<compile_context>
chip_gen: v7x
topology: tpu7x:2x2x1
jax: 0.10.0
libtpu: 0.0.40
codegen_flags: <defaults>
</compile_context>

<pallas_src>
import functools

import jax
import jax.numpy as jnp
from jax import lax
from jax.experimental import pallas as pl
from jax.experimental.pallas import tpu as pltpu


# ----------------------------------------------------------------------------
# Pallas kernel: fused im2col Conv + bias + ReLU (+ optional MaxPool)
# ----------------------------------------------------------------------------
def _conv_act_pool_kernel(x_ref, w_ref, b_ref, o_ref, xpad_ref, im2col_ref,
                          *rest, KH, KW, ph, pw, Ho, Wo, pool_h, pool_w):
    """One Conv(+folded BN)+ReLU(+MaxPool) layer for one batch element.

    x_ref     : (1, H, W, Cin)         bf16 input block (unpadded)
    w_ref     : (KH*KW*Cin, Cout)      bf16 weights, per-channel scale folded in
    b_ref     : (1, Cout)              f32 bias (conv bias or folded BN beta)
    o_ref     : (1, Hout, Wout, Cout)  bf16 output block
    xpad_ref  : (1, Hp, Wp, Cin)       f32 zero-padded input staging scratch
    im2col_ref: (Ho*Wo, KH*KW*Cin)     bf16 im2col operand scratch
    rest[0]   : (1, Ho, Wo, Cout)      f32 pooling stage scratch (pool layers)
    """
    nb, H, W, Cin = x_ref.shape
    Cout = o_ref.shape[-1]
    M = nb * Ho * Wo

    # ---- In-kernel zero padding (no wrapper-side jnp.pad / extra HBM pass).
    xpad_ref[...] = jnp.zeros(xpad_ref.shape, xpad_ref.dtype)
    xpad_ref[:, ph:ph + H, pw:pw + W, :] = x_ref[...].astype(jnp.float32)

    # ---- Build the (M, KH*KW*Cin) bf16 im2col operand once (static offsets).
    for i in range(KH):
        for j in range(KW):
            tap = i * KW + j
            xs = xpad_ref[:, i:i + Ho, j:j + Wo, :].reshape(M, Cin)
            im2col_ref[:, tap * Cin:(tap + 1) * Cin] = xs.astype(jnp.bfloat16)

    # ---- Single MXU matmul per layer: K = KH*KW*Cin, f32 accumulation.
    y = jnp.dot(im2col_ref[...], w_ref[...],
                preferred_element_type=jnp.float32)
    # Fused bias (conv bias or folded BN beta) + ReLU; f32 epilogue (v5e-safe).
    y = jnp.maximum(y + b_ref[...], 0.0).reshape(nb, Ho, Wo, Cout)

    # ---- Fused MaxPool epilogue (kernel == stride) via strided VMEM reads.
    if pool_h or pool_w:
        stage_ref = rest[0]
        Hh = Ho // 2 if pool_h else Ho
        stage_ref[...] = y
        if pool_h:
            y = jnp.maximum(stage_ref[:, pl.ds(0, Hh, 2), :, :],
                            stage_ref[:, pl.ds(1, Hh, 2), :, :])
        if pool_w:
            Wh = Wo // 2
            stage_ref[:, 0:Hh, :, :] = y            # reuse the same scratch
            y = jnp.maximum(stage_ref[:, 0:Hh, pl.ds(0, Wh, 2), :],
                            stage_ref[:, 0:Hh, pl.ds(1, Wh, 2), :])

    o_ref[...] = y.astype(o_ref.dtype)


# ----------------------------------------------------------------------------
# Wrapper around pallas_call (one fused layer)
# ----------------------------------------------------------------------------
def conv_bn_relu_pool(x, w, scale, bias, *, padding, pool=None):
    """x: (N,H,W,Cin) bf16/f32, w: (KH,KW,Cin,Cout) f32, scale/bias: (Cout,).

    pool: None, (2, 2) or (2, 1) -- MaxPool kernel==stride (PyTorch floor mode,
    exact at these even shapes).
    """
    N, H, W, Cin = x.shape
    KH, KW, _, Cout = w.shape
    ph, pw = padding
    Hp, Wp = H + 2 * ph, W + 2 * pw
    Ho, Wo = Hp - KH + 1, Wp - KW + 1

    pool_h = pool_w = False
    Hout, Wout = Ho, Wo
    if pool is not None:
        kh, kw = pool
        assert kh == 2 and kw in (1, 2) and Ho % 2 == 0
        pool_h, Hout = True, Ho // 2
        if kw == 2:
            assert Wo % 2 == 0
            pool_w, Wout = True, Wo // 2

    K = KH * KW * Cin
    # Fold the per-channel scale (identity or BN gamma/sqrt(var+eps)) into the
    # (K, Cout) bf16 weight matrix; bias stays as an f32 epilogue add.
    w2d = (w.reshape(K, Cout) * scale.reshape(1, Cout)).astype(jnp.bfloat16)
    b2 = bias.reshape(1, Cout).astype(jnp.float32)

    x = x.astype(jnp.bfloat16)                      # bf16 activations in HBM

    M = Ho * Wo                                     # per-sample im2col rows
    scratch = [
        pltpu.VMEM((1, Hp, Wp, Cin), jnp.float32),  # padded input stage
        pltpu.VMEM((M, K), jnp.bfloat16),           # im2col operand
    ]
    if pool_h or pool_w:
        scratch.append(pltpu.VMEM((1, Ho, Wo, Cout), jnp.float32))

    kernel = functools.partial(
        _conv_act_pool_kernel, KH=KH, KW=KW, ph=ph, pw=pw, Ho=Ho, Wo=Wo,
        pool_h=pool_h, pool_w=pool_w)

    cost = pl.CostEstimate(
        flops=2 * N * M * K * Cout,
        transcendentals=0,
        bytes_accessed=(N * H * W * Cin * 2 + K * Cout * 2 + Cout * 4
                        + N * Hout * Wout * Cout * 2))

    return pl.pallas_call(
        kernel,
        out_shape=jax.ShapeDtypeStruct((N, Hout, Wout, Cout), jnp.bfloat16),
        grid=(N,),
        in_specs=[
            pl.BlockSpec((1, H, W, Cin), lambda n: (n, 0, 0, 0)),
            pl.BlockSpec((K, Cout), lambda n: (0, 0)),
            pl.BlockSpec((1, Cout), lambda n: (0, 0)),
        ],
        out_specs=pl.BlockSpec((1, Hout, Wout, Cout), lambda n: (n, 0, 0, 0)),
        scratch_shapes=scratch,
        compiler_params=pltpu.CompilerParams(
            dimension_semantics=("parallel",),
            vmem_limit_bytes=32 * 1024 * 1024),
        cost_estimate=cost,
    )(x, w2d, b2)


# ----------------------------------------------------------------------------
# Parameter construction (deterministic, synthetic)
# ----------------------------------------------------------------------------
def init_params(key, input_channel, output_channel):
    oc = [output_channel // 8, output_channel // 4,
          output_channel // 2, output_channel]
    # (cin, cout, ksize, has_bias, has_bn)
    layer_cfg = [
        (input_channel, oc[0], 3, True, False),
        (oc[0], oc[1], 3, True, False),
        (oc[1], oc[2], 3, True, False),
        (oc[2], oc[2], 3, True, False),
        (oc[2], oc[3], 3, False, True),
        (oc[3], oc[3], 3, False, True),
        (oc[3], oc[3], 2, True, False),
    ]
    eps = 1e-5
    params = []
    for idx, (cin, cout, k, has_bias, has_bn) in enumerate(layer_cfg):
        kw_, kb_, kg_, kbe_ = jax.random.split(jax.random.fold_in(key, idx), 4)
        w = 0.05 * jax.random.normal(kw_, (k, k, cin, cout), jnp.float32)
        if has_bn:
            # Folded eval-mode BatchNorm: running_mean=0, running_var=1.
            gamma = 1.0 + 0.1 * jax.random.normal(kg_, (cout,), jnp.float32)
            beta = 0.1 * jax.random.normal(kbe_, (cout,), jnp.float32)
            running_mean = jnp.zeros((cout,), jnp.float32)
            running_var = jnp.ones((cout,), jnp.float32)
            scale = gamma / jnp.sqrt(running_var + eps)
            bias = beta - running_mean * scale
        else:
            scale = jnp.ones((cout,), jnp.float32)
            bias = (0.05 * jax.random.normal(kb_, (cout,), jnp.float32)
                    if has_bias else jnp.zeros((cout,), jnp.float32))
        params.append({"w": w, "scale": scale, "bias": bias})
    return params


# ----------------------------------------------------------------------------
# Forward pass (mirrors nn.Sequential in VGG_FeatureExtractor.forward)
# ----------------------------------------------------------------------------
def vgg_feature_extractor(x_nchw, params):
    x = jnp.transpose(x_nchw, (0, 2, 3, 1)).astype(jnp.bfloat16)  # NCHW->NHWC
    p = params
    x = conv_bn_relu_pool(x, p[0]["w"], p[0]["scale"], p[0]["bias"],
                          padding=(1, 1), pool=(2, 2))
    x = conv_bn_relu_pool(x, p[1]["w"], p[1]["scale"], p[1]["bias"],
                          padding=(1, 1), pool=(2, 2))
    x = conv_bn_relu_pool(x, p[2]["w"], p[2]["scale"], p[2]["bias"],
                          padding=(1, 1))
    x = conv_bn_relu_pool(x, p[3]["w"], p[3]["scale"], p[3]["bias"],
                          padding=(1, 1), pool=(2, 1))
    x = conv_bn_relu_pool(x, p[4]["w"], p[4]["scale"], p[4]["bias"],
                          padding=(1, 1))
    x = conv_bn_relu_pool(x, p[5]["w"], p[5]["scale"], p[5]["bias"],
                          padding=(1, 1), pool=(2, 1))
    x = conv_bn_relu_pool(x, p[6]["w"], p[6]["scale"], p[6]["bias"],
                          padding=(0, 0))
    return jnp.transpose(x, (0, 3, 1, 2)).astype(jnp.float32)  # NHWC -> NCHW


# ----------------------------------------------------------------------------
# Pure-JAX reference (for a sanity check only)
# ----------------------------------------------------------------------------
def _ref_conv(x, w, scale, bias, pad):
    y = lax.conv_general_dilated(
        x, w, window_strides=(1, 1), padding=[(pad, pad), (pad, pad)],
        dimension_numbers=("NHWC", "HWIO", "NHWC"),
        precision=lax.Precision.HIGHEST,
    )
    y = y * scale.reshape(1, 1, 1, -1) + bias.reshape(1, 1, 1, -1)
    return jnp.maximum(y, 0.0)


def _ref_pool(x, k, s):
    return lax.reduce_window(x, -jnp.inf, lax.max,
                             (1, k[0], k[1], 1), (1, s[0], s[1], 1), "VALID")


def vgg_feature_extractor_ref(x_nchw, params):
    x = jnp.transpose(x_nchw, (0, 2, 3, 1))
    p = params
    x = _ref_conv(x, p[0]["w"], p[0]["scale"], p[0]["bias"], 1)
    x = _ref_pool(x, (2, 2), (2, 2))
    x = _ref_conv(x, p[1]["w"], p[1]["scale"], p[1]["bias"], 1)
    x = _ref_pool(x, (2, 2), (2, 2))
    x = _ref_conv(x, p[2]["w"], p[2]["scale"], p[2]["bias"], 1)
    x = _ref_conv(x, p[3]["w"], p[3]["scale"], p[3]["bias"], 1)
    x = _ref_pool(x, (2, 1), (2, 1))
    x = _ref_conv(x, p[4]["w"], p[4]["scale"], p[4]["bias"], 1)
    x = _ref_conv(x, p[5]["w"], p[5]["scale"], p[5]["bias"], 1)
    x = _ref_pool(x, (2, 1), (2, 1))
    x = _ref_conv(x, p[6]["w"], p[6]["scale"], p[6]["bias"], 0)
    return jnp.transpose(x, (0, 3, 1, 2))


# ----------------------------------------------------------------------------
if __name__ == "__main__":
    key = jax.random.PRNGKey(0)
    k_in, k_par = jax.random.split(key)

    # Small shapes: batch=2, input_channel=4, H=32, W=16, output_channel=64
    # -> channel progression [8, 16, 32, 64], output (2, 64, 1, 3).
    batch, input_channel, H, W = 2, 4, 32, 16
    output_channel = 64

    x = jax.random.normal(k_in, (batch, input_channel, H, W), jnp.float32)
    params = init_params(k_par, input_channel, output_channel)

    out = jax.jit(vgg_feature_extractor)(x, params)
    out = jax.block_until_ready(out)

    ref = jax.block_until_ready(vgg_feature_extractor_ref(x, params))
    assert out.shape == (batch, output_channel, 1, W // 4 - 1), out.shape
    # Tolerance reflects bf16 MXU operands AND bf16 inter-layer activations
    # (f32 accumulation / epilogue), per the performance review.
    max_err = float(jnp.max(jnp.abs(out - ref)))
    assert jnp.allclose(out, ref, atol=4e-2, rtol=5e-2), max_err

    print("KERNEL_OK")
</pallas_src>

<mosaic_0001>
module attributes {stable_mosaic.version = 11 : i64} {
  func.func @_conv_act_pool_kernel(%arg0: i32, %arg1: memref<1x32x16x4xbf16, #tpu.memory_space<vmem>>, %arg2: memref<36x8xbf16, #tpu.memory_space<vmem>>, %arg3: memref<1x8xf32, #tpu.memory_space<vmem>>, %arg4: memref<1x16x8x8xbf16, #tpu.memory_space<vmem>>, %arg5: memref<1x34x18x4xf32, #tpu.memory_space<vmem>>, %arg6: memref<512x36xbf16, #tpu.memory_space<vmem>>, %arg7: memref<1x32x16x8xf32, #tpu.memory_space<vmem>>) attributes {dimension_semantics = [#tpu.dimension_semantics<parallel>], iteration_bounds = array<i64: 2>, scalar_prefetch = 0 : i64, scratch_operands = 3 : i64, tpu.core_type = #tpu.core_type<tc>, window_params = [{transform_indices = @transform_0, window_bounds = array<i64: 1, 32, 16, 4>}, {pipeline_mode = #tpu.pipeline_mode<synchronous>, transform_indices = @transform_1, window_bounds = array<i64: 36, 8>}, {pipeline_mode = #tpu.pipeline_mode<synchronous>, transform_indices = @transform_2, window_bounds = array<i64: 1, 8>}, {transform_indices = @transform_3, window_bounds = array<i64: 1, 16, 8, 8>}]} {
    %cst = arith.constant 0.000000e+00 : f32
    %0 = vector.broadcast %cst : f32 to vector<1x34x18x4xf32>
    %c0 = arith.constant 0 : index
    %c0_0 = arith.constant 0 : index
    %c0_1 = arith.constant 0 : index
    %c0_2 = arith.constant 0 : index
    %1 = vector.load %arg5[%c0, %c0_0, %c0_1, %c0_2] : memref<1x34x18x4xf32, #tpu.memory_space<vmem>>, vector<1x34x18x4xf32>
    tpu.vector_store %arg5[%c0, %c0_0, %c0_1, %c0_2], %0 {strides = array<i32>} : memref<1x34x18x4xf32, #tpu.memory_space<vmem>>, vector<1x34x18x4xf32>,
    %c0_3 = arith.constant 0 : index
    %c0_4 = arith.constant 0 : index
    %c0_5 = arith.constant 0 : index
    %c0_6 = arith.constant 0 : index
    %2 = vector.load %arg1[%c0_3, %c0_4, %c0_5, %c0_6] : memref<1x32x16x4xbf16, #tpu.memory_space<vmem>>, vector<1x32x16x4xbf16>
    %3 = arith.extf %2 : vector<1x32x16x4xbf16> to vector<1x32x16x4xf32>
    %c0_7 = arith.constant 0 : index
    %c1 = arith.constant 1 : index
    %c1_8 = arith.constant 1 : index
    %c0_9 = arith.constant 0 : index
    %4 = vector.load %arg5[%c0_7, %c1, %c1_8, %c0_9] : memref<1x34x18x4xf32, #tpu.memory_space<vmem>>, vector<1x32x16x4xf32>
    tpu.vector_store %arg5[%c0_7, %c1, %c1_8, %c0_9], %3 {strides = array<i32>} : memref<1x34x18x4xf32, #tpu.memory_space<vmem>>, vector<1x32x16x4xf32>,
    %c0_10 = arith.constant 0 : index
    %c0_11 = arith.constant 0 : index
    %c0_12 = arith.constant 0 : index
    %c0_13 = arith.constant 0 : index
    %5 = vector.load %arg5[%c0_10, %c0_11, %c0_12, %c0_13] : memref<1x34x18x4xf32, #tpu.memory_space<vmem>>, vector<1x32x16x4xf32>
    %6 = vector.shape_cast %5 : vector<1x32x16x4xf32> to vector<512x4xf32>
    %7 = arith.truncf %6 : vector<512x4xf32> to vector<512x4xbf16>
    %c0_14 = arith.constant 0 : index
    %c0_15 = arith.constant 0 : index
    %8 = vector.load %arg6[%c0_14, %c0_15] : memref<512x36xbf16, #tpu.memory_space<vmem>>, vector<512x4xbf16>
    tpu.vector_store %arg6[%c0_14, %c0_15], %7 {strides = array<i32>} : memref<512x36xbf16, #tpu.memory_space<vmem>>, vector<512x4xbf16>,
    %c0_16 = arith.constant 0 : index
    %c0_17 = arith.constant 0 : index
    %c1_18 = arith.constant 1 : index
    %c0_19 = arith.constant 0 : index
    %9 = vector.load %arg5[%c0_16, %c0_17, %c1_18, %c0_19] : memref<1x34x18x4xf32, #tpu.memory_space<vmem>>, vector<1x32x16x4xf32>
    %10 = vector.shape_cast %9 : vector<1x32x16x4xf32> to vector<512x4xf32>
    %11 = arith.truncf %10 : vector<512x4xf32> to vector<512x4xbf16>
    %c0_20 = arith.constant 0 : index
    %c4 = arith.constant 4 : index
    %12 = vector.load %arg6[%c0_20, %c4] : memref<512x36xbf16, #tpu.memory_space<vmem>>, vector<512x4xbf16>
    tpu.vector_store %arg6[%c0_20, %c4], %11 {strides = array<i32>} : memref<512x36xbf16, #tpu.memory_space<vmem>>, vector<512x4xbf16>,
    %c0_21 = arith.constant 0 : index
    %c0_22 = arith.constant 0 : index
    %c2 = arith.constant 2 : index
    %c0_23 = arith.constant 0 : index
    %13 = vector.load %arg5[%c0_21, %c0_22, %c2, %c0_23] : memref<1x34x18x4xf32, #tpu.memory_space<vmem>>, vector<1x32x16x4xf32>
    %14 = vector.shape_cast %13 : vector<1x32x16x4xf32> to vector<512x4xf32>
    %15 = arith.truncf %14 : vector<512x4xf32> to vector<512x4xbf16>
    %c0_24 = arith.constant 0 : index
    %c8 = arith.constant 8 : index
    %16 = vector.load %arg6[%c0_24, %c8] : memref<512x36xbf16, #tpu.memory_space<vmem>>, vector<512x4xbf16>
    tpu.vector_store %arg6[%c0_24, %c8], %15 {strides = array<i32>} : memref<512x36xbf16, #tpu.memory_space<vmem>>, vector<512x4xbf16>,
    %c0_25 = arith.constant 0 : index
    %c1_26 = arith.constant 1 : index
    %c0_27 = arith.constant 0 : index
    %c0_28 = arith.constant 0 : index
    %17 = vector.load %arg5[%c0_25, %c1_26, %c0_27, %c0_28] : memref<1x34x18x4xf32, #tpu.memory_space<vmem>>, vector<1x32x16x4xf32>
    %18 = vector.shape_cast %17 : vector<1x32x16x4xf32> to vector<512x4xf32>
    %19 = arith.truncf %18 : vector<512x4xf32> to vector<512x4xbf16>
    %c0_29 = arith.constant 0 : index
    %c12 = arith.constant 12 : index
    %20 = vector.load %arg6[%c0_29, %c12] : memref<512x36xbf16, #tpu.memory_space<vmem>>, vector<512x4xbf16>
    tpu.vector_store %arg6[%c0_29, %c12], %19 {strides = array<i32>} : memref<512x36xbf16, #tpu.memory_space<vmem>>, vector<512x4xbf16>,
    %c0_30 = arith.constant 0 : index
    %c1_31 = arith.constant 1 : index
    %c1_32 = arith.constant 1 : index
    %c0_33 = arith.constant 0 : index
    %21 = vector.load %arg5[%c0_30, %c1_31, %c1_32, %c0_33] : memref<1x34x18x4xf32, #tpu.memory_space<vmem>>, vector<1x32x16x4xf32>
    %22 = vector.shape_cast %21 : vector<1x32x16x4xf32> to vector<512x4xf32>
    %23 = arith.truncf %22 : vector<512x4xf32> to vector<512x4xbf16>
    %c0_34 = arith.constant 0 : index
    %c16 = arith.constant 16 : index
    %24 = vector.load %arg6[%c0_34, %c16] : memref<512x36xbf16, #tpu.memory_space<vmem>>, vector<512x4xbf16>
    tpu.vector_store %arg6[%c0_34, %c16], %23 {strides = array<i32>} : memref<512x36xbf16, #tpu.memory_space<vmem>>, vector<512x4xbf16>,
    %c0_35 = arith.constant 0 : index
    %c1_36 = arith.constant 1 : index
    %c2_37 = arith.constant 2 : index
    %c0_38 = arith.constant 0 : index
    %25 = vector.load %arg5[%c0_35, %c1_36, %c2_37, %c0_38] : memref<1x34x18x4xf32, #tpu.memory_space<vmem>>, vector<1x32x16x4xf32>
    %26 = vector.shape_cast %25 : vector<1x32x16x4xf32> to vector<512x4xf32>
    %27 = arith.truncf %26 : vector<512x4xf32> to vector<512x4xbf16>
    %c0_39 = arith.constant 0 : index
    %c20 = arith.constant 20 : index
    %28 = vector.load %arg6[%c0_39, %c20] : memref<512x36xbf16, #tpu.memory_space<vmem>>, vector<512x4xbf16>
    tpu.vector_store %arg6[%c0_39, %c20], %27 {strides = array<i32>} : memref<512x36xbf16, #tpu.memory_space<vmem>>, vector<512x4xbf16>,
    %c0_40 = arith.constant 0 : index
    %c2_41 = arith.constant 2 : index
    %c0_42 = arith.constant 0 : index
    %c0_43 = arith.constant 0 : index
    %29 = vector.load %arg5[%c0_40, %c2_41, %c0_42, %c0_43] : memref<1x34x18x4xf32, #tpu.memory_space<vmem>>, vector<1x32x16x4xf32>
    %30 = vector.shape_cast %29 : vector<1x32x16x4xf32> to vector<512x4xf32>
    %31 = arith.truncf %30 : vector<512x4xf32> to vector<512x4xbf16>
    %c0_44 = arith.constant 0 : index
    %c24 = arith.constant 24 : index
    %32 = vector.load %arg6[%c0_44, %c24] : memref<512x36xbf16, #tpu.memory_space<vmem>>, vector<512x4xbf16>
    tpu.vector_store %arg6[%c0_44, %c24], %31 {strides = array<i32>} : memref<512x36xbf16, #tpu.memory_space<vmem>>, vector<512x4xbf16>,
    %c0_45 = arith.constant 0 : index
    %c2_46 = arith.constant 2 : index
    %c1_47 = arith.constant 1 : index
    %c0_48 = arith.constant 0 : index
    %33 = vector.load %arg5[%c0_45, %c2_46, %c1_47, %c0_48] : memref<1x34x18x4xf32, #tpu.memory_space<vmem>>, vector<1x32x16x4xf32>
    %34 = vector.shape_cast %33 : vector<1x32x16x4xf32> to vector<512x4xf32>
    %35 = arith.truncf %34 : vector<512x4xf32> to vector<512x4xbf16>
    %c0_49 = arith.constant 0 : index
    %c28 = arith.constant 28 : index
    %36 = vector.load %arg6[%c0_49, %c28] : memref<512x36xbf16, #tpu.memory_space<vmem>>, vector<512x4xbf16>
    tpu.vector_store %arg6[%c0_49, %c28], %35 {strides = array<i32>} : memref<512x36xbf16, #tpu.memory_space<vmem>>, vector<512x4xbf16>,
    %c0_50 = arith.constant 0 : index
    %c2_51 = arith.constant 2 : index
    %c2_52 = arith.constant 2 : index
    %c0_53 = arith.constant 0 : index
    %37 = vector.load %arg5[%c0_50, %c2_51, %c2_52, %c0_53] : memref<1x34x18x4xf32, #tpu.memory_space<vmem>>, vector<1x32x16x4xf32>
    %38 = vector.shape_cast %37 : vector<1x32x16x4xf32> to vector<512x4xf32>
    %39 = arith.truncf %38 : vector<512x4xf32> to vector<512x4xbf16>
    %c0_54 = arith.constant 0 : index
    %c32 = arith.constant 32 : index
    %40 = vector.load %arg6[%c0_54, %c32] : memref<512x36xbf16, #tpu.memory_space<vmem>>, vector<512x4xbf16>
    tpu.vector_store %arg6[%c0_54, %c32], %39 {strides = array<i32>} : memref<512x36xbf16, #tpu.memory_space<vmem>>, vector<512x4xbf16>,
    %c0_55 = arith.constant 0 : index
    %c0_56 = arith.constant 0 : index
    %41 = vector.load %arg6[%c0_55, %c0_56] : memref<512x36xbf16, #tpu.memory_space<vmem>>, vector<512x36xbf16>
    %c0_57 = arith.constant 0 : index
    %c0_58 = arith.constant 0 : index
    %42 = vector.load %arg2[%c0_57, %c0_58] : memref<36x8xbf16, #tpu.memory_space<vmem>>, vector<36x8xbf16>
    %cst_59 = arith.constant dense<0.000000e+00> : vector<512x8xf32>
    %43 = tpu.matmul %41, %42, %cst_59 {dimension_numbers = #tpu.dot_dimension_numbers<[1], [0], [0], [1], [0, 0, 1, 1], [], []>} : vector<512x36xbf16>, vector<36x8xbf16>, vector<512x8xf32> -> vector<512x8xf32>
    %c0_60 = arith.constant 0 : index
    %c0_61 = arith.constant 0 : index
    %44 = vector.load %arg3[%c0_60, %c0_61] : memref<1x8xf32, #tpu.memory_space<vmem>>, vector<1x8xf32>
    %45 = vector.broadcast %44 : vector<1x8xf32> to vector<512x8xf32>
    %46 = arith.addf %43, %45 : vector<512x8xf32>
    %cst_62 = arith.constant 0.000000e+00 : f32
    %47 = vector.broadcast %cst_62 : f32 to vector<512x8xf32>
    %48 = arith.maximumf %46, %47 : vector<512x8xf32>
    %49 = vector.shape_cast %48 : vector<512x8xf32> to vector<1x32x16x8xf32>
    %c0_63 = arith.constant 0 : index
    %c0_64 = arith.constant 0 : index
    %c0_65 = arith.constant 0 : index
    %c0_66 = arith.constant 0 : index
    %50 = vector.load %arg7[%c0_63, %c0_64, %c0_65, %c0_66] : memref<1x32x16x8xf32, #tpu.memory_space<vmem>>, vector<1x32x16x8xf32>
    tpu.vector_store %arg7[%c0_63, %c0_64, %c0_65, %c0_66], %49 {strides = array<i32>} : memref<1x32x16x8xf32, #tpu.memory_space<vmem>>, vector<1x32x16x8xf32>,
    %c0_67 = arith.constant 0 : index
    %c0_68 = arith.constant 0 : index
    %c0_69 = arith.constant 0 : index
    %c0_70 = arith.constant 0 : index
    %51 = tpu.strided_load %arg7[%c0_67, %c0_68, %c0_69, %c0_70] {strides = array<i32: 1, 2, 1, 1>} : memref<1x32x16x8xf32, #tpu.memory_space<vmem>>, vector<1x16x16x8xf32>
    %c0_71 = arith.constant 0 : index
    %c1_72 = arith.constant 1 : index
    %c0_73 = arith.constant 0 : index
    %c0_74 = arith.constant 0 : index
    %52 = tpu.strided_load %arg7[%c0_71, %c1_72, %c0_73, %c0_74] {strides = array<i32: 1, 2, 1, 1>} : memref<1x32x16x8xf32, #tpu.memory_space<vmem>>, vector<1x16x16x8xf32>
    %53 = arith.maximumf %51, %52 : vector<1x16x16x8xf32>
    %c0_75 = arith.constant 0 : index
    %c0_76 = arith.constant 0 : index
    %c0_77 = arith.constant 0 : index
    %c0_78 = arith.constant 0 : index
    %54 = vector.load %arg7[%c0_75, %c0_76, %c0_77, %c0_78] : memref<1x32x16x8xf32, #tpu.memory_space<vmem>>, vector<1x16x16x8xf32>
    tpu.vector_store %arg7[%c0_75, %c0_76, %c0_77, %c0_78], %53 {strides = array<i32>} : memref<1x32x16x8xf32, #tpu.memory_space<vmem>>, vector<1x16x16x8xf32>,
    %c0_79 = arith.constant 0 : index
    %c0_80 = arith.constant 0 : index
    %c0_81 = arith.constant 0 : index
    %c0_82 = arith.constant 0 : index
    %55 = tpu.strided_load %arg7[%c0_79, %c0_80, %c0_81, %c0_82] {strides = array<i32: 1, 1, 2, 1>} : memref<1x32x16x8xf32, #tpu.memory_space<vmem>>, vector<1x16x8x8xf32>
    %c0_83 = arith.constant 0 : index
    %c0_84 = arith.constant 0 : index
    %c1_85 = arith.constant 1 : index
    %c0_86 = arith.constant 0 : index
    %56 = tpu.strided_load %arg7[%c0_83, %c0_84, %c1_85, %c0_86] {strides = array<i32: 1, 1, 2, 1>} : memref<1x32x16x8xf32, #tpu.memory_space<vmem>>, vector<1x16x8x8xf32>
    %57 = arith.maximumf %55, %56 : vector<1x16x8x8xf32>
    %58 = arith.truncf %57 : vector<1x16x8x8xf32> to vector<1x16x8x8xbf16>
    %c0_87 = arith.constant 0 : index
    %c0_88 = arith.constant 0 : index
    %c0_89 = arith.constant 0 : index
    %c0_90 = arith.constant 0 : index
    %59 = vector.load %arg4[%c0_87, %c0_88, %c0_89, %c0_90] : memref<1x16x8x8xbf16, #tpu.memory_space<vmem>>, vector<1x16x8x8xbf16>
    tpu.vector_store %arg4[%c0_87, %c0_88, %c0_89, %c0_90], %58 {strides = array<i32>} : memref<1x16x8x8xbf16, #tpu.memory_space<vmem>>, vector<1x16x8x8xbf16>,
    return
  }
  func.func @transform_0(%arg0: i32) -> (i32, i32, i32, i32) {
    %c0_i32 = arith.constant 0 : i32
    %c0_i32_0 = arith.constant 0 : i32
    %c0_i32_1 = arith.constant 0 : i32
    %c0_i32_2 = arith.constant 0 : i32
    return %arg0, %c0_i32, %c0_i32_0, %c0_i32_1 : i32, i32, i32, i32
  }
  func.func @transform_1(%arg0: i32) -> (i32, i32) {
    %c0_i32 = arith.constant 0 : i32
    %c0_i32_0 = arith.constant 0 : i32
    %c0_i32_1 = arith.constant 0 : i32
    return %c0_i32, %c0_i32_0 : i32, i32
  }
  func.func @transform_2(%arg0: i32) -> (i32, i32) {
    %c0_i32 = arith.constant 0 : i32
    %c0_i32_0 = arith.constant 0 : i32
    %c0_i32_1 = arith.constant 0 : i32
    return %c0_i32, %c0_i32_0 : i32, i32
  }
  func.func @transform_3(%arg0: i32) -> (i32, i32, i32, i32) {
    %c0_i32 = arith.constant 0 : i32
    %c0_i32_0 = arith.constant 0 : i32
    %c0_i32_1 = arith.constant 0 : i32
    %c0_i32_2 = arith.constant 0 : i32
    return %arg0, %c0_i32, %c0_i32_0, %c0_i32_1 : i32, i32, i32, i32
  }
}

module attributes {stable_mosaic.version = 11 : i64} {
  func.func @_conv_act_pool_kernel(%arg0: i32, %arg1: memref<1x16x8x8xbf16, #tpu.memory_space<vmem>>, %arg2: memref<72x16xbf16, #tpu.memory_space<vmem>>, %arg3: memref<1x16xf32, #tpu.memory_space<vmem>>, %arg4: memref<1x8x4x16xbf16, #tpu.memory_space<vmem>>, %arg5: memref<1x18x10x8xf32, #tpu.memory_space<vmem>>, %arg6: memref<128x72xbf16, #tpu.memory_space<vmem>>, %arg7: memref<1x16x8x16xf32, #tpu.memory_space<vmem>>) attributes {dimension_semantics = [#tpu.dimension_semantics<parallel>], iteration_bounds = array<i64: 2>, scalar_prefetch = 0 : i64, scratch_operands = 3 : i64, tpu.core_type = #tpu.core_type<tc>, window_params = [{transform_indices = @transform_0, window_bounds = array<i64: 1, 16, 8, 8>}, {pipeline_mode = #tpu.pipeline_mode<synchronous>, transform_indices = @transform_1, window_bounds = array<i64: 72, 16>}, {pipeline_mode = #tpu.pipeline_mode<synchronous>, transform_indices = @transform_2, window_bounds = array<i64: 1, 16>}, {transform_indices = @transform_3, window_bounds = array<i64: 1, 8, 4, 16>}]} {
    %cst = arith.constant 0.000000e+00 : f32
    %0 = vector.broadcast %cst : f32 to vector<1x18x10x8xf32>
    %c0 = arith.constant 0 : index
    %c0_0 = arith.constant 0 : index
    %c0_1 = arith.constant 0 : index
    %c0_2 = arith.constant 0 : index
    %1 = vector.load %arg5[%c0, %c0_0, %c0_1, %c0_2] : memref<1x18x10x8xf32, #tpu.memory_space<vmem>>, vector<1x18x10x8xf32>
    tpu.vector_store %arg5[%c0, %c0_0, %c0_1, %c0_2], %0 {strides = array<i32>} : memref<1x18x10x8xf32, #tpu.memory_space<vmem>>, vector<1x18x10x8xf32>,
    %c0_3 = arith.constant 0 : index
    %c0_4 = arith.constant 0 : index
    %c0_5 = arith.constant 0 : index
    %c0_6 = arith.constant 0 : index
    %2 = vector.load %arg1[%c0_3, %c0_4, %c0_5, %c0_6] : memref<1x16x8x8xbf16, #tpu.memory_space<vmem>>, vector<1x16x8x8xbf16>
    %3 = arith.extf %2 : vector<1x16x8x8xbf16> to vector<1x16x8x8xf32>
    %c0_7 = arith.constant 0 : index
    %c1 = arith.constant 1 : index
    %c1_8 = arith.constant 1 : index
    %c0_9 = arith.constant 0 : index
    %4 = vector.load %arg5[%c0_7, %c1, %c1_8, %c0_9] : memref<1x18x10x8xf32, #tpu.memory_space<vmem>>, vector<1x16x8x8xf32>
    tpu.vector_store %arg5[%c0_7, %c1, %c1_8, %c0_9], %3 {strides = array<i32>} : memref<1x18x10x8xf32, #tpu.memory_space<vmem>>, vector<1x16x8x8xf32>,
    %c0_10 = arith.constant 0 : index
    %c0_11 = arith.constant 0 : index
    %c0_12 = arith.constant 0 : index
    %c0_13 = arith.constant 0 : index
    %5 = vector.load %arg5[%c0_10, %c0_11, %c0_12, %c0_13] : memref<1x18x10x8xf32, #tpu.memory_space<vmem>>, vector<1x16x8x8xf32>
    %6 = vector.shape_cast %5 : vector<1x16x8x8xf32> to vector<128x8xf32>
    %7 = arith.truncf %6 : vector<128x8xf32> to vector<128x8xbf16>
    %c0_14 = arith.constant 0 : index
    %c0_15 = arith.constant 0 : index
    %8 = vector.load %arg6[%c0_14, %c0_15] : memref<128x72xbf16, #tpu.memory_space<vmem>>, vector<128x8xbf16>
    tpu.vector_store %arg6[%c0_14, %c0_15], %7 {strides = array<i32>} : memref<128x72xbf16, #tpu.memory_space<vmem>>, vector<128x8xbf16>,
    %c0_16 = arith.constant 0 : index
    %c0_17 = arith.constant 0 : index
    %c1_18 = arith.constant 1 : index
    %c0_19 = arith.constant 0 : index
    %9 = vector.load %arg5[%c0_16, %c0_17, %c1_18, %c0_19] : memref<1x18x10x8xf32, #tpu.memory_space<vmem>>, vector<1x16x8x8xf32>
    %10 = vector.shape_cast %9 : vector<1x16x8x8xf32> to vector<128x8xf32>
    %11 = arith.truncf %10 : vector<128x8xf32> to vector<128x8xbf16>
    %c0_20 = arith.constant 0 : index
    %c8 = arith.constant 8 : index
    %12 = vector.load %arg6[%c0_20, %c8] : memref<128x72xbf16, #tpu.memory_space<vmem>>, vector<128x8xbf16>
    tpu.vector_store %arg6[%c0_20, %c8], %11 {strides = array<i32>} : memref<128x72xbf16, #tpu.memory_space<vmem>>, vector<128x8xbf16>,
    %c0_21 = arith.constant 0 : index
    %c0_22 = arith.constant 0 : index
    %c2 = arith.constant 2 : index
    %c0_23 = arith.constant 0 : index
    %13 = vector.load %arg5[%c0_21, %c0_22, %c2, %c0_23] : memref<1x18x10x8xf32, #tpu.memory_space<vmem>>, vector<1x16x8x8xf32>
    %14 = vector.shape_cast %13 : vector<1x16x8x8xf32> to vector<128x8xf32>
    %15 = arith.truncf %14 : vector<128x8xf32> to vector<128x8xbf16>
    %c0_24 = arith.constant 0 : index
    %c16 = arith.constant 16 : index
    %16 = vector.load %arg6[%c0_24, %c16] : memref<128x72xbf16, #tpu.memory_space<vmem>>, vector<128x8xbf16>
    tpu.vector_store %arg6[%c0_24, %c16], %15 {strides = array<i32>} : memref<128x72xbf16, #tpu.memory_space<vmem>>, vector<128x8xbf16>,
    %c0_25 = arith.constant 0 : index
    %c1_26 = arith.constant 1 : index
    %c0_27 = arith.constant 0 : index
    %c0_28 = arith.constant 0 : index
    %17 = vector.load %arg5[%c0_25, %c1_26, %c0_27, %c0_28] : memref<1x18x10x8xf32, #tpu.memory_space<vmem>>, vector<1x16x8x8xf32>
    %18 = vector.shape_cast %17 : vector<1x16x8x8xf32> to vector<128x8xf32>
    %19 = arith.truncf %18 : vector<128x8xf32> to vector<128x8xbf16>
    %c0_29 = arith.constant 0 : index
    %c24 = arith.constant 24 : index
    %20 = vector.load %arg6[%c0_29, %c24] : memref<128x72xbf16, #tpu.memory_space<vmem>>, vector<128x8xbf16>
    tpu.vector_store %arg6[%c0_29, %c24], %19 {strides = array<i32>} : memref<128x72xbf16, #tpu.memory_space<vmem>>, vector<128x8xbf16>,
    %c0_30 = arith.constant 0 : index
    %c1_31 = arith.constant 1 : index
    %c1_32 = arith.constant 1 : index
    %c0_33 = arith.constant 0 : index
    %21 = vector.load %arg5[%c0_30, %c1_31, %c1_32, %c0_33] : memref<1x18x10x8xf32, #tpu.memory_space<vmem>>, vector<1x16x8x8xf32>
    %22 = vector.shape_cast %21 : vector<1x16x8x8xf32> to vector<128x8xf32>
    %23 = arith.truncf %22 : vector<128x8xf32> to vector<128x8xbf16>
    %c0_34 = arith.constant 0 : index
    %c32 = arith.constant 32 : index
    %24 = vector.load %arg6[%c0_34, %c32] : memref<128x72xbf16, #tpu.memory_space<vmem>>, vector<128x8xbf16>
    tpu.vector_store %arg6[%c0_34, %c32], %23 {strides = array<i32>} : memref<128x72xbf16, #tpu.memory_space<vmem>>, vector<128x8xbf16>,
    %c0_35 = arith.constant 0 : index
    %c1_36 = arith.constant 1 : index
    %c2_37 = arith.constant 2 : index
    %c0_38 = arith.constant 0 : index
    %25 = vector.load %arg5[%c0_35, %c1_36, %c2_37, %c0_38] : memref<1x18x10x8xf32, #tpu.memory_space<vmem>>, vector<1x16x8x8xf32>
    %26 = vector.shape_cast %25 : vector<1x16x8x8xf32> to vector<128x8xf32>
    %27 = arith.truncf %26 : vector<128x8xf32> to vector<128x8xbf16>
    %c0_39 = arith.constant 0 : index
    %c40 = arith.constant 40 : index
    %28 = vector.load %arg6[%c0_39, %c40] : memref<128x72xbf16, #tpu.memory_space<vmem>>, vector<128x8xbf16>
    tpu.vector_store %arg6[%c0_39, %c40], %27 {strides = array<i32>} : memref<128x72xbf16, #tpu.memory_space<vmem>>, vector<128x8xbf16>,
    %c0_40 = arith.constant 0 : index
    %c2_41 = arith.constant 2 : index
    %c0_42 = arith.constant 0 : index
    %c0_43 = arith.constant 0 : index
    %29 = vector.load %arg5[%c0_40, %c2_41, %c0_42, %c0_43] : memref<1x18x10x8xf32, #tpu.memory_space<vmem>>, vector<1x16x8x8xf32>
    %30 = vector.shape_cast %29 : vector<1x16x8x8xf32> to vector<128x8xf32>
    %31 = arith.truncf %30 : vector<128x8xf32> to vector<128x8xbf16>
    %c0_44 = arith.constant 0 : index
    %c48 = arith.constant 48 : index
    %32 = vector.load %arg6[%c0_44, %c48] : memref<128x72xbf16, #tpu.memory_space<vmem>>, vector<128x8xbf16>
    tpu.vector_store %arg6[%c0_44, %c48], %31 {strides = array<i32>} : memref<128x72xbf16, #tpu.memory_space<vmem>>, vector<128x8xbf16>,
    %c0_45 = arith.constant 0 : index
    %c2_46 = arith.constant 2 : index
    %c1_47 = arith.constant 1 : index
    %c0_48 = arith.constant 0 : index
    %33 = vector.load %arg5[%c0_45, %c2_46, %c1_47, %c0_48] : memref<1x18x10x8xf32, #tpu.memory_space<vmem>>, vector<1x16x8x8xf32>
    %34 = vector.shape_cast %33 : vector<1x16x8x8xf32> to vector<128x8xf32>
    %35 = arith.truncf %34 : vector<128x8xf32> to vector<128x8xbf16>
    %c0_49 = arith.constant 0 : index
    %c56 = arith.constant 56 : index
    %36 = vector.load %arg6[%c0_49, %c56] : memref<128x72xbf16, #tpu.memory_space<vmem>>, vector<128x8xbf16>
    tpu.vector_store %arg6[%c0_49, %c56], %35 {strides = array<i32>} : memref<128x72xbf16, #tpu.memory_space<vmem>>, vector<128x8xbf16>,
    %c0_50 = arith.constant 0 : index
    %c2_51 = arith.constant 2 : index
    %c2_52 = arith.constant 2 : index
    %c0_53 = arith.constant 0 : index
    %37 = vector.load %arg5[%c0_50, %c2_51, %c2_52, %c0_53] : memref<1x18x10x8xf32, #tpu.memory_space<vmem>>, vector<1x16x8x8xf32>
    %38 = vector.shape_cast %37 : vector<1x16x8x8xf32> to vector<128x8xf32>
    %39 = arith.truncf %38 : vector<128x8xf32> to vector<128x8xbf16>
    %c0_54 = arith.constant 0 : index
    %c64 = arith.constant 64 : index
    %40 = vector.load %arg6[%c0_54, %c64] : memref<128x72xbf16, #tpu.memory_space<vmem>>, vector<128x8xbf16>
    tpu.vector_store %arg6[%c0_54, %c64], %39 {strides = array<i32>} : memref<128x72xbf16, #tpu.memory_space<vmem>>, vector<128x8xbf16>,
    %c0_55 = arith.constant 0 : index
    %c0_56 = arith.constant 0 : index
    %41 = vector.load %arg6[%c0_55, %c0_56] : memref<128x72xbf16, #tpu.memory_space<vmem>>, vector<128x72xbf16>
    %c0_57 = arith.constant 0 : index
    %c0_58 = arith.constant 0 : index
    %42 = vector.load %arg2[%c0_57, %c0_58] : memref<72x16xbf16, #tpu.memory_space<vmem>>, vector<72x16xbf16>
    %cst_59 = arith.constant dense<0.000000e+00> : vector<128x16xf32>
    %43 = tpu.matmul %41, %42, %cst_59 {dimension_numbers = #tpu.dot_dimension_numbers<[1], [0], [0], [1], [0, 0, 1, 1], [], []>} : vector<128x72xbf16>, vector<72x16xbf16>, vector<128x16xf32> -> vector<128x16xf32>
    %c0_60 = arith.constant 0 : index
    %c0_61 = arith.constant 0 : index
    %44 = vector.load %arg3[%c0_60, %c0_61] : memref<1x16xf32, #tpu.memory_space<vmem>>, vector<1x16xf32>
    %45 = vector.broadcast %44 : vector<1x16xf32> to vector<128x16xf32>
    %46 = arith.addf %43, %45 : vector<128x16xf32>
    %cst_62 = arith.constant 0.000000e+00 : f32
    %47 = vector.broadcast %cst_62 : f32 to vector<128x16xf32>
    %48 = arith.maximumf %46, %47 : vector<128x16xf32>
    %49 = vector.shape_cast %48 : vector<128x16xf32> to vector<1x16x8x16xf32>
    %c0_63 = arith.constant 0 : index
    %c0_64 = arith.constant 0 : index
    %c0_65 = arith.constant 0 : index
    %c0_66 = arith.constant 0 : index
    %50 = vector.load %arg7[%c0_63, %c0_64, %c0_65, %c0_66] : memref<1x16x8x16xf32, #tpu.memory_space<vmem>>, vector<1x16x8x16xf32>
    tpu.vector_store %arg7[%c0_63, %c0_64, %c0_65, %c0_66], %49 {strides = array<i32>} : memref<1x16x8x16xf32, #tpu.memory_space<vmem>>, vector<1x16x8x16xf32>,
    %c0_67 = arith.constant 0 : index
    %c0_68 = arith.constant 0 : index
    %c0_69 = arith.constant 0 : index
    %c0_70 = arith.constant 0 : index
    %51 = tpu.strided_load %arg7[%c0_67, %c0_68, %c0_69, %c0_70] {strides = array<i32: 1, 2, 1, 1>} : memref<1x16x8x16xf32, #tpu.memory_space<vmem>>, vector<1x8x8x16xf32>
    %c0_71 = arith.constant 0 : index
    %c1_72 = arith.constant 1 : index
    %c0_73 = arith.constant 0 : index
    %c0_74 = arith.constant 0 : index
    %52 = tpu.strided_load %arg7[%c0_71, %c1_72, %c0_73, %c0_74] {strides = array<i32: 1, 2, 1, 1>} : memref<1x16x8x16xf32, #tpu.memory_space<vmem>>, vector<1x8x8x16xf32>
    %53 = arith.maximumf %51, %52 : vector<1x8x8x16xf32>
    %c0_75 = arith.constant 0 : index
    %c0_76 = arith.constant 0 : index
    %c0_77 = arith.constant 0 : index
    %c0_78 = arith.constant 0 : index
    %54 = vector.load %arg7[%c0_75, %c0_76, %c0_77, %c0_78] : memref<1x16x8x16xf32, #tpu.memory_space<vmem>>, vector<1x8x8x16xf32>
    tpu.vector_store %arg7[%c0_75, %c0_76, %c0_77, %c0_78], %53 {strides = array<i32>} : memref<1x16x8x16xf32, #tpu.memory_space<vmem>>, vector<1x8x8x16xf32>,
    %c0_79 = arith.constant 0 : index
    %c0_80 = arith.constant 0 : index
    %c0_81 = arith.constant 0 : index
    %c0_82 = arith.constant 0 : index
    %55 = tpu.strided_load %arg7[%c0_79, %c0_80, %c0_81, %c0_82] {strides = array<i32: 1, 1, 2, 1>} : memref<1x16x8x16xf32, #tpu.memory_space<vmem>>, vector<1x8x4x16xf32>
    %c0_83 = arith.constant 0 : index
    %c0_84 = arith.constant 0 : index
    %c1_85 = arith.constant 1 : index
    %c0_86 = arith.constant 0 : index
    %56 = tpu.strided_load %arg7[%c0_83, %c0_84, %c1_85, %c0_86] {strides = array<i32: 1, 1, 2, 1>} : memref<1x16x8x16xf32, #tpu.memory_space<vmem>>, vector<1x8x4x16xf32>
    %57 = arith.maximumf %55, %56 : vector<1x8x4x16xf32>
    %58 = arith.truncf %57 : vector<1x8x4x16xf32> to vector<1x8x4x16xbf16>
    %c0_87 = arith.constant 0 : index
    %c0_88 = arith.constant 0 : index
    %c0_89 = arith.constant 0 : index
    %c0_90 = arith.constant 0 : index
    %59 = vector.load %arg4[%c0_87, %c0_88, %c0_89, %c0_90] : memref<1x8x4x16xbf16, #tpu.memory_space<vmem>>, vector<1x8x4x16xbf16>
    tpu.vector_store %arg4[%c0_87, %c0_88, %c0_89, %c0_90], %58 {strides = array<i32>} : memref<1x8x4x16xbf16, #tpu.memory_space<vmem>>, vector<1x8x4x16xbf16>,
    return
  }
  func.func @transform_0(%arg0: i32) -> (i32, i32, i32, i32) {
    %c0_i32 = arith.constant 0 : i32
    %c0_i32_0 = arith.constant 0 : i32
    %c0_i32_1 = arith.constant 0 : i32
    %c0_i32_2 = arith.constant 0 : i32
    return %arg0, %c0_i32, %c0_i32_0, %c0_i32_1 : i32, i32, i32, i32
  }
  func.func @transform_1(%arg0: i32) -> (i32, i32) {
    %c0_i32 = arith.constant 0 : i32
    %c0_i32_0 = arith.constant 0 : i32
    %c0_i32_1 = arith.constant 0 : i32
    return %c0_i32, %c0_i32_0 : i32, i32
  }
  func.func @transform_2(%arg0: i32) -> (i32, i32) {
    %c0_i32 = arith.constant 0 : i32
    %c0_i32_0 = arith.constant 0 : i32
    %c0_i32_1 = arith.constant 0 : i32
    return %c0_i32, %c0_i32_0 : i32, i32
  }
  func.func @transform_3(%arg0: i32) -> (i32, i32, i32, i32) {
    %c0_i32 = arith.constant 0 : i32
    %c0_i32_0 = arith.constant 0 : i32
    %c0_i32_1 = arith.constant 0 : i32
    %c0_i32_2 = arith.constant 0 : i32
    return %arg0, %c0_i32, %c0_i32_0, %c0_i32_1 : i32, i32, i32, i32
  }
}

module attributes {stable_mosaic.version = 11 : i64} {
  func.func @_conv_act_pool_kernel(%arg0: i32, %arg1: memref<1x8x4x16xbf16, #tpu.memory_space<vmem>>, %arg2: memref<144x32xbf16, #tpu.memory_space<vmem>>, %arg3: memref<1x32xf32, #tpu.memory_space<vmem>>, %arg4: memref<1x8x4x32xbf16, #tpu.memory_space<vmem>>, %arg5: memref<1x10x6x16xf32, #tpu.memory_space<vmem>>, %arg6: memref<32x144xbf16, #tpu.memory_space<vmem>>) attributes {dimension_semantics = [#tpu.dimension_semantics<parallel>], iteration_bounds = array<i64: 2>, scalar_prefetch = 0 : i64, scratch_operands = 2 : i64, tpu.core_type = #tpu.core_type<tc>, window_params = [{transform_indices = @transform_0, window_bounds = array<i64: 1, 8, 4, 16>}, {pipeline_mode = #tpu.pipeline_mode<synchronous>, transform_indices = @transform_1, window_bounds = array<i64: 144, 32>}, {pipeline_mode = #tpu.pipeline_mode<synchronous>, transform_indices = @transform_2, window_bounds = array<i64: 1, 32>}, {transform_indices = @transform_3, window_bounds = array<i64: 1, 8, 4, 32>}]} {
    %cst = arith.constant 0.000000e+00 : f32
    %0 = vector.broadcast %cst : f32 to vector<1x10x6x16xf32>
    %c0 = arith.constant 0 : index
    %c0_0 = arith.constant 0 : index
    %c0_1 = arith.constant 0 : index
    %c0_2 = arith.constant 0 : index
    %1 = vector.load %arg5[%c0, %c0_0, %c0_1, %c0_2] : memref<1x10x6x16xf32, #tpu.memory_space<vmem>>, vector<1x10x6x16xf32>
    tpu.vector_store %arg5[%c0, %c0_0, %c0_1, %c0_2], %0 {strides = array<i32>} : memref<1x10x6x16xf32, #tpu.memory_space<vmem>>, vector<1x10x6x16xf32>,
    %c0_3 = arith.constant 0 : index
    %c0_4 = arith.constant 0 : index
    %c0_5 = arith.constant 0 : index
    %c0_6 = arith.constant 0 : index
    %2 = vector.load %arg1[%c0_3, %c0_4, %c0_5, %c0_6] : memref<1x8x4x16xbf16, #tpu.memory_space<vmem>>, vector<1x8x4x16xbf16>
    %3 = arith.extf %2 : vector<1x8x4x16xbf16> to vector<1x8x4x16xf32>
    %c0_7 = arith.constant 0 : index
    %c1 = arith.constant 1 : index
    %c1_8 = arith.constant 1 : index
    %c0_9 = arith.constant 0 : index
    %4 = vector.load %arg5[%c0_7, %c1, %c1_8, %c0_9] : memref<1x10x6x16xf32, #tpu.memory_space<vmem>>, vector<1x8x4x16xf32>
    tpu.vector_store %arg5[%c0_7, %c1, %c1_8, %c0_9], %3 {strides = array<i32>} : memref<1x10x6x16xf32, #tpu.memory_space<vmem>>, vector<1x8x4x16xf32>,
    %c0_10 = arith.constant 0 : index
    %c0_11 = arith.constant 0 : index
    %c0_12 = arith.constant 0 : index
    %c0_13 = arith.constant 0 : index
    %5 = vector.load %arg5[%c0_10, %c0_11, %c0_12, %c0_13] : memref<1x10x6x16xf32, #tpu.memory_space<vmem>>, vector<1x8x4x16xf32>
    %6 = vector.shape_cast %5 : vector<1x8x4x16xf32> to vector<32x16xf32>
    %7 = arith.truncf %6 : vector<32x16xf32> to vector<32x16xbf16>
    %c0_14 = arith.constant 0 : index
    %c0_15 = arith.constant 0 : index
    %8 = vector.load %arg6[%c0_14, %c0_15] : memref<32x144xbf16, #tpu.memory_space<vmem>>, vector<32x16xbf16>
    tpu.vector_store %arg6[%c0_14, %c0_15], %7 {strides = array<i32>} : memref<32x144xbf16, #tpu.memory_space<vmem>>, vector<32x16xbf16>,
    %c0_16 = arith.constant 0 : index
    %c0_17 = arith.constant 0 : index
    %c1_18 = arith.constant 1 : index
    %c0_19 = arith.constant 0 : index
    %9 = vector.load %arg5[%c0_16, %c0_17, %c1_18, %c0_19] : memref<1x10x6x16xf32, #tpu.memory_space<vmem>>, vector<1x8x4x16xf32>
    %10 = vector.shape_cast %9 : vector<1x8x4x16xf32> to vector<32x16xf32>
    %11 = arith.truncf %10 : vector<32x16xf32> to vector<32x16xbf16>
    %c0_20 = arith.constant 0 : index
    %c16 = arith.constant 16 : index
    %12 = vector.load %arg6[%c0_20, %c16] : memref<32x144xbf16, #tpu.memory_space<vmem>>, vector<32x16xbf16>
    tpu.vector_store %arg6[%c0_20, %c16], %11 {strides = array<i32>} : memref<32x144xbf16, #tpu.memory_space<vmem>>, vector<32x16xbf16>,
    %c0_21 = arith.constant 0 : index
    %c0_22 = arith.constant 0 : index
    %c2 = arith.constant 2 : index
    %c0_23 = arith.constant 0 : index
    %13 = vector.load %arg5[%c0_21, %c0_22, %c2, %c0_23] : memref<1x10x6x16xf32, #tpu.memory_space<vmem>>, vector<1x8x4x16xf32>
    %14 = vector.shape_cast %13 : vector<1x8x4x16xf32> to vector<32x16xf32>
    %15 = arith.truncf %14 : vector<32x16xf32> to vector<32x16xbf16>
    %c0_24 = arith.constant 0 : index
    %c32 = arith.constant 32 : index
    %16 = vector.load %arg6[%c0_24, %c32] : memref<32x144xbf16, #tpu.memory_space<vmem>>, vector<32x16xbf16>
    tpu.vector_store %arg6[%c0_24, %c32], %15 {strides = array<i32>} : memref<32x144xbf16, #tpu.memory_space<vmem>>, vector<32x16xbf16>,
    %c0_25 = arith.constant 0 : index
    %c1_26 = arith.constant 1 : index
    %c0_27 = arith.constant 0 : index
    %c0_28 = arith.constant 0 : index
    %17 = vector.load %arg5[%c0_25, %c1_26, %c0_27, %c0_28] : memref<1x10x6x16xf32, #tpu.memory_space<vmem>>, vector<1x8x4x16xf32>
    %18 = vector.shape_cast %17 : vector<1x8x4x16xf32> to vector<32x16xf32>
    %19 = arith.truncf %18 : vector<32x16xf32> to vector<32x16xbf16>
    %c0_29 = arith.constant 0 : index
    %c48 = arith.constant 48 : index
    %20 = vector.load %arg6[%c0_29, %c48] : memref<32x144xbf16, #tpu.memory_space<vmem>>, vector<32x16xbf16>
    tpu.vector_store %arg6[%c0_29, %c48], %19 {strides = array<i32>} : memref<32x144xbf16, #tpu.memory_space<vmem>>, vector<32x16xbf16>,
    %c0_30 = arith.constant 0 : index
    %c1_31 = arith.constant 1 : index
    %c1_32 = arith.constant 1 : index
    %c0_33 = arith.constant 0 : index
    %21 = vector.load %arg5[%c0_30, %c1_31, %c1_32, %c0_33] : memref<1x10x6x16xf32, #tpu.memory_space<vmem>>, vector<1x8x4x16xf32>
    %22 = vector.shape_cast %21 : vector<1x8x4x16xf32> to vector<32x16xf32>
    %23 = arith.truncf %22 : vector<32x16xf32> to vector<32x16xbf16>
    %c0_34 = arith.constant 0 : index
    %c64 = arith.constant 64 : index
    %24 = vector.load %arg6[%c0_34, %c64] : memref<32x144xbf16, #tpu.memory_space<vmem>>, vector<32x16xbf16>
    tpu.vector_store %arg6[%c0_34, %c64], %23 {strides = array<i32>} : memref<32x144xbf16, #tpu.memory_space<vmem>>, vector<32x16xbf16>,
    %c0_35 = arith.constant 0 : index
    %c1_36 = arith.constant 1 : index
    %c2_37 = arith.constant 2 : index
    %c0_38 = arith.constant 0 : index
    %25 = vector.load %arg5[%c0_35, %c1_36, %c2_37, %c0_38] : memref<1x10x6x16xf32, #tpu.memory_space<vmem>>, vector<1x8x4x16xf32>
    %26 = vector.shape_cast %25 : vector<1x8x4x16xf32> to vector<32x16xf32>
    %27 = arith.truncf %26 : vector<32x16xf32> to vector<32x16xbf16>
    %c0_39 = arith.constant 0 : index
    %c80 = arith.constant 80 : index
    %28 = vector.load %arg6[%c0_39, %c80] : memref<32x144xbf16, #tpu.memory_space<vmem>>, vector<32x16xbf16>
    tpu.vector_store %arg6[%c0_39, %c80], %27 {strides = array<i32>} : memref<32x144xbf16, #tpu.memory_space<vmem>>, vector<32x16xbf16>,
    %c0_40 = arith.constant 0 : index
    %c2_41 = arith.constant 2 : index
    %c0_42 = arith.constant 0 : index
    %c0_43 = arith.constant 0 : index
    %29 = vector.load %arg5[%c0_40, %c2_41, %c0_42, %c0_43] : memref<1x10x6x16xf32, #tpu.memory_space<vmem>>, vector<1x8x4x16xf32>
    %30 = vector.shape_cast %29 : vector<1x8x4x16xf32> to vector<32x16xf32>
    %31 = arith.truncf %30 : vector<32x16xf32> to vector<32x16xbf16>
    %c0_44 = arith.constant 0 : index
    %c96 = arith.constant 96 : index
    %32 = vector.load %arg6[%c0_44, %c96] : memref<32x144xbf16, #tpu.memory_space<vmem>>, vector<32x16xbf16>
    tpu.vector_store %arg6[%c0_44, %c96], %31 {strides = array<i32>} : memref<32x144xbf16, #tpu.memory_space<vmem>>, vector<32x16xbf16>,
    %c0_45 = arith.constant 0 : index
    %c2_46 = arith.constant 2 : index
    %c1_47 = arith.constant 1 : index
    %c0_48 = arith.constant 0 : index
    %33 = vector.load %arg5[%c0_45, %c2_46, %c1_47, %c0_48] : memref<1x10x6x16xf32, #tpu.memory_space<vmem>>, vector<1x8x4x16xf32>
    %34 = vector.shape_cast %33 : vector<1x8x4x16xf32> to vector<32x16xf32>
    %35 = arith.truncf %34 : vector<32x16xf32> to vector<32x16xbf16>
    %c0_49 = arith.constant 0 : index
    %c112 = arith.constant 112 : index
    %36 = vector.load %arg6[%c0_49, %c112] : memref<32x144xbf16, #tpu.memory_space<vmem>>, vector<32x16xbf16>
    tpu.vector_store %arg6[%c0_49, %c112], %35 {strides = array<i32>} : memref<32x144xbf16, #tpu.memory_space<vmem>>, vector<32x16xbf16>,
    %c0_50 = arith.constant 0 : index
    %c2_51 = arith.constant 2 : index
    %c2_52 = arith.constant 2 : index
    %c0_53 = arith.constant 0 : index
    %37 = vector.load %arg5[%c0_50, %c2_51, %c2_52, %c0_53] : memref<1x10x6x16xf32, #tpu.memory_space<vmem>>, vector<1x8x4x16xf32>
    %38 = vector.shape_cast %37 : vector<1x8x4x16xf32> to vector<32x16xf32>
    %39 = arith.truncf %38 : vector<32x16xf32> to vector<32x16xbf16>
    %c0_54 = arith.constant 0 : index
    %c128 = arith.constant 128 : index
    %40 = vector.load %arg6[%c0_54, %c128] : memref<32x144xbf16, #tpu.memory_space<vmem>>, vector<32x16xbf16>
    tpu.vector_store %arg6[%c0_54, %c128], %39 {strides = array<i32>} : memref<32x144xbf16, #tpu.memory_space<vmem>>, vector<32x16xbf16>,
    %c0_55 = arith.constant 0 : index
    %c0_56 = arith.constant 0 : index
    %41 = vector.load %arg6[%c0_55, %c0_56] : memref<32x144xbf16, #tpu.memory_space<vmem>>, vector<32x144xbf16>
    %c0_57 = arith.constant 0 : index
    %c0_58 = arith.constant 0 : index
    %42 = vector.load %arg2[%c0_57, %c0_58] : memref<144x32xbf16, #tpu.memory_space<vmem>>, vector<144x32xbf16>
    %cst_59 = arith.constant dense<0.000000e+00> : vector<32x32xf32>
    %43 = tpu.matmul %41, %42, %cst_59 {dimension_numbers = #tpu.dot_dimension_numbers<[1], [0], [0], [1], [0, 0, 1, 1], [], []>} : vector<32x144xbf16>, vector<144x32xbf16>, vector<32x32xf32> -> vector<32x32xf32>
    %c0_60 = arith.constant 0 : index
    %c0_61 = arith.constant 0 : index
    %44 = vector.load %arg3[%c0_60, %c0_61] : memref<1x32xf32, #tpu.memory_space<vmem>>, vector<1x32xf32>
    %45 = vector.broadcast %44 : vector<1x32xf32> to vector<32x32xf32>
    %46 = arith.addf %43, %45 : vector<32x32xf32>
    %cst_62 = arith.constant 0.000000e+00 : f32
    %47 = vector.broadcast %cst_62 : f32 to vector<32x32xf32>
    %48 = arith.maximumf %46, %47 : vector<32x32xf32>
    %49 = vector.shape_cast %48 : vector<32x32xf32> to vector<1x8x4x32xf32>
    %50 = arith.truncf %49 : vector<1x8x4x32xf32> to vector<1x8x4x32xbf16>
    %c0_63 = arith.constant 0 : index
    %c0_64 = arith.constant 0 : index
    %c0_65 = arith.constant 0 : index
    %c0_66 = arith.constant 0 : index
    %51 = vector.load %arg4[%c0_63, %c0_64, %c0_65, %c0_66] : memref<1x8x4x32xbf16, #tpu.memory_space<vmem>>, vector<1x8x4x32xbf16>
    tpu.vector_store %arg4[%c0_63, %c0_64, %c0_65, %c0_66], %50 {strides = array<i32>} : memref<1x8x4x32xbf16, #tpu.memory_space<vmem>>, vector<1x8x4x32xbf16>,
    return
  }
  func.func @transform_0(%arg0: i32) -> (i32, i32, i32, i32) {
    %c0_i32 = arith.constant 0 : i32
    %c0_i32_0 = arith.constant 0 : i32
    %c0_i32_1 = arith.constant 0 : i32
    %c0_i32_2 = arith.constant 0 : i32
    return %arg0, %c0_i32, %c0_i32_0, %c0_i32_1 : i32, i32, i32, i32
  }
  func.func @transform_1(%arg0: i32) -> (i32, i32) {
    %c0_i32 = arith.constant 0 : i32
    %c0_i32_0 = arith.constant 0 : i32
    %c0_i32_1 = arith.constant 0 : i32
    return %c0_i32, %c0_i32_0 : i32, i32
  }
  func.func @transform_2(%arg0: i32) -> (i32, i32) {
    %c0_i32 = arith.constant 0 : i32
    %c0_i32_0 = arith.constant 0 : i32
    %c0_i32_1 = arith.constant 0 : i32
    return %c0_i32, %c0_i32_0 : i32, i32
  }
  func.func @transform_3(%arg0: i32) -> (i32, i32, i32, i32) {
    %c0_i32 = arith.constant 0 : i32
    %c0_i32_0 = arith.constant 0 : i32
    %c0_i32_1 = arith.constant 0 : i32
    %c0_i32_2 = arith.constant 0 : i32
    return %arg0, %c0_i32, %c0_i32_0, %c0_i32_1 : i32, i32, i32, i32
  }
}

module attributes {stable_mosaic.version = 11 : i64} {
  func.func @_conv_act_pool_kernel(%arg0: i32, %arg1: memref<1x8x4x32xbf16, #tpu.memory_space<vmem>>, %arg2: memref<288x32xbf16, #tpu.memory_space<vmem>>, %arg3: memref<1x32xf32, #tpu.memory_space<vmem>>, %arg4: memref<1x4x4x32xbf16, #tpu.memory_space<vmem>>, %arg5: memref<1x10x6x32xf32, #tpu.memory_space<vmem>>, %arg6: memref<32x288xbf16, #tpu.memory_space<vmem>>, %arg7: memref<1x8x4x32xf32, #tpu.memory_space<vmem>>) attributes {dimension_semantics = [#tpu.dimension_semantics<parallel>], iteration_bounds = array<i64: 2>, scalar_prefetch = 0 : i64, scratch_operands = 3 : i64, tpu.core_type = #tpu.core_type<tc>, window_params = [{transform_indices = @transform_0, window_bounds = array<i64: 1, 8, 4, 32>}, {pipeline_mode = #tpu.pipeline_mode<synchronous>, transform_indices = @transform_1, window_bounds = array<i64: 288, 32>}, {pipeline_mode = #tpu.pipeline_mode<synchronous>, transform_indices = @transform_2, window_bounds = array<i64: 1, 32>}, {transform_indices = @transform_3, window_bounds = array<i64: 1, 4, 4, 32>}]} {
    %cst = arith.constant 0.000000e+00 : f32
    %0 = vector.broadcast %cst : f32 to vector<1x10x6x32xf32>
    %c0 = arith.constant 0 : index
    %c0_0 = arith.constant 0 : index
    %c0_1 = arith.constant 0 : index
    %c0_2 = arith.constant 0 : index
    %1 = vector.load %arg5[%c0, %c0_0, %c0_1, %c0_2] : memref<1x10x6x32xf32, #tpu.memory_space<vmem>>, vector<1x10x6x32xf32>
    tpu.vector_store %arg5[%c0, %c0_0, %c0_1, %c0_2], %0 {strides = array<i32>} : memref<1x10x6x32xf32, #tpu.memory_space<vmem>>, vector<1x10x6x32xf32>,
    %c0_3 = arith.constant 0 : index
    %c0_4 = arith.constant 0 : index
    %c0_5 = arith.constant 0 : index
    %c0_6 = arith.constant 0 : index
    %2 = vector.load %arg1[%c0_3, %c0_4, %c0_5, %c0_6] : memref<1x8x4x32xbf16, #tpu.memory_space<vmem>>, vector<1x8x4x32xbf16>
    %3 = arith.extf %2 : vector<1x8x4x32xbf16> to vector<1x8x4x32xf32>
    %c0_7 = arith.constant 0 : index
    %c1 = arith.constant 1 : index
    %c1_8 = arith.constant 1 : index
    %c0_9 = arith.constant 0 : index
    %4 = vector.load %arg5[%c0_7, %c1, %c1_8, %c0_9] : memref<1x10x6x32xf32, #tpu.memory_space<vmem>>, vector<1x8x4x32xf32>
    tpu.vector_store %arg5[%c0_7, %c1, %c1_8, %c0_9], %3 {strides = array<i32>} : memref<1x10x6x32xf32, #tpu.memory_space<vmem>>, vector<1x8x4x32xf32>,
    %c0_10 = arith.constant 0 : index
    %c0_11 = arith.constant 0 : index
    %c0_12 = arith.constant 0 : index
    %c0_13 = arith.constant 0 : index
    %5 = vector.load %arg5[%c0_10, %c0_11, %c0_12, %c0_13] : memref<1x10x6x32xf32, #tpu.memory_space<vmem>>, vector<1x8x4x32xf32>
    %6 = vector.shape_cast %5 : vector<1x8x4x32xf32> to vector<32x32xf32>
    %7 = arith.truncf %6 : vector<32x32xf32> to vector<32x32xbf16>
    %c0_14 = arith.constant 0 : index
    %c0_15 = arith.constant 0 : index
    %8 = vector.load %arg6[%c0_14, %c0_15] : memref<32x288xbf16, #tpu.memory_space<vmem>>, vector<32x32xbf16>
    tpu.vector_store %arg6[%c0_14, %c0_15], %7 {strides = array<i32>} : memref<32x288xbf16, #tpu.memory_space<vmem>>, vector<32x32xbf16>,
    %c0_16 = arith.constant 0 : index
    %c0_17 = arith.constant 0 : index
    %c1_18 = arith.constant 1 : index
    %c0_19 = arith.constant 0 : index
    %9 = vector.load %arg5[%c0_16, %c0_17, %c1_18, %c0_19] : memref<1x10x6x32xf32, #tpu.memory_space<vmem>>, vector<1x8x4x32xf32>
    %10 = vector.shape_cast %9 : vector<1x8x4x32xf32> to vector<32x32xf32>
    %11 = arith.truncf %10 : vector<32x32xf32> to vector<32x32xbf16>
    %c0_20 = arith.constant 0 : index
    %c32 = arith.constant 32 : index
    %12 = vector.load %arg6[%c0_20, %c32] : memref<32x288xbf16, #tpu.memory_space<vmem>>, vector<32x32xbf16>
    tpu.vector_store %arg6[%c0_20, %c32], %11 {strides = array<i32>} : memref<32x288xbf16, #tpu.memory_space<vmem>>, vector<32x32xbf16>,
    %c0_21 = arith.constant 0 : index
    %c0_22 = arith.constant 0 : index
    %c2 = arith.constant 2 : index
    %c0_23 = arith.constant 0 : index
    %13 = vector.load %arg5[%c0_21, %c0_22, %c2, %c0_23] : memref<1x10x6x32xf32, #tpu.memory_space<vmem>>, vector<1x8x4x32xf32>
    %14 = vector.shape_cast %13 : vector<1x8x4x32xf32> to vector<32x32xf32>
    %15 = arith.truncf %14 : vector<32x32xf32> to vector<32x32xbf16>
    %c0_24 = arith.constant 0 : index
    %c64 = arith.constant 64 : index
    %16 = vector.load %arg6[%c0_24, %c64] : memref<32x288xbf16, #tpu.memory_space<vmem>>, vector<32x32xbf16>
    tpu.vector_store %arg6[%c0_24, %c64], %15 {strides = array<i32>} : memref<32x288xbf16, #tpu.memory_space<vmem>>, vector<32x32xbf16>,
    %c0_25 = arith.constant 0 : index
    %c1_26 = arith.constant 1 : index
    %c0_27 = arith.constant 0 : index
    %c0_28 = arith.constant 0 : index
    %17 = vector.load %arg5[%c0_25, %c1_26, %c0_27, %c0_28] : memref<1x10x6x32xf32, #tpu.memory_space<vmem>>, vector<1x8x4x32xf32>
    %18 = vector.shape_cast %17 : vector<1x8x4x32xf32> to vector<32x32xf32>
    %19 = arith.truncf %18 : vector<32x32xf32> to vector<32x32xbf16>
    %c0_29 = arith.constant 0 : index
    %c96 = arith.constant 96 : index
    %20 = vector.load %arg6[%c0_29, %c96] : memref<32x288xbf16, #tpu.memory_space<vmem>>, vector<32x32xbf16>
    tpu.vector_store %arg6[%c0_29, %c96], %19 {strides = array<i32>} : memref<32x288xbf16, #tpu.memory_space<vmem>>, vector<32x32xbf16>,
    %c0_30 = arith.constant 0 : index
    %c1_31 = arith.constant 1 : index
    %c1_32 = arith.constant 1 : index
    %c0_33 = arith.constant 0 : index
    %21 = vector.load %arg5[%c0_30, %c1_31, %c1_32, %c0_33] : memref<1x10x6x32xf32, #tpu.memory_space<vmem>>, vector<1x8x4x32xf32>
    %22 = vector.shape_cast %21 : vector<1x8x4x32xf32> to vector<32x32xf32>
    %23 = arith.truncf %22 : vector<32x32xf32> to vector<32x32xbf16>
    %c0_34 = arith.constant 0 : index
    %c128 = arith.constant 128 : index
    %24 = vector.load %arg6[%c0_34, %c128] : memref<32x288xbf16, #tpu.memory_space<vmem>>, vector<32x32xbf16>
    tpu.vector_store %arg6[%c0_34, %c128], %23 {strides = array<i32>} : memref<32x288xbf16, #tpu.memory_space<vmem>>, vector<32x32xbf16>,
    %c0_35 = arith.constant 0 : index
    %c1_36 = arith.constant 1 : index
    %c2_37 = arith.constant 2 : index
    %c0_38 = arith.constant 0 : index
    %25 = vector.load %arg5[%c0_35, %c1_36, %c2_37, %c0_38] : memref<1x10x6x32xf32, #tpu.memory_space<vmem>>, vector<1x8x4x32xf32>
    %26 = vector.shape_cast %25 : vector<1x8x4x32xf32> to vector<32x32xf32>
    %27 = arith.truncf %26 : vector<32x32xf32> to vector<32x32xbf16>
    %c0_39 = arith.constant 0 : index
    %c160 = arith.constant 160 : index
    %28 = vector.load %arg6[%c0_39, %c160] : memref<32x288xbf16, #tpu.memory_space<vmem>>, vector<32x32xbf16>
    tpu.vector_store %arg6[%c0_39, %c160], %27 {strides = array<i32>} : memref<32x288xbf16, #tpu.memory_space<vmem>>, vector<32x32xbf16>,
    %c0_40 = arith.constant 0 : index
    %c2_41 = arith.constant 2 : index
    %c0_42 = arith.constant 0 : index
    %c0_43 = arith.constant 0 : index
    %29 = vector.load %arg5[%c0_40, %c2_41, %c0_42, %c0_43] : memref<1x10x6x32xf32, #tpu.memory_space<vmem>>, vector<1x8x4x32xf32>
    %30 = vector.shape_cast %29 : vector<1x8x4x32xf32> to vector<32x32xf32>
    %31 = arith.truncf %30 : vector<32x32xf32> to vector<32x32xbf16>
    %c0_44 = arith.constant 0 : index
    %c192 = arith.constant 192 : index
    %32 = vector.load %arg6[%c0_44, %c192] : memref<32x288xbf16, #tpu.memory_space<vmem>>, vector<32x32xbf16>
    tpu.vector_store %arg6[%c0_44, %c192], %31 {strides = array<i32>} : memref<32x288xbf16, #tpu.memory_space<vmem>>, vector<32x32xbf16>,
    %c0_45 = arith.constant 0 : index
    %c2_46 = arith.constant 2 : index
    %c1_47 = arith.constant 1 : index
    %c0_48 = arith.constant 0 : index
    %33 = vector.load %arg5[%c0_45, %c2_46, %c1_47, %c0_48] : memref<1x10x6x32xf32, #tpu.memory_space<vmem>>, vector<1x8x4x32xf32>
    %34 = vector.shape_cast %33 : vector<1x8x4x32xf32> to vector<32x32xf32>
    %35 = arith.truncf %34 : vector<32x32xf32> to vector<32x32xbf16>
    %c0_49 = arith.constant 0 : index
    %c224 = arith.constant 224 : index
    %36 = vector.load %arg6[%c0_49, %c224] : memref<32x288xbf16, #tpu.memory_space<vmem>>, vector<32x32xbf16>
    tpu.vector_store %arg6[%c0_49, %c224], %35 {strides = array<i32>} : memref<32x288xbf16, #tpu.memory_space<vmem>>, vector<32x32xbf16>,
    %c0_50 = arith.constant 0 : index
    %c2_51 = arith.constant 2 : index
    %c2_52 = arith.constant 2 : index
    %c0_53 = arith.constant 0 : index
    %37 = vector.load %arg5[%c0_50, %c2_51, %c2_52, %c0_53] : memref<1x10x6x32xf32, #tpu.memory_space<vmem>>, vector<1x8x4x32xf32>
    %38 = vector.shape_cast %37 : vector<1x8x4x32xf32> to vector<32x32xf32>
    %39 = arith.truncf %38 : vector<32x32xf32> to vector<32x32xbf16>
    %c0_54 = arith.constant 0 : index
    %c256 = arith.constant 256 : index
    %40 = vector.load %arg6[%c0_54, %c256] : memref<32x288xbf16, #tpu.memory_space<vmem>>, vector<32x32xbf16>
    tpu.vector_store %arg6[%c0_54, %c256], %39 {strides = array<i32>} : memref<32x288xbf16, #tpu.memory_space<vmem>>, vector<32x32xbf16>,
    %c0_55 = arith.constant 0 : index
    %c0_56 = arith.constant 0 : index
    %41 = vector.load %arg6[%c0_55, %c0_56] : memref<32x288xbf16, #tpu.memory_space<vmem>>, vector<32x288xbf16>
    %c0_57 = arith.constant 0 : index
    %c0_58 = arith.constant 0 : index
    %42 = vector.load %arg2[%c0_57, %c0_58] : memref<288x32xbf16, #tpu.memory_space<vmem>>, vector<288x32xbf16>
    %cst_59 = arith.constant dense<0.000000e+00> : vector<32x32xf32>
    %43 = tpu.matmul %41, %42, %cst_59 {dimension_numbers = #tpu.dot_dimension_numbers<[1], [0], [0], [1], [0, 0, 1, 1], [], []>} : vector<32x288xbf16>, vector<288x32xbf16>, vector<32x32xf32> -> vector<32x32xf32>
    %c0_60 = arith.constant 0 : index
    %c0_61 = arith.constant 0 : index
    %44 = vector.load %arg3[%c0_60, %c0_61] : memref<1x32xf32, #tpu.memory_space<vmem>>, vector<1x32xf32>
    %45 = vector.broadcast %44 : vector<1x32xf32> to vector<32x32xf32>
    %46 = arith.addf %43, %45 : vector<32x32xf32>
    %cst_62 = arith.constant 0.000000e+00 : f32
    %47 = vector.broadcast %cst_62 : f32 to vector<32x32xf32>
    %48 = arith.maximumf %46, %47 : vector<32x32xf32>
    %49 = vector.shape_cast %48 : vector<32x32xf32> to vector<1x8x4x32xf32>
    %c0_63 = arith.constant 0 : index
    %c0_64 = arith.constant 0 : index
    %c0_65 = arith.constant 0 : index
    %c0_66 = arith.constant 0 : index
    %50 = vector.load %arg7[%c0_63, %c0_64, %c0_65, %c0_66] : memref<1x8x4x32xf32, #tpu.memory_space<vmem>>, vector<1x8x4x32xf32>
    tpu.vector_store %arg7[%c0_63, %c0_64, %c0_65, %c0_66], %49 {strides = array<i32>} : memref<1x8x4x32xf32, #tpu.memory_space<vmem>>, vector<1x8x4x32xf32>,
    %c0_67 = arith.constant 0 : index
    %c0_68 = arith.constant 0 : index
    %c0_69 = arith.constant 0 : index
    %c0_70 = arith.constant 0 : index
    %51 = tpu.strided_load %arg7[%c0_67, %c0_68, %c0_69, %c0_70] {strides = array<i32: 1, 2, 1, 1>} : memref<1x8x4x32xf32, #tpu.memory_space<vmem>>, vector<1x4x4x32xf32>
    %c0_71 = arith.constant 0 : index
    %c1_72 = arith.constant 1 : index
    %c0_73 = arith.constant 0 : index
    %c0_74 = arith.constant 0 : index
    %52 = tpu.strided_load %arg7[%c0_71, %c1_72, %c0_73, %c0_74] {strides = array<i32: 1, 2, 1, 1>} : memref<1x8x4x32xf32, #tpu.memory_space<vmem>>, vector<1x4x4x32xf32>
    %53 = arith.maximumf %51, %52 : vector<1x4x4x32xf32>
    %54 = arith.truncf %53 : vector<1x4x4x32xf32> to vector<1x4x4x32xbf16>
    %c0_75 = arith.constant 0 : index
    %c0_76 = arith.constant 0 : index
    %c0_77 = arith.constant 0 : index
    %c0_78 = arith.constant 0 : index
    %55 = vector.load %arg4[%c0_75, %c0_76, %c0_77, %c0_78] : memref<1x4x4x32xbf16, #tpu.memory_space<vmem>>, vector<1x4x4x32xbf16>
    tpu.vector_store %arg4[%c0_75, %c0_76, %c0_77, %c0_78], %54 {strides = array<i32>} : memref<1x4x4x32xbf16, #tpu.memory_space<vmem>>, vector<1x4x4x32xbf16>,
    return
  }
  func.func @transform_0(%arg0: i32) -> (i32, i32, i32, i32) {
    %c0_i32 = arith.constant 0 : i32
    %c0_i32_0 = arith.constant 0 : i32
    %c0_i32_1 = arith.constant 0 : i32
    %c0_i32_2 = arith.constant 0 : i32
    return %arg0, %c0_i32, %c0_i32_0, %c0_i32_1 : i32, i32, i32, i32
  }
  func.func @transform_1(%arg0: i32) -> (i32, i32) {
    %c0_i32 = arith.constant 0 : i32
    %c0_i32_0 = arith.constant 0 : i32
    %c0_i32_1 = arith.constant 0 : i32
    return %c0_i32, %c0_i32_0 : i32, i32
  }
  func.func @transform_2(%arg0: i32) -> (i32, i32) {
    %c0_i32 = arith.constant 0 : i32
    %c0_i32_0 = arith.constant 0 : i32
    %c0_i32_1 = arith.constant 0 : i32
    return %c0_i32, %c0_i32_0 : i32, i32
  }
  func.func @transform_3(%arg0: i32) -> (i32, i32, i32, i32) {
    %c0_i32 = arith.constant 0 : i32
    %c0_i32_0 = arith.constant 0 : i32
    %c0_i32_1 = arith.constant 0 : i32
    %c0_i32_2 = arith.constant 0 : i32
    return %arg0, %c0_i32, %c0_i32_0, %c0_i32_1 : i32, i32, i32, i32
  }
}

module attributes {stable_mosaic.version = 11 : i64} {
  func.func @_conv_act_pool_kernel(%arg0: i32, %arg1: memref<1x4x4x32xbf16, #tpu.memory_space<vmem>>, %arg2: memref<288x64xbf16, #tpu.memory_space<vmem>>, %arg3: memref<1x64xf32, #tpu.memory_space<vmem>>, %arg4: memref<1x4x4x64xbf16, #tpu.memory_space<vmem>>, %arg5: memref<1x6x6x32xf32, #tpu.memory_space<vmem>>, %arg6: memref<16x288xbf16, #tpu.memory_space<vmem>>) attributes {dimension_semantics = [#tpu.dimension_semantics<parallel>], iteration_bounds = array<i64: 2>, scalar_prefetch = 0 : i64, scratch_operands = 2 : i64, tpu.core_type = #tpu.core_type<tc>, window_params = [{transform_indices = @transform_0, window_bounds = array<i64: 1, 4, 4, 32>}, {pipeline_mode = #tpu.pipeline_mode<synchronous>, transform_indices = @transform_1, window_bounds = array<i64: 288, 64>}, {pipeline_mode = #tpu.pipeline_mode<synchronous>, transform_indices = @transform_2, window_bounds = array<i64: 1, 64>}, {transform_indices = @transform_3, window_bounds = array<i64: 1, 4, 4, 64>}]} {
    %cst = arith.constant 0.000000e+00 : f32
    %0 = vector.broadcast %cst : f32 to vector<1x6x6x32xf32>
    %c0 = arith.constant 0 : index
    %c0_0 = arith.constant 0 : index
    %c0_1 = arith.constant 0 : index
    %c0_2 = arith.constant 0 : index
    %1 = vector.load %arg5[%c0, %c0_0, %c0_1, %c0_2] : memref<1x6x6x32xf32, #tpu.memory_space<vmem>>, vector<1x6x6x32xf32>
    tpu.vector_store %arg5[%c0, %c0_0, %c0_1, %c0_2], %0 {strides = array<i32>} : memref<1x6x6x32xf32, #tpu.memory_space<vmem>>, vector<1x6x6x32xf32>,
    %c0_3 = arith.constant 0 : index
    %c0_4 = arith.constant 0 : index
    %c0_5 = arith.constant 0 : index
    %c0_6 = arith.constant 0 : index
    %2 = vector.load %arg1[%c0_3, %c0_4, %c0_5, %c0_6] : memref<1x4x4x32xbf16, #tpu.memory_space<vmem>>, vector<1x4x4x32xbf16>
    %3 = arith.extf %2 : vector<1x4x4x32xbf16> to vector<1x4x4x32xf32>
    %c0_7 = arith.constant 0 : index
    %c1 = arith.constant 1 : index
    %c1_8 = arith.constant 1 : index
    %c0_9 = arith.constant 0 : index
    %4 = vector.load %arg5[%c0_7, %c1, %c1_8, %c0_9] : memref<1x6x6x32xf32, #tpu.memory_space<vmem>>, vector<1x4x4x32xf32>
    tpu.vector_store %arg5[%c0_7, %c1, %c1_8, %c0_9], %3 {strides = array<i32>} : memref<1x6x6x32xf32, #tpu.memory_space<vmem>>, vector<1x4x4x32xf32>,
    %c0_10 = arith.constant 0 : index
    %c0_11 = arith.constant 0 : index
    %c0_12 = arith.constant 0 : index
    %c0_13 = arith.constant 0 : index
    %5 = vector.load %arg5[%c0_10, %c0_11, %c0_12, %c0_13] : memref<1x6x6x32xf32, #tpu.memory_space<vmem>>, vector<1x4x4x32xf32>
    %6 = vector.shape_cast %5 : vector<1x4x4x32xf32> to vector<16x32xf32>
    %7 = arith.truncf %6 : vector<16x32xf32> to vector<16x32xbf16>
    %c0_14 = arith.constant 0 : index
    %c0_15 = arith.constant 0 : index
    %8 = vector.load %arg6[%c0_14, %c0_15] : memref<16x288xbf16, #tpu.memory_space<vmem>>, vector<16x32xbf16>
    tpu.vector_store %arg6[%c0_14, %c0_15], %7 {strides = array<i32>} : memref<16x288xbf16, #tpu.memory_space<vmem>>, vector<16x32xbf16>,
    %c0_16 = arith.constant 0 : index
    %c0_17 = arith.constant 0 : index
    %c1_18 = arith.constant 1 : index
    %c0_19 = arith.constant 0 : index
    %9 = vector.load %arg5[%c0_16, %c0_17, %c1_18, %c0_19] : memref<1x6x6x32xf32, #tpu.memory_space<vmem>>, vector<1x4x4x32xf32>
    %10 = vector.shape_cast %9 : vector<1x4x4x32xf32> to vector<16x32xf32>
    %11 = arith.truncf %10 : vector<16x32xf32> to vector<16x32xbf16>
    %c0_20 = arith.constant 0 : index
    %c32 = arith.constant 32 : index
    %12 = vector.load %arg6[%c0_20, %c32] : memref<16x288xbf16, #tpu.memory_space<vmem>>, vector<16x32xbf16>
    tpu.vector_store %arg6[%c0_20, %c32], %11 {strides = array<i32>} : memref<16x288xbf16, #tpu.memory_space<vmem>>, vector<16x32xbf16>,
    %c0_21 = arith.constant 0 : index
    %c0_22 = arith.constant 0 : index
    %c2 = arith.constant 2 : index
    %c0_23 = arith.constant 0 : index
    %13 = vector.load %arg5[%c0_21, %c0_22, %c2, %c0_23] : memref<1x6x6x32xf32, #tpu.memory_space<vmem>>, vector<1x4x4x32xf32>
    %14 = vector.shape_cast %13 : vector<1x4x4x32xf32> to vector<16x32xf32>
    %15 = arith.truncf %14 : vector<16x32xf32> to vector<16x32xbf16>
    %c0_24 = arith.constant 0 : index
    %c64 = arith.constant 64 : index
    %16 = vector.load %arg6[%c0_24, %c64] : memref<16x288xbf16, #tpu.memory_space<vmem>>, vector<16x32xbf16>
    tpu.vector_store %arg6[%c0_24, %c64], %15 {strides = array<i32>} : memref<16x288xbf16, #tpu.memory_space<vmem>>, vector<16x32xbf16>,
    %c0_25 = arith.constant 0 : index
    %c1_26 = arith.constant 1 : index
    %c0_27 = arith.constant 0 : index
    %c0_28 = arith.constant 0 : index
    %17 = vector.load %arg5[%c0_25, %c1_26, %c0_27, %c0_28] : memref<1x6x6x32xf32, #tpu.memory_space<vmem>>, vector<1x4x4x32xf32>
    %18 = vector.shape_cast %17 : vector<1x4x4x32xf32> to vector<16x32xf32>
    %19 = arith.truncf %18 : vector<16x32xf32> to vector<16x32xbf16>
    %c0_29 = arith.constant 0 : index
    %c96 = arith.constant 96 : index
    %20 = vector.load %arg6[%c0_29, %c96] : memref<16x288xbf16, #tpu.memory_space<vmem>>, vector<16x32xbf16>
    tpu.vector_store %arg6[%c0_29, %c96], %19 {strides = array<i32>} : memref<16x288xbf16, #tpu.memory_space<vmem>>, vector<16x32xbf16>,
    %c0_30 = arith.constant 0 : index
    %c1_31 = arith.constant 1 : index
    %c1_32 = arith.constant 1 : index
    %c0_33 = arith.constant 0 : index
    %21 = vector.load %arg5[%c0_30, %c1_31, %c1_32, %c0_33] : memref<1x6x6x32xf32, #tpu.memory_space<vmem>>, vector<1x4x4x32xf32>
    %22 = vector.shape_cast %21 : vector<1x4x4x32xf32> to vector<16x32xf32>
    %23 = arith.truncf %22 : vector<16x32xf32> to vector<16x32xbf16>
    %c0_34 = arith.constant 0 : index
    %c128 = arith.constant 128 : index
    %24 = vector.load %arg6[%c0_34, %c128] : memref<16x288xbf16, #tpu.memory_space<vmem>>, vector<16x32xbf16>
    tpu.vector_store %arg6[%c0_34, %c128], %23 {strides = array<i32>} : memref<16x288xbf16, #tpu.memory_space<vmem>>, vector<16x32xbf16>,
    %c0_35 = arith.constant 0 : index
    %c1_36 = arith.constant 1 : index
    %c2_37 = arith.constant 2 : index
    %c0_38 = arith.constant 0 : index
    %25 = vector.load %arg5[%c0_35, %c1_36, %c2_37, %c0_38] : memref<1x6x6x32xf32, #tpu.memory_space<vmem>>, vector<1x4x4x32xf32>
    %26 = vector.shape_cast %25 : vector<1x4x4x32xf32> to vector<16x32xf32>
    %27 = arith.truncf %26 : vector<16x32xf32> to vector<16x32xbf16>
    %c0_39 = arith.constant 0 : index
    %c160 = arith.constant 160 : index
    %28 = vector.load %arg6[%c0_39, %c160] : memref<16x288xbf16, #tpu.memory_space<vmem>>, vector<16x32xbf16>
    tpu.vector_store %arg6[%c0_39, %c160], %27 {strides = array<i32>} : memref<16x288xbf16, #tpu.memory_space<vmem>>, vector<16x32xbf16>,
    %c0_40 = arith.constant 0 : index
    %c2_41 = arith.constant 2 : index
    %c0_42 = arith.constant 0 : index
    %c0_43 = arith.constant 0 : index
    %29 = vector.load %arg5[%c0_40, %c2_41, %c0_42, %c0_43] : memref<1x6x6x32xf32, #tpu.memory_space<vmem>>, vector<1x4x4x32xf32>
    %30 = vector.shape_cast %29 : vector<1x4x4x32xf32> to vector<16x32xf32>
    %31 = arith.truncf %30 : vector<16x32xf32> to vector<16x32xbf16>
    %c0_44 = arith.constant 0 : index
    %c192 = arith.constant 192 : index
    %32 = vector.load %arg6[%c0_44, %c192] : memref<16x288xbf16, #tpu.memory_space<vmem>>, vector<16x32xbf16>
    tpu.vector_store %arg6[%c0_44, %c192], %31 {strides = array<i32>} : memref<16x288xbf16, #tpu.memory_space<vmem>>, vector<16x32xbf16>,
    %c0_45 = arith.constant 0 : index
    %c2_46 = arith.constant 2 : index
    %c1_47 = arith.constant 1 : index
    %c0_48 = arith.constant 0 : index
    %33 = vector.load %arg5[%c0_45, %c2_46, %c1_47, %c0_48] : memref<1x6x6x32xf32, #tpu.memory_space<vmem>>, vector<1x4x4x32xf32>
    %34 = vector.shape_cast %33 : vector<1x4x4x32xf32> to vector<16x32xf32>
    %35 = arith.truncf %34 : vector<16x32xf32> to vector<16x32xbf16>
    %c0_49 = arith.constant 0 : index
    %c224 = arith.constant 224 : index
    %36 = vector.load %arg6[%c0_49, %c224] : memref<16x288xbf16, #tpu.memory_space<vmem>>, vector<16x32xbf16>
    tpu.vector_store %arg6[%c0_49, %c224], %35 {strides = array<i32>} : memref<16x288xbf16, #tpu.memory_space<vmem>>, vector<16x32xbf16>,
    %c0_50 = arith.constant 0 : index
    %c2_51 = arith.constant 2 : index
    %c2_52 = arith.constant 2 : index
    %c0_53 = arith.constant 0 : index
    %37 = vector.load %arg5[%c0_50, %c2_51, %c2_52, %c0_53] : memref<1x6x6x32xf32, #tpu.memory_space<vmem>>, vector<1x4x4x32xf32>
    %38 = vector.shape_cast %37 : vector<1x4x4x32xf32> to vector<16x32xf32>
    %39 = arith.truncf %38 : vector<16x32xf32> to vector<16x32xbf16>
    %c0_54 = arith.constant 0 : index
    %c256 = arith.constant 256 : index
    %40 = vector.load %arg6[%c0_54, %c256] : memref<16x288xbf16, #tpu.memory_space<vmem>>, vector<16x32xbf16>
    tpu.vector_store %arg6[%c0_54, %c256], %39 {strides = array<i32>} : memref<16x288xbf16, #tpu.memory_space<vmem>>, vector<16x32xbf16>,
    %c0_55 = arith.constant 0 : index
    %c0_56 = arith.constant 0 : index
    %41 = vector.load %arg6[%c0_55, %c0_56] : memref<16x288xbf16, #tpu.memory_space<vmem>>, vector<16x288xbf16>
    %c0_57 = arith.constant 0 : index
    %c0_58 = arith.constant 0 : index
    %42 = vector.load %arg2[%c0_57, %c0_58] : memref<288x64xbf16, #tpu.memory_space<vmem>>, vector<288x64xbf16>
    %cst_59 = arith.constant dense<0.000000e+00> : vector<16x64xf32>
    %43 = tpu.matmul %41, %42, %cst_59 {dimension_numbers = #tpu.dot_dimension_numbers<[1], [0], [0], [1], [0, 0, 1, 1], [], []>} : vector<16x288xbf16>, vector<288x64xbf16>, vector<16x64xf32> -> vector<16x64xf32>
    %c0_60 = arith.constant 0 : index
    %c0_61 = arith.constant 0 : index
    %44 = vector.load %arg3[%c0_60, %c0_61] : memref<1x64xf32, #tpu.memory_space<vmem>>, vector<1x64xf32>
    %45 = vector.broadcast %44 : vector<1x64xf32> to vector<16x64xf32>
    %46 = arith.addf %43, %45 : vector<16x64xf32>
    %cst_62 = arith.constant 0.000000e+00 : f32
    %47 = vector.broadcast %cst_62 : f32 to vector<16x64xf32>
    %48 = arith.maximumf %46, %47 : vector<16x64xf32>
    %49 = vector.shape_cast %48 : vector<16x64xf32> to vector<1x4x4x64xf32>
    %50 = arith.truncf %49 : vector<1x4x4x64xf32> to vector<1x4x4x64xbf16>
    %c0_63 = arith.constant 0 : index
    %c0_64 = arith.constant 0 : index
    %c0_65 = arith.constant 0 : index
    %c0_66 = arith.constant 0 : index
    %51 = vector.load %arg4[%c0_63, %c0_64, %c0_65, %c0_66] : memref<1x4x4x64xbf16, #tpu.memory_space<vmem>>, vector<1x4x4x64xbf16>
    tpu.vector_store %arg4[%c0_63, %c0_64, %c0_65, %c0_66], %50 {strides = array<i32>} : memref<1x4x4x64xbf16, #tpu.memory_space<vmem>>, vector<1x4x4x64xbf16>,
    return
  }
  func.func @transform_0(%arg0: i32) -> (i32, i32, i32, i32) {
    %c0_i32 = arith.constant 0 : i32
    %c0_i32_0 = arith.constant 0 : i32
    %c0_i32_1 = arith.constant 0 : i32
    %c0_i32_2 = arith.constant 0 : i32
    return %arg0, %c0_i32, %c0_i32_0, %c0_i32_1 : i32, i32, i32, i32
  }
  func.func @transform_1(%arg0: i32) -> (i32, i32) {
    %c0_i32 = arith.constant 0 : i32
    %c0_i32_0 = arith.constant 0 : i32
    %c0_i32_1 = arith.constant 0 : i32
    return %c0_i32, %c0_i32_0 : i32, i32
  }
  func.func @transform_2(%arg0: i32) -> (i32, i32) {
    %c0_i32 = arith.constant 0 : i32
    %c0_i32_0 = arith.constant 0 : i32
    %c0_i32_1 = arith.constant 0 : i32
    return %c0_i32, %c0_i32_0 : i32, i32
  }
  func.func @transform_3(%arg0: i32) -> (i32, i32, i32, i32) {
    %c0_i32 = arith.constant 0 : i32
    %c0_i32_0 = arith.constant 0 : i32
    %c0_i32_1 = arith.constant 0 : i32
    %c0_i32_2 = arith.constant 0 : i32
    return %arg0, %c0_i32, %c0_i32_0, %c0_i32_1 : i32, i32, i32, i32
  }
}

module attributes {stable_mosaic.version = 11 : i64} {
  func.func @_conv_act_pool_kernel(%arg0: i32, %arg1: memref<1x4x4x64xbf16, #tpu.memory_space<vmem>>, %arg2: memref<576x64xbf16, #tpu.memory_space<vmem>>, %arg3: memref<1x64xf32, #tpu.memory_space<vmem>>, %arg4: memref<1x2x4x64xbf16, #tpu.memory_space<vmem>>, %arg5: memref<1x6x6x64xf32, #tpu.memory_space<vmem>>, %arg6: memref<16x576xbf16, #tpu.memory_space<vmem>>, %arg7: memref<1x4x4x64xf32, #tpu.memory_space<vmem>>) attributes {dimension_semantics = [#tpu.dimension_semantics<parallel>], iteration_bounds = array<i64: 2>, scalar_prefetch = 0 : i64, scratch_operands = 3 : i64, tpu.core_type = #tpu.core_type<tc>, window_params = [{transform_indices = @transform_0, window_bounds = array<i64: 1, 4, 4, 64>}, {pipeline_mode = #tpu.pipeline_mode<synchronous>, transform_indices = @transform_1, window_bounds = array<i64: 576, 64>}, {pipeline_mode = #tpu.pipeline_mode<synchronous>, transform_indices = @transform_2, window_bounds = array<i64: 1, 64>}, {transform_indices = @transform_3, window_bounds = array<i64: 1, 2, 4, 64>}]} {
    %cst = arith.constant 0.000000e+00 : f32
    %0 = vector.broadcast %cst : f32 to vector<1x6x6x64xf32>
    %c0 = arith.constant 0 : index
    %c0_0 = arith.constant 0 : index
    %c0_1 = arith.constant 0 : index
    %c0_2 = arith.constant 0 : index
    %1 = vector.load %arg5[%c0, %c0_0, %c0_1, %c0_2] : memref<1x6x6x64xf32, #tpu.memory_space<vmem>>, vector<1x6x6x64xf32>
    tpu.vector_store %arg5[%c0, %c0_0, %c0_1, %c0_2], %0 {strides = array<i32>} : memref<1x6x6x64xf32, #tpu.memory_space<vmem>>, vector<1x6x6x64xf32>,
    %c0_3 = arith.constant 0 : index
    %c0_4 = arith.constant 0 : index
    %c0_5 = arith.constant 0 : index
    %c0_6 = arith.constant 0 : index
    %2 = vector.load %arg1[%c0_3, %c0_4, %c0_5, %c0_6] : memref<1x4x4x64xbf16, #tpu.memory_space<vmem>>, vector<1x4x4x64xbf16>
    %3 = arith.extf %2 : vector<1x4x4x64xbf16> to vector<1x4x4x64xf32>
    %c0_7 = arith.constant 0 : index
    %c1 = arith.constant 1 : index
    %c1_8 = arith.constant 1 : index
    %c0_9 = arith.constant 0 : index
    %4 = vector.load %arg5[%c0_7, %c1, %c1_8, %c0_9] : memref<1x6x6x64xf32, #tpu.memory_space<vmem>>, vector<1x4x4x64xf32>
    tpu.vector_store %arg5[%c0_7, %c1, %c1_8, %c0_9], %3 {strides = array<i32>} : memref<1x6x6x64xf32, #tpu.memory_space<vmem>>, vector<1x4x4x64xf32>,
    %c0_10 = arith.constant 0 : index
    %c0_11 = arith.constant 0 : index
    %c0_12 = arith.constant 0 : index
    %c0_13 = arith.constant 0 : index
    %5 = vector.load %arg5[%c0_10, %c0_11, %c0_12, %c0_13] : memref<1x6x6x64xf32, #tpu.memory_space<vmem>>, vector<1x4x4x64xf32>
    %6 = vector.shape_cast %5 : vector<1x4x4x64xf32> to vector<16x64xf32>
    %7 = arith.truncf %6 : vector<16x64xf32> to vector<16x64xbf16>
    %c0_14 = arith.constant 0 : index
    %c0_15 = arith.constant 0 : index
    %8 = vector.load %arg6[%c0_14, %c0_15] : memref<16x576xbf16, #tpu.memory_space<vmem>>, vector<16x64xbf16>
    tpu.vector_store %arg6[%c0_14, %c0_15], %7 {strides = array<i32>} : memref<16x576xbf16, #tpu.memory_space<vmem>>, vector<16x64xbf16>,
    %c0_16 = arith.constant 0 : index
    %c0_17 = arith.constant 0 : index
    %c1_18 = arith.constant 1 : index
    %c0_19 = arith.constant 0 : index
    %9 = vector.load %arg5[%c0_16, %c0_17, %c1_18, %c0_19] : memref<1x6x6x64xf32, #tpu.memory_space<vmem>>, vector<1x4x4x64xf32>
    %10 = vector.shape_cast %9 : vector<1x4x4x64xf32> to vector<16x64xf32>
    %11 = arith.truncf %10 : vector<16x64xf32> to vector<16x64xbf16>
    %c0_20 = arith.constant 0 : index
    %c64 = arith.constant 64 : index
    %12 = vector.load %arg6[%c0_20, %c64] : memref<16x576xbf16, #tpu.memory_space<vmem>>, vector<16x64xbf16>
    tpu.vector_store %arg6[%c0_20, %c64], %11 {strides = array<i32>} : memref<16x576xbf16, #tpu.memory_space<vmem>>, vector<16x64xbf16>,
    %c0_21 = arith.constant 0 : index
    %c0_22 = arith.constant 0 : index
    %c2 = arith.constant 2 : index
    %c0_23 = arith.constant 0 : index
    %13 = vector.load %arg5[%c0_21, %c0_22, %c2, %c0_23] : memref<1x6x6x64xf32, #tpu.memory_space<vmem>>, vector<1x4x4x64xf32>
    %14 = vector.shape_cast %13 : vector<1x4x4x64xf32> to vector<16x64xf32>
    %15 = arith.truncf %14 : vector<16x64xf32> to vector<16x64xbf16>
    %c0_24 = arith.constant 0 : index
    %c128 = arith.constant 128 : index
    %16 = vector.load %arg6[%c0_24, %c128] : memref<16x576xbf16, #tpu.memory_space<vmem>>, vector<16x64xbf16>
    tpu.vector_store %arg6[%c0_24, %c128], %15 {strides = array<i32>} : memref<16x576xbf16, #tpu.memory_space<vmem>>, vector<16x64xbf16>,
    %c0_25 = arith.constant 0 : index
    %c1_26 = arith.constant 1 : index
    %c0_27 = arith.constant 0 : index
    %c0_28 = arith.constant 0 : index
    %17 = vector.load %arg5[%c0_25, %c1_26, %c0_27, %c0_28] : memref<1x6x6x64xf32, #tpu.memory_space<vmem>>, vector<1x4x4x64xf32>
    %18 = vector.shape_cast %17 : vector<1x4x4x64xf32> to vector<16x64xf32>
    %19 = arith.truncf %18 : vector<16x64xf32> to vector<16x64xbf16>
    %c0_29 = arith.constant 0 : index
    %c192 = arith.constant 192 : index
    %20 = vector.load %arg6[%c0_29, %c192] : memref<16x576xbf16, #tpu.memory_space<vmem>>, vector<16x64xbf16>
    tpu.vector_store %arg6[%c0_29, %c192], %19 {strides = array<i32>} : memref<16x576xbf16, #tpu.memory_space<vmem>>, vector<16x64xbf16>,
    %c0_30 = arith.constant 0 : index
    %c1_31 = arith.constant 1 : index
    %c1_32 = arith.constant 1 : index
    %c0_33 = arith.constant 0 : index
    %21 = vector.load %arg5[%c0_30, %c1_31, %c1_32, %c0_33] : memref<1x6x6x64xf32, #tpu.memory_space<vmem>>, vector<1x4x4x64xf32>
    %22 = vector.shape_cast %21 : vector<1x4x4x64xf32> to vector<16x64xf32>
    %23 = arith.truncf %22 : vector<16x64xf32> to vector<16x64xbf16>
    %c0_34 = arith.constant 0 : index
    %c256 = arith.constant 256 : index
    %24 = vector.load %arg6[%c0_34, %c256] : memref<16x576xbf16, #tpu.memory_space<vmem>>, vector<16x64xbf16>
    tpu.vector_store %arg6[%c0_34, %c256], %23 {strides = array<i32>} : memref<16x576xbf16, #tpu.memory_space<vmem>>, vector<16x64xbf16>,
    %c0_35 = arith.constant 0 : index
    %c1_36 = arith.constant 1 : index
    %c2_37 = arith.constant 2 : index
    %c0_38 = arith.constant 0 : index
    %25 = vector.load %arg5[%c0_35, %c1_36, %c2_37, %c0_38] : memref<1x6x6x64xf32, #tpu.memory_space<vmem>>, vector<1x4x4x64xf32>
    %26 = vector.shape_cast %25 : vector<1x4x4x64xf32> to vector<16x64xf32>
    %27 = arith.truncf %26 : vector<16x64xf32> to vector<16x64xbf16>
    %c0_39 = arith.constant 0 : index
    %c320 = arith.constant 320 : index
    %28 = vector.load %arg6[%c0_39, %c320] : memref<16x576xbf16, #tpu.memory_space<vmem>>, vector<16x64xbf16>
    tpu.vector_store %arg6[%c0_39, %c320], %27 {strides = array<i32>} : memref<16x576xbf16, #tpu.memory_space<vmem>>, vector<16x64xbf16>,
    %c0_40 = arith.constant 0 : index
    %c2_41 = arith.constant 2 : index
    %c0_42 = arith.constant 0 : index
    %c0_43 = arith.constant 0 : index
    %29 = vector.load %arg5[%c0_40, %c2_41, %c0_42, %c0_43] : memref<1x6x6x64xf32, #tpu.memory_space<vmem>>, vector<1x4x4x64xf32>
    %30 = vector.shape_cast %29 : vector<1x4x4x64xf32> to vector<16x64xf32>
    %31 = arith.truncf %30 : vector<16x64xf32> to vector<16x64xbf16>
    %c0_44 = arith.constant 0 : index
    %c384 = arith.constant 384 : index
    %32 = vector.load %arg6[%c0_44, %c384] : memref<16x576xbf16, #tpu.memory_space<vmem>>, vector<16x64xbf16>
    tpu.vector_store %arg6[%c0_44, %c384], %31 {strides = array<i32>} : memref<16x576xbf16, #tpu.memory_space<vmem>>, vector<16x64xbf16>,
    %c0_45 = arith.constant 0 : index
    %c2_46 = arith.constant 2 : index
    %c1_47 = arith.constant 1 : index
    %c0_48 = arith.constant 0 : index
    %33 = vector.load %arg5[%c0_45, %c2_46, %c1_47, %c0_48] : memref<1x6x6x64xf32, #tpu.memory_space<vmem>>, vector<1x4x4x64xf32>
    %34 = vector.shape_cast %33 : vector<1x4x4x64xf32> to vector<16x64xf32>
    %35 = arith.truncf %34 : vector<16x64xf32> to vector<16x64xbf16>
    %c0_49 = arith.constant 0 : index
    %c448 = arith.constant 448 : index
    %36 = vector.load %arg6[%c0_49, %c448] : memref<16x576xbf16, #tpu.memory_space<vmem>>, vector<16x64xbf16>
    tpu.vector_store %arg6[%c0_49, %c448], %35 {strides = array<i32>} : memref<16x576xbf16, #tpu.memory_space<vmem>>, vector<16x64xbf16>,
    %c0_50 = arith.constant 0 : index
    %c2_51 = arith.constant 2 : index
    %c2_52 = arith.constant 2 : index
    %c0_53 = arith.constant 0 : index
    %37 = vector.load %arg5[%c0_50, %c2_51, %c2_52, %c0_53] : memref<1x6x6x64xf32, #tpu.memory_space<vmem>>, vector<1x4x4x64xf32>
    %38 = vector.shape_cast %37 : vector<1x4x4x64xf32> to vector<16x64xf32>
    %39 = arith.truncf %38 : vector<16x64xf32> to vector<16x64xbf16>
    %c0_54 = arith.constant 0 : index
    %c512 = arith.constant 512 : index
    %40 = vector.load %arg6[%c0_54, %c512] : memref<16x576xbf16, #tpu.memory_space<vmem>>, vector<16x64xbf16>
    tpu.vector_store %arg6[%c0_54, %c512], %39 {strides = array<i32>} : memref<16x576xbf16, #tpu.memory_space<vmem>>, vector<16x64xbf16>,
    %c0_55 = arith.constant 0 : index
    %c0_56 = arith.constant 0 : index
    %41 = vector.load %arg6[%c0_55, %c0_56] : memref<16x576xbf16, #tpu.memory_space<vmem>>, vector<16x576xbf16>
    %c0_57 = arith.constant 0 : index
    %c0_58 = arith.constant 0 : index
    %42 = vector.load %arg2[%c0_57, %c0_58] : memref<576x64xbf16, #tpu.memory_space<vmem>>, vector<576x64xbf16>
    %cst_59 = arith.constant dense<0.000000e+00> : vector<16x64xf32>
    %43 = tpu.matmul %41, %42, %cst_59 {dimension_numbers = #tpu.dot_dimension_numbers<[1], [0], [0], [1], [0, 0, 1, 1], [], []>} : vector<16x576xbf16>, vector<576x64xbf16>, vector<16x64xf32> -> vector<16x64xf32>
    %c0_60 = arith.constant 0 : index
    %c0_61 = arith.constant 0 : index
    %44 = vector.load %arg3[%c0_60, %c0_61] : memref<1x64xf32, #tpu.memory_space<vmem>>, vector<1x64xf32>
    %45 = vector.broadcast %44 : vector<1x64xf32> to vector<16x64xf32>
    %46 = arith.addf %43, %45 : vector<16x64xf32>
    %cst_62 = arith.constant 0.000000e+00 : f32
    %47 = vector.broadcast %cst_62 : f32 to vector<16x64xf32>
    %48 = arith.maximumf %46, %47 : vector<16x64xf32>
    %49 = vector.shape_cast %48 : vector<16x64xf32> to vector<1x4x4x64xf32>
    %c0_63 = arith.constant 0 : index
    %c0_64 = arith.constant 0 : index
    %c0_65 = arith.constant 0 : index
    %c0_66 = arith.constant 0 : index
    %50 = vector.load %arg7[%c0_63, %c0_64, %c0_65, %c0_66] : memref<1x4x4x64xf32, #tpu.memory_space<vmem>>, vector<1x4x4x64xf32>
    tpu.vector_store %arg7[%c0_63, %c0_64, %c0_65, %c0_66], %49 {strides = array<i32>} : memref<1x4x4x64xf32, #tpu.memory_space<vmem>>, vector<1x4x4x64xf32>,
    %c0_67 = arith.constant 0 : index
    %c0_68 = arith.constant 0 : index
    %c0_69 = arith.constant 0 : index
    %c0_70 = arith.constant 0 : index
    %51 = tpu.strided_load %arg7[%c0_67, %c0_68, %c0_69, %c0_70] {strides = array<i32: 1, 2, 1, 1>} : memref<1x4x4x64xf32, #tpu.memory_space<vmem>>, vector<1x2x4x64xf32>
    %c0_71 = arith.constant 0 : index
    %c1_72 = arith.constant 1 : index
    %c0_73 = arith.constant 0 : index
    %c0_74 = arith.constant 0 : index
    %52 = tpu.strided_load %arg7[%c0_71, %c1_72, %c0_73, %c0_74] {strides = array<i32: 1, 2, 1, 1>} : memref<1x4x4x64xf32, #tpu.memory_space<vmem>>, vector<1x2x4x64xf32>
    %53 = arith.maximumf %51, %52 : vector<1x2x4x64xf32>
    %54 = arith.truncf %53 : vector<1x2x4x64xf32> to vector<1x2x4x64xbf16>
    %c0_75 = arith.constant 0 : index
    %c0_76 = arith.constant 0 : index
    %c0_77 = arith.constant 0 : index
    %c0_78 = arith.constant 0 : index
    %55 = vector.load %arg4[%c0_75, %c0_76, %c0_77, %c0_78] : memref<1x2x4x64xbf16, #tpu.memory_space<vmem>>, vector<1x2x4x64xbf16>
    tpu.vector_store %arg4[%c0_75, %c0_76, %c0_77, %c0_78], %54 {strides = array<i32>} : memref<1x2x4x64xbf16, #tpu.memory_space<vmem>>, vector<1x2x4x64xbf16>,
    return
  }
  func.func @transform_0(%arg0: i32) -> (i32, i32, i32, i32) {
    %c0_i32 = arith.constant 0 : i32
    %c0_i32_0 = arith.constant 0 : i32
    %c0_i32_1 = arith.constant 0 : i32
    %c0_i32_2 = arith.constant 0 : i32
    return %arg0, %c0_i32, %c0_i32_0, %c0_i32_1 : i32, i32, i32, i32
  }
  func.func @transform_1(%arg0: i32) -> (i32, i32) {
    %c0_i32 = arith.constant 0 : i32
    %c0_i32_0 = arith.constant 0 : i32
    %c0_i32_1 = arith.constant 0 : i32
    return %c0_i32, %c0_i32_0 : i32, i32
  }
  func.func @transform_2(%arg0: i32) -> (i32, i32) {
    %c0_i32 = arith.constant 0 : i32
    %c0_i32_0 = arith.constant 0 : i32
    %c0_i32_1 = arith.constant 0 : i32
    return %c0_i32, %c0_i32_0 : i32, i32
  }
  func.func @transform_3(%arg0: i32) -> (i32, i32, i32, i32) {
    %c0_i32 = arith.constant 0 : i32
    %c0_i32_0 = arith.constant 0 : i32
    %c0_i32_1 = arith.constant 0 : i32
    %c0_i32_2 = arith.constant 0 : i32
    return %arg0, %c0_i32, %c0_i32_0, %c0_i32_1 : i32, i32, i32, i32
  }
}

module attributes {stable_mosaic.version = 11 : i64} {
  func.func @_conv_act_pool_kernel(%arg0: i32, %arg1: memref<1x2x4x64xbf16, #tpu.memory_space<vmem>>, %arg2: memref<256x64xbf16, #tpu.memory_space<vmem>>, %arg3: memref<1x64xf32, #tpu.memory_space<vmem>>, %arg4: memref<1x1x3x64xbf16, #tpu.memory_space<vmem>>, %arg5: memref<1x2x4x64xf32, #tpu.memory_space<vmem>>, %arg6: memref<3x256xbf16, #tpu.memory_space<vmem>>) attributes {dimension_semantics = [#tpu.dimension_semantics<parallel>], iteration_bounds = array<i64: 2>, scalar_prefetch = 0 : i64, scratch_operands = 2 : i64, tpu.core_type = #tpu.core_type<tc>, window_params = [{transform_indices = @transform_0, window_bounds = array<i64: 1, 2, 4, 64>}, {pipeline_mode = #tpu.pipeline_mode<synchronous>, transform_indices = @transform_1, window_bounds = array<i64: 256, 64>}, {pipeline_mode = #tpu.pipeline_mode<synchronous>, transform_indices = @transform_2, window_bounds = array<i64: 1, 64>}, {transform_indices = @transform_3, window_bounds = array<i64: 1, 1, 3, 64>}]} {
    %cst = arith.constant 0.000000e+00 : f32
    %0 = vector.broadcast %cst : f32 to vector<1x2x4x64xf32>
    %c0 = arith.constant 0 : index
    %c0_0 = arith.constant 0 : index
    %c0_1 = arith.constant 0 : index
    %c0_2 = arith.constant 0 : index
    %1 = vector.load %arg5[%c0, %c0_0, %c0_1, %c0_2] : memref<1x2x4x64xf32, #tpu.memory_space<vmem>>, vector<1x2x4x64xf32>
    tpu.vector_store %arg5[%c0, %c0_0, %c0_1, %c0_2], %0 {strides = array<i32>} : memref<1x2x4x64xf32, #tpu.memory_space<vmem>>, vector<1x2x4x64xf32>,
    %c0_3 = arith.constant 0 : index
    %c0_4 = arith.constant 0 : index
    %c0_5 = arith.constant 0 : index
    %c0_6 = arith.constant 0 : index
    %2 = vector.load %arg1[%c0_3, %c0_4, %c0_5, %c0_6] : memref<1x2x4x64xbf16, #tpu.memory_space<vmem>>, vector<1x2x4x64xbf16>
    %3 = arith.extf %2 : vector<1x2x4x64xbf16> to vector<1x2x4x64xf32>
    %c0_7 = arith.constant 0 : index
    %c0_8 = arith.constant 0 : index
    %c0_9 = arith.constant 0 : index
    %c0_10 = arith.constant 0 : index
    %4 = vector.load %arg5[%c0_7, %c0_8, %c0_9, %c0_10] : memref<1x2x4x64xf32, #tpu.memory_space<vmem>>, vector<1x2x4x64xf32>
    tpu.vector_store %arg5[%c0_7, %c0_8, %c0_9, %c0_10], %3 {strides = array<i32>} : memref<1x2x4x64xf32, #tpu.memory_space<vmem>>, vector<1x2x4x64xf32>,
    %c0_11 = arith.constant 0 : index
    %c0_12 = arith.constant 0 : index
    %c0_13 = arith.constant 0 : index
    %c0_14 = arith.constant 0 : index
    %5 = vector.load %arg5[%c0_11, %c0_12, %c0_13, %c0_14] : memref<1x2x4x64xf32, #tpu.memory_space<vmem>>, vector<1x1x3x64xf32>
    %6 = vector.shape_cast %5 : vector<1x1x3x64xf32> to vector<3x64xf32>
    %7 = arith.truncf %6 : vector<3x64xf32> to vector<3x64xbf16>
    %c0_15 = arith.constant 0 : index
    %c0_16 = arith.constant 0 : index
    %8 = vector.load %arg6[%c0_15, %c0_16] : memref<3x256xbf16, #tpu.memory_space<vmem>>, vector<3x64xbf16>
    tpu.vector_store %arg6[%c0_15, %c0_16], %7 {strides = array<i32>} : memref<3x256xbf16, #tpu.memory_space<vmem>>, vector<3x64xbf16>,
    %c0_17 = arith.constant 0 : index
    %c0_18 = arith.constant 0 : index
    %c1 = arith.constant 1 : index
    %c0_19 = arith.constant 0 : index
    %9 = vector.load %arg5[%c0_17, %c0_18, %c1, %c0_19] : memref<1x2x4x64xf32, #tpu.memory_space<vmem>>, vector<1x1x3x64xf32>
    %10 = vector.shape_cast %9 : vector<1x1x3x64xf32> to vector<3x64xf32>
    %11 = arith.truncf %10 : vector<3x64xf32> to vector<3x64xbf16>
    %c0_20 = arith.constant 0 : index
    %c64 = arith.constant 64 : index
    %12 = vector.load %arg6[%c0_20, %c64] : memref<3x256xbf16, #tpu.memory_space<vmem>>, vector<3x64xbf16>
    tpu.vector_store %arg6[%c0_20, %c64], %11 {strides = array<i32>} : memref<3x256xbf16, #tpu.memory_space<vmem>>, vector<3x64xbf16>,
    %c0_21 = arith.constant 0 : index
    %c1_22 = arith.constant 1 : index
    %c0_23 = arith.constant 0 : index
    %c0_24 = arith.constant 0 : index
    %13 = vector.load %arg5[%c0_21, %c1_22, %c0_23, %c0_24] : memref<1x2x4x64xf32, #tpu.memory_space<vmem>>, vector<1x1x3x64xf32>
    %14 = vector.shape_cast %13 : vector<1x1x3x64xf32> to vector<3x64xf32>
    %15 = arith.truncf %14 : vector<3x64xf32> to vector<3x64xbf16>
    %c0_25 = arith.constant 0 : index
    %c128 = arith.constant 128 : index
    %16 = vector.load %arg6[%c0_25, %c128] : memref<3x256xbf16, #tpu.memory_space<vmem>>, vector<3x64xbf16>
    tpu.vector_store %arg6[%c0_25, %c128], %15 {strides = array<i32>} : memref<3x256xbf16, #tpu.memory_space<vmem>>, vector<3x64xbf16>,
    %c0_26 = arith.constant 0 : index
    %c1_27 = arith.constant 1 : index
    %c1_28 = arith.constant 1 : index
    %c0_29 = arith.constant 0 : index
    %17 = vector.load %arg5[%c0_26, %c1_27, %c1_28, %c0_29] : memref<1x2x4x64xf32, #tpu.memory_space<vmem>>, vector<1x1x3x64xf32>
    %18 = vector.shape_cast %17 : vector<1x1x3x64xf32> to vector<3x64xf32>
    %19 = arith.truncf %18 : vector<3x64xf32> to vector<3x64xbf16>
    %c0_30 = arith.constant 0 : index
    %c192 = arith.constant 192 : index
    %20 = vector.load %arg6[%c0_30, %c192] : memref<3x256xbf16, #tpu.memory_space<vmem>>, vector<3x64xbf16>
    tpu.vector_store %arg6[%c0_30, %c192], %19 {strides = array<i32>} : memref<3x256xbf16, #tpu.memory_space<vmem>>, vector<3x64xbf16>,
    %c0_31 = arith.constant 0 : index
    %c0_32 = arith.constant 0 : index
    %21 = vector.load %arg6[%c0_31, %c0_32] : memref<3x256xbf16, #tpu.memory_space<vmem>>, vector<3x256xbf16>
    %c0_33 = arith.constant 0 : index
    %c0_34 = arith.constant 0 : index
    %22 = vector.load %arg2[%c0_33, %c0_34] : memref<256x64xbf16, #tpu.memory_space<vmem>>, vector<256x64xbf16>
    %cst_35 = arith.constant dense<0.000000e+00> : vector<3x64xf32>
    %23 = tpu.matmul %21, %22, %cst_35 {dimension_numbers = #tpu.dot_dimension_numbers<[1], [0], [0], [1], [0, 0, 1, 1], [], []>} : vector<3x256xbf16>, vector<256x64xbf16>, vector<3x64xf32> -> vector<3x64xf32>
    %c0_36 = arith.constant 0 : index
    %c0_37 = arith.constant 0 : index
    %24 = vector.load %arg3[%c0_36, %c0_37] : memref<1x64xf32, #tpu.memory_space<vmem>>, vector<1x64xf32>
    %25 = vector.broadcast %24 : vector<1x64xf32> to vector<3x64xf32>
    %26 = arith.addf %23, %25 : vector<3x64xf32>
    %cst_38 = arith.constant 0.000000e+00 : f32
    %27 = vector.broadcast %cst_38 : f32 to vector<3x64xf32>
    %28 = arith.maximumf %26, %27 : vector<3x64xf32>
    %29 = vector.shape_cast %28 : vector<3x64xf32> to vector<1x1x3x64xf32>
    %30 = arith.truncf %29 : vector<1x1x3x64xf32> to vector<1x1x3x64xbf16>
    %c0_39 = arith.constant 0 : index
    %c0_40 = arith.constant 0 : index
    %c0_41 = arith.constant 0 : index
    %c0_42 = arith.constant 0 : index
    %31 = vector.load %arg4[%c0_39, %c0_40, %c0_41, %c0_42] : memref<1x1x3x64xbf16, #tpu.memory_space<vmem>>, vector<1x1x3x64xbf16>
    tpu.vector_store %arg4[%c0_39, %c0_40, %c0_41, %c0_42], %30 {strides = array<i32>} : memref<1x1x3x64xbf16, #tpu.memory_space<vmem>>, vector<1x1x3x64xbf16>,
    return
  }
  func.func @transform_0(%arg0: i32) -> (i32, i32, i32, i32) {
    %c0_i32 = arith.constant 0 : i32
    %c0_i32_0 = arith.constant 0 : i32
    %c0_i32_1 = arith.constant 0 : i32
    %c0_i32_2 = arith.constant 0 : i32
    return %arg0, %c0_i32, %c0_i32_0, %c0_i32_1 : i32, i32, i32, i32
  }
  func.func @transform_1(%arg0: i32) -> (i32, i32) {
    %c0_i32 = arith.constant 0 : i32
    %c0_i32_0 = arith.constant 0 : i32
    %c0_i32_1 = arith.constant 0 : i32
    return %c0_i32, %c0_i32_0 : i32, i32
  }
  func.func @transform_2(%arg0: i32) -> (i32, i32) {
    %c0_i32 = arith.constant 0 : i32
    %c0_i32_0 = arith.constant 0 : i32
    %c0_i32_1 = arith.constant 0 : i32
    return %c0_i32, %c0_i32_0 : i32, i32
  }
  func.func @transform_3(%arg0: i32) -> (i32, i32, i32, i32) {
    %c0_i32 = arith.constant 0 : i32
    %c0_i32_0 = arith.constant 0 : i32
    %c0_i32_1 = arith.constant 0 : i32
    %c0_i32_2 = arith.constant 0 : i32
    return %arg0, %c0_i32, %c0_i32_0, %c0_i32_1 : i32, i32, i32, i32
  }
}

</mosaic_0001>

<llo_original>
// kernel: vgg_feature_extractor.9
$region0: #{vgg_feature_extractor.9}
  #allocation0 [shape = 'u32[]', space=smem, size = 0x4, offset = 0x4, fixed_abs, tag = 'smem constant byte address 0x4 - core index']
  #allocation1 [shape = 'u32[144,128]{1,0:T(1,128)}', space=vmem, size = 0x12000, scoped, tag = 'internal scratch']
  #allocation2 [shape = 'f32[1,10,6,16]{3,2,1,0:T(8,128)}', space=vmem, size = 0xa000, scoped, tag = 'scratch operand']
  #allocation3 [shape = 'bf16[32,144]{1,0:T(16,128)(2,1)}', space=vmem, size = 0x4000, scoped, tag = 'scratch operand']
  %s0 = inlined_call_operand.vmem [shape: bf16[2,8,4,16], index: 0, kind: input, shape index: {}]
  %s1 = inlined_call_operand.vmem [shape: bf16[144,32], index: 1, kind: input, shape index: {}]
  %s2 = inlined_call_operand.vmem [shape: f32[1,32], index: 2, kind: input, shape index: {}]
  %s3 = inlined_call_operand.vmem [shape: bf16[2,8,4,32], index: 3, kind: output, shape index: {}]
  %s4 = sld [smem:[#allocation0]]
  $region45: #{vgg_feature_extractor.9} parent=0
    _
  %s6 = ssub.s32 1, %s4
  %s7 = scalar_select 0, %s6, %s4
  loop: start=0, step=1, limit=4
  $region2: #{vgg_feature_extractor.9} parent=0 // loop_pre_header
    _
  $region3: #{vgg_feature_extractor.9} parent=0 // loop_header
    %s9 = sphi 0, %s13
    %p10 = scmp.ge.s32.totalorder %s9, 4
    %s19 = sphi 0, %s21
    %s22 = sphi 0, %s19
    %s23 = sphi 0, %s22
    %s39 = sphi 0, %s23
    %s43 = sphi 0, %s43
    %s45 = sphi 0, %s43
    %s46 = sphi 0, %s45
    %s60 = sphi 0, %s46
    %s64 = sphi 0, %s64
    %s66 = sphi 0, %s64
    %s67 = sphi 0, %s66
    %s81 = sphi 0, %s67
    %s87 = sphi 0, %s89
    %s90 = sphi 0, %s87
    %s91 = sphi 0, %s90
    %s107 = sphi 0, %s91
  $region4: #{vgg_feature_extractor.9} parent=0 // loop_header_branch
    %12 = sbr.rel (%p10) target = $region8
  $region5: #{vgg_feature_extractor.9} parent=0 // loop_body
    %s14 = ssub.s32 %s9, 1
    %s15 = ssub.s32 %s9, 2
    %s16 = sadd.s32 %s9, 1
    %s17 = ssub.s32 %s9, %s16
    %p18 = scmp.eq.s32.totalorder %s17, 0
    %s20 = sadd.s32 %s19, 1
    %s21 = scalar_select %p18, %s19, %s20
    %p24 = pneg %p18
    %p25 = scmp.eq.s32.totalorder %s9, 1
    %p26 = por %p24, %p25
    %p27 = scmp.ne.s32.totalorder %s19, %s22
    %p28 = scmp.eq.s32.totalorder %s9, 0
    %p29 = por %p27, %p28
    %p30 = scmp.ne.s32.totalorder %s19, %s22
    %p31 = scmp.eq.s32.totalorder %s14, 1
    %p32 = por %p30, %p31
    %p33 = scmp.ne.s32.totalorder %s22, %s23
    %p34 = scmp.eq.s32.totalorder %s14, 0
    %p35 = por %p33, %p34
    %p36 = scmp.ne.s32.totalorder %s22, %s23
    %p37 = scmp.eq.s32.totalorder %s15, 1
    %p38 = por %p36, %p37
    %p40 = scmp.ne.s32.totalorder %s23, %s39
    %p41 = scmp.eq.s32.totalorder %s15, 0
    %p42 = por %p40, %p41
    %s44 = sadd.s32 %s43, 1
    %p47 = scmp.eq.s32.totalorder %s9, 1
    %p48 = scmp.ne.s32.totalorder %s43, %s45
    %p49 = scmp.eq.s32.totalorder %s9, 0
    %p50 = por %p48, %p49
    %p51 = scmp.ne.s32.totalorder %s43, %s45
    %p52 = scmp.eq.s32.totalorder %s14, 1
    %p53 = por %p51, %p52
    %p54 = scmp.ne.s32.totalorder %s45, %s46
    %p55 = scmp.eq.s32.totalorder %s14, 0
    %p56 = por %p54, %p55
    %p57 = scmp.ne.s32.totalorder %s45, %s46
    %p58 = scmp.eq.s32.totalorder %s15, 1
    %p59 = por %p57, %p58
    %p61 = scmp.ne.s32.totalorder %s46, %s60
    %p62 = scmp.eq.s32.totalorder %s15, 0
    %p63 = por %p61, %p62
    %s65 = sadd.s32 %s64, 1
    %p68 = scmp.eq.s32.totalorder %s9, 1
    %p69 = scmp.ne.s32.totalorder %s64, %s66
    %p70 = scmp.eq.s32.totalorder %s9, 0
    %p71 = por %p69, %p70
    %p72 = scmp.ne.s32.totalorder %s64, %s66
    %p73 = scmp.eq.s32.totalorder %s14, 1
    %p74 = por %p72, %p73
    %p75 = scmp.ne.s32.totalorder %s66, %s67
    %p76 = scmp.eq.s32.totalorder %s14, 0
    %p77 = por %p75, %p76
    %p78 = scmp.ne.s32.totalorder %s66, %s67
    %p79 = scmp.eq.s32.totalorder %s15, 1
    %p80 = por %p78, %p79
    %p82 = scmp.ne.s32.totalorder %s67, %s81
    %p83 = scmp.eq.s32.totalorder %s15, 0
    %p84 = por %p82, %p83
    %s85 = ssub.s32 %s9, %s16
    %p86 = scmp.eq.s32.totalorder %s85, 0
    %s88 = sadd.s32 %s87, 1
    %s89 = scalar_select %p86, %s87, %s88
    %p92 = pneg %p86
    %p93 = scmp.eq.s32.totalorder %s9, 1
    %p94 = por %p92, %p93
    %p95 = scmp.ne.s32.totalorder %s87, %s90
    %p96 = scmp.eq.s32.totalorder %s9, 0
    %p97 = por %p95, %p96
    %p98 = scmp.ne.s32.totalorder %s87, %s90
    %p99 = scmp.eq.s32.totalorder %s14, 1
    %p100 = por %p98, %p99
    %p101 = scmp.ne.s32.totalorder %s90, %s91
    %p102 = scmp.eq.s32.totalorder %s14, 0
    %p103 = por %p101, %p102
    %p104 = scmp.ne.s32.totalorder %s90, %s91
    %p105 = scmp.eq.s32.totalorder %s15, 1
    %p106 = por %p104, %p105
    %p108 = scmp.ne.s32.totalorder %s91, %s107
    %p109 = scmp.eq.s32.totalorder %s15, 0
    %p110 = por %p108, %p109
    %p111 = scmp.le.s32.totalorder 1, %s9
    %p112 = scmp.lt.s32.totalorder %s9, 3
    %p113 = pnand %p111, %p112
    %p114 = pneg %p113
    // Predicated region
    $region9: #{vgg_feature_extractor.9} parent=5 // pred_check
      _
    $region10: #{vgg_feature_extractor.9} parent=5 // pred_check_branch
      %116 = sbr.rel (%p113) target = $region12
    $region11: #{vgg_feature_extractor.9} parent=5 // pred_region
      %s117 = ssub.s32 %s9, 1
      // Predicated region
      $region13: #{vgg_feature_extractor.9} parent=11 // pred_check
        %p118 = pneg %p56
      $region14: #{vgg_feature_extractor.9} parent=11 // pred_check_branch
        %120 = sbr.rel (%p118) target = $region16
      $region15: #{vgg_feature_extractor.9} parent=11 // pred_region
        _
      $region16: #{vgg_feature_extractor.9} parent=11 // pred_fallthru
        _
      // Predicated region
      $region17: #{vgg_feature_extractor.9} parent=11 // pred_check
        %p121 = pneg %p77
      $region18: #{vgg_feature_extractor.9} parent=11 // pred_check_branch
        %123 = sbr.rel (%p121) target = $region20
      $region19: #{vgg_feature_extractor.9} parent=11 // pred_region
        _
      $region20: #{vgg_feature_extractor.9} parent=11 // pred_fallthru
        _
    $region12: #{vgg_feature_extractor.9} parent=5 // pred_fallthru
      _
    %p124 = scmp.lt.s32.totalorder %s9, 2
    // Predicated region
    $region21: #{vgg_feature_extractor.9} parent=5 // pred_check
      %p125 = pneg %p124
    $region22: #{vgg_feature_extractor.9} parent=5 // pred_check_branch
      %127 = sbr.rel (%p125) target = $region24
    $region23: #{vgg_feature_extractor.9} parent=5 // pred_region
      // Predicated region
      $region25: #{vgg_feature_extractor.9} parent=23 // pred_check
        %p128 = pneg %p29
      $region26: #{vgg_feature_extractor.9} parent=23 // pred_check_branch
        %130 = sbr.rel (%p128) target = $region28
      $region27: #{vgg_feature_extractor.9} parent=23 // pred_region
        %p131 = scmp.lt.s32.totalorder %s9, 1
        %s132 = scalar_select %p131, %s9, 1
        %s133 = smul.addr %s132, 8
        %s134 = smul.addr %s133, 2
        %s135 = scalar_lea.vmem %s0, %s134
      $region28: #{vgg_feature_extractor.9} parent=23 // pred_fallthru
        _
    $region24: #{vgg_feature_extractor.9} parent=5 // pred_fallthru
      _
    %p136 = scmp.le.s32.totalorder 1, %s9
    %p137 = scmp.lt.s32.totalorder %s9, 3
    %p138 = pnand %p136, %p137
    %p139 = pneg %p138
    // Predicated region
    $region29: #{vgg_feature_extractor.9} parent=5 // pred_check
      _
    $region30: #{vgg_feature_extractor.9} parent=5 // pred_check_branch
      %141 = sbr.rel (%p138) target = $region32
    $region31: #{vgg_feature_extractor.9} parent=5 // pred_region
      %s142 = ssub.s32 %s9, 1
      %p143 = scmp.lt.s32.totalorder %s14, 1
      %s144 = scalar_select %p143, %s14, 1
      %s145 = smul.addr %s144, 8
      %s146 = smul.addr %s145, 2
      %s147 = scalar_lea.vmem %s0, %s146
      %p148 = pneg %p35
      %p149 = pneg %p32
      %p150 = pneg %p56
      %p151 = pneg %p53
      %p152 = pneg %p77
      %p153 = pneg %p74
      %p154 = pneg %p103
      %p155 = pneg %p100
      %p156 = scmp.lt.s32.totalorder %s14, 1
      %s157 = scalar_select %p156, %s14, 1
      %s158 = smul.addr %s157, 8
      %s159 = smul.addr %s158, 2
      %s160 = scalar_lea.vmem %s3, %s159
      %p161 = scmp.lt.s32.totalorder %s14, 1
      %s162 = scalar_select %p161, %s14, 1
      %s163 = smul.addr %s162, 8
      %s164 = smul.addr %s163, 2
      %s165 = scalar_lea.vmem %s0, %s164
      %p166 = scmp.lt.s32.totalorder %s14, 1
      %s167 = scalar_select %p166, %s14, 1
      %s168 = smul.addr %s167, 8
      %s169 = smul.addr %s168, 2
      %s170 = scalar_lea.vmem %s3, %s169
      %vm172 = vcmask 128000
      %173 = vst.msk [vmem:[#allocation2] sm:$0x3f] %vm172, 0.0
      %174 = vst.msk [vmem:[#allocation2 + $0x8] sm:$0x3f] %vm172, 0.0
      %175 = vst.msk [vmem:[#allocation2 + $0x10] sm:$0x3f] %vm172, 0.0
      %176 = vst.msk [vmem:[#allocation2 + $0x18] sm:$0x3f] %vm172, 0.0
      %177 = vst.msk [vmem:[#allocation2 + $0x20] sm:$0x3f] %vm172, 0.0
      %178 = vst.msk [vmem:[#allocation2 + $0x28] sm:$0x3f] %vm172, 0.0
      %179 = vst.msk [vmem:[#allocation2 + $0x30] sm:$0x3f] %vm172, 0.0
      %180 = vst.msk [vmem:[#allocation2 + $0x38] sm:$0x3f] %vm172, 0.0
      %181 = vst.msk [vmem:[#allocation2 + $0x40] sm:$0x3f] %vm172, 0.0
      %182 = vst.msk [vmem:[#allocation2 + $0x48] sm:$0x3f] %vm172, 0.0
      %v183 = vld [vmem:[%s165] sm:$0x3]
      %v184 = vld [vmem:[%s165 + $0x2] sm:$0x3]
      %v185 = vld [vmem:[%s165 + $0x4] sm:$0x3]
      %v186 = vld [vmem:[%s165 + $0x6] sm:$0x3]
      %v187 = vld [vmem:[%s165 + $0x8] sm:$0x3]
      %v188 = vld [vmem:[%s165 + $0xa] sm:$0x3]
      %v189 = vld [vmem:[%s165 + $0xc] sm:$0x3]
      %v190 = vld [vmem:[%s165 + $0xe] sm:$0x3]
      %v191 = vunpack.c.l.bf16 %v183
      %v192 = vunpack.c.l.bf16 %v184
      %v193 = vunpack.c.l.bf16 %v185
      %v194 = vunpack.c.l.bf16 %v186
      %v195 = vunpack.c.l.bf16 %v187
      %v196 = vunpack.c.l.bf16 %v188
      %v197 = vunpack.c.l.bf16 %v189
      %v198 = vunpack.c.l.bf16 %v190
      %s199 = scalar_lea.vmem [#allocation2], 8
      %vm200 = vcmask 125952
      %201 = vst.msk [vmem:[%s199 + $0x1] sm:$0xf] %vm200, %v191
      %202 = vst.msk [vmem:[%s199 + $0x9] sm:$0xf] %vm200, %v192
      %203 = vst.msk [vmem:[%s199 + $0x11] sm:$0xf] %vm200, %v193
      %204 = vst.msk [vmem:[%s199 + $0x19] sm:$0xf] %vm200, %v194
      %205 = vst.msk [vmem:[%s199 + $0x21] sm:$0xf] %vm200, %v195
      %206 = vst.msk [vmem:[%s199 + $0x29] sm:$0xf] %vm200, %v196
      %207 = vst.msk [vmem:[%s199 + $0x31] sm:$0xf] %vm200, %v197
      %208 = vst.msk [vmem:[%s199 + $0x39] sm:$0xf] %vm200, %v198
      %v209 = vld [vmem:[#allocation2] sm:$0xf]
      %v210 = vld [vmem:[#allocation2 + $0x8] sm:$0xf]
      %v211 = vld [vmem:[#allocation2 + $0x10] sm:$0xf]
      %v212 = vld [vmem:[#allocation2 + $0x18] sm:$0xf]
      %v213 = vld [vmem:[#allocation2 + $0x20] sm:$0xf]
      %v214 = vld [vmem:[#allocation2 + $0x28] sm:$0xf]
      %v215 = vld [vmem:[#allocation2 + $0x30] sm:$0xf]
      %v216 = vld [vmem:[#allocation2 + $0x38] sm:$0xf]
      %v225 = vcombine.low %v209, %v210
      %v226 = vcombine.low %v211, %v212
      %v227 = vcombine.low %v213, %v214
      %v228 = vcombine.low %v215, %v216
      %v233 = vpack.c.bf16 %v226, %v225
      %v234 = vpack.c.bf16 %v228, %v227
      %vm235 = vcmask 130048
      %236 = vst.msk [vmem:[#allocation3] sm:$0xff] %vm235, %v233
      %237 = vst.msk [vmem:[#allocation3 + $0x10] sm:$0xff] %vm235, %v234
      %v238 = vld [vmem:[#allocation2 + $0x1] sm:$0xf]
      %v239 = vld [vmem:[#allocation2 + $0x9] sm:$0xf]
      %v240 = vld [vmem:[#allocation2 + $0x11] sm:$0xf]
      %v241 = vld [vmem:[#allocation2 + $0x19] sm:$0xf]
      %v242 = vld [vmem:[#allocation2 + $0x21] sm:$0xf]
      %v243 = vld [vmem:[#allocation2 + $0x29] sm:$0xf]
      %v244 = vld [vmem:[#allocation2 + $0x31] sm:$0xf]
      %v245 = vld [vmem:[#allocation2 + $0x39] sm:$0xf]
      %v254 = vcombine.low %v238, %v239
      %v255 = vcombine.low %v240, %v241
      %v256 = vcombine.low %v242, %v243
      %v257 = vcombine.low %v244, %v245
      %v262 = vpack.c.bf16 %v255, %v254
      %v263 = vpack.c.bf16 %v257, %v256
      %266 = vrot.lane.b32.xlu0 %v262, 16
      %v267 = vpop.permute.xlu0 %266
      %268 = vrot.lane.b32.xlu0 %v263, 16
      %v269 = vpop.permute.xlu0 %268
      %vm272 = vcmask 261248
      %273 = vst.msk [vmem:[#allocation3] sm:$0xff] %vm272, %v267
      %274 = vst.msk [vmem:[#allocation3 + $0x10] sm:$0xff] %vm272, %v269
      %v275 = vld [vmem:[#allocation2 + $0x2] sm:$0xf]
      %v276 = vld [vmem:[#allocation2 + $0xa] sm:$0xf]
      %v277 = vld [vmem:[#allocation2 + $0x12] sm:$0xf]
      %v278 = vld [vmem:[#allocation2 + $0x1a] sm:$0xf]
      %v279 = vld [vmem:[#allocation2 + $0x22] sm:$0xf]
      %v280 = vld [vmem:[#allocation2 + $0x2a] sm:$0xf]
      %v281 = vld [vmem:[#allocation2 + $0x32] sm:$0xf]
      %v282 = vld [vmem:[#allocation2 + $0x3a] sm:$0xf]
      %v291 = vcombine.low %v275, %v276
      %v292 = vcombine.low %v277, %v278
      %v293 = vcombine.low %v279, %v280
      %v294 = vcombine.low %v281, %v282
      %v299 = vpack.c.bf16 %v292, %v291
      %v300 = vpack.c.bf16 %v294, %v293
      %303 = vrot.lane.b32.xlu0 %v299, 32
      %v304 = vpop.permute.xlu0 %303
      %305 = vrot.lane.b32.xlu0 %v300, 32
      %v306 = vpop.permute.xlu0 %305
      %vm309 = vcmask 392448
      %310 = vst.msk [vmem:[#allocation3] sm:$0xff] %vm309, %v304
      %311 = vst.msk [vmem:[#allocation3 + $0x10] sm:$0xff] %vm309, %v306
      %v312 = vld [vmem:[%s199] sm:$0xf]
      %v313 = vld [vmem:[%s199 + $0x8] sm:$0xf]
      %v314 = vld [vmem:[%s199 + $0x10] sm:$0xf]
      %v315 = vld [vmem:[%s199 + $0x18] sm:$0xf]
      %v316 = vld [vmem:[%s199 + $0x20] sm:$0xf]
      %v317 = vld [vmem:[%s199 + $0x28] sm:$0xf]
      %v318 = vld [vmem:[%s199 + $0x30] sm:$0xf]
      %v319 = vld [vmem:[%s199 + $0x38] sm:$0xf]
      %v328 = vcombine.low %v312, %v313
      %v329 = vcombine.low %v314, %v315
      %v330 = vcombine.low %v316, %v317
      %v331 = vcombine.low %v318, %v319
      %v336 = vpack.c.bf16 %v329, %v328
      %v337 = vpack.c.bf16 %v331, %v330
      %340 = vrot.lane.b32.xlu0 %v336, 48
      %v341 = vpop.permute.xlu0 %340
      %342 = vrot.lane.b32.xlu0 %v337, 48
      %v343 = vpop.permute.xlu0 %342
      %vm346 = vcmask 523648
      %347 = vst.msk [vmem:[#allocation3] sm:$0xff] %vm346, %v341
      %348 = vst.msk [vmem:[#allocation3 + $0x10] sm:$0xff] %vm346, %v343
      %v349 = vld [vmem:[%s199 + $0x1] sm:$0xf]
      %v350 = vld [vmem:[%s199 + $0x9] sm:$0xf]
      %v351 = vld [vmem:[%s199 + $0x11] sm:$0xf]
      %v352 = vld [vmem:[%s199 + $0x19] sm:$0xf]
      %v353 = vld [vmem:[%s199 + $0x21] sm:$0xf]
      %v354 = vld [vmem:[%s199 + $0x29] sm:$0xf]
      %v355 = vld [vmem:[%s199 + $0x31] sm:$0xf]
      %v356 = vld [vmem:[%s199 + $0x39] sm:$0xf]
      %v365 = vcombine.low %v349, %v350
      %v366 = vcombine.low %v351, %v352
      %v367 = vcombine.low %v353, %v354
      %v368 = vcombine.low %v355, %v356
      %v373 = vpack.c.bf16 %v366, %v365
      %v374 = vpack.c.bf16 %v368, %v367
      %377 = vrot.lane.b32.xlu0 %v373, 64
      %v378 = vpop.permute.xlu0 %377
      %379 = vrot.lane.b32.xlu0 %v374, 64
      %v380 = vpop.permute.xlu0 %379
      %vm383 = vcmask 654848
      %384 = vst.msk [vmem:[#allocation3] sm:$0xff] %vm383, %v378
      %385 = vst.msk [vmem:[#allocation3 + $0x10] sm:$0xff] %vm383, %v380
      %v386 = vld [vmem:[%s199 + $0x2] sm:$0xf]
      %v387 = vld [vmem:[%s199 + $0xa] sm:$0xf]
      %v388 = vld [vmem:[%s199 + $0x12] sm:$0xf]
      %v389 = vld [vmem:[%s199 + $0x1a] sm:$0xf]
      %v390 = vld [vmem:[%s199 + $0x22] sm:$0xf]
      %v391 = vld [vmem:[%s199 + $0x2a] sm:$0xf]
      %v392 = vld [vmem:[%s199 + $0x32] sm:$0xf]
      %v393 = vld [vmem:[%s199 + $0x3a] sm:$0xf]
      %v402 = vcombine.low %v386, %v387
      %v403 = vcombine.low %v388, %v389
      %v404 = vcombine.low %v390, %v391
      %v405 = vcombine.low %v392, %v393
      %v410 = vpack.c.bf16 %v403, %v402
      %v411 = vpack.c.bf16 %v405, %v404
      %414 = vrot.lane.b32.xlu0 %v410, 80
      %v415 = vpop.permute.xlu0 %414
      %416 = vrot.lane.b32.xlu0 %v411, 80
      %v417 = vpop.permute.xlu0 %416
      %vm420 = vcmask 786048
      %421 = vst.msk [vmem:[#allocation3] sm:$0xff] %vm420, %v415
      %422 = vst.msk [vmem:[#allocation3 + $0x10] sm:$0xff] %vm420, %v417
      %s423 = scalar_lea.vmem [#allocation2], 16
      %v424 = vld [vmem:[%s423] sm:$0xf]
      %v425 = vld [vmem:[%s423 + $0x8] sm:$0xf]
      %v426 = vld [vmem:[%s423 + $0x10] sm:$0xf]
      %v427 = vld [vmem:[%s423 + $0x18] sm:$0xf]
      %v428 = vld [vmem:[%s423 + $0x20] sm:$0xf]
      %v429 = vld [vmem:[%s423 + $0x28] sm:$0xf]
      %v430 = vld [vmem:[%s423 + $0x30] sm:$0xf]
      %v431 = vld [vmem:[%s423 + $0x38] sm:$0xf]
      %v440 = vcombine.low %v424, %v425
      %v441 = vcombine.low %v426, %v427
      %v442 = vcombine.low %v428, %v429
      %v443 = vcombine.low %v430, %v431
      %v448 = vpack.c.bf16 %v441, %v440
      %v449 = vpack.c.bf16 %v443, %v442
      %452 = vrot.lane.b32.xlu0 %v448, 96
      %v453 = vpop.permute.xlu0 %452
      %454 = vrot.lane.b32.xlu0 %v449, 96
      %v455 = vpop.permute.xlu0 %454
      %vm458 = vcmask 917248
      %459 = vst.msk [vmem:[#allocation3] sm:$0xff] %vm458, %v453
      %460 = vst.msk [vmem:[#allocation3 + $0x10] sm:$0xff] %vm458, %v455
      %v461 = vld [vmem:[%s423 + $0x1] sm:$0xf]
      %v462 = vld [vmem:[%s423 + $0x9] sm:$0xf]
      %v463 = vld [vmem:[%s423 + $0x11] sm:$0xf]
      %v464 = vld [vmem:[%s423 + $0x19] sm:$0xf]
      %v465 = vld [vmem:[%s423 + $0x21] sm:$0xf]
      %v466 = vld [vmem:[%s423 + $0x29] sm:$0xf]
      %v467 = vld [vmem:[%s423 + $0x31] sm:$0xf]
      %v468 = vld [vmem:[%s423 + $0x39] sm:$0xf]
      %v477 = vcombine.low %v461, %v462
      %v478 = vcombine.low %v463, %v464
      %v479 = vcombine.low %v465, %v466
      %v480 = vcombine.low %v467, %v468
      %v485 = vpack.c.bf16 %v478, %v477
      %v486 = vpack.c.bf16 %v480, %v479
      %489 = vrot.lane.b32.xlu0 %v485, 112
      %v490 = vpop.permute.xlu0 %489
      %491 = vrot.lane.b32.xlu0 %v486, 112
      %v492 = vpop.permute.xlu0 %491
      %vm495 = vcmask 1048448
      %496 = vst.msk [vmem:[#allocation3] sm:$0xff] %vm495, %v490
      %497 = vst.msk [vmem:[#allocation3 + $0x10] sm:$0xff] %vm495, %v492
      %v498 = vld [vmem:[%s423 + $0x2] sm:$0xf]
      %v499 = vld [vmem:[%s423 + $0xa] sm:$0xf]
      %v500 = vld [vmem:[%s423 + $0x12] sm:$0xf]
      %v501 = vld [vmem:[%s423 + $0x1a] sm:$0xf]
      %v502 = vld [vmem:[%s423 + $0x22] sm:$0xf]
      %v503 = vld [vmem:[%s423 + $0x2a] sm:$0xf]
      %v504 = vld [vmem:[%s423 + $0x32] sm:$0xf]
      %v505 = vld [vmem:[%s423 + $0x3a] sm:$0xf]
      %v514 = vcombine.low %v498, %v499
      %v515 = vcombine.low %v500, %v501
      %v516 = vcombine.low %v502, %v503
      %v517 = vcombine.low %v504, %v505
      %v522 = vpack.c.bf16 %v515, %v514
      %v523 = vpack.c.bf16 %v517, %v516
      %524 = vst.msk [vmem:[#allocation3 + $0x8] sm:$0xff] %vm235, %v522
      %525 = vst.msk [vmem:[#allocation3 + $0x18] sm:$0xff] %vm235, %v523
      %v526 = vld [vmem:[#allocation3] sm:$0xff]
      %v527 = vld [vmem:[#allocation3 + $0x8] sm:$0xff]
      %v528 = vld [vmem:[#allocation3 + $0x10] sm:$0xff]
      %v529 = vld [vmem:[#allocation3 + $0x18] sm:$0xff]
      %v530 = vld [vmem:[%s1] sm:$0xf]
      %v531 = vld [vmem:[%s1 + $0x4] sm:$0xf]
      %v532 = vld [vmem:[%s1 + $0x8] sm:$0xf]
      %v533 = vld [vmem:[%s1 + $0xc] sm:$0xf]
      %v534 = vld [vmem:[%s1 + $0x10] sm:$0xf]
      %v535 = vld [vmem:[%s1 + $0x14] sm:$0xf]
      %v536 = vld [vmem:[%s1 + $0x18] sm:$0xf]
      %v537 = vld [vmem:[%s1 + $0x1c] sm:$0xf]
      %v538 = vld [vmem:[%s1 + $0x20] sm:$0xf]
      %v539 = vld [vmem:[%s1 + $0x24] sm:$0xf]
      %v540 = vld [vmem:[%s1 + $0x28] sm:$0xf]
      %v541 = vld [vmem:[%s1 + $0x2c] sm:$0xf]
      %v542 = vld [vmem:[%s1 + $0x30] sm:$0xf]
      %v543 = vld [vmem:[%s1 + $0x34] sm:$0xf]
      %v544 = vld [vmem:[%s1 + $0x38] sm:$0xf]
      %v545 = vld [vmem:[%s1 + $0x3c] sm:$0xf]
      %v546 = vld [vmem:[%s1 + $0x40] sm:$0xf]
      %v547 = vld [vmem:[%s1 + $0x44] sm:$0xf]
      %v548 = vld [vmem:[%s2] sm:$0x1]
      %v550 = vlaneseq
      %v551 = vshrl.u32 %v550, 7
      %v552 = vsub.s32 0, %v551
      %v553 = vrot.slane %v548, %v552
      %v573 = vunpack.c.l.b16 %v530
      %v574 = vunpack.c.l.b16 %v531
      %v575 = vunpack.c.l.b16 %v532
      %v576 = vunpack.c.l.b16 %v533
      %v577 = vunpack.c.l.b16 %v534
      %v578 = vunpack.c.l.b16 %v535
      %v579 = vunpack.c.l.b16 %v536
      %v580 = vunpack.c.l.b16 %v537
      %v581 = vunpack.c.l.b16 %v538
      %v582 = vunpack.c.l.b16 %v539
      %v583 = vunpack.c.l.b16 %v540
      %v584 = vunpack.c.l.b16 %v541
      %v585 = vunpack.c.l.b16 %v542
      %v586 = vunpack.c.l.b16 %v543
      %v587 = vunpack.c.l.b16 %v544
      %v588 = vunpack.c.l.b16 %v545
      %v589 = vunpack.c.l.b16 %v546
      %v590 = vunpack.c.l.b16 %v547
      %v591 = vpack.c.b16 %v574, %v573
      %v592 = vpack.c.b16 %v576, %v575
      %v593 = vpack.c.b16 %v578, %v577
      %v594 = vpack.c.b16 %v580, %v579
      %v595 = vpack.c.b16 %v582, %v581
      %v596 = vpack.c.b16 %v584, %v583
      %v597 = vpack.c.b16 %v586, %v585
      %v598 = vpack.c.b16 %v588, %v587
      %v599 = vpack.c.b16 %v590, %v589
      %v610 = vsel %vm235, %v527, 0
      %v613 = vsel %vm235, %v529, 0
      %615 = vmatprep.subr.bf16.mxu0 0
      %616 = vmatpush1.bf16.msra.mxu0 %v591
      %617 = vmatprep.subr.bf16.mxu0 0
      %618 = vmatpush1.bf16.msra.mxu0 %v592
      %619 = vmatprep.subr.bf16.mxu0 0
      %620 = vmatpush1.bf16.msra.mxu0 %v593
      %621 = vmatprep.subr.bf16.mxu0 0
      %622 = vmatpush1.bf16.msra.mxu0 %v594
      %623 = vmatprep.subr.bf16.mxu0 0
      %624 = vmatpush1.bf16.msra.mxu0 %v595
      %625 = vmatprep.subr.bf16.mxu0 0
      %626 = vmatpush1.bf16.msra.mxu0 %v596
      %627 = vmatprep.subr.bf16.mxu0 0
      %628 = vmatpush1.bf16.msra.mxu0 %v597
      %629 = vmatprep.subr.bf16.mxu0 0
      %630 = vmatpush1.bf16.msra.mxu0 %v598
      %631 = vmatprep.subr.bf16.mxu0 0
      %632 = vmatpush1.bf16.msra.mxu0 %v599
      %633 = vmatprep.subr.bf16.mxu0 0
      %634 = vmatpush1.bf16.msra.mxu0 0
      %635 = vmatprep.subr.bf16.mxu0 0
      %636 = vmatpush1.bf16.msra.mxu0 0
      %637 = vmatprep.subr.bf16.mxu0 0
      %638 = vmatpush1.bf16.msra.mxu0 0
      %639 = vmatprep.subr.bf16.mxu0 0
      %640 = vmatpush1.bf16.msra.mxu0 0
      %641 = vmatprep.subr.bf16.mxu0 0
      %642 = vmatpush1.bf16.msra.mxu0 0
      %643 = vmatprep.subr.bf16.mxu0 0
      %644 = vmatpush1.bf16.msra.mxu0 0
      %645 = vmatprep.subr.bf16.mxu0 0
      %646 = vmatpush1.bf16.msra.mxu0 0
      %647 = vmatprep.mubr.bf16.mxu0 %v610
      %648 = vmatmul.mubr.bf16.gmra.mrb[0].mxu0 %v526
      %v649 = vpop.f32.mrb[0].mxu0
      %v650 = vadd.f32 %v553, %v649
      %v651 = vpop.f32.mrb[0].mxu0
      %v652 = vpop.f32.mrb[0].mxu0
      %v653 = vadd.f32 %v553, %v652
      %v654 = vpop.f32.mrb[0].mxu0
      %655 = vmatprep.mubr.bf16.mxu0 %v613
      %656 = vmatmul.mubr.bf16.gmra.mrb[0].mxu0 %v528
      %v657 = vpop.f32.mrb[0].mxu0
      %v658 = vadd.f32 %v553, %v657
      %v659 = vpop.f32.mrb[0].mxu0
      %v660 = vpop.f32.mrb[0].mxu0
      %v661 = vadd.f32 %v553, %v660
      %v662 = vpop.f32.mrb[0].mxu0
      %663 = vdwg.mxu0
      %v664 = vmax.f32 %v650, 0.0
      %v665 = vmax.f32 %v653, 0.0
      %v666 = vmax.f32 %v658, 0.0
      %v667 = vmax.f32 %v661, 0.0
      %v672 = vcombine.high %v664, %v664
      %v673 = vcombine.high %v665, %v665
      %v674 = vcombine.high %v666, %v666
      %v675 = vcombine.high %v667, %v667
      %v680 = vpack.c.bf16 %v664, %v664
      %v681 = vpack.c.bf16 %v672, %v672
      %v682 = vpack.c.bf16 %v665, %v665
      %v683 = vpack.c.bf16 %v673, %v673
      %v684 = vpack.c.bf16 %v666, %v666
      %v685 = vpack.c.bf16 %v674, %v674
      %v686 = vpack.c.bf16 %v667, %v667
      %v687 = vpack.c.bf16 %v675, %v675
      %vm688 = vcmask 254976
      %689 = vst.msk [vmem:[%s170] sm:$0x3] %vm688, %v680
      %690 = vst.msk [vmem:[%s170 + $0x2] sm:$0x3] %vm688, %v681
      %691 = vst.msk [vmem:[%s170 + $0x4] sm:$0x3] %vm688, %v682
      %692 = vst.msk [vmem:[%s170 + $0x6] sm:$0x3] %vm688, %v683
      %693 = vst.msk [vmem:[%s170 + $0x8] sm:$0x3] %vm688, %v684
      %694 = vst.msk [vmem:[%s170 + $0xa] sm:$0x3] %vm688, %v685
      %695 = vst.msk [vmem:[%s170 + $0xc] sm:$0x3] %vm688, %v686
      %696 = vst.msk [vmem:[%s170 + $0xe] sm:$0x3] %vm688, %v687
      %p697 = scmp.lt.s32.totalorder %s14, 1
      %s698 = scalar_select %p697, %s14, 1
      %s699 = smul.addr %s698, 8
      %s700 = smul.addr %s699, 2
      %s701 = scalar_lea.vmem %s3, %s700
      // Predicated region
      $region33: #{vgg_feature_extractor.9} parent=31 // pred_check
        %p702 = pneg %p100
      $region34: #{vgg_feature_extractor.9} parent=31 // pred_check_branch
        %704 = sbr.rel (%p702) target = $region36
      $region35: #{vgg_feature_extractor.9} parent=31 // pred_region
        _
      $region36: #{vgg_feature_extractor.9} parent=31 // pred_fallthru
        _
    $region32: #{vgg_feature_extractor.9} parent=5 // pred_fallthru
      _
    %p705 = scmp.le.s32.totalorder 2, %s9
    // Predicated region
    $region37: #{vgg_feature_extractor.9} parent=5 // pred_check
      %p706 = pneg %p705
    $region38: #{vgg_feature_extractor.9} parent=5 // pred_check_branch
      %708 = sbr.rel (%p706) target = $region40
    $region39: #{vgg_feature_extractor.9} parent=5 // pred_region
      %s709 = ssub.s32 %s9, 2
      // Predicated region
      $region41: #{vgg_feature_extractor.9} parent=39 // pred_check
        %p710 = pneg %p106
      $region42: #{vgg_feature_extractor.9} parent=39 // pred_check_branch
        %712 = sbr.rel (%p710) target = $region44
      $region43: #{vgg_feature_extractor.9} parent=39 // pred_region
        %p713 = scmp.lt.s32.totalorder %s15, 1
        %s714 = scalar_select %p713, %s15, 1
        %s715 = smul.addr %s714, 8
        %s716 = smul.addr %s715, 2
        %s717 = scalar_lea.vmem %s3, %s716
      $region44: #{vgg_feature_extractor.9} parent=39 // pred_fallthru
        _
    $region40: #{vgg_feature_extractor.9} parent=5 // pred_fallthru
      _
  $region6: #{vgg_feature_extractor.9} parent=0 // loop_footer
    %s13 = sadd.s32 1, %s9
  $region7: #{vgg_feature_extractor.9} parent=0 // loop_footer_branch
    %8 = sbr.rel target = $region3
  $region8: #{vgg_feature_extractor.9} parent=0 // loop_exit
    _

// kernel: vgg_feature_extractor.8
$region0: #{vgg_feature_extractor.8}
  #allocation0 [shape = 'u32[]', space=smem, size = 0x4, offset = 0x4, fixed_abs, tag = 'smem constant byte address 0x4 - core index']
  #allocation1 [shape = 'u32[144,128]{1,0:T(1,128)}', space=vmem, size = 0x12000, scoped, tag = 'internal scratch']
  #allocation2 [shape = 'f32[1,18,10,8]{3,2,1,0:T(8,128)}', space=vmem, size = 0x24000, scoped, tag = 'scratch operand']
  #allocation3 [shape = 'bf16[128,72]{1,0:T(16,128)(2,1)}', space=vmem, size = 0x8000, scoped, tag = 'scratch operand']
  #allocation4 [shape = 'f32[1,16,8,16]{3,2,1,0:T(8,128)}', space=vmem, size = 0x10000, scoped, tag = 'scratch operand']
  %s0 = inlined_call_operand.vmem [shape: bf16[2,16,8,8], index: 0, kind: input, shape index: {}]
  %s1 = inlined_call_operand.vmem [shape: bf16[72,16], index: 1, kind: input, shape index: {}]
  %s2 = inlined_call_operand.vmem [shape: f32[1,16], index: 2, kind: input, shape index: {}]
  %s3 = inlined_call_operand.vmem [shape: bf16[2,8,4,16], index: 3, kind: output, shape index: {}]
  %s4 = sld [smem:[#allocation0]]
  $region45: #{vgg_feature_extractor.8} parent=0
    _
  %s6 = ssub.s32 1, %s4
  %s7 = scalar_select 0, %s6, %s4
  loop: start=0, step=1, limit=4
  $region2: #{vgg_feature_extractor.8} parent=0 // loop_pre_header
    _
  $region3: #{vgg_feature_extractor.8} parent=0 // loop_header
    %s9 = sphi 0, %s13
    %p10 = scmp.ge.s32.totalorder %s9, 4
    %s19 = sphi 0, %s21
    %s22 = sphi 0, %s19
    %s23 = sphi 0, %s22
    %s39 = sphi 0, %s23
    %s43 = sphi 0, %s43
    %s45 = sphi 0, %s43
    %s46 = sphi 0, %s45
    %s60 = sphi 0, %s46
    %s64 = sphi 0, %s64
    %s66 = sphi 0, %s64
    %s67 = sphi 0, %s66
    %s81 = sphi 0, %s67
    %s87 = sphi 0, %s89
    %s90 = sphi 0, %s87
    %s91 = sphi 0, %s90
    %s107 = sphi 0, %s91
  $region4: #{vgg_feature_extractor.8} parent=0 // loop_header_branch
    %12 = sbr.rel (%p10) target = $region8
  $region5: #{vgg_feature_extractor.8} parent=0 // loop_body
    %s14 = ssub.s32 %s9, 1
    %s15 = ssub.s32 %s9, 2
    %s16 = sadd.s32 %s9, 1
    %s17 = ssub.s32 %s9, %s16
    %p18 = scmp.eq.s32.totalorder %s17, 0
    %s20 = sadd.s32 %s19, 1
    %s21 = scalar_select %p18, %s19, %s20
    %p24 = pneg %p18
    %p25 = scmp.eq.s32.totalorder %s9, 1
    %p26 = por %p24, %p25
    %p27 = scmp.ne.s32.totalorder %s19, %s22
    %p28 = scmp.eq.s32.totalorder %s9, 0
    %p29 = por %p27, %p28
    %p30 = scmp.ne.s32.totalorder %s19, %s22
    %p31 = scmp.eq.s32.totalorder %s14, 1
    %p32 = por %p30, %p31
    %p33 = scmp.ne.s32.totalorder %s22, %s23
    %p34 = scmp.eq.s32.totalorder %s14, 0
    %p35 = por %p33, %p34
    %p36 = scmp.ne.s32.totalorder %s22, %s23
    %p37 = scmp.eq.s32.totalorder %s15, 1
    %p38 = por %p36, %p37
    %p40 = scmp.ne.s32.totalorder %s23, %s39
    %p41 = scmp.eq.s32.totalorder %s15, 0
    %p42 = por %p40, %p41
    %s44 = sadd.s32 %s43, 1
    %p47 = scmp.eq.s32.totalorder %s9, 1
    %p48 = scmp.ne.s32.totalorder %s43, %s45
    %p49 = scmp.eq.s32.totalorder %s9, 0
    %p50 = por %p48, %p49
    %p51 = scmp.ne.s32.totalorder %s43, %s45
    %p52 = scmp.eq.s32.totalorder %s14, 1
    %p53 = por %p51, %p52
    %p54 = scmp.ne.s32.totalorder %s45, %s46
    %p55 = scmp.eq.s32.totalorder %s14, 0
    %p56 = por %p54, %p55
    %p57 = scmp.ne.s32.totalorder %s45, %s46
    %p58 = scmp.eq.s32.totalorder %s15, 1
    %p59 = por %p57, %p58
    %p61 = scmp.ne.s32.totalorder %s46, %s60
    %p62 = scmp.eq.s32.totalorder %s15, 0
    %p63 = por %p61, %p62
    %s65 = sadd.s32 %s64, 1
    %p68 = scmp.eq.s32.totalorder %s9, 1
    %p69 = scmp.ne.s32.totalorder %s64, %s66
    %p70 = scmp.eq.s32.totalorder %s9, 0
    %p71 = por %p69, %p70
    %p72 = scmp.ne.s32.totalorder %s64, %s66
    %p73 = scmp.eq.s32.totalorder %s14, 1
    %p74 = por %p72, %p73
    %p75 = scmp.ne.s32.totalorder %s66, %s67
    %p76 = scmp.eq.s32.totalorder %s14, 0
    %p77 = por %p75, %p76
    %p78 = scmp.ne.s32.totalorder %s66, %s67
    %p79 = scmp.eq.s32.totalorder %s15, 1
    %p80 = por %p78, %p79
    %p82 = scmp.ne.s32.totalorder %s67, %s81
    %p83 = scmp.eq.s32.totalorder %s15, 0
    %p84 = por %p82, %p83
    %s85 = ssub.s32 %s9, %s16
    %p86 = scmp.eq.s32.totalorder %s85, 0
    %s88 = sadd.s32 %s87, 1
    %s89 = scalar_select %p86, %s87, %s88
    %p92 = pneg %p86
    %p93 = scmp.eq.s32.totalorder %s9, 1
    %p94 = por %p92, %p93
    %p95 = scmp.ne.s32.totalorder %s87, %s90
    %p96 = scmp.eq.s32.totalorder %s9, 0
    %p97 = por %p95, %p96
    %p98 = scmp.ne.s32.totalorder %s87, %s90
    %p99 = scmp.eq.s32.totalorder %s14, 1
    %p100 = por %p98, %p99
    %p101 = scmp.ne.s32.totalorder %s90, %s91
    %p102 = scmp.eq.s32.totalorder %s14, 0
    %p103 = por %p101, %p102
    %p104 = scmp.ne.s32.totalorder %s90, %s91
    %p105 = scmp.eq.s32.totalorder %s15, 1
    %p106 = por %p104, %p105
    %p108 = scmp.ne.s32.totalorder %s91, %s107
    %p109 = scmp.eq.s32.totalorder %s15, 0
    %p110 = por %p108, %p109
    %p111 = scmp.le.s32.totalorder 1, %s9
    %p112 = scmp.lt.s32.totalorder %s9, 3
    %p113 = pnand %p111, %p112
    %p114 = pneg %p113
    // Predicated region
    $region9: #{vgg_feature_extractor.8} parent=5 // pred_check
      _
    $region10: #{vgg_feature_extractor.8} parent=5 // pred_check_branch
      %116 = sbr.rel (%p113) target = $region12
    $region11: #{vgg_feature_extractor.8} parent=5 // pred_region
      %s117 = ssub.s32 %s9, 1
      // Predicated region
      $region13: #{vgg_feature_extractor.8} parent=11 // pred_check
        %p118 = pneg %p56
      $region14: #{vgg_feature_extractor.8} parent=11 // pred_check_branch
        %120 = sbr.rel (%p118) target = $region16
      $region15: #{vgg_feature_extractor.8} parent=11 // pred_region
        _
      $region16: #{vgg_feature_extractor.8} parent=11 // pred_fallthru
        _
      // Predicated region
      $region17: #{vgg_feature_extractor.8} parent=11 // pred_check
        %p121 = pneg %p77
      $region18: #{vgg_feature_extractor.8} parent=11 // pred_check_branch
        %123 = sbr.rel (%p121) target = $region20
      $region19: #{vgg_feature_extractor.8} parent=11 // pred_region
        _
      $region20: #{vgg_feature_extractor.8} parent=11 // pred_fallthru
        _
    $region12: #{vgg_feature_extractor.8} parent=5 // pred_fallthru
      _
    %p124 = scmp.lt.s32.totalorder %s9, 2
    // Predicated region
    $region21: #{vgg_feature_extractor.8} parent=5 // pred_check
      %p125 = pneg %p124
    $region22: #{vgg_feature_extractor.8} parent=5 // pred_check_branch
      %127 = sbr.rel (%p125) target = $region24
    $region23: #{vgg_feature_extractor.8} parent=5 // pred_region
      // Predicated region
      $region25: #{vgg_feature_extractor.8} parent=23 // pred_check
        %p128 = pneg %p29
      $region26: #{vgg_feature_extractor.8} parent=23 // pred_check_branch
        %130 = sbr.rel (%p128) target = $region28
      $region27: #{vgg_feature_extractor.8} parent=23 // pred_region
        %p131 = scmp.lt.s32.totalorder %s9, 1
        %s132 = scalar_select %p131, %s9, 1
        %s133 = smul.addr %s132, 16
        %s134 = smul.addr %s133, 4
        %s135 = scalar_lea.vmem %s0, %s134
      $region28: #{vgg_feature_extractor.8} parent=23 // pred_fallthru
        _
    $region24: #{vgg_feature_extractor.8} parent=5 // pred_fallthru
      _
    %p136 = scmp.le.s32.totalorder 1, %s9
    %p137 = scmp.lt.s32.totalorder %s9, 3
    %p138 = pnand %p136, %p137
    %p139 = pneg %p138
    // Predicated region
    $region29: #{vgg_feature_extractor.8} parent=5 // pred_check
      _
    $region30: #{vgg_feature_extractor.8} parent=5 // pred_check_branch
      %141 = sbr.rel (%p138) target = $region32
    $region31: #{vgg_feature_extractor.8} parent=5 // pred_region
      %s142 = ssub.s32 %s9, 1
      %p143 = scmp.lt.s32.totalorder %s14, 1
      %s144 = scalar_select %p143, %s14, 1
      %s145 = smul.addr %s144, 16
      %s146 = smul.addr %s145, 4
      %s147 = scalar_lea.vmem %s0, %s146
      %p148 = pneg %p35
      %p149 = pneg %p32
      %p150 = pneg %p56
      %p151 = pneg %p53
      %p152 = pneg %p77
      %p153 = pneg %p74
      %p154 = pneg %p103
      %p155 = pneg %p100
      %p156 = scmp.lt.s32.totalorder %s14, 1
      %s157 = scalar_select %p156, %s14, 1
      %s158 = smul.addr %s157, 8
      %s159 = smul.addr %s158, 2
      %s160 = scalar_lea.vmem %s3, %s159
      %p161 = scmp.lt.s32.totalorder %s14, 1
      %s162 = scalar_select %p161, %s14, 1
      %s163 = smul.addr %s162, 16
      %s164 = smul.addr %s163, 4
      %s165 = scalar_lea.vmem %s0, %s164
      %p166 = scmp.lt.s32.totalorder %s14, 1
      %s167 = scalar_select %p166, %s14, 1
      %s168 = smul.addr %s167, 8
      %s169 = smul.addr %s168, 2
      %s170 = scalar_lea.vmem %s3, %s169
      %vm172 = vcmask 64512
      %173 = vst.msk [vmem:[#allocation2] sm:$0xff] %vm172, 0.0
      %vm174 = vcmask 58368
      %175 = vst.msk [vmem:[#allocation2 + $0x8] sm:$0x3] %vm174, 0.0
      %176 = vst.msk [vmem:[#allocation2 + $0x10] sm:$0xff] %vm172, 0.0
      %177 = vst.msk [vmem:[#allocation2 + $0x18] sm:$0x3] %vm174, 0.0
      %178 = vst.msk [vmem:[#allocation2 + $0x20] sm:$0xff] %vm172, 0.0
      %179 = vst.msk [vmem:[#allocation2 + $0x28] sm:$0x3] %vm174, 0.0
      %180 = vst.msk [vmem:[#allocation2 + $0x30] sm:$0xff] %vm172, 0.0
      %181 = vst.msk [vmem:[#allocation2 + $0x38] sm:$0x3] %vm174, 0.0
      %182 = vst.msk [vmem:[#allocation2 + $0x40] sm:$0xff] %vm172, 0.0
      %183 = vst.msk [vmem:[#allocation2 + $0x48] sm:$0x3] %vm174, 0.0
      %184 = vst.msk [vmem:[#allocation2 + $0x50] sm:$0xff] %vm172, 0.0
      %185 = vst.msk [vmem:[#allocation2 + $0x58] sm:$0x3] %vm174, 0.0
      %186 = vst.msk [vmem:[#allocation2 + $0x60] sm:$0xff] %vm172, 0.0
      %187 = vst.msk [vmem:[#allocation2 + $0x68] sm:$0x3] %vm174, 0.0
      %188 = vst.msk [vmem:[#allocation2 + $0x70] sm:$0xff] %vm172, 0.0
      %189 = vst.msk [vmem:[#allocation2 + $0x78] sm:$0x3] %vm174, 0.0
      %190 = vst.msk [vmem:[#allocation2 + $0x80] sm:$0xff] %vm172, 0.0
      %191 = vst.msk [vmem:[#allocation2 + $0x88] sm:$0x3] %vm174, 0.0
      %192 = vst.msk [vmem:[#allocation2 + $0x90] sm:$0xff] %vm172, 0.0
      %193 = vst.msk [vmem:[#allocation2 + $0x98] sm:$0x3] %vm174, 0.0
      %194 = vst.msk [vmem:[#allocation2 + $0xa0] sm:$0xff] %vm172, 0.0
      %195 = vst.msk [vmem:[#allocation2 + $0xa8] sm:$0x3] %vm174, 0.0
      %196 = vst.msk [vmem:[#allocation2 + $0xb0] sm:$0xff] %vm172, 0.0
      %197 = vst.msk [vmem:[#allocation2 + $0xb8] sm:$0x3] %vm174, 0.0
      %198 = vst.msk [vmem:[#allocation2 + $0xc0] sm:$0xff] %vm172, 0.0
      %199 = vst.msk [vmem:[#allocation2 + $0xc8] sm:$0x3] %vm174, 0.0
      %200 = vst.msk [vmem:[#allocation2 + $0xd0] sm:$0xff] %vm172, 0.0
      %201 = vst.msk [vmem:[#allocation2 + $0xd8] sm:$0x3] %vm174, 0.0
      %202 = vst.msk [vmem:[#allocation2 + $0xe0] sm:$0xff] %vm172, 0.0
      %203 = vst.msk [vmem:[#allocation2 + $0xe8] sm:$0x3] %vm174, 0.0
      %204 = vst.msk [vmem:[#allocation2 + $0xf0] sm:$0xff] %vm172, 0.0
      %205 = vst.msk [vmem:[#allocation2 + $0xf8] sm:$0x3] %vm174, 0.0
      %206 = vst.msk [vmem:[#allocation2 + $0x100] sm:$0xff] %vm172, 0.0
      %207 = vst.msk [vmem:[#allocation2 + $0x108] sm:$0x3] %vm174, 0.0
      %208 = vst.msk [vmem:[#allocation2 + $0x110] sm:$0xff] %vm172, 0.0
      %209 = vst.msk [vmem:[#allocation2 + $0x118] sm:$0x3] %vm174, 0.0
      %v210 = vld [vmem:[%s165] sm:$0xf]
      %v211 = vld [vmem:[%s165 + $0x4] sm:$0xf]
      %v212 = vld [vmem:[%s165 + $0x8] sm:$0xf]
      %v213 = vld [vmem:[%s165 + $0xc] sm:$0xf]
      %v214 = vld [vmem:[%s165 + $0x10] sm:$0xf]
      %v215 = vld [vmem:[%s165 + $0x14] sm:$0xf]
      %v216 = vld [vmem:[%s165 + $0x18] sm:$0xf]
      %v217 = vld [vmem:[%s165 + $0x1c] sm:$0xf]
      %v218 = vld [vmem:[%s165 + $0x20] sm:$0xf]
      %v219 = vld [vmem:[%s165 + $0x24] sm:$0xf]
      %v220 = vld [vmem:[%s165 + $0x28] sm:$0xf]
      %v221 = vld [vmem:[%s165 + $0x2c] sm:$0xf]
      %v222 = vld [vmem:[%s165 + $0x30] sm:$0xf]
      %v223 = vld [vmem:[%s165 + $0x34] sm:$0xf]
      %v224 = vld [vmem:[%s165 + $0x38] sm:$0xf]
      %v225 = vld [vmem:[%s165 + $0x3c] sm:$0xf]
      %v226 = vunpack.c.l.bf16 %v210
      %v227 = vunpack.c.l.bf16 %v211
      %v228 = vunpack.c.l.bf16 %v212
      %v229 = vunpack.c.l.bf16 %v213
      %v230 = vunpack.c.l.bf16 %v214
      %v231 = vunpack.c.l.bf16 %v215
      %v232 = vunpack.c.l.bf16 %v216
      %v233 = vunpack.c.l.bf16 %v217
      %v234 = vunpack.c.l.bf16 %v218
      %v235 = vunpack.c.l.bf16 %v219
      %v236 = vunpack.c.l.bf16 %v220
      %v237 = vunpack.c.l.bf16 %v221
      %v238 = vunpack.c.l.bf16 %v222
      %v239 = vunpack.c.l.bf16 %v223
      %v240 = vunpack.c.l.bf16 %v224
      %v241 = vunpack.c.l.bf16 %v225
      %s242 = scalar_lea.vmem [#allocation2], 16
      %243 = vst.msk [vmem:[%s242 + $0x1] sm:$0xff] %vm172, %v226
      %244 = vst.msk [vmem:[%s242 + $0x11] sm:$0xff] %vm172, %v227
      %245 = vst.msk [vmem:[%s242 + $0x21] sm:$0xff] %vm172, %v228
      %246 = vst.msk [vmem:[%s242 + $0x31] sm:$0xff] %vm172, %v229
      %247 = vst.msk [vmem:[%s242 + $0x41] sm:$0xff] %vm172, %v230
      %248 = vst.msk [vmem:[%s242 + $0x51] sm:$0xff] %vm172, %v231
      %249 = vst.msk [vmem:[%s242 + $0x61] sm:$0xff] %vm172, %v232
      %250 = vst.msk [vmem:[%s242 + $0x71] sm:$0xff] %vm172, %v233
      %251 = vst.msk [vmem:[%s242 + $0x81] sm:$0xff] %vm172, %v234
      %252 = vst.msk [vmem:[%s242 + $0x91] sm:$0xff] %vm172, %v235
      %253 = vst.msk [vmem:[%s242 + $0xa1] sm:$0xff] %vm172, %v236
      %254 = vst.msk [vmem:[%s242 + $0xb1] sm:$0xff] %vm172, %v237
      %255 = vst.msk [vmem:[%s242 + $0xc1] sm:$0xff] %vm172, %v238
      %256 = vst.msk [vmem:[%s242 + $0xd1] sm:$0xff] %vm172, %v239
      %257 = vst.msk [vmem:[%s242 + $0xe1] sm:$0xff] %vm172, %v240
      %258 = vst.msk [vmem:[%s242 + $0xf1] sm:$0xff] %vm172, %v241
      %v259 = vld [vmem:[#allocation2] sm:$0xff]
      %v260 = vld [vmem:[#allocation2 + $0x10] sm:$0xff]
      %v261 = vld [vmem:[#allocation2 + $0x20] sm:$0xff]
      %v262 = vld [vmem:[#allocation2 + $0x30] sm:$0xff]
      %v263 = vld [vmem:[#allocation2 + $0x40] sm:$0xff]
      %v264 = vld [vmem:[#allocation2 + $0x50] sm:$0xff]
      %v265 = vld [vmem:[#allocation2 + $0x60] sm:$0xff]
      %v266 = vld [vmem:[#allocation2 + $0x70] sm:$0xff]
      %v267 = vld [vmem:[#allocation2 + $0x80] sm:$0xff]
      %v268 = vld [vmem:[#allocation2 + $0x90] sm:$0xff]
      %v269 = vld [vmem:[#allocation2 + $0xa0] sm:$0xff]
      %v270 = vld [vmem:[#allocation2 + $0xb0] sm:$0xff]
      %v271 = vld [vmem:[#allocation2 + $0xc0] sm:$0xff]
      %v272 = vld [vmem:[#allocation2 + $0xd0] sm:$0xff]
      %v273 = vld [vmem:[#allocation2 + $0xe0] sm:$0xff]
      %v274 = vld [vmem:[#allocation2 + $0xf0] sm:$0xff]
      %v275 = vpack.c.bf16 %v260, %v259
      %v276 = vpack.c.bf16 %v262, %v261
      %v277 = vpack.c.bf16 %v264, %v263
      %v278 = vpack.c.bf16 %v266, %v265
      %v279 = vpack.c.bf16 %v268, %v267
      %v280 = vpack.c.bf16 %v270, %v269
      %v281 = vpack.c.bf16 %v272, %v271
      %v282 = vpack.c.bf16 %v274, %v273
      %283 = vst.msk [vmem:[#allocation3] sm:$0xff] %vm172, %v275
      %284 = vst.msk [vmem:[#allocation3 + $0x8] sm:$0xff] %vm172, %v276
      %285 = vst.msk [vmem:[#allocation3 + $0x10] sm:$0xff] %vm172, %v277
      %286 = vst.msk [vmem:[#allocation3 + $0x18] sm:$0xff] %vm172, %v278
      %287 = vst.msk [vmem:[#allocation3 + $0x20] sm:$0xff] %vm172, %v279
      %288 = vst.msk [vmem:[#allocation3 + $0x28] sm:$0xff] %vm172, %v280
      %289 = vst.msk [vmem:[#allocation3 + $0x30] sm:$0xff] %vm172, %v281
      %290 = vst.msk [vmem:[#allocation3 + $0x38] sm:$0xff] %vm172, %v282
      %v291 = vld [vmem:[#allocation2 + $0x1] sm:$0xff]
      %v292 = vld [vmem:[#allocation2 + $0x11] sm:$0xff]
      %v293 = vld [vmem:[#allocation2 + $0x21] sm:$0xff]
      %v294 = vld [vmem:[#allocation2 + $0x31] sm:$0xff]
      %v295 = vld [vmem:[#allocation2 + $0x41] sm:$0xff]
      %v296 = vld [vmem:[#allocation2 + $0x51] sm:$0xff]
      %v297 = vld [vmem:[#allocation2 + $0x61] sm:$0xff]
      %v298 = vld [vmem:[#allocation2 + $0x71] sm:$0xff]
      %v299 = vld [vmem:[#allocation2 + $0x81] sm:$0xff]
      %v300 = vld [vmem:[#allocation2 + $0x91] sm:$0xff]
      %v301 = vld [vmem:[#allocation2 + $0xa1] sm:$0xff]
      %v302 = vld [vmem:[#allocation2 + $0xb1] sm:$0xff]
      %v303 = vld [vmem:[#allocation2 + $0xc1] sm:$0xff]
      %v304 = vld [vmem:[#allocation2 + $0xd1] sm:$0xff]
      %v305 = vld [vmem:[#allocation2 + $0xe1] sm:$0xff]
      %v306 = vld [vmem:[#allocation2 + $0xf1] sm:$0xff]
      %v307 = vpack.c.bf16 %v292, %v291
      %v308 = vpack.c.bf16 %v294, %v293
      %v309 = vpack.c.bf16 %v296, %v295
      %v310 = vpack.c.bf16 %v298, %v297
      %v311 = vpack.c.bf16 %v300, %v299
      %v312 = vpack.c.bf16 %v302, %v301
      %v313 = vpack.c.bf16 %v304, %v303
      %v314 = vpack.c.bf16 %v306, %v305
      %323 = vrot.lane.b32.xlu0 %v307, 8
      %v324 = vpop.permute.xlu0 %323
      %325 = vrot.lane.b32.xlu0 %v308, 8
      %v326 = vpop.permute.xlu0 %325
      %327 = vrot.lane.b32.xlu0 %v309, 8
      %v328 = vpop.permute.xlu0 %327
      %329 = vrot.lane.b32.xlu0 %v310, 8
      %v330 = vpop.permute.xlu0 %329
      %331 = vrot.lane.b32.xlu0 %v311, 8
      %v332 = vpop.permute.xlu0 %331
      %333 = vrot.lane.b32.xlu0 %v312, 8
      %v334 = vpop.permute.xlu0 %333
      %335 = vrot.lane.b32.xlu0 %v313, 8
      %v336 = vpop.permute.xlu0 %335
      %337 = vrot.lane.b32.xlu0 %v314, 8
      %v338 = vpop.permute.xlu0 %337
      %vm347 = vcmask 130112
      %348 = vst.msk [vmem:[#allocation3] sm:$0xff] %vm347, %v324
      %349 = vst.msk [vmem:[#allocation3 + $0x8] sm:$0xff] %vm347, %v326
      %350 = vst.msk [vmem:[#allocation3 + $0x10] sm:$0xff] %vm347, %v328
      %351 = vst.msk [vmem:[#allocation3 + $0x18] sm:$0xff] %vm347, %v330
      %352 = vst.msk [vmem:[#allocation3 + $0x20] sm:$0xff] %vm347, %v332
      %353 = vst.msk [vmem:[#allocation3 + $0x28] sm:$0xff] %vm347, %v334
      %354 = vst.msk [vmem:[#allocation3 + $0x30] sm:$0xff] %vm347, %v336
      %355 = vst.msk [vmem:[#allocation3 + $0x38] sm:$0xff] %vm347, %v338
      %v356 = vld [vmem:[#allocation2 + $0x2] sm:$0xff]
      %v357 = vld [vmem:[#allocation2 + $0x12] sm:$0xff]
      %v358 = vld [vmem:[#allocation2 + $0x22] sm:$0xff]
      %v359 = vld [vmem:[#allocation2 + $0x32] sm:$0xff]
      %v360 = vld [vmem:[#allocation2 + $0x42] sm:$0xff]
      %v361 = vld [vmem:[#allocation2 + $0x52] sm:$0xff]
      %v362 = vld [vmem:[#allocation2 + $0x62] sm:$0xff]
      %v363 = vld [vmem:[#allocation2 + $0x72] sm:$0xff]
      %v364 = vld [vmem:[#allocation2 + $0x82] sm:$0xff]
      %v365 = vld [vmem:[#allocation2 + $0x92] sm:$0xff]
      %v366 = vld [vmem:[#allocation2 + $0xa2] sm:$0xff]
      %v367 = vld [vmem:[#allocation2 + $0xb2] sm:$0xff]
      %v368 = vld [vmem:[#allocation2 + $0xc2] sm:$0xff]
      %v369 = vld [vmem:[#allocation2 + $0xd2] sm:$0xff]
      %v370 = vld [vmem:[#allocation2 + $0xe2] sm:$0xff]
      %v371 = vld [vmem:[#allocation2 + $0xf2] sm:$0xff]
      %v372 = vpack.c.bf16 %v357, %v356
      %v373 = vpack.c.bf16 %v359, %v358
      %v374 = vpack.c.bf16 %v361, %v360
      %v375 = vpack.c.bf16 %v363, %v362
      %v376 = vpack.c.bf16 %v365, %v364
      %v377 = vpack.c.bf16 %v367, %v366
      %v378 = vpack.c.bf16 %v369, %v368
      %v379 = vpack.c.bf16 %v371, %v370
      %388 = vrot.lane.b32.xlu0 %v372, 16
      %v389 = vpop.permute.xlu0 %388
      %390 = vrot.lane.b32.xlu0 %v373, 16
      %v391 = vpop.permute.xlu0 %390
      %392 = vrot.lane.b32.xlu0 %v374, 16
      %v393 = vpop.permute.xlu0 %392
      %394 = vrot.lane.b32.xlu0 %v375, 16
      %v395 = vpop.permute.xlu0 %394
      %396 = vrot.lane.b32.xlu0 %v376, 16
      %v397 = vpop.permute.xlu0 %396
      %398 = vrot.lane.b32.xlu0 %v377, 16
      %v399 = vpop.permute.xlu0 %398
      %400 = vrot.lane.b32.xlu0 %v378, 16
      %v401 = vpop.permute.xlu0 %400
      %402 = vrot.lane.b32.xlu0 %v379, 16
      %v403 = vpop.permute.xlu0 %402
      %vm412 = vcmask 195712
      %413 = vst.msk [vmem:[#allocation3] sm:$0xff] %vm412, %v389
      %414 = vst.msk [vmem:[#allocation3 + $0x8] sm:$0xff] %vm412, %v391
      %415 = vst.msk [vmem:[#allocation3 + $0x10] sm:$0xff] %vm412, %v393
      %416 = vst.msk [vmem:[#allocation3 + $0x18] sm:$0xff] %vm412, %v395
      %417 = vst.msk [vmem:[#allocation3 + $0x20] sm:$0xff] %vm412, %v397
      %418 = vst.msk [vmem:[#allocation3 + $0x28] sm:$0xff] %vm412, %v399
      %419 = vst.msk [vmem:[#allocation3 + $0x30] sm:$0xff] %vm412, %v401
      %420 = vst.msk [vmem:[#allocation3 + $0x38] sm:$0xff] %vm412, %v403
      %v421 = vld [vmem:[%s242] sm:$0xff]
      %v422 = vld [vmem:[%s242 + $0x10] sm:$0xff]
      %v423 = vld [vmem:[%s242 + $0x20] sm:$0xff]
      %v424 = vld [vmem:[%s242 + $0x30] sm:$0xff]
      %v425 = vld [vmem:[%s242 + $0x40] sm:$0xff]
      %v426 = vld [vmem:[%s242 + $0x50] sm:$0xff]
      %v427 = vld [vmem:[%s242 + $0x60] sm:$0xff]
      %v428 = vld [vmem:[%s242 + $0x70] sm:$0xff]
      %v429 = vld [vmem:[%s242 + $0x80] sm:$0xff]
      %v430 = vld [vmem:[%s242 + $0x90] sm:$0xff]
      %v431 = vld [vmem:[%s242 + $0xa0] sm:$0xff]
      %v432 = vld [vmem:[%s242 + $0xb0] sm:$0xff]
      %v433 = vld [vmem:[%s242 + $0xc0] sm:$0xff]
      %v434 = vld [vmem:[%s242 + $0xd0] sm:$0xff]
      %v435 = vld [vmem:[%s242 + $0xe0] sm:$0xff]
      %v436 = vld [vmem:[%s242 + $0xf0] sm:$0xff]
      %v437 = vpack.c.bf16 %v422, %v421
      %v438 = vpack.c.bf16 %v424, %v423
      %v439 = vpack.c.bf16 %v426, %v425
      %v440 = vpack.c.bf16 %v428, %v427
      %v441 = vpack.c.bf16 %v430, %v429
      %v442 = vpack.c.bf16 %v432, %v431
      %v443 = vpack.c.bf16 %v434, %v433
      %v444 = vpack.c.bf16 %v436, %v435
      %453 = vrot.lane.b32.xlu0 %v437, 24
      %v454 = vpop.permute.xlu0 %453
      %455 = vrot.lane.b32.xlu0 %v438, 24
      %v456 = vpop.permute.xlu0 %455
      %457 = vrot.lane.b32.xlu0 %v439, 24
      %v458 = vpop.permute.xlu0 %457
      %459 = vrot.lane.b32.xlu0 %v440, 24
      %v460 = vpop.permute.xlu0 %459
      %461 = vrot.lane.b32.xlu0 %v441, 24
      %v462 = vpop.permute.xlu0 %461
      %463 = vrot.lane.b32.xlu0 %v442, 24
      %v464 = vpop.permute.xlu0 %463
      %465 = vrot.lane.b32.xlu0 %v443, 24
      %v466 = vpop.permute.xlu0 %465
      %467 = vrot.lane.b32.xlu0 %v444, 24
      %v468 = vpop.permute.xlu0 %467
      %vm477 = vcmask 261312
      %478 = vst.msk [vmem:[#allocation3] sm:$0xff] %vm477, %v454
      %479 = vst.msk [vmem:[#allocation3 + $0x8] sm:$0xff] %vm477, %v456
      %480 = vst.msk [vmem:[#allocation3 + $0x10] sm:$0xff] %vm477, %v458
      %481 = vst.msk [vmem:[#allocation3 + $0x18] sm:$0xff] %vm477, %v460
      %482 = vst.msk [vmem:[#allocation3 + $0x20] sm:$0xff] %vm477, %v462
      %483 = vst.msk [vmem:[#allocation3 + $0x28] sm:$0xff] %vm477, %v464
      %484 = vst.msk [vmem:[#allocation3 + $0x30] sm:$0xff] %vm477, %v466
      %485 = vst.msk [vmem:[#allocation3 + $0x38] sm:$0xff] %vm477, %v468
      %v486 = vld [vmem:[%s242 + $0x1] sm:$0xff]
      %v487 = vld [vmem:[%s242 + $0x11] sm:$0xff]
      %v488 = vld [vmem:[%s242 + $0x21] sm:$0xff]
      %v489 = vld [vmem:[%s242 + $0x31] sm:$0xff]
      %v490 = vld [vmem:[%s242 + $0x41] sm:$0xff]
      %v491 = vld [vmem:[%s242 + $0x51] sm:$0xff]
      %v492 = vld [vmem:[%s242 + $0x61] sm:$0xff]
      %v493 = vld [vmem:[%s242 + $0x71] sm:$0xff]
      %v494 = vld [vmem:[%s242 + $0x81] sm:$0xff]
      %v495 = vld [vmem:[%s242 + $0x91] sm:$0xff]
      %v496 = vld [vmem:[%s242 + $0xa1] sm:$0xff]
      %v497 = vld [vmem:[%s242 + $0xb1] sm:$0xff]
      %v498 = vld [vmem:[%s242 + $0xc1] sm:$0xff]
      %v499 = vld [vmem:[%s242 + $0xd1] sm:$0xff]
      %v500 = vld [vmem:[%s242 + $0xe1] sm:$0xff]
      %v501 = vld [vmem:[%s242 + $0xf1] sm:$0xff]
      %v502 = vpack.c.bf16 %v487, %v486
      %v503 = vpack.c.bf16 %v489, %v488
      %v504 = vpack.c.bf16 %v491, %v490
      %v505 = vpack.c.bf16 %v493, %v492
      %v506 = vpack.c.bf16 %v495, %v494
      %v507 = vpack.c.bf16 %v497, %v496
      %v508 = vpack.c.bf16 %v499, %v498
      %v509 = vpack.c.bf16 %v501, %v500
      %518 = vrot.lane.b32.xlu0 %v502, 32
      %v519 = vpop.permute.xlu0 %518
      %520 = vrot.lane.b32.xlu0 %v503, 32
      %v521 = vpop.permute.xlu0 %520
      %522 = vrot.lane.b32.xlu0 %v504, 32
      %v523 = vpop.permute.xlu0 %522
      %524 = vrot.lane.b32.xlu0 %v505, 32
      %v525 = vpop.permute.xlu0 %524
      %526 = vrot.lane.b32.xlu0 %v506, 32
      %v527 = vpop.permute.xlu0 %526
      %528 = vrot.lane.b32.xlu0 %v507, 32
      %v529 = vpop.permute.xlu0 %528
      %530 = vrot.lane.b32.xlu0 %v508, 32
      %v531 = vpop.permute.xlu0 %530
      %532 = vrot.lane.b32.xlu0 %v509, 32
      %v533 = vpop.permute.xlu0 %532
      %vm542 = vcmask 326912
      %543 = vst.msk [vmem:[#allocation3] sm:$0xff] %vm542, %v519
      %544 = vst.msk [vmem:[#allocation3 + $0x8] sm:$0xff] %vm542, %v521
      %545 = vst.msk [vmem:[#allocation3 + $0x10] sm:$0xff] %vm542, %v523
      %546 = vst.msk [vmem:[#allocation3 + $0x18] sm:$0xff] %vm542, %v525
      %547 = vst.msk [vmem:[#allocation3 + $0x20] sm:$0xff] %vm542, %v527
      %548 = vst.msk [vmem:[#allocation3 + $0x28] sm:$0xff] %vm542, %v529
      %549 = vst.msk [vmem:[#allocation3 + $0x30] sm:$0xff] %vm542, %v531
      %550 = vst.msk [vmem:[#allocation3 + $0x38] sm:$0xff] %vm542, %v533
      %v551 = vld [vmem:[%s242 + $0x2] sm:$0xff]
      %v552 = vld [vmem:[%s242 + $0x12] sm:$0xff]
      %v553 = vld [vmem:[%s242 + $0x22] sm:$0xff]
      %v554 = vld [vmem:[%s242 + $0x32] sm:$0xff]
      %v555 = vld [vmem:[%s242 + $0x42] sm:$0xff]
      %v556 = vld [vmem:[%s242 + $0x52] sm:$0xff]
      %v557 = vld [vmem:[%s242 + $0x62] sm:$0xff]
      %v558 = vld [vmem:[%s242 + $0x72] sm:$0xff]
      %v559 = vld [vmem:[%s242 + $0x82] sm:$0xff]
      %v560 = vld [vmem:[%s242 + $0x92] sm:$0xff]
      %v561 = vld [vmem:[%s242 + $0xa2] sm:$0xff]
      %v562 = vld [vmem:[%s242 + $0xb2] sm:$0xff]
      %v563 = vld [vmem:[%s242 + $0xc2] sm:$0xff]
      %v564 = vld [vmem:[%s242 + $0xd2] sm:$0xff]
      %v565 = vld [vmem:[%s242 + $0xe2] sm:$0xff]
      %v566 = vld [vmem:[%s242 + $0xf2] sm:$0xff]
      %v567 = vpack.c.bf16 %v552, %v551
      %v568 = vpack.c.bf16 %v554, %v553
      %v569 = vpack.c.bf16 %v556, %v555
      %v570 = vpack.c.bf16 %v558, %v557
      %v571 = vpack.c.bf16 %v560, %v559
      %v572 = vpack.c.bf16 %v562, %v561
      %v573 = vpack.c.bf16 %v564, %v563
      %v574 = vpack.c.bf16 %v566, %v565
      %583 = vrot.lane.b32.xlu0 %v567, 40
      %v584 = vpop.permute.xlu0 %583
      %585 = vrot.lane.b32.xlu0 %v568, 40
      %v586 = vpop.permute.xlu0 %585
      %587 = vrot.lane.b32.xlu0 %v569, 40
      %v588 = vpop.permute.xlu0 %587
      %589 = vrot.lane.b32.xlu0 %v570, 40
      %v590 = vpop.permute.xlu0 %589
      %591 = vrot.lane.b32.xlu0 %v571, 40
      %v592 = vpop.permute.xlu0 %591
      %593 = vrot.lane.b32.xlu0 %v572, 40
      %v594 = vpop.permute.xlu0 %593
      %595 = vrot.lane.b32.xlu0 %v573, 40
      %v596 = vpop.permute.xlu0 %595
      %597 = vrot.lane.b32.xlu0 %v574, 40
      %v598 = vpop.permute.xlu0 %597
      %vm607 = vcmask 392512
      %608 = vst.msk [vmem:[#allocation3] sm:$0xff] %vm607, %v584
      %609 = vst.msk [vmem:[#allocation3 + $0x8] sm:$0xff] %vm607, %v586
      %610 = vst.msk [vmem:[#allocation3 + $0x10] sm:$0xff] %vm607, %v588
      %611 = vst.msk [vmem:[#allocation3 + $0x18] sm:$0xff] %vm607, %v590
      %612 = vst.msk [vmem:[#allocation3 + $0x20] sm:$0xff] %vm607, %v592
      %613 = vst.msk [vmem:[#allocation3 + $0x28] sm:$0xff] %vm607, %v594
      %614 = vst.msk [vmem:[#allocation3 + $0x30] sm:$0xff] %vm607, %v596
      %615 = vst.msk [vmem:[#allocation3 + $0x38] sm:$0xff] %vm607, %v598
      %s616 = scalar_lea.vmem [#allocation2], 32
      %v617 = vld [vmem:[%s616] sm:$0xff]
      %v618 = vld [vmem:[%s616 + $0x10] sm:$0xff]
      %v619 = vld [vmem:[%s616 + $0x20] sm:$0xff]
      %v620 = vld [vmem:[%s616 + $0x30] sm:$0xff]
      %v621 = vld [vmem:[%s616 + $0x40] sm:$0xff]
      %v622 = vld [vmem:[%s616 + $0x50] sm:$0xff]
      %v623 = vld [vmem:[%s616 + $0x60] sm:$0xff]
      %v624 = vld [vmem:[%s616 + $0x70] sm:$0xff]
      %v625 = vld [vmem:[%s616 + $0x80] sm:$0xff]
      %v626 = vld [vmem:[%s616 + $0x90] sm:$0xff]
      %v627 = vld [vmem:[%s616 + $0xa0] sm:$0xff]
      %v628 = vld [vmem:[%s616 + $0xb0] sm:$0xff]
      %v629 = vld [vmem:[%s616 + $0xc0] sm:$0xff]
      %v630 = vld [vmem:[%s616 + $0xd0] sm:$0xff]
      %v631 = vld [vmem:[%s616 + $0xe0] sm:$0xff]
      %v632 = vld [vmem:[%s616 + $0xf0] sm:$0xff]
      %v633 = vpack.c.bf16 %v618, %v617
      %v634 = vpack.c.bf16 %v620, %v619
      %v635 = vpack.c.bf16 %v622, %v621
      %v636 = vpack.c.bf16 %v624, %v623
      %v637 = vpack.c.bf16 %v626, %v625
      %v638 = vpack.c.bf16 %v628, %v627
      %v639 = vpack.c.bf16 %v630, %v629
      %v640 = vpack.c.bf16 %v632, %v631
      %649 = vrot.lane.b32.xlu0 %v633, 48
      %v650 = vpop.permute.xlu0 %649
      %651 = vrot.lane.b32.xlu0 %v634, 48
      %v652 = vpop.permute.xlu0 %651
      %653 = vrot.lane.b32.xlu0 %v635, 48
      %v654 = vpop.permute.xlu0 %653
      %655 = vrot.lane.b32.xlu0 %v636, 48
      %v656 = vpop.permute.xlu0 %655
      %657 = vrot.lane.b32.xlu0 %v637, 48
      %v658 = vpop.permute.xlu0 %657
      %659 = vrot.lane.b32.xlu0 %v638, 48
      %v660 = vpop.permute.xlu0 %659
      %661 = vrot.lane.b32.xlu0 %v639, 48
      %v662 = vpop.permute.xlu0 %661
      %663 = vrot.lane.b32.xlu0 %v640, 48
      %v664 = vpop.permute.xlu0 %663
      %vm673 = vcmask 458112
      %674 = vst.msk [vmem:[#allocation3] sm:$0xff] %vm673, %v650
      %675 = vst.msk [vmem:[#allocation3 + $0x8] sm:$0xff] %vm673, %v652
      %676 = vst.msk [vmem:[#allocation3 + $0x10] sm:$0xff] %vm673, %v654
      %677 = vst.msk [vmem:[#allocation3 + $0x18] sm:$0xff] %vm673, %v656
      %678 = vst.msk [vmem:[#allocation3 + $0x20] sm:$0xff] %vm673, %v658
      %679 = vst.msk [vmem:[#allocation3 + $0x28] sm:$0xff] %vm673, %v660
      %680 = vst.msk [vmem:[#allocation3 + $0x30] sm:$0xff] %vm673, %v662
      %681 = vst.msk [vmem:[#allocation3 + $0x38] sm:$0xff] %vm673, %v664
      %v682 = vld [vmem:[%s616 + $0x1] sm:$0xff]
      %v683 = vld [vmem:[%s616 + $0x11] sm:$0xff]
      %v684 = vld [vmem:[%s616 + $0x21] sm:$0xff]
      %v685 = vld [vmem:[%s616 + $0x31] sm:$0xff]
      %v686 = vld [vmem:[%s616 + $0x41] sm:$0xff]
      %v687 = vld [vmem:[%s616 + $0x51] sm:$0xff]
      %v688 = vld [vmem:[%s616 + $0x61] sm:$0xff]
      %v689 = vld [vmem:[%s616 + $0x71] sm:$0xff]
      %v690 = vld [vmem:[%s616 + $0x81] sm:$0xff]
      %v691 = vld [vmem:[%s616 + $0x91] sm:$0xff]
      %v692 = vld [vmem:[%s616 + $0xa1] sm:$0xff]
      %v693 = vld [vmem:[%s616 + $0xb1] sm:$0xff]
      %v694 = vld [vmem:[%s616 + $0xc1] sm:$0xff]
      %v695 = vld [vmem:[%s616 + $0xd1] sm:$0xff]
      %v696 = vld [vmem:[%s616 + $0xe1] sm:$0xff]
      %v697 = vld [vmem:[%s616 + $0xf1] sm:$0xff]
      %v698 = vpack.c.bf16 %v683, %v682
      %v699 = vpack.c.bf16 %v685, %v684
      %v700 = vpack.c.bf16 %v687, %v686
      %v701 = vpack.c.bf16 %v689, %v688
      %v702 = vpack.c.bf16 %v691, %v690
      %v703 = vpack.c.bf16 %v693, %v692
      %v704 = vpack.c.bf16 %v695, %v694
      %v705 = vpack.c.bf16 %v697, %v696
      %714 = vrot.lane.b32.xlu0 %v698, 56
      %v715 = vpop.permute.xlu0 %714
      %716 = vrot.lane.b32.xlu0 %v699, 56
      %v717 = vpop.permute.xlu0 %716
      %718 = vrot.lane.b32.xlu0 %v700, 56
      %v719 = vpop.permute.xlu0 %718
      %720 = vrot.lane.b32.xlu0 %v701, 56
      %v721 = vpop.permute.xlu0 %720
      %722 = vrot.lane.b32.xlu0 %v702, 56
      %v723 = vpop.permute.xlu0 %722
      %724 = vrot.lane.b32.xlu0 %v703, 56
      %v725 = vpop.permute.xlu0 %724
      %726 = vrot.lane.b32.xlu0 %v704, 56
      %v727 = vpop.permute.xlu0 %726
      %728 = vrot.lane.b32.xlu0 %v705, 56
      %v729 = vpop.permute.xlu0 %728
      %vm738 = vcmask 523712
      %739 = vst.msk [vmem:[#allocation3] sm:$0xff] %vm738, %v715
      %740 = vst.msk [vmem:[#allocation3 + $0x8] sm:$0xff] %vm738, %v717
      %741 = vst.msk [vmem:[#allocation3 + $0x10] sm:$0xff] %vm738, %v719
      %742 = vst.msk [vmem:[#allocation3 + $0x18] sm:$0xff] %vm738, %v721
      %743 = vst.msk [vmem:[#allocation3 + $0x20] sm:$0xff] %vm738, %v723
      %744 = vst.msk [vmem:[#allocation3 + $0x28] sm:$0xff] %vm738, %v725
      %745 = vst.msk [vmem:[#allocation3 + $0x30] sm:$0xff] %vm738, %v727
      %746 = vst.msk [vmem:[#allocation3 + $0x38] sm:$0xff] %vm738, %v729
      %v747 = vld [vmem:[%s616 + $0x2] sm:$0xff]
      %v748 = vld [vmem:[%s616 + $0x12] sm:$0xff]
      %v749 = vld [vmem:[%s616 + $0x22] sm:$0xff]
      %v750 = vld [vmem:[%s616 + $0x32] sm:$0xff]
      %v751 = vld [vmem:[%s616 + $0x42] sm:$0xff]
      %v752 = vld [vmem:[%s616 + $0x52] sm:$0xff]
      %v753 = vld [vmem:[%s616 + $0x62] sm:$0xff]
      %v754 = vld [vmem:[%s616 + $0x72] sm:$0xff]
      %v755 = vld [vmem:[%s616 + $0x82] sm:$0xff]
      %v756 = vld [vmem:[%s616 + $0x92] sm:$0xff]
      %v757 = vld [vmem:[%s616 + $0xa2] sm:$0xff]
      %v758 = vld [vmem:[%s616 + $0xb2] sm:$0xff]
      %v759 = vld [vmem:[%s616 + $0xc2] sm:$0xff]
      %v760 = vld [vmem:[%s616 + $0xd2] sm:$0xff]
      %v761 = vld [vmem:[%s616 + $0xe2] sm:$0xff]
      %v762 = vld [vmem:[%s616 + $0xf2] sm:$0xff]
      %v763 = vpack.c.bf16 %v748, %v747
      %v764 = vpack.c.bf16 %v750, %v749
      %v765 = vpack.c.bf16 %v752, %v751
      %v766 = vpack.c.bf16 %v754, %v753
      %v767 = vpack.c.bf16 %v756, %v755
      %v768 = vpack.c.bf16 %v758, %v757
      %v769 = vpack.c.bf16 %v760, %v759
      %v770 = vpack.c.bf16 %v762, %v761
      %779 = vrot.lane.b32.xlu0 %v763, 64
      %v780 = vpop.permute.xlu0 %779
      %781 = vrot.lane.b32.xlu0 %v764, 64
      %v782 = vpop.permute.xlu0 %781
      %783 = vrot.lane.b32.xlu0 %v765, 64
      %v784 = vpop.permute.xlu0 %783
      %785 = vrot.lane.b32.xlu0 %v766, 64
      %v786 = vpop.permute.xlu0 %785
      %787 = vrot.lane.b32.xlu0 %v767, 64
      %v788 = vpop.permute.xlu0 %787
      %789 = vrot.lane.b32.xlu0 %v768, 64
      %v790 = vpop.permute.xlu0 %789
      %791 = vrot.lane.b32.xlu0 %v769, 64
      %v792 = vpop.permute.xlu0 %791
      %793 = vrot.lane.b32.xlu0 %v770, 64
      %v794 = vpop.permute.xlu0 %793
      %vm803 = vcmask 589312
      %804 = vst.msk [vmem:[#allocation3] sm:$0xff] %vm803, %v780
      %805 = vst.msk [vmem:[#allocation3 + $0x8] sm:$0xff] %vm803, %v782
      %806 = vst.msk [vmem:[#allocation3 + $0x10] sm:$0xff] %vm803, %v784
      %807 = vst.msk [vmem:[#allocation3 + $0x18] sm:$0xff] %vm803, %v786
      %808 = vst.msk [vmem:[#allocation3 + $0x20] sm:$0xff] %vm803, %v788
      %809 = vst.msk [vmem:[#allocation3 + $0x28] sm:$0xff] %vm803, %v790
      %810 = vst.msk [vmem:[#allocation3 + $0x30] sm:$0xff] %vm803, %v792
      %811 = vst.msk [vmem:[#allocation3 + $0x38] sm:$0xff] %vm803, %v794
      %v812 = vld [vmem:[#allocation3] sm:$0xff]
      %v813 = vld [vmem:[#allocation3 + $0x8] sm:$0xff]
      %v814 = vld [vmem:[#allocation3 + $0x10] sm:$0xff]
      %v815 = vld [vmem:[#allocation3 + $0x18] sm:$0xff]
      %v816 = vld [vmem:[#allocation3 + $0x20] sm:$0xff]
      %v817 = vld [vmem:[#allocation3 + $0x28] sm:$0xff]
      %v818 = vld [vmem:[#allocation3 + $0x30] sm:$0xff]
      %v819 = vld [vmem:[#allocation3 + $0x38] sm:$0xff]
      %v820 = vld [vmem:[%s1] sm:$0xf]
      %v821 = vld [vmem:[%s1 + $0x4] sm:$0xf]
      %v822 = vld [vmem:[%s1 + $0x8] sm:$0xf]
      %v823 = vld [vmem:[%s1 + $0xc] sm:$0xf]
      %v824 = vld [vmem:[%s1 + $0x10] sm:$0xf]
      %v825 = vld [vmem:[%s1 + $0x14] sm:$0xf]
      %v826 = vld [vmem:[%s1 + $0x18] sm:$0xf]
      %v827 = vld [vmem:[%s1 + $0x1c] sm:$0xf]
      %v828 = vld [vmem:[%s1 + $0x20] sm:$0xf]
      %v829 = vld [vmem:[%s2] sm:$0x1]
      %v831 = vlaneseq
      %v832 = vshrl.u32 %v831, 7
      %v833 = vsub.s32 0, %v832
      %v834 = vrot.slane %v829, %v833
      %v845 = vunpack.c.l.b16 %v820
      %v846 = vunpack.c.l.b16 %v821
      %v847 = vunpack.c.l.b16 %v822
      %v848 = vunpack.c.l.b16 %v823
      %v849 = vunpack.c.l.b16 %v824
      %v850 = vunpack.c.l.b16 %v825
      %v851 = vunpack.c.l.b16 %v826
      %v852 = vunpack.c.l.b16 %v827
      %v853 = vunpack.c.l.b16 %v828
      %v854 = vpack.c.b16 %v846, %v845
      %v855 = vpack.c.b16 %v848, %v847
      %v856 = vpack.c.b16 %v850, %v849
      %v857 = vpack.c.b16 %v852, %v851
      %v858 = vpack.c.b16 %v853, %v853
      %vm863 = vcmask 588800
      %v865 = vsel %vm863, %v812, 0
      %v868 = vsel %vm863, %v813, 0
      %v871 = vsel %vm863, %v814, 0
      %v874 = vsel %vm863, %v815, 0
      %v877 = vsel %vm863, %v816, 0
      %v880 = vsel %vm863, %v817, 0
      %v883 = vsel %vm863, %v818, 0
      %v886 = vsel %vm863, %v819, 0
      %vm888 = vcmask 1043456
      %v890 = vsel %vm888, %v858, 0
      %892 = vmatprep.subr.bf16.mxu0 0
      %893 = vmatpush1.bf16.msra.mxu0 %v854
      %894 = vmatprep.subr.bf16.mxu0 0
      %895 = vmatpush1.bf16.msra.mxu0 %v855
      %896 = vmatprep.subr.bf16.mxu0 0
      %897 = vmatpush1.bf16.msra.mxu0 %v856
      %898 = vmatprep.subr.bf16.mxu0 0
      %899 = vmatpush1.bf16.msra.mxu0 %v857
      %900 = vmatprep.subr.bf16.mxu0 0
      %901 = vmatpush1.bf16.msra.mxu0 %v890
      %902 = vmatprep.subr.bf16.mxu0 0
      %903 = vmatpush1.bf16.msra.mxu0 0
      %904 = vmatprep.subr.bf16.mxu0 0
      %905 = vmatpush1.bf16.msra.mxu0 0
      %906 = vmatprep.subr.bf16.mxu0 0
      %907 = vmatpush1.bf16.msra.mxu0 0
      %908 = vmatprep.subr.bf16.mxu0 0
      %909 = vmatpush1.bf16.msra.mxu0 0
      %910 = vmatprep.subr.bf16.mxu0 0
      %911 = vmatpush1.bf16.msra.mxu0 0
      %912 = vmatprep.subr.bf16.mxu0 0
      %913 = vmatpush1.bf16.msra.mxu0 0
      %914 = vmatprep.subr.bf16.mxu0 0
      %915 = vmatpush1.bf16.msra.mxu0 0
      %916 = vmatprep.subr.bf16.mxu0 0
      %917 = vmatpush1.bf16.msra.mxu0 0
      %918 = vmatprep.subr.bf16.mxu0 0
      %919 = vmatpush1.bf16.msra.mxu0 0
      %920 = vmatprep.subr.bf16.mxu0 0
      %921 = vmatpush1.bf16.msra.mxu0 0
      %922 = vmatprep.subr.bf16.mxu0 0
      %923 = vmatpush1.bf16.msra.mxu0 0
      %924 = vmatprep.mubr.bf16.mxu0 0
      %925 = vmatmul.mubr.bf16.gmra.mrb[0].mxu0 %v865
      %v926 = vpop.f32.mrb[0].mxu0
      %v927 = vadd.f32 %v834, %v926
      %v928 = vpop.f32.mrb[0].mxu0
      %v929 = vpop.f32.mrb[0].mxu0
      %v930 = vadd.f32 %v834, %v929
      %v931 = vpop.f32.mrb[0].mxu0
      %932 = vmatprep.mubr.bf16.mxu0 0
      %933 = vmatmul.mubr.bf16.gmra.mrb[0].mxu0 %v868
      %v934 = vpop.f32.mrb[0].mxu0
      %v935 = vadd.f32 %v834, %v934
      %v936 = vpop.f32.mrb[0].mxu0
      %v937 = vpop.f32.mrb[0].mxu0
      %v938 = vadd.f32 %v834, %v937
      %v939 = vpop.f32.mrb[0].mxu0
      %940 = vmatprep.mubr.bf16.mxu0 0
      %941 = vmatmul.mubr.bf16.gmra.mrb[0].mxu0 %v871
      %v942 = vpop.f32.mrb[0].mxu0
      %v943 = vadd.f32 %v834, %v942
      %v944 = vpop.f32.mrb[0].mxu0
      %v945 = vpop.f32.mrb[0].mxu0
      %v946 = vadd.f32 %v834, %v945
      %v947 = vpop.f32.mrb[0].mxu0
      %948 = vmatprep.mubr.bf16.mxu0 0
      %949 = vmatmul.mubr.bf16.gmra.mrb[0].mxu0 %v874
      %v950 = vpop.f32.mrb[0].mxu0
      %v951 = vadd.f32 %v834, %v950
      %v952 = vpop.f32.mrb[0].mxu0
      %v953 = vpop.f32.mrb[0].mxu0
      %v954 = vadd.f32 %v834, %v953
      %v955 = vpop.f32.mrb[0].mxu0
      %956 = vmatprep.mubr.bf16.mxu0 0
      %957 = vmatmul.mubr.bf16.gmra.mrb[0].mxu0 %v877
      %v958 = vpop.f32.mrb[0].mxu0
      %v959 = vadd.f32 %v834, %v958
      %v960 = vpop.f32.mrb[0].mxu0
      %v961 = vpop.f32.mrb[0].mxu0
      %v962 = vadd.f32 %v834, %v961
      %v963 = vpop.f32.mrb[0].mxu0
      %964 = vmatprep.mubr.bf16.mxu0 0
      %965 = vmatmul.mubr.bf16.gmra.mrb[0].mxu0 %v880
      %v966 = vpop.f32.mrb[0].mxu0
      %v967 = vadd.f32 %v834, %v966
      %v968 = vpop.f32.mrb[0].mxu0
      %v969 = vpop.f32.mrb[0].mxu0
      %v970 = vadd.f32 %v834, %v969
      %v971 = vpop.f32.mrb[0].mxu0
      %972 = vmatprep.mubr.bf16.mxu0 0
      %973 = vmatmul.mubr.bf16.gmra.mrb[0].mxu0 %v883
      %v974 = vpop.f32.mrb[0].mxu0
      %v975 = vadd.f32 %v834, %v974
      %v976 = vpop.f32.mrb[0].mxu0
      %v977 = vpop.f32.mrb[0].mxu0
      %v978 = vadd.f32 %v834, %v977
      %v979 = vpop.f32.mrb[0].mxu0
      %980 = vmatprep.mubr.bf16.mxu0 0
      %981 = vmatmul.mubr.bf16.gmra.mrb[0].mxu0 %v886
      %v982 = vpop.f32.mrb[0].mxu0
      %v983 = vadd.f32 %v834, %v982
      %v984 = vpop.f32.mrb[0].mxu0
      %v985 = vpop.f32.mrb[0].mxu0
      %v986 = vadd.f32 %v834, %v985
      %v987 = vpop.f32.mrb[0].mxu0
      %988 = vdwg.mxu0
      %v989 = vmax.f32 %v927, 0.0
      %v990 = vmax.f32 %v930, 0.0
      %v991 = vmax.f32 %v935, 0.0
      %v992 = vmax.f32 %v938, 0.0
      %v993 = vmax.f32 %v943, 0.0
      %v994 = vmax.f32 %v946, 0.0
      %v995 = vmax.f32 %v951, 0.0
      %v996 = vmax.f32 %v954, 0.0
      %v997 = vmax.f32 %v959, 0.0
      %v998 = vmax.f32 %v962, 0.0
      %v999 = vmax.f32 %v967, 0.0
      %v1000 = vmax.f32 %v970, 0.0
      %v1001 = vmax.f32 %v975, 0.0
      %v1002 = vmax.f32 %v978, 0.0
      %v1003 = vmax.f32 %v983, 0.0
      %v1004 = vmax.f32 %v986, 0.0
      %vm1005 = vcmask 130048
      %1006 = vst.msk [vmem:[#allocation4] sm:$0xff] %vm1005, %v989
      %1007 = vst.msk [vmem:[#allocation4 + $0x8] sm:$0xff] %vm1005, %v990
      %1008 = vst.msk [vmem:[#allocation4 + $0x10] sm:$0xff] %vm1005, %v991
      %1009 = vst.msk [vmem:[#allocation4 + $0x18] sm:$0xff] %vm1005, %v992
      %1010 = vst.msk [vmem:[#allocation4 + $0x20] sm:$0xff] %vm1005, %v993
      %1011 = vst.msk [vmem:[#allocation4 + $0x28] sm:$0xff] %vm1005, %v994
      %1012 = vst.msk [vmem:[#allocation4 + $0x30] sm:$0xff] %vm1005, %v995
      %1013 = vst.msk [vmem:[#allocation4 + $0x38] sm:$0xff] %vm1005, %v996
      %1014 = vst.msk [vmem:[#allocation4 + $0x40] sm:$0xff] %vm1005, %v997
      %1015 = vst.msk [vmem:[#allocation4 + $0x48] sm:$0xff] %vm1005, %v998
      %1016 = vst.msk [vmem:[#allocation4 + $0x50] sm:$0xff] %vm1005, %v999
      %1017 = vst.msk [vmem:[#allocation4 + $0x58] sm:$0xff] %vm1005, %v1000
      %1018 = vst.msk [vmem:[#allocation4 + $0x60] sm:$0xff] %vm1005, %v1001
      %1019 = vst.msk [vmem:[#allocation4 + $0x68] sm:$0xff] %vm1005, %v1002
      %1020 = vst.msk [vmem:[#allocation4 + $0x70] sm:$0xff] %vm1005, %v1003
      %1021 = vst.msk [vmem:[#allocation4 + $0x78] sm:$0xff] %vm1005, %v1004
      %v1022 = vld [vmem:[#allocation4] sm:$0xff]
      %v1023 = vld [vmem:[#allocation4 + $0x10] sm:$0xff]
      %v1024 = vld [vmem:[#allocation4 + $0x20] sm:$0xff]
      %v1025 = vld [vmem:[#allocation4 + $0x30] sm:$0xff]
      %v1026 = vld [vmem:[#allocation4 + $0x40] sm:$0xff]
      %v1027 = vld [vmem:[#allocation4 + $0x50] sm:$0xff]
      %v1028 = vld [vmem:[#allocation4 + $0x60] sm:$0xff]
      %v1029 = vld [vmem:[#allocation4 + $0x70] sm:$0xff]
      %s1030 = scalar_lea.vmem [#allocation4], 8
      %v1031 = vld [vmem:[%s1030] sm:$0xff]
      %v1032 = vld [vmem:[%s1030 + $0x10] sm:$0xff]
      %v1033 = vld [vmem:[%s1030 + $0x20] sm:$0xff]
      %v1034 = vld [vmem:[%s1030 + $0x30] sm:$0xff]
      %v1035 = vld [vmem:[%s1030 + $0x40] sm:$0xff]
      %v1036 = vld [vmem:[%s1030 + $0x50] sm:$0xff]
      %v1037 = vld [vmem:[%s1030 + $0x60] sm:$0xff]
      %v1038 = vld [vmem:[%s1030 + $0x70] sm:$0xff]
      %v1039 = vmax.f32 %v1022, %v1031
      %v1040 = vmax.f32 %v1023, %v1032
      %v1041 = vmax.f32 %v1024, %v1033
      %v1042 = vmax.f32 %v1025, %v1034
      %v1043 = vmax.f32 %v1026, %v1035
      %v1044 = vmax.f32 %v1027, %v1036
      %v1045 = vmax.f32 %v1028, %v1037
      %v1046 = vmax.f32 %v1029, %v1038
      %1047 = vst.msk [vmem:[#allocation4] sm:$0xff] %vm1005, %v1039
      %1048 = vst.msk [vmem:[#allocation4 + $0x8] sm:$0xff] %vm1005, %v1040
      %1049 = vst.msk [vmem:[#allocation4 + $0x10] sm:$0xff] %vm1005, %v1041
      %1050 = vst.msk [vmem:[#allocation4 + $0x18] sm:$0xff] %vm1005, %v1042
      %1051 = vst.msk [vmem:[#allocation4 + $0x20] sm:$0xff] %vm1005, %v1043
      %1052 = vst.msk [vmem:[#allocation4 + $0x28] sm:$0xff] %vm1005, %v1044
      %1053 = vst.msk [vmem:[#allocation4 + $0x30] sm:$0xff] %vm1005, %v1045
      %1054 = vst.msk [vmem:[#allocation4 + $0x38] sm:$0xff] %vm1005, %v1046
      %v1055 = vld [vmem:[#allocation4] ss:$2 sm:$0xf]
      %s1056 = scalar_lea.vmem [#allocation4], 8
      %v1057 = vld [vmem:[%s1056] ss:$2 sm:$0xf]
      %s1058 = scalar_lea.vmem [#allocation4], 16
      %v1059 = vld [vmem:[%s1058] ss:$2 sm:$0xf]
      %s1060 = scalar_lea.vmem [#allocation4], 24
      %v1061 = vld [vmem:[%s1060] ss:$2 sm:$0xf]
      %s1062 = scalar_lea.vmem [#allocation4], 32
      %v1063 = vld [vmem:[%s1062] ss:$2 sm:$0xf]
      %s1064 = scalar_lea.vmem [#allocation4], 40
      %v1065 = vld [vmem:[%s1064] ss:$2 sm:$0xf]
      %s1066 = scalar_lea.vmem [#allocation4], 48
      %v1067 = vld [vmem:[%s1066] ss:$2 sm:$0xf]
      %s1068 = scalar_lea.vmem [#allocation4], 56
      %v1069 = vld [vmem:[%s1068] ss:$2 sm:$0xf]
      %s1070 = scalar_lea.vmem [#allocation4], 1
      %v1071 = vld [vmem:[%s1070] ss:$2 sm:$0xf]
      %s1072 = scalar_lea.vmem [#allocation4], 9
      %v1073 = vld [vmem:[%s1072] ss:$2 sm:$0xf]
      %s1074 = scalar_lea.vmem [#allocation4], 17
      %v1075 = vld [vmem:[%s1074] ss:$2 sm:$0xf]
      %s1076 = scalar_lea.vmem [#allocation4], 25
      %v1077 = vld [vmem:[%s1076] ss:$2 sm:$0xf]
      %s1078 = scalar_lea.vmem [#allocation4], 33
      %v1079 = vld [vmem:[%s1078] ss:$2 sm:$0xf]
      %s1080 = scalar_lea.vmem [#allocation4], 41
      %v1081 = vld [vmem:[%s1080] ss:$2 sm:$0xf]
      %s1082 = scalar_lea.vmem [#allocation4], 49
      %v1083 = vld [vmem:[%s1082] ss:$2 sm:$0xf]
      %s1084 = scalar_lea.vmem [#allocation4], 57
      %v1085 = vld [vmem:[%s1084] ss:$2 sm:$0xf]
      %v1086 = vmax.f32 %v1055, %v1071
      %v1087 = vmax.f32 %v1057, %v1073
      %v1088 = vmax.f32 %v1059, %v1075
      %v1089 = vmax.f32 %v1061, %v1077
      %v1090 = vmax.f32 %v1063, %v1079
      %v1091 = vmax.f32 %v1065, %v1081
      %v1092 = vmax.f32 %v1067, %v1083
      %v1093 = vmax.f32 %v1069, %v1085
      %v1094 = vpack.c.bf16 %v1086, %v1086
      %v1095 = vpack.c.bf16 %v1087, %v1087
      %v1096 = vpack.c.bf16 %v1088, %v1088
      %v1097 = vpack.c.bf16 %v1089, %v1089
      %v1098 = vpack.c.bf16 %v1090, %v1090
      %v1099 = vpack.c.bf16 %v1091, %v1091
      %v1100 = vpack.c.bf16 %v1092, %v1092
      %v1101 = vpack.c.bf16 %v1093, %v1093
      %vm1102 = vcmask 123904
      %1103 = vst.msk [vmem:[%s170] sm:$0x3] %vm1102, %v1094
      %1104 = vst.msk [vmem:[%s170 + $0x2] sm:$0x3] %vm1102, %v1095
      %1105 = vst.msk [vmem:[%s170 + $0x4] sm:$0x3] %vm1102, %v1096
      %1106 = vst.msk [vmem:[%s170 + $0x6] sm:$0x3] %vm1102, %v1097
      %1107 = vst.msk [vmem:[%s170 + $0x8] sm:$0x3] %vm1102, %v1098
      %1108 = vst.msk [vmem:[%s170 + $0xa] sm:$0x3] %vm1102, %v1099
      %1109 = vst.msk [vmem:[%s170 + $0xc] sm:$0x3] %vm1102, %v1100
      %1110 = vst.msk [vmem:[%s170 + $0xe] sm:$0x3] %vm1102, %v1101
      %p1111 = scmp.lt.s32.totalorder %s14, 1
      %s1112 = scalar_select %p1111, %s14, 1
      %s1113 = smul.addr %s1112, 8
      %s1114 = smul.addr %s1113, 2
      %s1115 = scalar_lea.vmem %s3, %s1114
      // Predicated region
      $region33: #{vgg_feature_extractor.8} parent=31 // pred_check
        %p1116 = pneg %p100
      $region34: #{vgg_feature_extractor.8} parent=31 // pred_check_branch
        %1118 = sbr.rel (%p1116) target = $region36
      $region35: #{vgg_feature_extractor.8} parent=31 // pred_region
        _
      $region36: #{vgg_feature_extractor.8} parent=31 // pred_fallthru
        _
    $region32: #{vgg_feature_extractor.8} parent=5 // pred_fallthru
      _
    %p1119 = scmp.le.s32.totalorder 2, %s9
    // Predicated region
    $region37: #{vgg_feature_extractor.8} parent=5 // pred_check
      %p1120 = pneg %p1119
    $region38: #{vgg_feature_extractor.8} parent=5 // pred_check_branch
      %1122 = sbr.rel (%p1120) target = $region40
    $region39: #{vgg_feature_extractor.8} parent=5 // pred_region
      %s1123 = ssub.s32 %s9, 2
      // Predicated region
      $region41: #{vgg_feature_extractor.8} parent=39 // pred_check
        %p1124 = pneg %p106
      $region42: #{vgg_feature_extractor.8} parent=39 // pred_check_branch
        %1126 = sbr.rel (%p1124) target = $region44
      $region43: #{vgg_feature_extractor.8} parent=39 // pred_region
        %p1127 = scmp.lt.s32.totalorder %s15, 1
        %s1128 = scalar_select %p1127, %s15, 1
        %s1129 = smul.addr %s1128, 8
        %s1130 = smul.addr %s1129, 2
        %s1131 = scalar_lea.vmem %s3, %s1130
      $region44: #{vgg_feature_extractor.8} parent=39 // pred_fallthru
        _
    $region40: #{vgg_feature_extractor.8} parent=5 // pred_fallthru
      _
  $region6: #{vgg_feature_extractor.8} parent=0 // loop_footer
    %s13 = sadd.s32 1, %s9
  $region7: #{vgg_feature_extractor.8} parent=0 // loop_footer_branch
    %8 = sbr.rel target = $region3
  $region8: #{vgg_feature_extractor.8} parent=0 // loop_exit
    _

// kernel: vgg_feature_extractor.10
$region0: #{vgg_feature_extractor.10}
  #allocation0 [shape = 'u32[]', space=smem, size = 0x4, offset = 0x4, fixed_abs, tag = 'smem constant byte address 0x4 - core index']
  #allocation1 [shape = 'u32[144,128]{1,0:T(1,128)}', space=vmem, size = 0x12000, scoped, tag = 'internal scratch']
  #allocation2 [shape = 'f32[1,10,6,32]{3,2,1,0:T(8,128)}', space=vmem, size = 0xa000, scoped, tag = 'scratch operand']
  #allocation3 [shape = 'bf16[32,288]{1,0:T(16,128)(2,1)}', space=vmem, size = 0x6000, scoped, tag = 'scratch operand']
  #allocation4 [shape = 'f32[1,8,4,32]{3,2,1,0:T(4,128)}', space=vmem, size = 0x4000, scoped, tag = 'scratch operand']
  %s0 = inlined_call_operand.vmem [shape: bf16[2,8,4,32], index: 0, kind: input, shape index: {}]
  %s1 = inlined_call_operand.vmem [shape: bf16[288,32], index: 1, kind: input, shape index: {}]
  %s2 = inlined_call_operand.vmem [shape: f32[1,32], index: 2, kind: input, shape index: {}]
  %s3 = inlined_call_operand.vmem [shape: bf16[2,4,4,32], index: 3, kind: output, shape index: {}]
  %s4 = sld [smem:[#allocation0]]
  $region45: #{vgg_feature_extractor.10} parent=0
    _
  %s6 = ssub.s32 1, %s4
  %s7 = scalar_select 0, %s6, %s4
  loop: start=0, step=1, limit=4
  $region2: #{vgg_feature_extractor.10} parent=0 // loop_pre_header
    _
  $region3: #{vgg_feature_extractor.10} parent=0 // loop_header
    %s9 = sphi 0, %s13
    %p10 = scmp.ge.s32.totalorder %s9, 4
    %s19 = sphi 0, %s21
    %s22 = sphi 0, %s19
    %s23 = sphi 0, %s22
    %s39 = sphi 0, %s23
    %s43 = sphi 0, %s43
    %s45 = sphi 0, %s43
    %s46 = sphi 0, %s45
    %s60 = sphi 0, %s46
    %s64 = sphi 0, %s64
    %s66 = sphi 0, %s64
    %s67 = sphi 0, %s66
    %s81 = sphi 0, %s67
    %s87 = sphi 0, %s89
    %s90 = sphi 0, %s87
    %s91 = sphi 0, %s90
    %s107 = sphi 0, %s91
  $region4: #{vgg_feature_extractor.10} parent=0 // loop_header_branch
    %12 = sbr.rel (%p10) target = $region8
  $region5: #{vgg_feature_extractor.10} parent=0 // loop_body
    %s14 = ssub.s32 %s9, 1
    %s15 = ssub.s32 %s9, 2
    %s16 = sadd.s32 %s9, 1
    %s17 = ssub.s32 %s9, %s16
    %p18 = scmp.eq.s32.totalorder %s17, 0
    %s20 = sadd.s32 %s19, 1
    %s21 = scalar_select %p18, %s19, %s20
    %p24 = pneg %p18
    %p25 = scmp.eq.s32.totalorder %s9, 1
    %p26 = por %p24, %p25
    %p27 = scmp.ne.s32.totalorder %s19, %s22
    %p28 = scmp.eq.s32.totalorder %s9, 0
    %p29 = por %p27, %p28
    %p30 = scmp.ne.s32.totalorder %s19, %s22
    %p31 = scmp.eq.s32.totalorder %s14, 1
    %p32 = por %p30, %p31
    %p33 = scmp.ne.s32.totalorder %s22, %s23
    %p34 = scmp.eq.s32.totalorder %s14, 0
    %p35 = por %p33, %p34
    %p36 = scmp.ne.s32.totalorder %s22, %s23
    %p37 = scmp.eq.s32.totalorder %s15, 1
    %p38 = por %p36, %p37
    %p40 = scmp.ne.s32.totalorder %s23, %s39
    %p41 = scmp.eq.s32.totalorder %s15, 0
    %p42 = por %p40, %p41
    %s44 = sadd.s32 %s43, 1
    %p47 = scmp.eq.s32.totalorder %s9, 1
    %p48 = scmp.ne.s32.totalorder %s43, %s45
    %p49 = scmp.eq.s32.totalorder %s9, 0
    %p50 = por %p48, %p49
    %p51 = scmp.ne.s32.totalorder %s43, %s45
    %p52 = scmp.eq.s32.totalorder %s14, 1
    %p53 = por %p51, %p52
    %p54 = scmp.ne.s32.totalorder %s45, %s46
    %p55 = scmp.eq.s32.totalorder %s14, 0
    %p56 = por %p54, %p55
    %p57 = scmp.ne.s32.totalorder %s45, %s46
    %p58 = scmp.eq.s32.totalorder %s15, 1
    %p59 = por %p57, %p58
    %p61 = scmp.ne.s32.totalorder %s46, %s60
    %p62 = scmp.eq.s32.totalorder %s15, 0
    %p63 = por %p61, %p62
    %s65 = sadd.s32 %s64, 1
    %p68 = scmp.eq.s32.totalorder %s9, 1
    %p69 = scmp.ne.s32.totalorder %s64, %s66
    %p70 = scmp.eq.s32.totalorder %s9, 0
    %p71 = por %p69, %p70
    %p72 = scmp.ne.s32.totalorder %s64, %s66
    %p73 = scmp.eq.s32.totalorder %s14, 1
    %p74 = por %p72, %p73
    %p75 = scmp.ne.s32.totalorder %s66, %s67
    %p76 = scmp.eq.s32.totalorder %s14, 0
    %p77 = por %p75, %p76
    %p78 = scmp.ne.s32.totalorder %s66, %s67
    %p79 = scmp.eq.s32.totalorder %s15, 1
    %p80 = por %p78, %p79
    %p82 = scmp.ne.s32.totalorder %s67, %s81
    %p83 = scmp.eq.s32.totalorder %s15, 0
    %p84 = por %p82, %p83
    %s85 = ssub.s32 %s9, %s16
    %p86 = scmp.eq.s32.totalorder %s85, 0
    %s88 = sadd.s32 %s87, 1
    %s89 = scalar_select %p86, %s87, %s88
    %p92 = pneg %p86
    %p93 = scmp.eq.s32.totalorder %s9, 1
    %p94 = por %p92, %p93
    %p95 = scmp.ne.s32.totalorder %s87, %s90
    %p96 = scmp.eq.s32.totalorder %s9, 0
    %p97 = por %p95, %p96
    %p98 = scmp.ne.s32.totalorder %s87, %s90
    %p99 = scmp.eq.s32.totalorder %s14, 1
    %p100 = por %p98, %p99
    %p101 = scmp.ne.s32.totalorder %s90, %s91
    %p102 = scmp.eq.s32.totalorder %s14, 0
    %p103 = por %p101, %p102
    %p104 = scmp.ne.s32.totalorder %s90, %s91
    %p105 = scmp.eq.s32.totalorder %s15, 1
    %p106 = por %p104, %p105
    %p108 = scmp.ne.s32.totalorder %s91, %s107
    %p109 = scmp.eq.s32.totalorder %s15, 0
    %p110 = por %p108, %p109
    %p111 = scmp.le.s32.totalorder 1, %s9
    %p112 = scmp.lt.s32.totalorder %s9, 3
    %p113 = pnand %p111, %p112
    %p114 = pneg %p113
    // Predicated region
    $region9: #{vgg_feature_extractor.10} parent=5 // pred_check
      _
    $region10: #{vgg_feature_extractor.10} parent=5 // pred_check_branch
      %116 = sbr.rel (%p113) target = $region12
    $region11: #{vgg_feature_extractor.10} parent=5 // pred_region
      %s117 = ssub.s32 %s9, 1
      // Predicated region
      $region13: #{vgg_feature_extractor.10} parent=11 // pred_check
        %p118 = pneg %p56
      $region14: #{vgg_feature_extractor.10} parent=11 // pred_check_branch
        %120 = sbr.rel (%p118) target = $region16
      $region15: #{vgg_feature_extractor.10} parent=11 // pred_region
        _
      $region16: #{vgg_feature_extractor.10} parent=11 // pred_fallthru
        _
      // Predicated region
      $region17: #{vgg_feature_extractor.10} parent=11 // pred_check
        %p121 = pneg %p77
      $region18: #{vgg_feature_extractor.10} parent=11 // pred_check_branch
        %123 = sbr.rel (%p121) target = $region20
      $region19: #{vgg_feature_extractor.10} parent=11 // pred_region
        _
      $region20: #{vgg_feature_extractor.10} parent=11 // pred_fallthru
        _
    $region12: #{vgg_feature_extractor.10} parent=5 // pred_fallthru
      _
    %p124 = scmp.lt.s32.totalorder %s9, 2
    // Predicated region
    $region21: #{vgg_feature_extractor.10} parent=5 // pred_check
      %p125 = pneg %p124
    $region22: #{vgg_feature_extractor.10} parent=5 // pred_check_branch
      %127 = sbr.rel (%p125) target = $region24
    $region23: #{vgg_feature_extractor.10} parent=5 // pred_region
      // Predicated region
      $region25: #{vgg_feature_extractor.10} parent=23 // pred_check
        %p128 = pneg %p29
      $region26: #{vgg_feature_extractor.10} parent=23 // pred_check_branch
        %130 = sbr.rel (%p128) target = $region28
      $region27: #{vgg_feature_extractor.10} parent=23 // pred_region
        %p131 = scmp.lt.s32.totalorder %s9, 1
        %s132 = scalar_select %p131, %s9, 1
        %s133 = smul.addr %s132, 8
        %s134 = smul.addr %s133, 2
        %s135 = scalar_lea.vmem %s0, %s134
      $region28: #{vgg_feature_extractor.10} parent=23 // pred_fallthru
        _
    $region24: #{vgg_feature_extractor.10} parent=5 // pred_fallthru
      _
    %p136 = scmp.le.s32.totalorder 1, %s9
    %p137 = scmp.lt.s32.totalorder %s9, 3
    %p138 = pnand %p136, %p137
    %p139 = pneg %p138
    // Predicated region
    $region29: #{vgg_feature_extractor.10} parent=5 // pred_check
      _
    $region30: #{vgg_feature_extractor.10} parent=5 // pred_check_branch
      %141 = sbr.rel (%p138) target = $region32
    $region31: #{vgg_feature_extractor.10} parent=5 // pred_region
      %s142 = ssub.s32 %s9, 1
      %p143 = scmp.lt.s32.totalorder %s14, 1
      %s144 = scalar_select %p143, %s14, 1
      %s145 = smul.addr %s144, 8
      %s146 = smul.addr %s145, 2
      %s147 = scalar_lea.vmem %s0, %s146
      %p148 = pneg %p35
      %p149 = pneg %p32
      %p150 = pneg %p56
      %p151 = pneg %p53
      %p152 = pneg %p77
      %p153 = pneg %p74
      %p154 = pneg %p103
      %p155 = pneg %p100
      %p156 = scmp.lt.s32.totalorder %s14, 1
      %s157 = scalar_select %p156, %s14, 1
      %s158 = smul.addr %s157, 4
      %s159 = smul.addr %s158, 2
      %s160 = scalar_lea.vmem %s3, %s159
      %p161 = scmp.lt.s32.totalorder %s14, 1
      %s162 = scalar_select %p161, %s14, 1
      %s163 = smul.addr %s162, 8
      %s164 = smul.addr %s163, 2
      %s165 = scalar_lea.vmem %s0, %s164
      %p166 = scmp.lt.s32.totalorder %s14, 1
      %s167 = scalar_select %p166, %s14, 1
      %s168 = smul.addr %s167, 4
      %s169 = smul.addr %s168, 2
      %s170 = scalar_lea.vmem %s3, %s169
      %vm172 = vcmask 259072
      %173 = vst.msk [vmem:[#allocation2] sm:$0x3f] %vm172, 0.0
      %174 = vst.msk [vmem:[#allocation2 + $0x8] sm:$0x3f] %vm172, 0.0
      %175 = vst.msk [vmem:[#allocation2 + $0x10] sm:$0x3f] %vm172, 0.0
      %176 = vst.msk [vmem:[#allocation2 + $0x18] sm:$0x3f] %vm172, 0.0
      %177 = vst.msk [vmem:[#allocation2 + $0x20] sm:$0x3f] %vm172, 0.0
      %178 = vst.msk [vmem:[#allocation2 + $0x28] sm:$0x3f] %vm172, 0.0
      %179 = vst.msk [vmem:[#allocation2 + $0x30] sm:$0x3f] %vm172, 0.0
      %180 = vst.msk [vmem:[#allocation2 + $0x38] sm:$0x3f] %vm172, 0.0
      %181 = vst.msk [vmem:[#allocation2 + $0x40] sm:$0x3f] %vm172, 0.0
      %182 = vst.msk [vmem:[#allocation2 + $0x48] sm:$0x3f] %vm172, 0.0
      %v183 = vld [vmem:[%s165] sm:$0x3]
      %v184 = vld [vmem:[%s165 + $0x2] sm:$0x3]
      %v185 = vld [vmem:[%s165 + $0x4] sm:$0x3]
      %v186 = vld [vmem:[%s165 + $0x6] sm:$0x3]
      %v187 = vld [vmem:[%s165 + $0x8] sm:$0x3]
      %v188 = vld [vmem:[%s165 + $0xa] sm:$0x3]
      %v189 = vld [vmem:[%s165 + $0xc] sm:$0x3]
      %v190 = vld [vmem:[%s165 + $0xe] sm:$0x3]
      %v191 = vunpack.c.l.bf16 %v183
      %v192 = vunpack.c.l.bf16 %v184
      %v193 = vunpack.c.l.bf16 %v185
      %v194 = vunpack.c.l.bf16 %v186
      %v195 = vunpack.c.l.bf16 %v187
      %v196 = vunpack.c.l.bf16 %v188
      %v197 = vunpack.c.l.bf16 %v189
      %v198 = vunpack.c.l.bf16 %v190
      %s199 = scalar_lea.vmem [#allocation2], 8
      %vm200 = vcmask 257024
      %201 = vst.msk [vmem:[%s199 + $0x1] sm:$0xf] %vm200, %v191
      %202 = vst.msk [vmem:[%s199 + $0x9] sm:$0xf] %vm200, %v192
      %203 = vst.msk [vmem:[%s199 + $0x11] sm:$0xf] %vm200, %v193
      %204 = vst.msk [vmem:[%s199 + $0x19] sm:$0xf] %vm200, %v194
      %205 = vst.msk [vmem:[%s199 + $0x21] sm:$0xf] %vm200, %v195
      %206 = vst.msk [vmem:[%s199 + $0x29] sm:$0xf] %vm200, %v196
      %207 = vst.msk [vmem:[%s199 + $0x31] sm:$0xf] %vm200, %v197
      %208 = vst.msk [vmem:[%s199 + $0x39] sm:$0xf] %vm200, %v198
      %v209 = vld [vmem:[#allocation2] sm:$0xf]
      %v210 = vld [vmem:[#allocation2 + $0x8] sm:$0xf]
      %v211 = vld [vmem:[#allocation2 + $0x10] sm:$0xf]
      %v212 = vld [vmem:[#allocation2 + $0x18] sm:$0xf]
      %v213 = vld [vmem:[#allocation2 + $0x20] sm:$0xf]
      %v214 = vld [vmem:[#allocation2 + $0x28] sm:$0xf]
      %v215 = vld [vmem:[#allocation2 + $0x30] sm:$0xf]
      %v216 = vld [vmem:[#allocation2 + $0x38] sm:$0xf]
      %v225 = vcombine.low %v209, %v210
      %v226 = vcombine.low %v211, %v212
      %v227 = vcombine.low %v213, %v214
      %v228 = vcombine.low %v215, %v216
      %v233 = vpack.c.bf16 %v226, %v225
      %v234 = vpack.c.bf16 %v228, %v227
      %vm235 = vcmask 261120
      %236 = vst.msk [vmem:[#allocation3] sm:$0xff] %vm235, %v233
      %237 = vst.msk [vmem:[#allocation3 + $0x18] sm:$0xff] %vm235, %v234
      %v238 = vld [vmem:[#allocation2 + $0x1] sm:$0xf]
      %v239 = vld [vmem:[#allocation2 + $0x9] sm:$0xf]
      %v240 = vld [vmem:[#allocation2 + $0x11] sm:$0xf]
      %v241 = vld [vmem:[#allocation2 + $0x19] sm:$0xf]
      %v242 = vld [vmem:[#allocation2 + $0x21] sm:$0xf]
      %v243 = vld [vmem:[#allocation2 + $0x29] sm:$0xf]
      %v244 = vld [vmem:[#allocation2 + $0x31] sm:$0xf]
      %v245 = vld [vmem:[#allocation2 + $0x39] sm:$0xf]
      %v254 = vcombine.low %v238, %v239
      %v255 = vcombine.low %v240, %v241
      %v256 = vcombine.low %v242, %v243
      %v257 = vcombine.low %v244, %v245
      %v262 = vpack.c.bf16 %v255, %v254
      %v263 = vpack.c.bf16 %v257, %v256
      %266 = vrot.lane.b32.xlu0 %v262, 32
      %v267 = vpop.permute.xlu0 %266
      %268 = vrot.lane.b32.xlu0 %v263, 32
      %v269 = vpop.permute.xlu0 %268
      %vm272 = vcmask 523520
      %273 = vst.msk [vmem:[#allocation3] sm:$0xff] %vm272, %v267
      %274 = vst.msk [vmem:[#allocation3 + $0x18] sm:$0xff] %vm272, %v269
      %v275 = vld [vmem:[#allocation2 + $0x2] sm:$0xf]
      %v276 = vld [vmem:[#allocation2 + $0xa] sm:$0xf]
      %v277 = vld [vmem:[#allocation2 + $0x12] sm:$0xf]
      %v278 = vld [vmem:[#allocation2 + $0x1a] sm:$0xf]
      %v279 = vld [vmem:[#allocation2 + $0x22] sm:$0xf]
      %v280 = vld [vmem:[#allocation2 + $0x2a] sm:$0xf]
      %v281 = vld [vmem:[#allocation2 + $0x32] sm:$0xf]
      %v282 = vld [vmem:[#allocation2 + $0x3a] sm:$0xf]
      %v291 = vcombine.low %v275, %v276
      %v292 = vcombine.low %v277, %v278
      %v293 = vcombine.low %v279, %v280
      %v294 = vcombine.low %v281, %v282
      %v299 = vpack.c.bf16 %v292, %v291
      %v300 = vpack.c.bf16 %v294, %v293
      %303 = vrot.lane.b32.xlu0 %v299, 64
      %v304 = vpop.permute.xlu0 %303
      %305 = vrot.lane.b32.xlu0 %v300, 64
      %v306 = vpop.permute.xlu0 %305
      %vm309 = vcmask 785920
      %310 = vst.msk [vmem:[#allocation3] sm:$0xff] %vm309, %v304
      %311 = vst.msk [vmem:[#allocation3 + $0x18] sm:$0xff] %vm309, %v306
      %v312 = vld [vmem:[%s199] sm:$0xf]
      %v313 = vld [vmem:[%s199 + $0x8] sm:$0xf]
      %v314 = vld [vmem:[%s199 + $0x10] sm:$0xf]
      %v315 = vld [vmem:[%s199 + $0x18] sm:$0xf]
      %v316 = vld [vmem:[%s199 + $0x20] sm:$0xf]
      %v317 = vld [vmem:[%s199 + $0x28] sm:$0xf]
      %v318 = vld [vmem:[%s199 + $0x30] sm:$0xf]
      %v319 = vld [vmem:[%s199 + $0x38] sm:$0xf]
      %v328 = vcombine.low %v312, %v313
      %v329 = vcombine.low %v314, %v315
      %v330 = vcombine.low %v316, %v317
      %v331 = vcombine.low %v318, %v319
      %v336 = vpack.c.bf16 %v329, %v328
      %v337 = vpack.c.bf16 %v331, %v330
      %340 = vrot.lane.b32.xlu0 %v336, 96
      %v341 = vpop.permute.xlu0 %340
      %342 = vrot.lane.b32.xlu0 %v337, 96
      %v343 = vpop.permute.xlu0 %342
      %vm346 = vcmask 1048320
      %347 = vst.msk [vmem:[#allocation3] sm:$0xff] %vm346, %v341
      %348 = vst.msk [vmem:[#allocation3 + $0x18] sm:$0xff] %vm346, %v343
      %v349 = vld [vmem:[%s199 + $0x1] sm:$0xf]
      %v350 = vld [vmem:[%s199 + $0x9] sm:$0xf]
      %v351 = vld [vmem:[%s199 + $0x11] sm:$0xf]
      %v352 = vld [vmem:[%s199 + $0x19] sm:$0xf]
      %v353 = vld [vmem:[%s199 + $0x21] sm:$0xf]
      %v354 = vld [vmem:[%s199 + $0x29] sm:$0xf]
      %v355 = vld [vmem:[%s199 + $0x31] sm:$0xf]
      %v356 = vld [vmem:[%s199 + $0x39] sm:$0xf]
      %v365 = vcombine.low %v349, %v350
      %v366 = vcombine.low %v351, %v352
      %v367 = vcombine.low %v353, %v354
      %v368 = vcombine.low %v355, %v356
      %v373 = vpack.c.bf16 %v366, %v365
      %v374 = vpack.c.bf16 %v368, %v367
      %375 = vst.msk [vmem:[#allocation3 + $0x8] sm:$0xff] %vm235, %v373
      %376 = vst.msk [vmem:[#allocation3 + $0x20] sm:$0xff] %vm235, %v374
      %v377 = vld [vmem:[%s199 + $0x2] sm:$0xf]
      %v378 = vld [vmem:[%s199 + $0xa] sm:$0xf]
      %v379 = vld [vmem:[%s199 + $0x12] sm:$0xf]
      %v380 = vld [vmem:[%s199 + $0x1a] sm:$0xf]
      %v381 = vld [vmem:[%s199 + $0x22] sm:$0xf]
      %v382 = vld [vmem:[%s199 + $0x2a] sm:$0xf]
      %v383 = vld [vmem:[%s199 + $0x32] sm:$0xf]
      %v384 = vld [vmem:[%s199 + $0x3a] sm:$0xf]
      %v393 = vcombine.low %v377, %v378
      %v394 = vcombine.low %v379, %v380
      %v395 = vcombine.low %v381, %v382
      %v396 = vcombine.low %v383, %v384
      %v401 = vpack.c.bf16 %v394, %v393
      %v402 = vpack.c.bf16 %v396, %v395
      %405 = vrot.lane.b32.xlu0 %v401, 32
      %v406 = vpop.permute.xlu0 %405
      %407 = vrot.lane.b32.xlu0 %v402, 32
      %v408 = vpop.permute.xlu0 %407
      %411 = vst.msk [vmem:[#allocation3 + $0x8] sm:$0xff] %vm272, %v406
      %412 = vst.msk [vmem:[#allocation3 + $0x20] sm:$0xff] %vm272, %v408
      %s413 = scalar_lea.vmem [#allocation2], 16
      %v414 = vld [vmem:[%s413] sm:$0xf]
      %v415 = vld [vmem:[%s413 + $0x8] sm:$0xf]
      %v416 = vld [vmem:[%s413 + $0x10] sm:$0xf]
      %v417 = vld [vmem:[%s413 + $0x18] sm:$0xf]
      %v418 = vld [vmem:[%s413 + $0x20] sm:$0xf]
      %v419 = vld [vmem:[%s413 + $0x28] sm:$0xf]
      %v420 = vld [vmem:[%s413 + $0x30] sm:$0xf]
      %v421 = vld [vmem:[%s413 + $0x38] sm:$0xf]
      %v430 = vcombine.low %v414, %v415
      %v431 = vcombine.low %v416, %v417
      %v432 = vcombine.low %v418, %v419
      %v433 = vcombine.low %v420, %v421
      %v438 = vpack.c.bf16 %v431, %v430
      %v439 = vpack.c.bf16 %v433, %v432
      %442 = vrot.lane.b32.xlu0 %v438, 64
      %v443 = vpop.permute.xlu0 %442
      %444 = vrot.lane.b32.xlu0 %v439, 64
      %v445 = vpop.permute.xlu0 %444
      %448 = vst.msk [vmem:[#allocation3 + $0x8] sm:$0xff] %vm309, %v443
      %449 = vst.msk [vmem:[#allocation3 + $0x20] sm:$0xff] %vm309, %v445
      %v450 = vld [vmem:[%s413 + $0x1] sm:$0xf]
      %v451 = vld [vmem:[%s413 + $0x9] sm:$0xf]
      %v452 = vld [vmem:[%s413 + $0x11] sm:$0xf]
      %v453 = vld [vmem:[%s413 + $0x19] sm:$0xf]
      %v454 = vld [vmem:[%s413 + $0x21] sm:$0xf]
      %v455 = vld [vmem:[%s413 + $0x29] sm:$0xf]
      %v456 = vld [vmem:[%s413 + $0x31] sm:$0xf]
      %v457 = vld [vmem:[%s413 + $0x39] sm:$0xf]
      %v466 = vcombine.low %v450, %v451
      %v467 = vcombine.low %v452, %v453
      %v468 = vcombine.low %v454, %v455
      %v469 = vcombine.low %v456, %v457
      %v474 = vpack.c.bf16 %v467, %v466
      %v475 = vpack.c.bf16 %v469, %v468
      %478 = vrot.lane.b32.xlu0 %v474, 96
      %v479 = vpop.permute.xlu0 %478
      %480 = vrot.lane.b32.xlu0 %v475, 96
      %v481 = vpop.permute.xlu0 %480
      %484 = vst.msk [vmem:[#allocation3 + $0x8] sm:$0xff] %vm346, %v479
      %485 = vst.msk [vmem:[#allocation3 + $0x20] sm:$0xff] %vm346, %v481
      %v486 = vld [vmem:[%s413 + $0x2] sm:$0xf]
      %v487 = vld [vmem:[%s413 + $0xa] sm:$0xf]
      %v488 = vld [vmem:[%s413 + $0x12] sm:$0xf]
      %v489 = vld [vmem:[%s413 + $0x1a] sm:$0xf]
      %v490 = vld [vmem:[%s413 + $0x22] sm:$0xf]
      %v491 = vld [vmem:[%s413 + $0x2a] sm:$0xf]
      %v492 = vld [vmem:[%s413 + $0x32] sm:$0xf]
      %v493 = vld [vmem:[%s413 + $0x3a] sm:$0xf]
      %v502 = vcombine.low %v486, %v487
      %v503 = vcombine.low %v488, %v489
      %v504 = vcombine.low %v490, %v491
      %v505 = vcombine.low %v492, %v493
      %v510 = vpack.c.bf16 %v503, %v502
      %v511 = vpack.c.bf16 %v505, %v504
      %512 = vst.msk [vmem:[#allocation3 + $0x10] sm:$0xff] %vm235, %v510
      %513 = vst.msk [vmem:[#allocation3 + $0x28] sm:$0xff] %vm235, %v511
      %v514 = vld [vmem:[#allocation3] sm:$0xff]
      %v515 = vld [vmem:[#allocation3 + $0x8] sm:$0xff]
      %v516 = vld [vmem:[#allocation3 + $0x10] sm:$0xff]
      %v517 = vld [vmem:[#allocation3 + $0x18] sm:$0xff]
      %v518 = vld [vmem:[#allocation3 + $0x20] sm:$0xff]
      %v519 = vld [vmem:[#allocation3 + $0x28] sm:$0xff]
      %v520 = vld [vmem:[%s1] sm:$0xf]
      %v521 = vld [vmem:[%s1 + $0x4] sm:$0xf]
      %v522 = vld [vmem:[%s1 + $0x8] sm:$0xf]
      %v523 = vld [vmem:[%s1 + $0xc] sm:$0xf]
      %v524 = vld [vmem:[%s1 + $0x10] sm:$0xf]
      %v525 = vld [vmem:[%s1 + $0x14] sm:$0xf]
      %v526 = vld [vmem:[%s1 + $0x18] sm:$0xf]
      %v527 = vld [vmem:[%s1 + $0x1c] sm:$0xf]
      %v528 = vld [vmem:[%s1 + $0x20] sm:$0xf]
      %v529 = vld [vmem:[%s1 + $0x24] sm:$0xf]
      %v530 = vld [vmem:[%s1 + $0x28] sm:$0xf]
      %v531 = vld [vmem:[%s1 + $0x2c] sm:$0xf]
      %v532 = vld [vmem:[%s1 + $0x30] sm:$0xf]
      %v533 = vld [vmem:[%s1 + $0x34] sm:$0xf]
      %v534 = vld [vmem:[%s1 + $0x38] sm:$0xf]
      %v535 = vld [vmem:[%s1 + $0x3c] sm:$0xf]
      %v536 = vld [vmem:[%s1 + $0x40] sm:$0xf]
      %v537 = vld [vmem:[%s1 + $0x44] sm:$0xf]
      %v538 = vld [vmem:[%s1 + $0x48] sm:$0xf]
      %v539 = vld [vmem:[%s1 + $0x4c] sm:$0xf]
      %v540 = vld [vmem:[%s1 + $0x50] sm:$0xf]
      %v541 = vld [vmem:[%s1 + $0x54] sm:$0xf]
      %v542 = vld [vmem:[%s1 + $0x58] sm:$0xf]
      %v543 = vld [vmem:[%s1 + $0x5c] sm:$0xf]
      %v544 = vld [vmem:[%s1 + $0x60] sm:$0xf]
      %v545 = vld [vmem:[%s1 + $0x64] sm:$0xf]
      %v546 = vld [vmem:[%s1 + $0x68] sm:$0xf]
      %v547 = vld [vmem:[%s1 + $0x6c] sm:$0xf]
      %v548 = vld [vmem:[%s1 + $0x70] sm:$0xf]
      %v549 = vld [vmem:[%s1 + $0x74] sm:$0xf]
      %v550 = vld [vmem:[%s1 + $0x78] sm:$0xf]
      %v551 = vld [vmem:[%s1 + $0x7c] sm:$0xf]
      %v552 = vld [vmem:[%s1 + $0x80] sm:$0xf]
      %v553 = vld [vmem:[%s1 + $0x84] sm:$0xf]
      %v554 = vld [vmem:[%s1 + $0x88] sm:$0xf]
      %v555 = vld [vmem:[%s1 + $0x8c] sm:$0xf]
      %v556 = vld [vmem:[%s2] sm:$0x1]
      %v558 = vlaneseq
      %v559 = vshrl.u32 %v558, 7
      %v560 = vsub.s32 0, %v559
      %v561 = vrot.slane %v556, %v560
      %v599 = vunpack.c.l.b16 %v520
      %v600 = vunpack.c.l.b16 %v521
      %v601 = vunpack.c.l.b16 %v522
      %v602 = vunpack.c.l.b16 %v523
      %v603 = vunpack.c.l.b16 %v524
      %v604 = vunpack.c.l.b16 %v525
      %v605 = vunpack.c.l.b16 %v526
      %v606 = vunpack.c.l.b16 %v527
      %v607 = vunpack.c.l.b16 %v528
      %v608 = vunpack.c.l.b16 %v529
      %v609 = vunpack.c.l.b16 %v530
      %v610 = vunpack.c.l.b16 %v531
      %v611 = vunpack.c.l.b16 %v532
      %v612 = vunpack.c.l.b16 %v533
      %v613 = vunpack.c.l.b16 %v534
      %v614 = vunpack.c.l.b16 %v535
      %v615 = vunpack.c.l.b16 %v536
      %v616 = vunpack.c.l.b16 %v537
      %v617 = vunpack.c.l.b16 %v538
      %v618 = vunpack.c.l.b16 %v539
      %v619 = vunpack.c.l.b16 %v540
      %v620 = vunpack.c.l.b16 %v541
      %v621 = vunpack.c.l.b16 %v542
      %v622 = vunpack.c.l.b16 %v543
      %v623 = vunpack.c.l.b16 %v544
      %v624 = vunpack.c.l.b16 %v545
      %v625 = vunpack.c.l.b16 %v546
      %v626 = vunpack.c.l.b16 %v547
      %v627 = vunpack.c.l.b16 %v548
      %v628 = vunpack.c.l.b16 %v549
      %v629 = vunpack.c.l.b16 %v550
      %v630 = vunpack.c.l.b16 %v551
      %v631 = vunpack.c.l.b16 %v552
      %v632 = vunpack.c.l.b16 %v553
      %v633 = vunpack.c.l.b16 %v554
      %v634 = vunpack.c.l.b16 %v555
      %v635 = vpack.c.b16 %v600, %v599
      %v636 = vpack.c.b16 %v602, %v601
      %v637 = vpack.c.b16 %v604, %v603
      %v638 = vpack.c.b16 %v606, %v605
      %v639 = vpack.c.b16 %v608, %v607
      %v640 = vpack.c.b16 %v610, %v609
      %v641 = vpack.c.b16 %v612, %v611
      %v642 = vpack.c.b16 %v614, %v613
      %v643 = vpack.c.b16 %v616, %v615
      %v644 = vpack.c.b16 %v618, %v617
      %v645 = vpack.c.b16 %v620, %v619
      %v646 = vpack.c.b16 %v622, %v621
      %v647 = vpack.c.b16 %v624, %v623
      %v648 = vpack.c.b16 %v626, %v625
      %v649 = vpack.c.b16 %v628, %v627
      %v650 = vpack.c.b16 %v630, %v629
      %v651 = vpack.c.b16 %v632, %v631
      %v652 = vpack.c.b16 %v634, %v633
      %v672 = vsel %vm235, %v516, 0
      %v675 = vsel %vm235, %v519, 0
      %677 = vmatprep.subr.bf16.mxu0 0
      %678 = vmatpush1.bf16.msra.mxu0 %v635
      %679 = vmatprep.subr.bf16.mxu0 0
      %680 = vmatpush1.bf16.msra.mxu0 %v636
      %681 = vmatprep.subr.bf16.mxu0 0
      %682 = vmatpush1.bf16.msra.mxu0 %v637
      %683 = vmatprep.subr.bf16.mxu0 0
      %684 = vmatpush1.bf16.msra.mxu0 %v638
      %685 = vmatprep.subr.bf16.mxu0 0
      %686 = vmatpush1.bf16.msra.mxu0 %v639
      %687 = vmatprep.subr.bf16.mxu0 0
      %688 = vmatpush1.bf16.msra.mxu0 %v640
      %689 = vmatprep.subr.bf16.mxu0 0
      %690 = vmatpush1.bf16.msra.mxu0 %v641
      %691 = vmatprep.subr.bf16.mxu0 0
      %692 = vmatpush1.bf16.msra.mxu0 %v642
      %693 = vmatprep.subr.bf16.mxu0 0
      %694 = vmatpush1.bf16.msra.mxu0 %v643
      %695 = vmatprep.subr.bf16.mxu0 0
      %696 = vmatpush1.bf16.msra.mxu0 %v644
      %697 = vmatprep.subr.bf16.mxu0 0
      %698 = vmatpush1.bf16.msra.mxu0 %v645
      %699 = vmatprep.subr.bf16.mxu0 0
      %700 = vmatpush1.bf16.msra.mxu0 %v646
      %701 = vmatprep.subr.bf16.mxu0 0
      %702 = vmatpush1.bf16.msra.mxu0 %v647
      %703 = vmatprep.subr.bf16.mxu0 0
      %704 = vmatpush1.bf16.msra.mxu0 %v648
      %705 = vmatprep.subr.bf16.mxu0 0
      %706 = vmatpush1.bf16.msra.mxu0 %v649
      %707 = vmatprep.subr.bf16.mxu0 0
      %708 = vmatpush1.bf16.msra.mxu0 %v650
      %709 = vmatprep.mubr.bf16.mxu0 %v515
      %710 = vmatmul.mubr.bf16.gmra.mrb[0].mxu0 %v514
      %v711 = vpop.f32.mrb[0].mxu0
      %v712 = vadd.f32 %v561, %v711
      %v713 = vpop.f32.mrb[0].mxu0
      %v714 = vpop.f32.mrb[0].mxu0
      %v715 = vadd.f32 %v561, %v714
      %v716 = vpop.f32.mrb[0].mxu0
      %717 = vmatprep.mubr.bf16.mxu0 %v518
      %718 = vmatmul.mubr.bf16.gmra.mrb[0].mxu0 %v517
      %v719 = vpop.f32.mrb[0].mxu0
      %v720 = vadd.f32 %v561, %v719
      %v721 = vpop.f32.mrb[0].mxu0
      %v722 = vpop.f32.mrb[0].mxu0
      %v723 = vadd.f32 %v561, %v722
      %v724 = vpop.f32.mrb[0].mxu0
      %725 = vdwg.mxu0
      %726 = vmatprep.subr.bf16.mxu0 0
      %727 = vmatpush1.bf16.msra.mxu0 %v651
      %728 = vmatprep.subr.bf16.mxu0 0
      %729 = vmatpush1.bf16.msra.mxu0 %v652
      %730 = vmatprep.subr.bf16.mxu0 0
      %731 = vmatpush1.bf16.msra.mxu0 0
      %732 = vmatprep.subr.bf16.mxu0 0
      %733 = vmatpush1.bf16.msra.mxu0 0
      %734 = vmatprep.subr.bf16.mxu0 0
      %735 = vmatpush1.bf16.msra.mxu0 0
      %736 = vmatprep.subr.bf16.mxu0 0
      %737 = vmatpush1.bf16.msra.mxu0 0
      %738 = vmatprep.subr.bf16.mxu0 0
      %739 = vmatpush1.bf16.msra.mxu0 0
      %740 = vmatprep.subr.bf16.mxu0 0
      %741 = vmatpush1.bf16.msra.mxu0 0
      %742 = vmatprep.subr.bf16.mxu0 0
      %743 = vmatpush1.bf16.msra.mxu0 0
      %744 = vmatprep.subr.bf16.mxu0 0
      %745 = vmatpush1.bf16.msra.mxu0 0
      %746 = vmatprep.subr.bf16.mxu0 0
      %747 = vmatpush1.bf16.msra.mxu0 0
      %748 = vmatprep.subr.bf16.mxu0 0
      %749 = vmatpush1.bf16.msra.mxu0 0
      %750 = vmatprep.subr.bf16.mxu0 0
      %751 = vmatpush1.bf16.msra.mxu0 0
      %752 = vmatprep.subr.bf16.mxu0 0
      %753 = vmatpush1.bf16.msra.mxu0 0
      %754 = vmatprep.subr.bf16.mxu0 0
      %755 = vmatpush1.bf16.msra.mxu0 0
      %756 = vmatprep.subr.bf16.mxu0 0
      %757 = vmatpush1.bf16.msra.mxu0 0
      %758 = vmatprep.mubr.bf16.mxu0 0
      %759 = vmatmul.mubr.bf16.gmra.mrb[0].mxu0 %v672
      %v760 = vpop.f32.mrb[0].mxu0
      %v761 = vadd.f32 %v712, %v760
      %v762 = vpop.f32.mrb[0].mxu0
      %v763 = vpop.f32.mrb[0].mxu0
      %v764 = vadd.f32 %v715, %v763
      %v765 = vpop.f32.mrb[0].mxu0
      %766 = vmatprep.mubr.bf16.mxu0 0
      %767 = vmatmul.mubr.bf16.gmra.mrb[0].mxu0 %v675
      %v768 = vpop.f32.mrb[0].mxu0
      %v769 = vadd.f32 %v720, %v768
      %v770 = vpop.f32.mrb[0].mxu0
      %v771 = vpop.f32.mrb[0].mxu0
      %v772 = vadd.f32 %v723, %v771
      %v773 = vpop.f32.mrb[0].mxu0
      %774 = vdwg.mxu0
      %v775 = vmax.f32 %v761, 0.0
      %v776 = vmax.f32 %v764, 0.0
      %v777 = vmax.f32 %v769, 0.0
      %v778 = vmax.f32 %v772, 0.0
      %v783 = vcombine.high %v775, %v775
      %v784 = vcombine.high %v776, %v776
      %v785 = vcombine.high %v777, %v777
      %v786 = vcombine.high %v778, %v778
      %791 = vst.msk [vmem:[#allocation4] sm:$0xf] %vm200, %v775
      %792 = vst.msk [vmem:[#allocation4 + $0x4] sm:$0xf] %vm200, %v783
      %793 = vst.msk [vmem:[#allocation4 + $0x8] sm:$0xf] %vm200, %v776
      %794 = vst.msk [vmem:[#allocation4 + $0xc] sm:$0xf] %vm200, %v784
      %795 = vst.msk [vmem:[#allocation4 + $0x10] sm:$0xf] %vm200, %v777
      %796 = vst.msk [vmem:[#allocation4 + $0x14] sm:$0xf] %vm200, %v785
      %797 = vst.msk [vmem:[#allocation4 + $0x18] sm:$0xf] %vm200, %v778
      %798 = vst.msk [vmem:[#allocation4 + $0x1c] sm:$0xf] %vm200, %v786
      %v799 = vld [vmem:[#allocation4] sm:$0xf]
      %v800 = vld [vmem:[#allocation4 + $0x8] sm:$0xf]
      %v801 = vld [vmem:[#allocation4 + $0x10] sm:$0xf]
      %v802 = vld [vmem:[#allocation4 + $0x18] sm:$0xf]
      %s803 = scalar_lea.vmem [#allocation4], 4
      %v804 = vld [vmem:[%s803] sm:$0xf]
      %v805 = vld [vmem:[%s803 + $0x8] sm:$0xf]
      %v806 = vld [vmem:[%s803 + $0x10] sm:$0xf]
      %v807 = vld [vmem:[%s803 + $0x18] sm:$0xf]
      %v808 = vmax.f32 %v799, %v804
      %v809 = vmax.f32 %v800, %v805
      %v810 = vmax.f32 %v801, %v806
      %v811 = vmax.f32 %v802, %v807
      %v812 = vpack.c.bf16 %v808, %v808
      %v813 = vpack.c.bf16 %v809, %v809
      %v814 = vpack.c.bf16 %v810, %v810
      %v815 = vpack.c.bf16 %v811, %v811
      %vm816 = vcmask 254976
      %817 = vst.msk [vmem:[%s170] sm:$0x3] %vm816, %v812
      %818 = vst.msk [vmem:[%s170 + $0x2] sm:$0x3] %vm816, %v813
      %819 = vst.msk [vmem:[%s170 + $0x4] sm:$0x3] %vm816, %v814
      %820 = vst.msk [vmem:[%s170 + $0x6] sm:$0x3] %vm816, %v815
      %p821 = scmp.lt.s32.totalorder %s14, 1
      %s822 = scalar_select %p821, %s14, 1
      %s823 = smul.addr %s822, 4
      %s824 = smul.addr %s823, 2
      %s825 = scalar_lea.vmem %s3, %s824
      // Predicated region
      $region33: #{vgg_feature_extractor.10} parent=31 // pred_check
        %p826 = pneg %p100
      $region34: #{vgg_feature_extractor.10} parent=31 // pred_check_branch
        %828 = sbr.rel (%p826) target = $region36
      $region35: #{vgg_feature_extractor.10} parent=31 // pred_region
        _
      $region36: #{vgg_feature_extractor.10} parent=31 // pred_fallthru
        _
    $region32: #{vgg_feature_extractor.10} parent=5 // pred_fallthru
      _
    %p829 = scmp.le.s32.totalorder 2, %s9
    // Predicated region
    $region37: #{vgg_feature_extractor.10} parent=5 // pred_check
      %p830 = pneg %p829
    $region38: #{vgg_feature_extractor.10} parent=5 // pred_check_branch
      %832 = sbr.rel (%p830) target = $region40
    $region39: #{vgg_feature_extractor.10} parent=5 // pred_region
      %s833 = ssub.s32 %s9, 2
      // Predicated region
      $region41: #{vgg_feature_extractor.10} parent=39 // pred_check
        %p834 = pneg %p106
      $region42: #{vgg_feature_extractor.10} parent=39 // pred_check_branch
        %836 = sbr.rel (%p834) target = $region44
      $region43: #{vgg_feature_extractor.10} parent=39 // pred_region
        %p837 = scmp.lt.s32.totalorder %s15, 1
        %s838 = scalar_select %p837, %s15, 1
        %s839 = smul.addr %s838, 4
        %s840 = smul.addr %s839, 2
        %s841 = scalar_lea.vmem %s3, %s840
      $region44: #{vgg_feature_extractor.10} parent=39 // pred_fallthru
        _
    $region40: #{vgg_feature_extractor.10} parent=5 // pred_fallthru
      _
  $region6: #{vgg_feature_extractor.10} parent=0 // loop_footer
    %s13 = sadd.s32 1, %s9
  $region7: #{vgg_feature_extractor.10} parent=0 // loop_footer_branch
    %8 = sbr.rel target = $region3
  $region8: #{vgg_feature_extractor.10} parent=0 // loop_exit
    _

// kernel: vgg_feature_extractor.11
$region0: #{vgg_feature_extractor.11}
  #allocation0 [shape = 'u32[]', space=smem, size = 0x4, offset = 0x4, fixed_abs, tag = 'smem constant byte address 0x4 - core index']
  #allocation1 [shape = 'u32[144,128]{1,0:T(1,128)}', space=vmem, size = 0x12000, scoped, tag = 'internal scratch']
  #allocation2 [shape = 'f32[1,6,6,32]{3,2,1,0:T(8,128)}', space=vmem, size = 0x6000, scoped, tag = 'scratch operand']
  #allocation3 [shape = 'bf16[16,288]{1,0:T(16,128)(2,1)}', space=vmem, size = 0x3000, scoped, tag = 'scratch operand']
  %s0 = inlined_call_operand.vmem [shape: bf16[2,4,4,32], index: 0, kind: input, shape index: {}]
  %s1 = inlined_call_operand.vmem [shape: bf16[288,64], index: 1, kind: input, shape index: {}]
  %s2 = inlined_call_operand.vmem [shape: f32[1,64], index: 2, kind: input, shape index: {}]
  %s3 = inlined_call_operand.vmem [shape: bf16[2,4,4,64], index: 3, kind: output, shape index: {}]
  %s4 = sld [smem:[#allocation0]]
  $region45: #{vgg_feature_extractor.11} parent=0
    _
  %s6 = ssub.s32 1, %s4
  %s7 = scalar_select 0, %s6, %s4
  loop: start=0, step=1, limit=4
  $region2: #{vgg_feature_extractor.11} parent=0 // loop_pre_header
    _
  $region3: #{vgg_feature_extractor.11} parent=0 // loop_header
    %s9 = sphi 0, %s13
    %p10 = scmp.ge.s32.totalorder %s9, 4
    %s19 = sphi 0, %s21
    %s22 = sphi 0, %s19
    %s23 = sphi 0, %s22
    %s39 = sphi 0, %s23
    %s43 = sphi 0, %s43
    %s45 = sphi 0, %s43
    %s46 = sphi 0, %s45
    %s60 = sphi 0, %s46
    %s64 = sphi 0, %s64
    %s66 = sphi 0, %s64
    %s67 = sphi 0, %s66
    %s81 = sphi 0, %s67
    %s87 = sphi 0, %s89
    %s90 = sphi 0, %s87
    %s91 = sphi 0, %s90
    %s107 = sphi 0, %s91
  $region4: #{vgg_feature_extractor.11} parent=0 // loop_header_branch
    %12 = sbr.rel (%p10) target = $region8
  $region5: #{vgg_feature_extractor.11} parent=0 // loop_body
    %s14 = ssub.s32 %s9, 1
    %s15 = ssub.s32 %s9, 2
    %s16 = sadd.s32 %s9, 1
    %s17 = ssub.s32 %s9, %s16
    %p18 = scmp.eq.s32.totalorder %s17, 0
    %s20 = sadd.s32 %s19, 1
    %s21 = scalar_select %p18, %s19, %s20
    %p24 = pneg %p18
    %p25 = scmp.eq.s32.totalorder %s9, 1
    %p26 = por %p24, %p25
    %p27 = scmp.ne.s32.totalorder %s19, %s22
    %p28 = scmp.eq.s32.totalorder %s9, 0
    %p29 = por %p27, %p28
    %p30 = scmp.ne.s32.totalorder %s19, %s22
    %p31 = scmp.eq.s32.totalorder %s14, 1
    %p32 = por %p30, %p31
    %p33 = scmp.ne.s32.totalorder %s22, %s23
    %p34 = scmp.eq.s32.totalorder %s14, 0
    %p35 = por %p33, %p34
    %p36 = scmp.ne.s32.totalorder %s22, %s23
    %p37 = scmp.eq.s32.totalorder %s15, 1
    %p38 = por %p36, %p37
    %p40 = scmp.ne.s32.totalorder %s23, %s39
    %p41 = scmp.eq.s32.totalorder %s15, 0
    %p42 = por %p40, %p41
    %s44 = sadd.s32 %s43, 1
    %p47 = scmp.eq.s32.totalorder %s9, 1
    %p48 = scmp.ne.s32.totalorder %s43, %s45
    %p49 = scmp.eq.s32.totalorder %s9, 0
    %p50 = por %p48, %p49
    %p51 = scmp.ne.s32.totalorder %s43, %s45
    %p52 = scmp.eq.s32.totalorder %s14, 1
    %p53 = por %p51, %p52
    %p54 = scmp.ne.s32.totalorder %s45, %s46
    %p55 = scmp.eq.s32.totalorder %s14, 0
    %p56 = por %p54, %p55
    %p57 = scmp.ne.s32.totalorder %s45, %s46
    %p58 = scmp.eq.s32.totalorder %s15, 1
    %p59 = por %p57, %p58
    %p61 = scmp.ne.s32.totalorder %s46, %s60
    %p62 = scmp.eq.s32.totalorder %s15, 0
    %p63 = por %p61, %p62
    %s65 = sadd.s32 %s64, 1
    %p68 = scmp.eq.s32.totalorder %s9, 1
    %p69 = scmp.ne.s32.totalorder %s64, %s66
    %p70 = scmp.eq.s32.totalorder %s9, 0
    %p71 = por %p69, %p70
    %p72 = scmp.ne.s32.totalorder %s64, %s66
    %p73 = scmp.eq.s32.totalorder %s14, 1
    %p74 = por %p72, %p73
    %p75 = scmp.ne.s32.totalorder %s66, %s67
    %p76 = scmp.eq.s32.totalorder %s14, 0
    %p77 = por %p75, %p76
    %p78 = scmp.ne.s32.totalorder %s66, %s67
    %p79 = scmp.eq.s32.totalorder %s15, 1
    %p80 = por %p78, %p79
    %p82 = scmp.ne.s32.totalorder %s67, %s81
    %p83 = scmp.eq.s32.totalorder %s15, 0
    %p84 = por %p82, %p83
    %s85 = ssub.s32 %s9, %s16
    %p86 = scmp.eq.s32.totalorder %s85, 0
    %s88 = sadd.s32 %s87, 1
    %s89 = scalar_select %p86, %s87, %s88
    %p92 = pneg %p86
    %p93 = scmp.eq.s32.totalorder %s9, 1
    %p94 = por %p92, %p93
    %p95 = scmp.ne.s32.totalorder %s87, %s90
    %p96 = scmp.eq.s32.totalorder %s9, 0
    %p97 = por %p95, %p96
    %p98 = scmp.ne.s32.totalorder %s87, %s90
    %p99 = scmp.eq.s32.totalorder %s14, 1
    %p100 = por %p98, %p99
    %p101 = scmp.ne.s32.totalorder %s90, %s91
    %p102 = scmp.eq.s32.totalorder %s14, 0
    %p103 = por %p101, %p102
    %p104 = scmp.ne.s32.totalorder %s90, %s91
    %p105 = scmp.eq.s32.totalorder %s15, 1
    %p106 = por %p104, %p105
    %p108 = scmp.ne.s32.totalorder %s91, %s107
    %p109 = scmp.eq.s32.totalorder %s15, 0
    %p110 = por %p108, %p109
    %p111 = scmp.le.s32.totalorder 1, %s9
    %p112 = scmp.lt.s32.totalorder %s9, 3
    %p113 = pnand %p111, %p112
    %p114 = pneg %p113
    // Predicated region
    $region9: #{vgg_feature_extractor.11} parent=5 // pred_check
      _
    $region10: #{vgg_feature_extractor.11} parent=5 // pred_check_branch
      %116 = sbr.rel (%p113) target = $region12
    $region11: #{vgg_feature_extractor.11} parent=5 // pred_region
      %s117 = ssub.s32 %s9, 1
      // Predicated region
      $region13: #{vgg_feature_extractor.11} parent=11 // pred_check
        %p118 = pneg %p56
      $region14: #{vgg_feature_extractor.11} parent=11 // pred_check_branch
        %120 = sbr.rel (%p118) target = $region16
      $region15: #{vgg_feature_extractor.11} parent=11 // pred_region
        _
      $region16: #{vgg_feature_extractor.11} parent=11 // pred_fallthru
        _
      // Predicated region
      $region17: #{vgg_feature_extractor.11} parent=11 // pred_check
        %p121 = pneg %p77
      $region18: #{vgg_feature_extractor.11} parent=11 // pred_check_branch
        %123 = sbr.rel (%p121) target = $region20
      $region19: #{vgg_feature_extractor.11} parent=11 // pred_region
        _
      $region20: #{vgg_feature_extractor.11} parent=11 // pred_fallthru
        _
    $region12: #{vgg_feature_extractor.11} parent=5 // pred_fallthru
      _
    %p124 = scmp.lt.s32.totalorder %s9, 2
    // Predicated region
    $region21: #{vgg_feature_extractor.11} parent=5 // pred_check
      %p125 = pneg %p124
    $region22: #{vgg_feature_extractor.11} parent=5 // pred_check_branch
      %127 = sbr.rel (%p125) target = $region24
    $region23: #{vgg_feature_extractor.11} parent=5 // pred_region
      // Predicated region
      $region25: #{vgg_feature_extractor.11} parent=23 // pred_check
        %p128 = pneg %p29
      $region26: #{vgg_feature_extractor.11} parent=23 // pred_check_branch
        %130 = sbr.rel (%p128) target = $region28
      $region27: #{vgg_feature_extractor.11} parent=23 // pred_region
        %p131 = scmp.lt.s32.totalorder %s9, 1
        %s132 = scalar_select %p131, %s9, 1
        %s133 = smul.addr %s132, 4
        %s134 = smul.addr %s133, 2
        %s135 = scalar_lea.vmem %s0, %s134
      $region28: #{vgg_feature_extractor.11} parent=23 // pred_fallthru
        _
    $region24: #{vgg_feature_extractor.11} parent=5 // pred_fallthru
      _
    %p136 = scmp.le.s32.totalorder 1, %s9
    %p137 = scmp.lt.s32.totalorder %s9, 3
    %p138 = pnand %p136, %p137
    %p139 = pneg %p138
    // Predicated region
    $region29: #{vgg_feature_extractor.11} parent=5 // pred_check
      _
    $region30: #{vgg_feature_extractor.11} parent=5 // pred_check_branch
      %141 = sbr.rel (%p138) target = $region32
    $region31: #{vgg_feature_extractor.11} parent=5 // pred_region
      %s142 = ssub.s32 %s9, 1
      %p143 = scmp.lt.s32.totalorder %s14, 1
      %s144 = scalar_select %p143, %s14, 1
      %s145 = smul.addr %s144, 4
      %s146 = smul.addr %s145, 2
      %s147 = scalar_lea.vmem %s0, %s146
      %p148 = pneg %p35
      %p149 = pneg %p32
      %p150 = pneg %p56
      %p151 = pneg %p53
      %p152 = pneg %p77
      %p153 = pneg %p74
      %p154 = pneg %p103
      %p155 = pneg %p100
      %p156 = scmp.lt.s32.totalorder %s14, 1
      %s157 = scalar_select %p156, %s14, 1
      %s158 = smul.addr %s157, 4
      %s159 = smul.addr %s158, 2
      %s160 = scalar_lea.vmem %s3, %s159
      %p161 = scmp.lt.s32.totalorder %s14, 1
      %s162 = scalar_select %p161, %s14, 1
      %s163 = smul.addr %s162, 4
      %s164 = smul.addr %s163, 2
      %s165 = scalar_lea.vmem %s0, %s164
      %p166 = scmp.lt.s32.totalorder %s14, 1
      %s167 = scalar_select %p166, %s14, 1
      %s168 = smul.addr %s167, 4
      %s169 = smul.addr %s168, 2
      %s170 = scalar_lea.vmem %s3, %s169
      %vm172 = vcmask 259072
      %173 = vst.msk [vmem:[#allocation2] sm:$0x3f] %vm172, 0.0
      %174 = vst.msk [vmem:[#allocation2 + $0x8] sm:$0x3f] %vm172, 0.0
      %175 = vst.msk [vmem:[#allocation2 + $0x10] sm:$0x3f] %vm172, 0.0
      %176 = vst.msk [vmem:[#allocation2 + $0x18] sm:$0x3f] %vm172, 0.0
      %177 = vst.msk [vmem:[#allocation2 + $0x20] sm:$0x3f] %vm172, 0.0
      %178 = vst.msk [vmem:[#allocation2 + $0x28] sm:$0x3f] %vm172, 0.0
      %v179 = vld [vmem:[%s165] sm:$0x3]
      %v180 = vld [vmem:[%s165 + $0x2] sm:$0x3]
      %v181 = vld [vmem:[%s165 + $0x4] sm:$0x3]
      %v182 = vld [vmem:[%s165 + $0x6] sm:$0x3]
      %v183 = vunpack.c.l.bf16 %v179
      %v184 = vunpack.c.l.bf16 %v180
      %v185 = vunpack.c.l.bf16 %v181
      %v186 = vunpack.c.l.bf16 %v182
      %s187 = scalar_lea.vmem [#allocation2], 8
      %vm188 = vcmask 257024
      %189 = vst.msk [vmem:[%s187 + $0x1] sm:$0xf] %vm188, %v183
      %190 = vst.msk [vmem:[%s187 + $0x9] sm:$0xf] %vm188, %v184
      %191 = vst.msk [vmem:[%s187 + $0x11] sm:$0xf] %vm188, %v185
      %192 = vst.msk [vmem:[%s187 + $0x19] sm:$0xf] %vm188, %v186
      %v193 = vld [vmem:[#allocation2] sm:$0xf]
      %v194 = vld [vmem:[#allocation2 + $0x8] sm:$0xf]
      %v195 = vld [vmem:[#allocation2 + $0x10] sm:$0xf]
      %v196 = vld [vmem:[#allocation2 + $0x18] sm:$0xf]
      %v201 = vcombine.low %v193, %v194
      %v202 = vcombine.low %v195, %v196
      %v205 = vpack.c.bf16 %v202, %v201
      %vm206 = vcmask 261120
      %207 = vst.msk [vmem:[#allocation3] sm:$0xff] %vm206, %v205
      %v208 = vld [vmem:[#allocation2 + $0x1] sm:$0xf]
      %v209 = vld [vmem:[#allocation2 + $0x9] sm:$0xf]
      %v210 = vld [vmem:[#allocation2 + $0x11] sm:$0xf]
      %v211 = vld [vmem:[#allocation2 + $0x19] sm:$0xf]
      %v216 = vcombine.low %v208, %v209
      %v217 = vcombine.low %v210, %v211
      %v220 = vpack.c.bf16 %v217, %v216
      %222 = vrot.lane.b32.xlu0 %v220, 32
      %v223 = vpop.permute.xlu0 %222
      %vm225 = vcmask 523520
      %226 = vst.msk [vmem:[#allocation3] sm:$0xff] %vm225, %v223
      %v227 = vld [vmem:[#allocation2 + $0x2] sm:$0xf]
      %v228 = vld [vmem:[#allocation2 + $0xa] sm:$0xf]
      %v229 = vld [vmem:[#allocation2 + $0x12] sm:$0xf]
      %v230 = vld [vmem:[#allocation2 + $0x1a] sm:$0xf]
      %v235 = vcombine.low %v227, %v228
      %v236 = vcombine.low %v229, %v230
      %v239 = vpack.c.bf16 %v236, %v235
      %241 = vrot.lane.b32.xlu0 %v239, 64
      %v242 = vpop.permute.xlu0 %241
      %vm244 = vcmask 785920
      %245 = vst.msk [vmem:[#allocation3] sm:$0xff] %vm244, %v242
      %v246 = vld [vmem:[%s187] sm:$0xf]
      %v247 = vld [vmem:[%s187 + $0x8] sm:$0xf]
      %v248 = vld [vmem:[%s187 + $0x10] sm:$0xf]
      %v249 = vld [vmem:[%s187 + $0x18] sm:$0xf]
      %v254 = vcombine.low %v246, %v247
      %v255 = vcombine.low %v248, %v249
      %v258 = vpack.c.bf16 %v255, %v254
      %260 = vrot.lane.b32.xlu0 %v258, 96
      %v261 = vpop.permute.xlu0 %260
      %vm263 = vcmask 1048320
      %264 = vst.msk [vmem:[#allocation3] sm:$0xff] %vm263, %v261
      %v265 = vld [vmem:[%s187 + $0x1] sm:$0xf]
      %v266 = vld [vmem:[%s187 + $0x9] sm:$0xf]
      %v267 = vld [vmem:[%s187 + $0x11] sm:$0xf]
      %v268 = vld [vmem:[%s187 + $0x19] sm:$0xf]
      %v273 = vcombine.low %v265, %v266
      %v274 = vcombine.low %v267, %v268
      %v277 = vpack.c.bf16 %v274, %v273
      %278 = vst.msk [vmem:[#allocation3 + $0x8] sm:$0xff] %vm206, %v277
      %v279 = vld [vmem:[%s187 + $0x2] sm:$0xf]
      %v280 = vld [vmem:[%s187 + $0xa] sm:$0xf]
      %v281 = vld [vmem:[%s187 + $0x12] sm:$0xf]
      %v282 = vld [vmem:[%s187 + $0x1a] sm:$0xf]
      %v287 = vcombine.low %v279, %v280
      %v288 = vcombine.low %v281, %v282
      %v291 = vpack.c.bf16 %v288, %v287
      %293 = vrot.lane.b32.xlu0 %v291, 32
      %v294 = vpop.permute.xlu0 %293
      %296 = vst.msk [vmem:[#allocation3 + $0x8] sm:$0xff] %vm225, %v294
      %s297 = scalar_lea.vmem [#allocation2], 16
      %v298 = vld [vmem:[%s297] sm:$0xf]
      %v299 = vld [vmem:[%s297 + $0x8] sm:$0xf]
      %v300 = vld [vmem:[%s297 + $0x10] sm:$0xf]
      %v301 = vld [vmem:[%s297 + $0x18] sm:$0xf]
      %v306 = vcombine.low %v298, %v299
      %v307 = vcombine.low %v300, %v301
      %v310 = vpack.c.bf16 %v307, %v306
      %312 = vrot.lane.b32.xlu0 %v310, 64
      %v313 = vpop.permute.xlu0 %312
      %315 = vst.msk [vmem:[#allocation3 + $0x8] sm:$0xff] %vm244, %v313
      %v316 = vld [vmem:[%s297 + $0x1] sm:$0xf]
      %v317 = vld [vmem:[%s297 + $0x9] sm:$0xf]
      %v318 = vld [vmem:[%s297 + $0x11] sm:$0xf]
      %v319 = vld [vmem:[%s297 + $0x19] sm:$0xf]
      %v324 = vcombine.low %v316, %v317
      %v325 = vcombine.low %v318, %v319
      %v328 = vpack.c.bf16 %v325, %v324
      %330 = vrot.lane.b32.xlu0 %v328, 96
      %v331 = vpop.permute.xlu0 %330
      %333 = vst.msk [vmem:[#allocation3 + $0x8] sm:$0xff] %vm263, %v331
      %v334 = vld [vmem:[%s297 + $0x2] sm:$0xf]
      %v335 = vld [vmem:[%s297 + $0xa] sm:$0xf]
      %v336 = vld [vmem:[%s297 + $0x12] sm:$0xf]
      %v337 = vld [vmem:[%s297 + $0x1a] sm:$0xf]
      %v342 = vcombine.low %v334, %v335
      %v343 = vcombine.low %v336, %v337
      %v346 = vpack.c.bf16 %v343, %v342
      %347 = vst.msk [vmem:[#allocation3 + $0x10] sm:$0xff] %vm206, %v346
      %v348 = vld [vmem:[#allocation3] sm:$0xff]
      %v349 = vld [vmem:[#allocation3 + $0x8] sm:$0xff]
      %v350 = vld [vmem:[#allocation3 + $0x10] sm:$0xff]
      %v351 = vld [vmem:[%s1] sm:$0xf]
      %v352 = vld [vmem:[%s1 + $0x4] sm:$0xf]
      %v353 = vld [vmem:[%s1 + $0x8] sm:$0xf]
      %v354 = vld [vmem:[%s1 + $0xc] sm:$0xf]
      %v355 = vld [vmem:[%s1 + $0x10] sm:$0xf]
      %v356 = vld [vmem:[%s1 + $0x14] sm:$0xf]
      %v357 = vld [vmem:[%s1 + $0x18] sm:$0xf]
      %v358 = vld [vmem:[%s1 + $0x1c] sm:$0xf]
      %v359 = vld [vmem:[%s1 + $0x20] sm:$0xf]
      %v360 = vld [vmem:[%s1 + $0x24] sm:$0xf]
      %v361 = vld [vmem:[%s1 + $0x28] sm:$0xf]
      %v362 = vld [vmem:[%s1 + $0x2c] sm:$0xf]
      %v363 = vld [vmem:[%s1 + $0x30] sm:$0xf]
      %v364 = vld [vmem:[%s1 + $0x34] sm:$0xf]
      %v365 = vld [vmem:[%s1 + $0x38] sm:$0xf]
      %v366 = vld [vmem:[%s1 + $0x3c] sm:$0xf]
      %v367 = vld [vmem:[%s1 + $0x40] sm:$0xf]
      %v368 = vld [vmem:[%s1 + $0x44] sm:$0xf]
      %v369 = vld [vmem:[%s1 + $0x48] sm:$0xf]
      %v370 = vld [vmem:[%s1 + $0x4c] sm:$0xf]
      %v371 = vld [vmem:[%s1 + $0x50] sm:$0xf]
      %v372 = vld [vmem:[%s1 + $0x54] sm:$0xf]
      %v373 = vld [vmem:[%s1 + $0x58] sm:$0xf]
      %v374 = vld [vmem:[%s1 + $0x5c] sm:$0xf]
      %v375 = vld [vmem:[%s1 + $0x60] sm:$0xf]
      %v376 = vld [vmem:[%s1 + $0x64] sm:$0xf]
      %v377 = vld [vmem:[%s1 + $0x68] sm:$0xf]
      %v378 = vld [vmem:[%s1 + $0x6c] sm:$0xf]
      %v379 = vld [vmem:[%s1 + $0x70] sm:$0xf]
      %v380 = vld [vmem:[%s1 + $0x74] sm:$0xf]
      %v381 = vld [vmem:[%s1 + $0x78] sm:$0xf]
      %v382 = vld [vmem:[%s1 + $0x7c] sm:$0xf]
      %v383 = vld [vmem:[%s1 + $0x80] sm:$0xf]
      %v384 = vld [vmem:[%s1 + $0x84] sm:$0xf]
      %v385 = vld [vmem:[%s1 + $0x88] sm:$0xf]
      %v386 = vld [vmem:[%s1 + $0x8c] sm:$0xf]
      %v387 = vld [vmem:[%s2] sm:$0x1]
      %v389 = vlaneseq
      %v390 = vshrl.u32 %v389, 7
      %v391 = vsub.s32 0, %v390
      %v392 = vrot.slane %v387, %v391
      %v430 = vunpack.c.l.b16 %v351
      %v431 = vunpack.c.l.b16 %v352
      %v432 = vunpack.c.l.b16 %v353
      %v433 = vunpack.c.l.b16 %v354
      %v434 = vunpack.c.l.b16 %v355
      %v435 = vunpack.c.l.b16 %v356
      %v436 = vunpack.c.l.b16 %v357
      %v437 = vunpack.c.l.b16 %v358
      %v438 = vunpack.c.l.b16 %v359
      %v439 = vunpack.c.l.b16 %v360
      %v440 = vunpack.c.l.b16 %v361
      %v441 = vunpack.c.l.b16 %v362
      %v442 = vunpack.c.l.b16 %v363
      %v443 = vunpack.c.l.b16 %v364
      %v444 = vunpack.c.l.b16 %v365
      %v445 = vunpack.c.l.b16 %v366
      %v446 = vunpack.c.l.b16 %v367
      %v447 = vunpack.c.l.b16 %v368
      %v448 = vunpack.c.l.b16 %v369
      %v449 = vunpack.c.l.b16 %v370
      %v450 = vunpack.c.l.b16 %v371
      %v451 = vunpack.c.l.b16 %v372
      %v452 = vunpack.c.l.b16 %v373
      %v453 = vunpack.c.l.b16 %v374
      %v454 = vunpack.c.l.b16 %v375
      %v455 = vunpack.c.l.b16 %v376
      %v456 = vunpack.c.l.b16 %v377
      %v457 = vunpack.c.l.b16 %v378
      %v458 = vunpack.c.l.b16 %v379
      %v459 = vunpack.c.l.b16 %v380
      %v460 = vunpack.c.l.b16 %v381
      %v461 = vunpack.c.l.b16 %v382
      %v462 = vunpack.c.l.b16 %v383
      %v463 = vunpack.c.l.b16 %v384
      %v464 = vunpack.c.l.b16 %v385
      %v465 = vunpack.c.l.b16 %v386
      %v466 = vpack.c.b16 %v431, %v430
      %v467 = vpack.c.b16 %v433, %v432
      %v468 = vpack.c.b16 %v435, %v434
      %v469 = vpack.c.b16 %v437, %v436
      %v470 = vpack.c.b16 %v439, %v438
      %v471 = vpack.c.b16 %v441, %v440
      %v472 = vpack.c.b16 %v443, %v442
      %v473 = vpack.c.b16 %v445, %v444
      %v474 = vpack.c.b16 %v447, %v446
      %v475 = vpack.c.b16 %v449, %v448
      %v476 = vpack.c.b16 %v451, %v450
      %v477 = vpack.c.b16 %v453, %v452
      %v478 = vpack.c.b16 %v455, %v454
      %v479 = vpack.c.b16 %v457, %v456
      %v480 = vpack.c.b16 %v459, %v458
      %v481 = vpack.c.b16 %v461, %v460
      %v482 = vpack.c.b16 %v463, %v462
      %v483 = vpack.c.b16 %v465, %v464
      %v503 = vsel %vm206, %v350, 0
      %505 = vmatprep.subr.bf16.mxu0 0
      %506 = vmatpush1.bf16.msra.mxu0 %v466
      %507 = vmatprep.subr.bf16.mxu0 0
      %508 = vmatpush1.bf16.msra.mxu0 %v467
      %509 = vmatprep.subr.bf16.mxu0 0
      %510 = vmatpush1.bf16.msra.mxu0 %v468
      %511 = vmatprep.subr.bf16.mxu0 0
      %512 = vmatpush1.bf16.msra.mxu0 %v469
      %513 = vmatprep.subr.bf16.mxu0 0
      %514 = vmatpush1.bf16.msra.mxu0 %v470
      %515 = vmatprep.subr.bf16.mxu0 0
      %516 = vmatpush1.bf16.msra.mxu0 %v471
      %517 = vmatprep.subr.bf16.mxu0 0
      %518 = vmatpush1.bf16.msra.mxu0 %v472
      %519 = vmatprep.subr.bf16.mxu0 0
      %520 = vmatpush1.bf16.msra.mxu0 %v473
      %521 = vmatprep.subr.bf16.mxu0 0
      %522 = vmatpush1.bf16.msra.mxu0 %v474
      %523 = vmatprep.subr.bf16.mxu0 0
      %524 = vmatpush1.bf16.msra.mxu0 %v475
      %525 = vmatprep.subr.bf16.mxu0 0
      %526 = vmatpush1.bf16.msra.mxu0 %v476
      %527 = vmatprep.subr.bf16.mxu0 0
      %528 = vmatpush1.bf16.msra.mxu0 %v477
      %529 = vmatprep.subr.bf16.mxu0 0
      %530 = vmatpush1.bf16.msra.mxu0 %v478
      %531 = vmatprep.subr.bf16.mxu0 0
      %532 = vmatpush1.bf16.msra.mxu0 %v479
      %533 = vmatprep.subr.bf16.mxu0 0
      %534 = vmatpush1.bf16.msra.mxu0 %v480
      %535 = vmatprep.subr.bf16.mxu0 0
      %536 = vmatpush1.bf16.msra.mxu0 %v481
      %537 = vmatprep.mubr.bf16.mxu0 %v349
      %538 = vmatmul.mubr.bf16.gmra.mrb[0].mxu0 %v348
      %v539 = vpop.f32.mrb[0].mxu0
      %v540 = vadd.f32 %v392, %v539
      %v541 = vpop.f32.mrb[0].mxu0
      %v542 = vpop.f32.mrb[0].mxu0
      %v543 = vadd.f32 %v392, %v542
      %v544 = vpop.f32.mrb[0].mxu0
      %545 = vdwg.mxu0
      %546 = vmatprep.subr.bf16.mxu0 0
      %547 = vmatpush1.bf16.msra.mxu0 %v482
      %548 = vmatprep.subr.bf16.mxu0 0
      %549 = vmatpush1.bf16.msra.mxu0 %v483
      %550 = vmatprep.subr.bf16.mxu0 0
      %551 = vmatpush1.bf16.msra.mxu0 0
      %552 = vmatprep.subr.bf16.mxu0 0
      %553 = vmatpush1.bf16.msra.mxu0 0
      %554 = vmatprep.subr.bf16.mxu0 0
      %555 = vmatpush1.bf16.msra.mxu0 0
      %556 = vmatprep.subr.bf16.mxu0 0
      %557 = vmatpush1.bf16.msra.mxu0 0
      %558 = vmatprep.subr.bf16.mxu0 0
      %559 = vmatpush1.bf16.msra.mxu0 0
      %560 = vmatprep.subr.bf16.mxu0 0
      %561 = vmatpush1.bf16.msra.mxu0 0
      %562 = vmatprep.subr.bf16.mxu0 0
      %563 = vmatpush1.bf16.msra.mxu0 0
      %564 = vmatprep.subr.bf16.mxu0 0
      %565 = vmatpush1.bf16.msra.mxu0 0
      %566 = vmatprep.subr.bf16.mxu0 0
      %567 = vmatpush1.bf16.msra.mxu0 0
      %568 = vmatprep.subr.bf16.mxu0 0
      %569 = vmatpush1.bf16.msra.mxu0 0
      %570 = vmatprep.subr.bf16.mxu0 0
      %571 = vmatpush1.bf16.msra.mxu0 0
      %572 = vmatprep.subr.bf16.mxu0 0
      %573 = vmatpush1.bf16.msra.mxu0 0
      %574 = vmatprep.subr.bf16.mxu0 0
      %575 = vmatpush1.bf16.msra.mxu0 0
      %576 = vmatprep.subr.bf16.mxu0 0
      %577 = vmatpush1.bf16.msra.mxu0 0
      %578 = vmatprep.mubr.bf16.mxu0 0
      %579 = vmatmul.mubr.bf16.gmra.mrb[0].mxu0 %v503
      %v580 = vpop.f32.mrb[0].mxu0
      %v581 = vadd.f32 %v540, %v580
      %v582 = vpop.f32.mrb[0].mxu0
      %v583 = vpop.f32.mrb[0].mxu0
      %v584 = vadd.f32 %v543, %v583
      %v585 = vpop.f32.mrb[0].mxu0
      %586 = vdwg.mxu0
      %v587 = vmax.f32 %v581, 0.0
      %v588 = vmax.f32 %v584, 0.0
      %v591 = vcombine.high %v587, %v587
      %v592 = vcombine.high %v588, %v588
      %v595 = vpack.c.bf16 %v587, %v587
      %v596 = vpack.c.bf16 %v591, %v591
      %v597 = vpack.c.bf16 %v588, %v588
      %v598 = vpack.c.bf16 %v592, %v592
      %vm599 = vcmask 517120
      %600 = vst.msk [vmem:[%s170] sm:$0x3] %vm599, %v595
      %601 = vst.msk [vmem:[%s170 + $0x2] sm:$0x3] %vm599, %v596
      %602 = vst.msk [vmem:[%s170 + $0x4] sm:$0x3] %vm599, %v597
      %603 = vst.msk [vmem:[%s170 + $0x6] sm:$0x3] %vm599, %v598
      %p604 = scmp.lt.s32.totalorder %s14, 1
      %s605 = scalar_select %p604, %s14, 1
      %s606 = smul.addr %s605, 4
      %s607 = smul.addr %s606, 2
      %s608 = scalar_lea.vmem %s3, %s607
      // Predicated region
      $region33: #{vgg_feature_extractor.11} parent=31 // pred_check
        %p609 = pneg %p100
      $region34: #{vgg_feature_extractor.11} parent=31 // pred_check_branch
        %611 = sbr.rel (%p609) target = $region36
      $region35: #{vgg_feature_extractor.11} parent=31 // pred_region
        _
      $region36: #{vgg_feature_extractor.11} parent=31 // pred_fallthru
        _
    $region32: #{vgg_feature_extractor.11} parent=5 // pred_fallthru
      _
    %p612 = scmp.le.s32.totalorder 2, %s9
    // Predicated region
    $region37: #{vgg_feature_extractor.11} parent=5 // pred_check
      %p613 = pneg %p612
    $region38: #{vgg_feature_extractor.11} parent=5 // pred_check_branch
      %615 = sbr.rel (%p613) target = $region40
    $region39: #{vgg_feature_extractor.11} parent=5 // pred_region
      %s616 = ssub.s32 %s9, 2
      // Predicated region
      $region41: #{vgg_feature_extractor.11} parent=39 // pred_check
        %p617 = pneg %p106
      $region42: #{vgg_feature_extractor.11} parent=39 // pred_check_branch
        %619 = sbr.rel (%p617) target = $region44
      $region43: #{vgg_feature_extractor.11} parent=39 // pred_region
        %p620 = scmp.lt.s32.totalorder %s15, 1
        %s621 = scalar_select %p620, %s15, 1
        %s622 = smul.addr %s621, 4
        %s623 = smul.addr %s622, 2
        %s624 = scalar_lea.vmem %s3, %s623
      $region44: #{vgg_feature_extractor.11} parent=39 // pred_fallthru
        _
    $region40: #{vgg_feature_extractor.11} parent=5 // pred_fallthru
      _
  $region6: #{vgg_feature_extractor.11} parent=0 // loop_footer
    %s13 = sadd.s32 1, %s9
  $region7: #{vgg_feature_extractor.11} parent=0 // loop_footer_branch
    %8 = sbr.rel target = $region3
  $region8: #{vgg_feature_extractor.11} parent=0 // loop_exit
    _

// kernel: vgg_feature_extractor.13
$region0: #{vgg_feature_extractor.13}
  #allocation0 [shape = 'u32[]', space=smem, size = 0x4, offset = 0x4, fixed_abs, tag = 'smem constant byte address 0x4 - core index']
  #allocation1 [shape = 'u32[144,128]{1,0:T(1,128)}', space=vmem, size = 0x12000, scoped, tag = 'internal scratch']
  #allocation2 [shape = 'f32[1,2,4,64]{3,2,1,0:T(4,128)}', space=vmem, size = 0x1000, scoped, tag = 'scratch operand']
  #allocation3 [shape = 'bf16[3,256]{1,0:T(4,128)(2,1)}', space=vmem, size = 0x800, scoped, tag = 'scratch operand']
  %s0 = inlined_call_operand.vmem [shape: bf16[2,2,4,64], index: 0, kind: input, shape index: {}]
  %s1 = inlined_call_operand.vmem [shape: bf16[256,64], index: 1, kind: input, shape index: {}]
  %s2 = inlined_call_operand.vmem [shape: f32[1,64], index: 2, kind: input, shape index: {}]
  %s3 = inlined_call_operand.vmem [shape: bf16[2,1,3,64], index: 3, kind: output, shape index: {}]
  %s4 = sld [smem:[#allocation0]]
  $region45: #{vgg_feature_extractor.13} parent=0
    _
  %s6 = ssub.s32 1, %s4
  %s7 = scalar_select 0, %s6, %s4
  loop: start=0, step=1, limit=4
  $region2: #{vgg_feature_extractor.13} parent=0 // loop_pre_header
    _
  $region3: #{vgg_feature_extractor.13} parent=0 // loop_header
    %s9 = sphi 0, %s13
    %p10 = scmp.ge.s32.totalorder %s9, 4
    %s19 = sphi 0, %s21
    %s22 = sphi 0, %s19
    %s23 = sphi 0, %s22
    %s39 = sphi 0, %s23
    %s43 = sphi 0, %s43
    %s45 = sphi 0, %s43
    %s46 = sphi 0, %s45
    %s60 = sphi 0, %s46
    %s64 = sphi 0, %s64
    %s66 = sphi 0, %s64
    %s67 = sphi 0, %s66
    %s81 = sphi 0, %s67
    %s87 = sphi 0, %s89
    %s90 = sphi 0, %s87
    %s91 = sphi 0, %s90
    %s107 = sphi 0, %s91
  $region4: #{vgg_feature_extractor.13} parent=0 // loop_header_branch
    %12 = sbr.rel (%p10) target = $region8
  $region5: #{vgg_feature_extractor.13} parent=0 // loop_body
    %s14 = ssub.s32 %s9, 1
    %s15 = ssub.s32 %s9, 2
    %s16 = sadd.s32 %s9, 1
    %s17 = ssub.s32 %s9, %s16
    %p18 = scmp.eq.s32.totalorder %s17, 0
    %s20 = sadd.s32 %s19, 1
    %s21 = scalar_select %p18, %s19, %s20
    %p24 = pneg %p18
    %p25 = scmp.eq.s32.totalorder %s9, 1
    %p26 = por %p24, %p25
    %p27 = scmp.ne.s32.totalorder %s19, %s22
    %p28 = scmp.eq.s32.totalorder %s9, 0
    %p29 = por %p27, %p28
    %p30 = scmp.ne.s32.totalorder %s19, %s22
    %p31 = scmp.eq.s32.totalorder %s14, 1
    %p32 = por %p30, %p31
    %p33 = scmp.ne.s32.totalorder %s22, %s23
    %p34 = scmp.eq.s32.totalorder %s14, 0
    %p35 = por %p33, %p34
    %p36 = scmp.ne.s32.totalorder %s22, %s23
    %p37 = scmp.eq.s32.totalorder %s15, 1
    %p38 = por %p36, %p37
    %p40 = scmp.ne.s32.totalorder %s23, %s39
    %p41 = scmp.eq.s32.totalorder %s15, 0
    %p42 = por %p40, %p41
    %s44 = sadd.s32 %s43, 1
    %p47 = scmp.eq.s32.totalorder %s9, 1
    %p48 = scmp.ne.s32.totalorder %s43, %s45
    %p49 = scmp.eq.s32.totalorder %s9, 0
    %p50 = por %p48, %p49
    %p51 = scmp.ne.s32.totalorder %s43, %s45
    %p52 = scmp.eq.s32.totalorder %s14, 1
    %p53 = por %p51, %p52
    %p54 = scmp.ne.s32.totalorder %s45, %s46
    %p55 = scmp.eq.s32.totalorder %s14, 0
    %p56 = por %p54, %p55
    %p57 = scmp.ne.s32.totalorder %s45, %s46
    %p58 = scmp.eq.s32.totalorder %s15, 1
    %p59 = por %p57, %p58
    %p61 = scmp.ne.s32.totalorder %s46, %s60
    %p62 = scmp.eq.s32.totalorder %s15, 0
    %p63 = por %p61, %p62
    %s65 = sadd.s32 %s64, 1
    %p68 = scmp.eq.s32.totalorder %s9, 1
    %p69 = scmp.ne.s32.totalorder %s64, %s66
    %p70 = scmp.eq.s32.totalorder %s9, 0
    %p71 = por %p69, %p70
    %p72 = scmp.ne.s32.totalorder %s64, %s66
    %p73 = scmp.eq.s32.totalorder %s14, 1
    %p74 = por %p72, %p73
    %p75 = scmp.ne.s32.totalorder %s66, %s67
    %p76 = scmp.eq.s32.totalorder %s14, 0
    %p77 = por %p75, %p76
    %p78 = scmp.ne.s32.totalorder %s66, %s67
    %p79 = scmp.eq.s32.totalorder %s15, 1
    %p80 = por %p78, %p79
    %p82 = scmp.ne.s32.totalorder %s67, %s81
    %p83 = scmp.eq.s32.totalorder %s15, 0
    %p84 = por %p82, %p83
    %s85 = ssub.s32 %s9, %s16
    %p86 = scmp.eq.s32.totalorder %s85, 0
    %s88 = sadd.s32 %s87, 1
    %s89 = scalar_select %p86, %s87, %s88
    %p92 = pneg %p86
    %p93 = scmp.eq.s32.totalorder %s9, 1
    %p94 = por %p92, %p93
    %p95 = scmp.ne.s32.totalorder %s87, %s90
    %p96 = scmp.eq.s32.totalorder %s9, 0
    %p97 = por %p95, %p96
    %p98 = scmp.ne.s32.totalorder %s87, %s90
    %p99 = scmp.eq.s32.totalorder %s14, 1
    %p100 = por %p98, %p99
    %p101 = scmp.ne.s32.totalorder %s90, %s91
    %p102 = scmp.eq.s32.totalorder %s14, 0
    %p103 = por %p101, %p102
    %p104 = scmp.ne.s32.totalorder %s90, %s91
    %p105 = scmp.eq.s32.totalorder %s15, 1
    %p106 = por %p104, %p105
    %p108 = scmp.ne.s32.totalorder %s91, %s107
    %p109 = scmp.eq.s32.totalorder %s15, 0
    %p110 = por %p108, %p109
    %p111 = scmp.le.s32.totalorder 1, %s9
    %p112 = scmp.lt.s32.totalorder %s9, 3
    %p113 = pnand %p111, %p112
    %p114 = pneg %p113
    // Predicated region
    $region9: #{vgg_feature_extractor.13} parent=5 // pred_check
      _
    $region10: #{vgg_feature_extractor.13} parent=5 // pred_check_branch
      %116 = sbr.rel (%p113) target = $region12
    $region11: #{vgg_feature_extractor.13} parent=5 // pred_region
      %s117 = ssub.s32 %s9, 1
      // Predicated region
      $region13: #{vgg_feature_extractor.13} parent=11 // pred_check
        %p118 = pneg %p56
      $region14: #{vgg_feature_extractor.13} parent=11 // pred_check_branch
        %120 = sbr.rel (%p118) target = $region16
      $region15: #{vgg_feature_extractor.13} parent=11 // pred_region
        _
      $region16: #{vgg_feature_extractor.13} parent=11 // pred_fallthru
        _
      // Predicated region
      $region17: #{vgg_feature_extractor.13} parent=11 // pred_check
        %p121 = pneg %p77
      $region18: #{vgg_feature_extractor.13} parent=11 // pred_check_branch
        %123 = sbr.rel (%p121) target = $region20
      $region19: #{vgg_feature_extractor.13} parent=11 // pred_region
        _
      $region20: #{vgg_feature_extractor.13} parent=11 // pred_fallthru
        _
    $region12: #{vgg_feature_extractor.13} parent=5 // pred_fallthru
      _
    %p124 = scmp.lt.s32.totalorder %s9, 2
    // Predicated region
    $region21: #{vgg_feature_extractor.13} parent=5 // pred_check
      %p125 = pneg %p124
    $region22: #{vgg_feature_extractor.13} parent=5 // pred_check_branch
      %127 = sbr.rel (%p125) target = $region24
    $region23: #{vgg_feature_extractor.13} parent=5 // pred_region
      // Predicated region
      $region25: #{vgg_feature_extractor.13} parent=23 // pred_check
        %p128 = pneg %p29
      $region26: #{vgg_feature_extractor.13} parent=23 // pred_check_branch
        %130 = sbr.rel (%p128) target = $region28
      $region27: #{vgg_feature_extractor.13} parent=23 // pred_region
        %p131 = scmp.lt.s32.totalorder %s9, 1
        %s132 = scalar_select %p131, %s9, 1
        %s133 = smul.addr %s132, 2
        %s134 = smul.addr %s133, 2
        %s135 = scalar_lea.vmem %s0, %s134
      $region28: #{vgg_feature_extractor.13} parent=23 // pred_fallthru
        _
    $region24: #{vgg_feature_extractor.13} parent=5 // pred_fallthru
      _
    %p136 = scmp.le.s32.totalorder 1, %s9
    %p137 = scmp.lt.s32.totalorder %s9, 3
    %p138 = pnand %p136, %p137
    %p139 = pneg %p138
    // Predicated region
    $region29: #{vgg_feature_extractor.13} parent=5 // pred_check
      _
    $region30: #{vgg_feature_extractor.13} parent=5 // pred_check_branch
      %141 = sbr.rel (%p138) target = $region32
    $region31: #{vgg_feature_extractor.13} parent=5 // pred_region
      %s142 = ssub.s32 %s9, 1
      %p143 = scmp.lt.s32.totalorder %s14, 1
      %s144 = scalar_select %p143, %s14, 1
      %s145 = smul.addr %s144, 2
      %s146 = smul.addr %s145, 2
      %s147 = scalar_lea.vmem %s0, %s146
      %p148 = pneg %p35
      %p149 = pneg %p32
      %p150 = pneg %p56
      %p151 = pneg %p53
      %p152 = pneg %p77
      %p153 = pneg %p74
      %p154 = pneg %p103
      %p155 = pneg %p100
      %p156 = scmp.lt.s32.totalorder %s14, 1
      %s157 = scalar_select %p156, %s14, 1
      %s158 = smul.addr %s157, 2
      %s159 = scalar_lea.vmem %s3, %s158
      %p160 = scmp.lt.s32.totalorder %s14, 1
      %s161 = scalar_select %p160, %s14, 1
      %s162 = smul.addr %s161, 2
      %s163 = smul.addr %s162, 2
      %s164 = scalar_lea.vmem %s0, %s163
      %p165 = scmp.lt.s32.totalorder %s14, 1
      %s166 = scalar_select %p165, %s14, 1
      %s167 = smul.addr %s166, 2
      %s168 = scalar_lea.vmem %s3, %s167
      %vm170 = vcmask 519168
      %171 = vst.msk [vmem:[#allocation2] sm:$0xf] %vm170, 0.0
      %172 = vst.msk [vmem:[#allocation2 + $0x4] sm:$0xf] %vm170, 0.0
      %v173 = vld [vmem:[%s164] sm:$0x3]
      %v174 = vld [vmem:[%s164 + $0x2] sm:$0x3]
      %v175 = vunpack.c.l.bf16 %v173
      %v176 = vunpack.c.l.bf16 %v174
      %177 = vst.msk [vmem:[#allocation2] sm:$0xf] %vm170, %v175
      %178 = vst.msk [vmem:[#allocation2 + $0x4] sm:$0xf] %vm170, %v176
      %v179 = vld [vmem:[#allocation2] sm:$0x7]
      %v180 = vpack.c.bf16 %v179, %v179
      %vm181 = vcmask 517120
      %vm182 = vsmask.f32 1280
      %vm183 = vmand %vm181, %vm182
      %v184 = vld [vmem:[#allocation3] sm:$0x3]
      %v185 = vsel %vm183, %v180, %v184
      %186 = vst [vmem:[#allocation3] sm:$0x3] %v185
      %v187 = vld [vmem:[#allocation2 + $0x1] sm:$0x7]
      %v188 = vpack.c.bf16 %v187, %v187
      %v191 = vunpack.c.l.s4 1983009808
      %v192 = vunpack.c.0.s8 %v191
      %v193 = vlaneseq
      %v194 = vshrl.u32 %v193, 7
      %v195 = vsub.s32 %v192, %v194
      %v196 = vrot.slane %v188, %v195
      %197 = vrot.lane.b32.xlu0 %v196, 64
      %v198 = vpop.permute.xlu0 %197
      %vm200 = vcmask 1041920
      %vm201 = vmand %vm200, %vm182
      %v202 = vld [vmem:[#allocation3] sm:$0x3]
      %v203 = vsel %vm201, %v198, %v202
      %204 = vst [vmem:[#allocation3] sm:$0x3] %v203
      %s205 = scalar_lea.vmem [#allocation2], 4
      %v206 = vld [vmem:[%s205] sm:$0x7]
      %v207 = vpack.c.bf16 %v206, %v206
      %v208 = vld [vmem:[#allocation3 + $0x2] sm:$0x3]
      %v209 = vsel %vm183, %v207, %v208
      %210 = vst [vmem:[#allocation3 + $0x2] sm:$0x3] %v209
      %v211 = vld [vmem:[%s205 + $0x1] sm:$0x7]
      %v212 = vpack.c.bf16 %v211, %v211
      %v215 = vunpack.c.l.s4 1983009808
      %v216 = vunpack.c.0.s8 %v215
      %v217 = vlaneseq
      %v218 = vshrl.u32 %v217, 7
      %v219 = vsub.s32 %v216, %v218
      %v220 = vrot.slane %v212, %v219
      %221 = vrot.lane.b32.xlu0 %v220, 64
      %v222 = vpop.permute.xlu0 %221
      %v224 = vld [vmem:[#allocation3 + $0x2] sm:$0x3]
      %v225 = vsel %vm201, %v222, %v224
      %226 = vst [vmem:[#allocation3 + $0x2] sm:$0x3] %v225
      %v227 = vld [vmem:[#allocation3] sm:$0xf]
      %v228 = vld [vmem:[%s1] sm:$0xf]
      %v229 = vld [vmem:[%s1 + $0x4] sm:$0xf]
      %v230 = vld [vmem:[%s1 + $0x8] sm:$0xf]
      %v231 = vld [vmem:[%s1 + $0xc] sm:$0xf]
      %v232 = vld [vmem:[%s1 + $0x10] sm:$0xf]
      %v233 = vld [vmem:[%s1 + $0x14] sm:$0xf]
      %v234 = vld [vmem:[%s1 + $0x18] sm:$0xf]
      %v235 = vld [vmem:[%s1 + $0x1c] sm:$0xf]
      %v236 = vld [vmem:[%s1 + $0x20] sm:$0xf]
      %v237 = vld [vmem:[%s1 + $0x24] sm:$0xf]
      %v238 = vld [vmem:[%s1 + $0x28] sm:$0xf]
      %v239 = vld [vmem:[%s1 + $0x2c] sm:$0xf]
      %v240 = vld [vmem:[%s1 + $0x30] sm:$0xf]
      %v241 = vld [vmem:[%s1 + $0x34] sm:$0xf]
      %v242 = vld [vmem:[%s1 + $0x38] sm:$0xf]
      %v243 = vld [vmem:[%s1 + $0x3c] sm:$0xf]
      %v244 = vld [vmem:[%s1 + $0x40] sm:$0xf]
      %v245 = vld [vmem:[%s1 + $0x44] sm:$0xf]
      %v246 = vld [vmem:[%s1 + $0x48] sm:$0xf]
      %v247 = vld [vmem:[%s1 + $0x4c] sm:$0xf]
      %v248 = vld [vmem:[%s1 + $0x50] sm:$0xf]
      %v249 = vld [vmem:[%s1 + $0x54] sm:$0xf]
      %v250 = vld [vmem:[%s1 + $0x58] sm:$0xf]
      %v251 = vld [vmem:[%s1 + $0x5c] sm:$0xf]
      %v252 = vld [vmem:[%s1 + $0x60] sm:$0xf]
      %v253 = vld [vmem:[%s1 + $0x64] sm:$0xf]
      %v254 = vld [vmem:[%s1 + $0x68] sm:$0xf]
      %v255 = vld [vmem:[%s1 + $0x6c] sm:$0xf]
      %v256 = vld [vmem:[%s1 + $0x70] sm:$0xf]
      %v257 = vld [vmem:[%s1 + $0x74] sm:$0xf]
      %v258 = vld [vmem:[%s1 + $0x78] sm:$0xf]
      %v259 = vld [vmem:[%s1 + $0x7c] sm:$0xf]
      %v260 = vld [vmem:[%s2] sm:$0x1]
      %v262 = vlaneseq
      %v263 = vshrl.u32 %v262, 7
      %v264 = vsub.s32 0, %v263
      %v265 = vrot.slane %v260, %v264
      %v269 = vunpack.c.l.s4 1983009808
      %v270 = vunpack.c.0.s8 %v269
      %v271 = vlaneseq
      %v272 = vshrl.u32 %v271, 7
      %v273 = vsub.s32 %v270, %v272
      %v274 = vrot.slane %v227, %v273
      %v275 = vcombine.high %v274, %v274
      %v310 = vunpack.c.l.b16 %v228
      %v311 = vunpack.c.l.b16 %v229
      %v312 = vunpack.c.l.b16 %v230
      %v313 = vunpack.c.l.b16 %v231
      %v314 = vunpack.c.l.b16 %v232
      %v315 = vunpack.c.l.b16 %v233
      %v316 = vunpack.c.l.b16 %v234
      %v317 = vunpack.c.l.b16 %v235
      %v318 = vunpack.c.l.b16 %v236
      %v319 = vunpack.c.l.b16 %v237
      %v320 = vunpack.c.l.b16 %v238
      %v321 = vunpack.c.l.b16 %v239
      %v322 = vunpack.c.l.b16 %v240
      %v323 = vunpack.c.l.b16 %v241
      %v324 = vunpack.c.l.b16 %v242
      %v325 = vunpack.c.l.b16 %v243
      %v326 = vunpack.c.l.b16 %v244
      %v327 = vunpack.c.l.b16 %v245
      %v328 = vunpack.c.l.b16 %v246
      %v329 = vunpack.c.l.b16 %v247
      %v330 = vunpack.c.l.b16 %v248
      %v331 = vunpack.c.l.b16 %v249
      %v332 = vunpack.c.l.b16 %v250
      %v333 = vunpack.c.l.b16 %v251
      %v334 = vunpack.c.l.b16 %v252
      %v335 = vunpack.c.l.b16 %v253
      %v336 = vunpack.c.l.b16 %v254
      %v337 = vunpack.c.l.b16 %v255
      %v338 = vunpack.c.l.b16 %v256
      %v339 = vunpack.c.l.b16 %v257
      %v340 = vunpack.c.l.b16 %v258
      %v341 = vunpack.c.l.b16 %v259
      %v342 = vpack.c.b16 %v311, %v310
      %v343 = vpack.c.b16 %v313, %v312
      %v344 = vpack.c.b16 %v315, %v314
      %v345 = vpack.c.b16 %v317, %v316
      %v346 = vpack.c.b16 %v319, %v318
      %v347 = vpack.c.b16 %v321, %v320
      %v348 = vpack.c.b16 %v323, %v322
      %v349 = vpack.c.b16 %v325, %v324
      %v350 = vpack.c.b16 %v327, %v326
      %v351 = vpack.c.b16 %v329, %v328
      %v352 = vpack.c.b16 %v331, %v330
      %v353 = vpack.c.b16 %v333, %v332
      %v354 = vpack.c.b16 %v335, %v334
      %v355 = vpack.c.b16 %v337, %v336
      %v356 = vpack.c.b16 %v339, %v338
      %v357 = vpack.c.b16 %v341, %v340
      %374 = vmatprep.subr.bf16.mxu0 0
      %375 = vmatpush1.bf16.msra.mxu0 %v342
      %376 = vmatprep.subr.bf16.mxu0 0
      %377 = vmatpush1.bf16.msra.mxu0 %v343
      %378 = vmatprep.subr.bf16.mxu0 0
      %379 = vmatpush1.bf16.msra.mxu0 %v344
      %380 = vmatprep.subr.bf16.mxu0 0
      %381 = vmatpush1.bf16.msra.mxu0 %v345
      %382 = vmatprep.subr.bf16.mxu0 0
      %383 = vmatpush1.bf16.msra.mxu0 %v346
      %384 = vmatprep.subr.bf16.mxu0 0
      %385 = vmatpush1.bf16.msra.mxu0 %v347
      %386 = vmatprep.subr.bf16.mxu0 0
      %387 = vmatpush1.bf16.msra.mxu0 %v348
      %388 = vmatprep.subr.bf16.mxu0 0
      %389 = vmatpush1.bf16.msra.mxu0 %v349
      %390 = vmatprep.subr.bf16.mxu0 0
      %391 = vmatpush1.bf16.msra.mxu0 %v350
      %392 = vmatprep.subr.bf16.mxu0 0
      %393 = vmatpush1.bf16.msra.mxu0 %v351
      %394 = vmatprep.subr.bf16.mxu0 0
      %395 = vmatpush1.bf16.msra.mxu0 %v352
      %396 = vmatprep.subr.bf16.mxu0 0
      %397 = vmatpush1.bf16.msra.mxu0 %v353
      %398 = vmatprep.subr.bf16.mxu0 0
      %399 = vmatpush1.bf16.msra.mxu0 %v354
      %400 = vmatprep.subr.bf16.mxu0 0
      %401 = vmatpush1.bf16.msra.mxu0 %v355
      %402 = vmatprep.subr.bf16.mxu0 0
      %403 = vmatpush1.bf16.msra.mxu0 %v356
      %404 = vmatprep.subr.bf16.mxu0 0
      %405 = vmatpush1.bf16.msra.mxu0 %v357
      %406 = vmatprep.mubr.bf16.mxu0 %v275
      %407 = vmatmul.mubr.bf16.gmra.mrb[0].mxu0 %v274
      %v408 = vpop.f32.mrb[0].mxu0
      %v409 = vadd.f32 %v265, %v408
      %v410 = vpop.f32.mrb[0].mxu0
      %v411 = vpop.f32.mrb[0].mxu0
      %v412 = vpop.f32.mrb[0].mxu0
      %413 = vdwg.mxu0
      %v414 = vmax.f32 %v409, 0.0
      %v415 = vpack.c.bf16 %v414, %v414
      %v416 = vld [vmem:[%s168] sm:$0x3]
      %v417 = vsel %vm183, %v415, %v416
      %418 = vst [vmem:[%s168] sm:$0x3] %v417
      %p419 = scmp.lt.s32.totalorder %s14, 1
      %s420 = scalar_select %p419, %s14, 1
      %s421 = smul.addr %s420, 2
      %s422 = scalar_lea.vmem %s3, %s421
      // Predicated region
      $region33: #{vgg_feature_extractor.13} parent=31 // pred_check
        %p423 = pneg %p100
      $region34: #{vgg_feature_extractor.13} parent=31 // pred_check_branch
        %425 = sbr.rel (%p423) target = $region36
      $region35: #{vgg_feature_extractor.13} parent=31 // pred_region
        _
      $region36: #{vgg_feature_extractor.13} parent=31 // pred_fallthru
        _
    $region32: #{vgg_feature_extractor.13} parent=5 // pred_fallthru
      _
    %p426 = scmp.le.s32.totalorder 2, %s9
    // Predicated region
    $region37: #{vgg_feature_extractor.13} parent=5 // pred_check
      %p427 = pneg %p426
    $region38: #{vgg_feature_extractor.13} parent=5 // pred_check_branch
      %429 = sbr.rel (%p427) target = $region40
    $region39: #{vgg_feature_extractor.13} parent=5 // pred_region
      %s430 = ssub.s32 %s9, 2
      // Predicated region
      $region41: #{vgg_feature_extractor.13} parent=39 // pred_check
        %p431 = pneg %p106
      $region42: #{vgg_feature_extractor.13} parent=39 // pred_check_branch
        %433 = sbr.rel (%p431) target = $region44
      $region43: #{vgg_feature_extractor.13} parent=39 // pred_region
        %p434 = scmp.lt.s32.totalorder %s15, 1
        %s435 = scalar_select %p434, %s15, 1
        %s436 = smul.addr %s435, 2
        %s437 = scalar_lea.vmem %s3, %s436
      $region44: #{vgg_feature_extractor.13} parent=39 // pred_fallthru
        _
    $region40: #{vgg_feature_extractor.13} parent=5 // pred_fallthru
      _
  $region6: #{vgg_feature_extractor.13} parent=0 // loop_footer
    %s13 = sadd.s32 1, %s9
  $region7: #{vgg_feature_extractor.13} parent=0 // loop_footer_branch
    %8 = sbr.rel target = $region3
  $region8: #{vgg_feature_extractor.13} parent=0 // loop_exit
    _

// kernel: vgg_feature_extractor.12
$region0: #{vgg_feature_extractor.12}
  #allocation0 [shape = 'u32[]', space=smem, size = 0x4, offset = 0x4, fixed_abs, tag = 'smem constant byte address 0x4 - core index']
  #allocation1 [shape = 'u32[144,128]{1,0:T(1,128)}', space=vmem, size = 0x12000, scoped, tag = 'internal scratch']
  #allocation2 [shape = 'f32[1,6,6,64]{3,2,1,0:T(8,128)}', space=vmem, size = 0x6000, scoped, tag = 'scratch operand']
  #allocation3 [shape = 'bf16[16,576]{1,0:T(16,128)(2,1)}', space=vmem, size = 0x5000, scoped, tag = 'scratch operand']
  #allocation4 [shape = 'f32[1,4,4,64]{3,2,1,0:T(4,128)}', space=vmem, size = 0x2000, scoped, tag = 'scratch operand']
  %s0 = inlined_call_operand.vmem [shape: bf16[2,4,4,64], index: 0, kind: input, shape index: {}]
  %s1 = inlined_call_operand.vmem [shape: bf16[576,64], index: 1, kind: input, shape index: {}]
  %s2 = inlined_call_operand.vmem [shape: f32[1,64], index: 2, kind: input, shape index: {}]
  %s3 = inlined_call_operand.vmem [shape: bf16[2,2,4,64], index: 3, kind: output, shape index: {}]
  %s4 = sld [smem:[#allocation0]]
  $region45: #{vgg_feature_extractor.12} parent=0
    _
  %s6 = ssub.s32 1, %s4
  %s7 = scalar_select 0, %s6, %s4
  loop: start=0, step=1, limit=4
  $region2: #{vgg_feature_extractor.12} parent=0 // loop_pre_header
    _
  $region3: #{vgg_feature_extractor.12} parent=0 // loop_header
    %s9 = sphi 0, %s13
    %p10 = scmp.ge.s32.totalorder %s9, 4
    %s19 = sphi 0, %s21
    %s22 = sphi 0, %s19
    %s23 = sphi 0, %s22
    %s39 = sphi 0, %s23
    %s43 = sphi 0, %s43
    %s45 = sphi 0, %s43
    %s46 = sphi 0, %s45
    %s60 = sphi 0, %s46
    %s64 = sphi 0, %s64
    %s66 = sphi 0, %s64
    %s67 = sphi 0, %s66
    %s81 = sphi 0, %s67
    %s87 = sphi 0, %s89
    %s90 = sphi 0, %s87
    %s91 = sphi 0, %s90
    %s107 = sphi 0, %s91
  $region4: #{vgg_feature_extractor.12} parent=0 // loop_header_branch
    %12 = sbr.rel (%p10) target = $region8
  $region5: #{vgg_feature_extractor.12} parent=0 // loop_body
    %s14 = ssub.s32 %s9, 1
    %s15 = ssub.s32 %s9, 2
    %s16 = sadd.s32 %s9, 1
    %s17 = ssub.s32 %s9, %s16
    %p18 = scmp.eq.s32.totalorder %s17, 0
    %s20 = sadd.s32 %s19, 1
    %s21 = scalar_select %p18, %s19, %s20
    %p24 = pneg %p18
    %p25 = scmp.eq.s32.totalorder %s9, 1
    %p26 = por %p24, %p25
    %p27 = scmp.ne.s32.totalorder %s19, %s22
    %p28 = scmp.eq.s32.totalorder %s9, 0
    %p29 = por %p27, %p28
    %p30 = scmp.ne.s32.totalorder %s19, %s22
    %p31 = scmp.eq.s32.totalorder %s14, 1
    %p32 = por %p30, %p31
    %p33 = scmp.ne.s32.totalorder %s22, %s23
    %p34 = scmp.eq.s32.totalorder %s14, 0
    %p35 = por %p33, %p34
    %p36 = scmp.ne.s32.totalorder %s22, %s23
    %p37 = scmp.eq.s32.totalorder %s15, 1
    %p38 = por %p36, %p37
    %p40 = scmp.ne.s32.totalorder %s23, %s39
    %p41 = scmp.eq.s32.totalorder %s15, 0
    %p42 = por %p40, %p41
    %s44 = sadd.s32 %s43, 1
    %p47 = scmp.eq.s32.totalorder %s9, 1
    %p48 = scmp.ne.s32.totalorder %s43, %s45
    %p49 = scmp.eq.s32.totalorder %s9, 0
    %p50 = por %p48, %p49
    %p51 = scmp.ne.s32.totalorder %s43, %s45
    %p52 = scmp.eq.s32.totalorder %s14, 1
    %p53 = por %p51, %p52
    %p54 = scmp.ne.s32.totalorder %s45, %s46
    %p55 = scmp.eq.s32.totalorder %s14, 0
    %p56 = por %p54, %p55
    %p57 = scmp.ne.s32.totalorder %s45, %s46
    %p58 = scmp.eq.s32.totalorder %s15, 1
    %p59 = por %p57, %p58
    %p61 = scmp.ne.s32.totalorder %s46, %s60
    %p62 = scmp.eq.s32.totalorder %s15, 0
    %p63 = por %p61, %p62
    %s65 = sadd.s32 %s64, 1
    %p68 = scmp.eq.s32.totalorder %s9, 1
    %p69 = scmp.ne.s32.totalorder %s64, %s66
    %p70 = scmp.eq.s32.totalorder %s9, 0
    %p71 = por %p69, %p70
    %p72 = scmp.ne.s32.totalorder %s64, %s66
    %p73 = scmp.eq.s32.totalorder %s14, 1
    %p74 = por %p72, %p73
    %p75 = scmp.ne.s32.totalorder %s66, %s67
    %p76 = scmp.eq.s32.totalorder %s14, 0
    %p77 = por %p75, %p76
    %p78 = scmp.ne.s32.totalorder %s66, %s67
    %p79 = scmp.eq.s32.totalorder %s15, 1
    %p80 = por %p78, %p79
    %p82 = scmp.ne.s32.totalorder %s67, %s81
    %p83 = scmp.eq.s32.totalorder %s15, 0
    %p84 = por %p82, %p83
    %s85 = ssub.s32 %s9, %s16
    %p86 = scmp.eq.s32.totalorder %s85, 0
    %s88 = sadd.s32 %s87, 1
    %s89 = scalar_select %p86, %s87, %s88
    %p92 = pneg %p86
    %p93 = scmp.eq.s32.totalorder %s9, 1
    %p94 = por %p92, %p93
    %p95 = scmp.ne.s32.totalorder %s87, %s90
    %p96 = scmp.eq.s32.totalorder %s9, 0
    %p97 = por %p95, %p96
    %p98 = scmp.ne.s32.totalorder %s87, %s90
    %p99 = scmp.eq.s32.totalorder %s14, 1
    %p100 = por %p98, %p99
    %p101 = scmp.ne.s32.totalorder %s90, %s91
    %p102 = scmp.eq.s32.totalorder %s14, 0
    %p103 = por %p101, %p102
    %p104 = scmp.ne.s32.totalorder %s90, %s91
    %p105 = scmp.eq.s32.totalorder %s15, 1
    %p106 = por %p104, %p105
    %p108 = scmp.ne.s32.totalorder %s91, %s107
    %p109 = scmp.eq.s32.totalorder %s15, 0
    %p110 = por %p108, %p109
    %p111 = scmp.le.s32.totalorder 1, %s9
    %p112 = scmp.lt.s32.totalorder %s9, 3
    %p113 = pnand %p111, %p112
    %p114 = pneg %p113
    // Predicated region
    $region9: #{vgg_feature_extractor.12} parent=5 // pred_check
      _
    $region10: #{vgg_feature_extractor.12} parent=5 // pred_check_branch
      %116 = sbr.rel (%p113) target = $region12
    $region11: #{vgg_feature_extractor.12} parent=5 // pred_region
      %s117 = ssub.s32 %s9, 1
      // Predicated region
      $region13: #{vgg_feature_extractor.12} parent=11 // pred_check
        %p118 = pneg %p56
      $region14: #{vgg_feature_extractor.12} parent=11 // pred_check_branch
        %120 = sbr.rel (%p118) target = $region16
      $region15: #{vgg_feature_extractor.12} parent=11 // pred_region
        _
      $region16: #{vgg_feature_extractor.12} parent=11 // pred_fallthru
        _
      // Predicated region
      $region17: #{vgg_feature_extractor.12} parent=11 // pred_check
        %p121 = pneg %p77
      $region18: #{vgg_feature_extractor.12} parent=11 // pred_check_branch
        %123 = sbr.rel (%p121) target = $region20
      $region19: #{vgg_feature_extractor.12} parent=11 // pred_region
        _
      $region20: #{vgg_feature_extractor.12} parent=11 // pred_fallthru
        _
    $region12: #{vgg_feature_extractor.12} parent=5 // pred_fallthru
      _
    %p124 = scmp.lt.s32.totalorder %s9, 2
    // Predicated region
    $region21: #{vgg_feature_extractor.12} parent=5 // pred_check
      %p125 = pneg %p124
    $region22: #{vgg_feature_extractor.12} parent=5 // pred_check_branch
      %127 = sbr.rel (%p125) target = $region24
    $region23: #{vgg_feature_extractor.12} parent=5 // pred_region
      // Predicated region
      $region25: #{vgg_feature_extractor.12} parent=23 // pred_check
        %p128 = pneg %p29
      $region26: #{vgg_feature_extractor.12} parent=23 // pred_check_branch
        %130 = sbr.rel (%p128) target = $region28
      $region27: #{vgg_feature_extractor.12} parent=23 // pred_region
        %p131 = scmp.lt.s32.totalorder %s9, 1
        %s132 = scalar_select %p131, %s9, 1
        %s133 = smul.addr %s132, 4
        %s134 = smul.addr %s133, 2
        %s135 = scalar_lea.vmem %s0, %s134
      $region28: #{vgg_feature_extractor.12} parent=23 // pred_fallthru
        _
    $region24: #{vgg_feature_extractor.12} parent=5 // pred_fallthru
      _
    %p136 = scmp.le.s32.totalorder 1, %s9
    %p137 = scmp.lt.s32.totalorder %s9, 3
    %p138 = pnand %p136, %p137
    %p139 = pneg %p138
    // Predicated region
    $region29: #{vgg_feature_extractor.12} parent=5 // pred_check
      _
    $region30: #{vgg_feature_extractor.12} parent=5 // pred_check_branch
      %141 = sbr.rel (%p138) target = $region32
    $region31: #{vgg_feature_extractor.12} parent=5 // pred_region
      %s142 = ssub.s32 %s9, 1
      %p143 = scmp.lt.s32.totalorder %s14, 1
      %s144 = scalar_select %p143, %s14, 1
      %s145 = smul.addr %s144, 4
      %s146 = smul.addr %s145, 2
      %s147 = scalar_lea.vmem %s0, %s146
      %p148 = pneg %p35
      %p149 = pneg %p32
      %p150 = pneg %p56
      %p151 = pneg %p53
      %p152 = pneg %p77
      %p153 = pneg %p74
      %p154 = pneg %p103
      %p155 = pneg %p100
      %p156 = scmp.lt.s32.totalorder %s14, 1
      %s157 = scalar_select %p156, %s14, 1
      %s158 = smul.addr %s157, 2
      %s159 = smul.addr %s158, 2
      %s160 = scalar_lea.vmem %s3, %s159
      %p161 = scmp.lt.s32.totalorder %s14, 1
      %s162 = scalar_select %p161, %s14, 1
      %s163 = smul.addr %s162, 4
      %s164 = smul.addr %s163, 2
      %s165 = scalar_lea.vmem %s0, %s164
      %p166 = scmp.lt.s32.totalorder %s14, 1
      %s167 = scalar_select %p166, %s14, 1
      %s168 = smul.addr %s167, 2
      %s169 = smul.addr %s168, 2
      %s170 = scalar_lea.vmem %s3, %s169
      %vm172 = vcmask 521216
      %173 = vst.msk [vmem:[#allocation2] sm:$0x3f] %vm172, 0.0
      %174 = vst.msk [vmem:[#allocation2 + $0x8] sm:$0x3f] %vm172, 0.0
      %175 = vst.msk [vmem:[#allocation2 + $0x10] sm:$0x3f] %vm172, 0.0
      %176 = vst.msk [vmem:[#allocation2 + $0x18] sm:$0x3f] %vm172, 0.0
      %177 = vst.msk [vmem:[#allocation2 + $0x20] sm:$0x3f] %vm172, 0.0
      %178 = vst.msk [vmem:[#allocation2 + $0x28] sm:$0x3f] %vm172, 0.0
      %v179 = vld [vmem:[%s165] sm:$0x3]
      %v180 = vld [vmem:[%s165 + $0x2] sm:$0x3]
      %v181 = vld [vmem:[%s165 + $0x4] sm:$0x3]
      %v182 = vld [vmem:[%s165 + $0x6] sm:$0x3]
      %v183 = vunpack.c.l.bf16 %v179
      %v184 = vunpack.c.l.bf16 %v180
      %v185 = vunpack.c.l.bf16 %v181
      %v186 = vunpack.c.l.bf16 %v182
      %s187 = scalar_lea.vmem [#allocation2], 8
      %vm188 = vcmask 519168
      %189 = vst.msk [vmem:[%s187 + $0x1] sm:$0xf] %vm188, %v183
      %190 = vst.msk [vmem:[%s187 + $0x9] sm:$0xf] %vm188, %v184
      %191 = vst.msk [vmem:[%s187 + $0x11] sm:$0xf] %vm188, %v185
      %192 = vst.msk [vmem:[%s187 + $0x19] sm:$0xf] %vm188, %v186
      %v193 = vld [vmem:[#allocation2] sm:$0xf]
      %v194 = vld [vmem:[#allocation2 + $0x8] sm:$0xf]
      %v195 = vld [vmem:[#allocation2 + $0x10] sm:$0xf]
      %v196 = vld [vmem:[#allocation2 + $0x18] sm:$0xf]
      %v201 = vcombine.low %v193, %v194
      %v202 = vcombine.low %v195, %v196
      %v205 = vpack.c.bf16 %v202, %v201
      %vm206 = vcmask 523264
      %207 = vst.msk [vmem:[#allocation3] sm:$0xff] %vm206, %v205
      %v208 = vld [vmem:[#allocation2 + $0x1] sm:$0xf]
      %v209 = vld [vmem:[#allocation2 + $0x9] sm:$0xf]
      %v210 = vld [vmem:[#allocation2 + $0x11] sm:$0xf]
      %v211 = vld [vmem:[#allocation2 + $0x19] sm:$0xf]
      %v216 = vcombine.low %v208, %v209
      %v217 = vcombine.low %v210, %v211
      %v220 = vpack.c.bf16 %v217, %v216
      %222 = vrot.lane.b32.xlu0 %v220, 64
      %v223 = vpop.permute.xlu0 %222
      %vm225 = vcmask 1048064
      %226 = vst.msk [vmem:[#allocation3] sm:$0xff] %vm225, %v223
      %v227 = vld [vmem:[#allocation2 + $0x2] sm:$0xf]
      %v228 = vld [vmem:[#allocation2 + $0xa] sm:$0xf]
      %v229 = vld [vmem:[#allocation2 + $0x12] sm:$0xf]
      %v230 = vld [vmem:[#allocation2 + $0x1a] sm:$0xf]
      %v235 = vcombine.low %v227, %v228
      %v236 = vcombine.low %v229, %v230
      %v239 = vpack.c.bf16 %v236, %v235
      %240 = vst.msk [vmem:[#allocation3 + $0x8] sm:$0xff] %vm206, %v239
      %v241 = vld [vmem:[%s187] sm:$0xf]
      %v242 = vld [vmem:[%s187 + $0x8] sm:$0xf]
      %v243 = vld [vmem:[%s187 + $0x10] sm:$0xf]
      %v244 = vld [vmem:[%s187 + $0x18] sm:$0xf]
      %v249 = vcombine.low %v241, %v242
      %v250 = vcombine.low %v243, %v244
      %v253 = vpack.c.bf16 %v250, %v249
      %255 = vrot.lane.b32.xlu0 %v253, 64
      %v256 = vpop.permute.xlu0 %255
      %258 = vst.msk [vmem:[#allocation3 + $0x8] sm:$0xff] %vm225, %v256
      %v259 = vld [vmem:[%s187 + $0x1] sm:$0xf]
      %v260 = vld [vmem:[%s187 + $0x9] sm:$0xf]
      %v261 = vld [vmem:[%s187 + $0x11] sm:$0xf]
      %v262 = vld [vmem:[%s187 + $0x19] sm:$0xf]
      %v267 = vcombine.low %v259, %v260
      %v268 = vcombine.low %v261, %v262
      %v271 = vpack.c.bf16 %v268, %v267
      %272 = vst.msk [vmem:[#allocation3 + $0x10] sm:$0xff] %vm206, %v271
      %v273 = vld [vmem:[%s187 + $0x2] sm:$0xf]
      %v274 = vld [vmem:[%s187 + $0xa] sm:$0xf]
      %v275 = vld [vmem:[%s187 + $0x12] sm:$0xf]
      %v276 = vld [vmem:[%s187 + $0x1a] sm:$0xf]
      %v281 = vcombine.low %v273, %v274
      %v282 = vcombine.low %v275, %v276
      %v285 = vpack.c.bf16 %v282, %v281
      %287 = vrot.lane.b32.xlu0 %v285, 64
      %v288 = vpop.permute.xlu0 %287
      %290 = vst.msk [vmem:[#allocation3 + $0x10] sm:$0xff] %vm225, %v288
      %s291 = scalar_lea.vmem [#allocation2], 16
      %v292 = vld [vmem:[%s291] sm:$0xf]
      %v293 = vld [vmem:[%s291 + $0x8] sm:$0xf]
      %v294 = vld [vmem:[%s291 + $0x10] sm:$0xf]
      %v295 = vld [vmem:[%s291 + $0x18] sm:$0xf]
      %v300 = vcombine.low %v292, %v293
      %v301 = vcombine.low %v294, %v295
      %v304 = vpack.c.bf16 %v301, %v300
      %305 = vst.msk [vmem:[#allocation3 + $0x18] sm:$0xff] %vm206, %v304
      %v306 = vld [vmem:[%s291 + $0x1] sm:$0xf]
      %v307 = vld [vmem:[%s291 + $0x9] sm:$0xf]
      %v308 = vld [vmem:[%s291 + $0x11] sm:$0xf]
      %v309 = vld [vmem:[%s291 + $0x19] sm:$0xf]
      %v314 = vcombine.low %v306, %v307
      %v315 = vcombine.low %v308, %v309
      %v318 = vpack.c.bf16 %v315, %v314
      %320 = vrot.lane.b32.xlu0 %v318, 64
      %v321 = vpop.permute.xlu0 %320
      %323 = vst.msk [vmem:[#allocation3 + $0x18] sm:$0xff] %vm225, %v321
      %v324 = vld [vmem:[%s291 + $0x2] sm:$0xf]
      %v325 = vld [vmem:[%s291 + $0xa] sm:$0xf]
      %v326 = vld [vmem:[%s291 + $0x12] sm:$0xf]
      %v327 = vld [vmem:[%s291 + $0x1a] sm:$0xf]
      %v332 = vcombine.low %v324, %v325
      %v333 = vcombine.low %v326, %v327
      %v336 = vpack.c.bf16 %v333, %v332
      %337 = vst.msk [vmem:[#allocation3 + $0x20] sm:$0xff] %vm206, %v336
      %v338 = vld [vmem:[#allocation3] sm:$0xff]
      %v339 = vld [vmem:[#allocation3 + $0x8] sm:$0xff]
      %v340 = vld [vmem:[#allocation3 + $0x10] sm:$0xff]
      %v341 = vld [vmem:[#allocation3 + $0x18] sm:$0xff]
      %v342 = vld [vmem:[#allocation3 + $0x20] sm:$0xff]
      %v343 = vld [vmem:[%s1] sm:$0xf]
      %v344 = vld [vmem:[%s1 + $0x4] sm:$0xf]
      %v345 = vld [vmem:[%s1 + $0x8] sm:$0xf]
      %v346 = vld [vmem:[%s1 + $0xc] sm:$0xf]
      %v347 = vld [vmem:[%s1 + $0x10] sm:$0xf]
      %v348 = vld [vmem:[%s1 + $0x14] sm:$0xf]
      %v349 = vld [vmem:[%s1 + $0x18] sm:$0xf]
      %v350 = vld [vmem:[%s1 + $0x1c] sm:$0xf]
      %v351 = vld [vmem:[%s1 + $0x20] sm:$0xf]
      %v352 = vld [vmem:[%s1 + $0x24] sm:$0xf]
      %v353 = vld [vmem:[%s1 + $0x28] sm:$0xf]
      %v354 = vld [vmem:[%s1 + $0x2c] sm:$0xf]
      %v355 = vld [vmem:[%s1 + $0x30] sm:$0xf]
      %v356 = vld [vmem:[%s1 + $0x34] sm:$0xf]
      %v357 = vld [vmem:[%s1 + $0x38] sm:$0xf]
      %v358 = vld [vmem:[%s1 + $0x3c] sm:$0xf]
      %v359 = vld [vmem:[%s1 + $0x40] sm:$0xf]
      %v360 = vld [vmem:[%s1 + $0x44] sm:$0xf]
      %v361 = vld [vmem:[%s1 + $0x48] sm:$0xf]
      %v362 = vld [vmem:[%s1 + $0x4c] sm:$0xf]
      %v363 = vld [vmem:[%s1 + $0x50] sm:$0xf]
      %v364 = vld [vmem:[%s1 + $0x54] sm:$0xf]
      %v365 = vld [vmem:[%s1 + $0x58] sm:$0xf]
      %v366 = vld [vmem:[%s1 + $0x5c] sm:$0xf]
      %v367 = vld [vmem:[%s1 + $0x60] sm:$0xf]
      %v368 = vld [vmem:[%s1 + $0x64] sm:$0xf]
      %v369 = vld [vmem:[%s1 + $0x68] sm:$0xf]
      %v370 = vld [vmem:[%s1 + $0x6c] sm:$0xf]
      %v371 = vld [vmem:[%s1 + $0x70] sm:$0xf]
      %v372 = vld [vmem:[%s1 + $0x74] sm:$0xf]
      %v373 = vld [vmem:[%s1 + $0x78] sm:$0xf]
      %v374 = vld [vmem:[%s1 + $0x7c] sm:$0xf]
      %v375 = vld [vmem:[%s1 + $0x80] sm:$0xf]
      %v376 = vld [vmem:[%s1 + $0x84] sm:$0xf]
      %v377 = vld [vmem:[%s1 + $0x88] sm:$0xf]
      %v378 = vld [vmem:[%s1 + $0x8c] sm:$0xf]
      %v379 = vld [vmem:[%s1 + $0x90] sm:$0xf]
      %v380 = vld [vmem:[%s1 + $0x94] sm:$0xf]
      %v381 = vld [vmem:[%s1 + $0x98] sm:$0xf]
      %v382 = vld [vmem:[%s1 + $0x9c] sm:$0xf]
      %v383 = vld [vmem:[%s1 + $0xa0] sm:$0xf]
      %v384 = vld [vmem:[%s1 + $0xa4] sm:$0xf]
      %v385 = vld [vmem:[%s1 + $0xa8] sm:$0xf]
      %v386 = vld [vmem:[%s1 + $0xac] sm:$0xf]
      %v387 = vld [vmem:[%s1 + $0xb0] sm:$0xf]
      %v388 = vld [vmem:[%s1 + $0xb4] sm:$0xf]
      %v389 = vld [vmem:[%s1 + $0xb8] sm:$0xf]
      %v390 = vld [vmem:[%s1 + $0xbc] sm:$0xf]
      %v391 = vld [vmem:[%s1 + $0xc0] sm:$0xf]
      %v392 = vld [vmem:[%s1 + $0xc4] sm:$0xf]
      %v393 = vld [vmem:[%s1 + $0xc8] sm:$0xf]
      %v394 = vld [vmem:[%s1 + $0xcc] sm:$0xf]
      %v395 = vld [vmem:[%s1 + $0xd0] sm:$0xf]
      %v396 = vld [vmem:[%s1 + $0xd4] sm:$0xf]
      %v397 = vld [vmem:[%s1 + $0xd8] sm:$0xf]
      %v398 = vld [vmem:[%s1 + $0xdc] sm:$0xf]
      %v399 = vld [vmem:[%s1 + $0xe0] sm:$0xf]
      %v400 = vld [vmem:[%s1 + $0xe4] sm:$0xf]
      %v401 = vld [vmem:[%s1 + $0xe8] sm:$0xf]
      %v402 = vld [vmem:[%s1 + $0xec] sm:$0xf]
      %v403 = vld [vmem:[%s1 + $0xf0] sm:$0xf]
      %v404 = vld [vmem:[%s1 + $0xf4] sm:$0xf]
      %v405 = vld [vmem:[%s1 + $0xf8] sm:$0xf]
      %v406 = vld [vmem:[%s1 + $0xfc] sm:$0xf]
      %v407 = vld [vmem:[%s1 + $0x100] sm:$0xf]
      %v408 = vld [vmem:[%s1 + $0x104] sm:$0xf]
      %v409 = vld [vmem:[%s1 + $0x108] sm:$0xf]
      %v410 = vld [vmem:[%s1 + $0x10c] sm:$0xf]
      %v411 = vld [vmem:[%s1 + $0x110] sm:$0xf]
      %v412 = vld [vmem:[%s1 + $0x114] sm:$0xf]
      %v413 = vld [vmem:[%s1 + $0x118] sm:$0xf]
      %v414 = vld [vmem:[%s1 + $0x11c] sm:$0xf]
      %v415 = vld [vmem:[%s2] sm:$0x1]
      %v417 = vlaneseq
      %v418 = vshrl.u32 %v417, 7
      %v419 = vsub.s32 0, %v418
      %v420 = vrot.slane %v415, %v419
      %v494 = vunpack.c.l.b16 %v343
      %v495 = vunpack.c.l.b16 %v344
      %v496 = vunpack.c.l.b16 %v345
      %v497 = vunpack.c.l.b16 %v346
      %v498 = vunpack.c.l.b16 %v347
      %v499 = vunpack.c.l.b16 %v348
      %v500 = vunpack.c.l.b16 %v349
      %v501 = vunpack.c.l.b16 %v350
      %v502 = vunpack.c.l.b16 %v351
      %v503 = vunpack.c.l.b16 %v352
      %v504 = vunpack.c.l.b16 %v353
      %v505 = vunpack.c.l.b16 %v354
      %v506 = vunpack.c.l.b16 %v355
      %v507 = vunpack.c.l.b16 %v356
      %v508 = vunpack.c.l.b16 %v357
      %v509 = vunpack.c.l.b16 %v358
      %v510 = vunpack.c.l.b16 %v359
      %v511 = vunpack.c.l.b16 %v360
      %v512 = vunpack.c.l.b16 %v361
      %v513 = vunpack.c.l.b16 %v362
      %v514 = vunpack.c.l.b16 %v363
      %v515 = vunpack.c.l.b16 %v364
      %v516 = vunpack.c.l.b16 %v365
      %v517 = vunpack.c.l.b16 %v366
      %v518 = vunpack.c.l.b16 %v367
      %v519 = vunpack.c.l.b16 %v368
      %v520 = vunpack.c.l.b16 %v369
      %v521 = vunpack.c.l.b16 %v370
      %v522 = vunpack.c.l.b16 %v371
      %v523 = vunpack.c.l.b16 %v372
      %v524 = vunpack.c.l.b16 %v373
      %v525 = vunpack.c.l.b16 %v374
      %v526 = vunpack.c.l.b16 %v375
      %v527 = vunpack.c.l.b16 %v376
      %v528 = vunpack.c.l.b16 %v377
      %v529 = vunpack.c.l.b16 %v378
      %v530 = vunpack.c.l.b16 %v379
      %v531 = vunpack.c.l.b16 %v380
      %v532 = vunpack.c.l.b16 %v381
      %v533 = vunpack.c.l.b16 %v382
      %v534 = vunpack.c.l.b16 %v383
      %v535 = vunpack.c.l.b16 %v384
      %v536 = vunpack.c.l.b16 %v385
      %v537 = vunpack.c.l.b16 %v386
      %v538 = vunpack.c.l.b16 %v387
      %v539 = vunpack.c.l.b16 %v388
      %v540 = vunpack.c.l.b16 %v389
      %v541 = vunpack.c.l.b16 %v390
      %v542 = vunpack.c.l.b16 %v391
      %v543 = vunpack.c.l.b16 %v392
      %v544 = vunpack.c.l.b16 %v393
      %v545 = vunpack.c.l.b16 %v394
      %v546 = vunpack.c.l.b16 %v395
      %v547 = vunpack.c.l.b16 %v396
      %v548 = vunpack.c.l.b16 %v397
      %v549 = vunpack.c.l.b16 %v398
      %v550 = vunpack.c.l.b16 %v399
      %v551 = vunpack.c.l.b16 %v400
      %v552 = vunpack.c.l.b16 %v401
      %v553 = vunpack.c.l.b16 %v402
      %v554 = vunpack.c.l.b16 %v403
      %v555 = vunpack.c.l.b16 %v404
      %v556 = vunpack.c.l.b16 %v405
      %v557 = vunpack.c.l.b16 %v406
      %v558 = vunpack.c.l.b16 %v407
      %v559 = vunpack.c.l.b16 %v408
      %v560 = vunpack.c.l.b16 %v409
      %v561 = vunpack.c.l.b16 %v410
      %v562 = vunpack.c.l.b16 %v411
      %v563 = vunpack.c.l.b16 %v412
      %v564 = vunpack.c.l.b16 %v413
      %v565 = vunpack.c.l.b16 %v414
      %v566 = vpack.c.b16 %v495, %v494
      %v567 = vpack.c.b16 %v497, %v496
      %v568 = vpack.c.b16 %v499, %v498
      %v569 = vpack.c.b16 %v501, %v500
      %v570 = vpack.c.b16 %v503, %v502
      %v571 = vpack.c.b16 %v505, %v504
      %v572 = vpack.c.b16 %v507, %v506
      %v573 = vpack.c.b16 %v509, %v508
      %v574 = vpack.c.b16 %v511, %v510
      %v575 = vpack.c.b16 %v513, %v512
      %v576 = vpack.c.b16 %v515, %v514
      %v577 = vpack.c.b16 %v517, %v516
      %v578 = vpack.c.b16 %v519, %v518
      %v579 = vpack.c.b16 %v521, %v520
      %v580 = vpack.c.b16 %v523, %v522
      %v581 = vpack.c.b16 %v525, %v524
      %v582 = vpack.c.b16 %v527, %v526
      %v583 = vpack.c.b16 %v529, %v528
      %v584 = vpack.c.b16 %v531, %v530
      %v585 = vpack.c.b16 %v533, %v532
      %v586 = vpack.c.b16 %v535, %v534
      %v587 = vpack.c.b16 %v537, %v536
      %v588 = vpack.c.b16 %v539, %v538
      %v589 = vpack.c.b16 %v541, %v540
      %v590 = vpack.c.b16 %v543, %v542
      %v591 = vpack.c.b16 %v545, %v544
      %v592 = vpack.c.b16 %v547, %v546
      %v593 = vpack.c.b16 %v549, %v548
      %v594 = vpack.c.b16 %v551, %v550
      %v595 = vpack.c.b16 %v553, %v552
      %v596 = vpack.c.b16 %v555, %v554
      %v597 = vpack.c.b16 %v557, %v556
      %v598 = vpack.c.b16 %v559, %v558
      %v599 = vpack.c.b16 %v561, %v560
      %v600 = vpack.c.b16 %v563, %v562
      %v601 = vpack.c.b16 %v565, %v564
      %v639 = vsel %vm206, %v342, 0
      %641 = vmatprep.subr.bf16.mxu0 0
      %642 = vmatpush1.bf16.msra.mxu0 %v566
      %643 = vmatprep.subr.bf16.mxu0 0
      %644 = vmatpush1.bf16.msra.mxu0 %v567
      %645 = vmatprep.subr.bf16.mxu0 0
      %646 = vmatpush1.bf16.msra.mxu0 %v568
      %647 = vmatprep.subr.bf16.mxu0 0
      %648 = vmatpush1.bf16.msra.mxu0 %v569
      %649 = vmatprep.subr.bf16.mxu0 0
      %650 = vmatpush1.bf16.msra.mxu0 %v570
      %651 = vmatprep.subr.bf16.mxu0 0
      %652 = vmatpush1.bf16.msra.mxu0 %v571
      %653 = vmatprep.subr.bf16.mxu0 0
      %654 = vmatpush1.bf16.msra.mxu0 %v572
      %655 = vmatprep.subr.bf16.mxu0 0
      %656 = vmatpush1.bf16.msra.mxu0 %v573
      %657 = vmatprep.subr.bf16.mxu0 0
      %658 = vmatpush1.bf16.msra.mxu0 %v574
      %659 = vmatprep.subr.bf16.mxu0 0
      %660 = vmatpush1.bf16.msra.mxu0 %v575
      %661 = vmatprep.subr.bf16.mxu0 0
      %662 = vmatpush1.bf16.msra.mxu0 %v576
      %663 = vmatprep.subr.bf16.mxu0 0
      %664 = vmatpush1.bf16.msra.mxu0 %v577
      %665 = vmatprep.subr.bf16.mxu0 0
      %666 = vmatpush1.bf16.msra.mxu0 %v578
      %667 = vmatprep.subr.bf16.mxu0 0
      %668 = vmatpush1.bf16.msra.mxu0 %v579
      %669 = vmatprep.subr.bf16.mxu0 0
      %670 = vmatpush1.bf16.msra.mxu0 %v580
      %671 = vmatprep.subr.bf16.mxu0 0
      %672 = vmatpush1.bf16.msra.mxu0 %v581
      %673 = vmatprep.mubr.bf16.mxu0 %v339
      %674 = vmatmul.mubr.bf16.gmra.mrb[0].mxu0 %v338
      %v675 = vpop.f32.mrb[0].mxu0
      %v676 = vadd.f32 %v420, %v675
      %v677 = vpop.f32.mrb[0].mxu0
      %v678 = vpop.f32.mrb[0].mxu0
      %v679 = vadd.f32 %v420, %v678
      %v680 = vpop.f32.mrb[0].mxu0
      %681 = vdwg.mxu0
      %682 = vmatprep.subr.bf16.mxu0 0
      %683 = vmatpush1.bf16.msra.mxu0 %v582
      %684 = vmatprep.subr.bf16.mxu0 0
      %685 = vmatpush1.bf16.msra.mxu0 %v583
      %686 = vmatprep.subr.bf16.mxu0 0
      %687 = vmatpush1.bf16.msra.mxu0 %v584
      %688 = vmatprep.subr.bf16.mxu0 0
      %689 = vmatpush1.bf16.msra.mxu0 %v585
      %690 = vmatprep.subr.bf16.mxu0 0
      %691 = vmatpush1.bf16.msra.mxu0 %v586
      %692 = vmatprep.subr.bf16.mxu0 0
      %693 = vmatpush1.bf16.msra.mxu0 %v587
      %694 = vmatprep.subr.bf16.mxu0 0
      %695 = vmatpush1.bf16.msra.mxu0 %v588
      %696 = vmatprep.subr.bf16.mxu0 0
      %697 = vmatpush1.bf16.msra.mxu0 %v589
      %698 = vmatprep.subr.bf16.mxu0 0
      %699 = vmatpush1.bf16.msra.mxu0 %v590
      %700 = vmatprep.subr.bf16.mxu0 0
      %701 = vmatpush1.bf16.msra.mxu0 %v591
      %702 = vmatprep.subr.bf16.mxu0 0
      %703 = vmatpush1.bf16.msra.mxu0 %v592
      %704 = vmatprep.subr.bf16.mxu0 0
      %705 = vmatpush1.bf16.msra.mxu0 %v593
      %706 = vmatprep.subr.bf16.mxu0 0
      %707 = vmatpush1.bf16.msra.mxu0 %v594
      %708 = vmatprep.subr.bf16.mxu0 0
      %709 = vmatpush1.bf16.msra.mxu0 %v595
      %710 = vmatprep.subr.bf16.mxu0 0
      %711 = vmatpush1.bf16.msra.mxu0 %v596
      %712 = vmatprep.subr.bf16.mxu0 0
      %713 = vmatpush1.bf16.msra.mxu0 %v597
      %714 = vmatprep.mubr.bf16.mxu0 %v341
      %715 = vmatmul.mubr.bf16.gmra.mrb[0].mxu0 %v340
      %v716 = vpop.f32.mrb[0].mxu0
      %v717 = vadd.f32 %v676, %v716
      %v718 = vpop.f32.mrb[0].mxu0
      %v719 = vpop.f32.mrb[0].mxu0
      %v720 = vadd.f32 %v679, %v719
      %v721 = vpop.f32.mrb[0].mxu0
      %722 = vdwg.mxu0
      %723 = vmatprep.subr.bf16.mxu0 0
      %724 = vmatpush1.bf16.msra.mxu0 %v598
      %725 = vmatprep.subr.bf16.mxu0 0
      %726 = vmatpush1.bf16.msra.mxu0 %v599
      %727 = vmatprep.subr.bf16.mxu0 0
      %728 = vmatpush1.bf16.msra.mxu0 %v600
      %729 = vmatprep.subr.bf16.mxu0 0
      %730 = vmatpush1.bf16.msra.mxu0 %v601
      %731 = vmatprep.subr.bf16.mxu0 0
      %732 = vmatpush1.bf16.msra.mxu0 0
      %733 = vmatprep.subr.bf16.mxu0 0
      %734 = vmatpush1.bf16.msra.mxu0 0
      %735 = vmatprep.subr.bf16.mxu0 0
      %736 = vmatpush1.bf16.msra.mxu0 0
      %737 = vmatprep.subr.bf16.mxu0 0
      %738 = vmatpush1.bf16.msra.mxu0 0
      %739 = vmatprep.subr.bf16.mxu0 0
      %740 = vmatpush1.bf16.msra.mxu0 0
      %741 = vmatprep.subr.bf16.mxu0 0
      %742 = vmatpush1.bf16.msra.mxu0 0
      %743 = vmatprep.subr.bf16.mxu0 0
      %744 = vmatpush1.bf16.msra.mxu0 0
      %745 = vmatprep.subr.bf16.mxu0 0
      %746 = vmatpush1.bf16.msra.mxu0 0
      %747 = vmatprep.subr.bf16.mxu0 0
      %748 = vmatpush1.bf16.msra.mxu0 0
      %749 = vmatprep.subr.bf16.mxu0 0
      %750 = vmatpush1.bf16.msra.mxu0 0
      %751 = vmatprep.subr.bf16.mxu0 0
      %752 = vmatpush1.bf16.msra.mxu0 0
      %753 = vmatprep.subr.bf16.mxu0 0
      %754 = vmatpush1.bf16.msra.mxu0 0
      %755 = vmatprep.mubr.bf16.mxu0 0
      %756 = vmatmul.mubr.bf16.gmra.mrb[0].mxu0 %v639
      %v757 = vpop.f32.mrb[0].mxu0
      %v758 = vadd.f32 %v717, %v757
      %v759 = vpop.f32.mrb[0].mxu0
      %v760 = vpop.f32.mrb[0].mxu0
      %v761 = vadd.f32 %v720, %v760
      %v762 = vpop.f32.mrb[0].mxu0
      %763 = vdwg.mxu0
      %v764 = vmax.f32 %v758, 0.0
      %v765 = vmax.f32 %v761, 0.0
      %v768 = vcombine.high %v764, %v764
      %v769 = vcombine.high %v765, %v765
      %772 = vst.msk [vmem:[#allocation4] sm:$0xf] %vm188, %v764
      %773 = vst.msk [vmem:[#allocation4 + $0x4] sm:$0xf] %vm188, %v768
      %774 = vst.msk [vmem:[#allocation4 + $0x8] sm:$0xf] %vm188, %v765
      %775 = vst.msk [vmem:[#allocation4 + $0xc] sm:$0xf] %vm188, %v769
      %v776 = vld [vmem:[#allocation4] sm:$0xf]
      %v777 = vld [vmem:[#allocation4 + $0x8] sm:$0xf]
      %s778 = scalar_lea.vmem [#allocation4], 4
      %v779 = vld [vmem:[%s778] sm:$0xf]
      %v780 = vld [vmem:[%s778 + $0x8] sm:$0xf]
      %v781 = vmax.f32 %v776, %v779
      %v782 = vmax.f32 %v777, %v780
      %v783 = vpack.c.bf16 %v781, %v781
      %v784 = vpack.c.bf16 %v782, %v782
      %vm785 = vcmask 517120
      %786 = vst.msk [vmem:[%s170] sm:$0x3] %vm785, %v783
      %787 = vst.msk [vmem:[%s170 + $0x2] sm:$0x3] %vm785, %v784
      %p788 = scmp.lt.s32.totalorder %s14, 1
      %s789 = scalar_select %p788, %s14, 1
      %s790 = smul.addr %s789, 2
      %s791 = smul.addr %s790, 2
      %s792 = scalar_lea.vmem %s3, %s791
      // Predicated region
      $region33: #{vgg_feature_extractor.12} parent=31 // pred_check
        %p793 = pneg %p100
      $region34: #{vgg_feature_extractor.12} parent=31 // pred_check_branch
        %795 = sbr.rel (%p793) target = $region36
      $region35: #{vgg_feature_extractor.12} parent=31 // pred_region
        _
      $region36: #{vgg_feature_extractor.12} parent=31 // pred_fallthru
        _
    $region32: #{vgg_feature_extractor.12} parent=5 // pred_fallthru
      _
    %p796 = scmp.le.s32.totalorder 2, %s9
    // Predicated region
    $region37: #{vgg_feature_extractor.12} parent=5 // pred_check
      %p797 = pneg %p796
    $region38: #{vgg_feature_extractor.12} parent=5 // pred_check_branch
      %799 = sbr.rel (%p797) target = $region40
    $region39: #{vgg_feature_extractor.12} parent=5 // pred_region
      %s800 = ssub.s32 %s9, 2
      // Predicated region
      $region41: #{vgg_feature_extractor.12} parent=39 // pred_check
        %p801 = pneg %p106
      $region42: #{vgg_feature_extractor.12} parent=39 // pred_check_branch
        %803 = sbr.rel (%p801) target = $region44
      $region43: #{vgg_feature_extractor.12} parent=39 // pred_region
        %p804 = scmp.lt.s32.totalorder %s15, 1
        %s805 = scalar_select %p804, %s15, 1
        %s806 = smul.addr %s805, 2
        %s807 = smul.addr %s806, 2
        %s808 = scalar_lea.vmem %s3, %s807
      $region44: #{vgg_feature_extractor.12} parent=39 // pred_fallthru
        _
    $region40: #{vgg_feature_extractor.12} parent=5 // pred_fallthru
      _
  $region6: #{vgg_feature_extractor.12} parent=0 // loop_footer
    %s13 = sadd.s32 1, %s9
  $region7: #{vgg_feature_extractor.12} parent=0 // loop_footer_branch
    %8 = sbr.rel target = $region3
  $region8: #{vgg_feature_extractor.12} parent=0 // loop_exit
    _

// kernel: vgg_feature_extractor.7
$region0: #{vgg_feature_extractor.7}
  #allocation0 [shape = 'u32[]', space=smem, size = 0x4, offset = 0x4, fixed_abs, tag = 'smem constant byte address 0x4 - core index']
  #allocation1 [shape = 'u32[144,128]{1,0:T(1,128)}', space=vmem, size = 0x12000, scoped, tag = 'internal scratch']
  #allocation2 [shape = 'f32[1,34,18,4]{3,2,1,0:T(8,128)}', space=vmem, size = 0x66000, scoped, tag = 'scratch operand']
  #allocation3 [shape = 'bf16[512,36]{1,0:T(16,128)(2,1)}', space=vmem, size = 0x20000, scoped, tag = 'scratch operand']
  #allocation4 [shape = 'f32[1,32,16,8]{3,2,1,0:T(8,128)}', space=vmem, size = 0x40000, scoped, tag = 'scratch operand']
  %s0 = inlined_call_operand.vmem [shape: bf16[2,32,16,4], index: 0, kind: input, shape index: {}]
  %s1 = inlined_call_operand.vmem [shape: bf16[36,8], index: 1, kind: input, shape index: {}]
  %s2 = inlined_call_operand.vmem [shape: f32[1,8], index: 2, kind: input, shape index: {}]
  %s3 = inlined_call_operand.vmem [shape: bf16[2,16,8,8], index: 3, kind: output, shape index: {}]
  %s4 = sld [smem:[#allocation0]]
  $region45: #{vgg_feature_extractor.7} parent=0
    _
  %s6 = ssub.s32 1, %s4
  %s7 = scalar_select 0, %s6, %s4
  loop: start=0, step=1, limit=4
  $region2: #{vgg_feature_extractor.7} parent=0 // loop_pre_header
    _
  $region3: #{vgg_feature_extractor.7} parent=0 // loop_header
    %s9 = sphi 0, %s13
    %p10 = scmp.ge.s32.totalorder %s9, 4
    %s19 = sphi 0, %s21
    %s22 = sphi 0, %s19
    %s23 = sphi 0, %s22
    %s39 = sphi 0, %s23
    %s43 = sphi 0, %s43
    %s45 = sphi 0, %s43
    %s46 = sphi 0, %s45
    %s60 = sphi 0, %s46
    %s64 = sphi 0, %s64
    %s66 = sphi 0, %s64
    %s67 = sphi 0, %s66
    %s81 = sphi 0, %s67
    %s87 = sphi 0, %s89
    %s90 = sphi 0, %s87
    %s91 = sphi 0, %s90
    %s107 = sphi 0, %s91
  $region4: #{vgg_feature_extractor.7} parent=0 // loop_header_branch
    %12 = sbr.rel (%p10) target = $region8
  $region5: #{vgg_feature_extractor.7} parent=0 // loop_body
    %s14 = ssub.s32 %s9, 1
    %s15 = ssub.s32 %s9, 2
    %s16 = sadd.s32 %s9, 1
    %s17 = ssub.s32 %s9, %s16
    %p18 = scmp.eq.s32.totalorder %s17, 0
    %s20 = sadd.s32 %s19, 1
    %s21 = scalar_select %p18, %s19, %s20
    %p24 = pneg %p18
    %p25 = scmp.eq.s32.totalorder %s9, 1
    %p26 = por %p24, %p25
    %p27 = scmp.ne.s32.totalorder %s19, %s22
    %p28 = scmp.eq.s32.totalorder %s9, 0
    %p29 = por %p27, %p28
    %p30 = scmp.ne.s32.totalorder %s19, %s22
    %p31 = scmp.eq.s32.totalorder %s14, 1
    %p32 = por %p30, %p31
    %p33 = scmp.ne.s32.totalorder %s22, %s23
    %p34 = scmp.eq.s32.totalorder %s14, 0
    %p35 = por %p33, %p34
    %p36 = scmp.ne.s32.totalorder %s22, %s23
    %p37 = scmp.eq.s32.totalorder %s15, 1
    %p38 = por %p36, %p37
    %p40 = scmp.ne.s32.totalorder %s23, %s39
    %p41 = scmp.eq.s32.totalorder %s15, 0
    %p42 = por %p40, %p41
    %s44 = sadd.s32 %s43, 1
    %p47 = scmp.eq.s32.totalorder %s9, 1
    %p48 = scmp.ne.s32.totalorder %s43, %s45
    %p49 = scmp.eq.s32.totalorder %s9, 0
    %p50 = por %p48, %p49
    %p51 = scmp.ne.s32.totalorder %s43, %s45
    %p52 = scmp.eq.s32.totalorder %s14, 1
    %p53 = por %p51, %p52
    %p54 = scmp.ne.s32.totalorder %s45, %s46
    %p55 = scmp.eq.s32.totalorder %s14, 0
    %p56 = por %p54, %p55
    %p57 = scmp.ne.s32.totalorder %s45, %s46
    %p58 = scmp.eq.s32.totalorder %s15, 1
    %p59 = por %p57, %p58
    %p61 = scmp.ne.s32.totalorder %s46, %s60
    %p62 = scmp.eq.s32.totalorder %s15, 0
    %p63 = por %p61, %p62
    %s65 = sadd.s32 %s64, 1
    %p68 = scmp.eq.s32.totalorder %s9, 1
    %p69 = scmp.ne.s32.totalorder %s64, %s66
    %p70 = scmp.eq.s32.totalorder %s9, 0
    %p71 = por %p69, %p70
    %p72 = scmp.ne.s32.totalorder %s64, %s66
    %p73 = scmp.eq.s32.totalorder %s14, 1
    %p74 = por %p72, %p73
    %p75 = scmp.ne.s32.totalorder %s66, %s67
    %p76 = scmp.eq.s32.totalorder %s14, 0
    %p77 = por %p75, %p76
    %p78 = scmp.ne.s32.totalorder %s66, %s67
    %p79 = scmp.eq.s32.totalorder %s15, 1
    %p80 = por %p78, %p79
    %p82 = scmp.ne.s32.totalorder %s67, %s81
    %p83 = scmp.eq.s32.totalorder %s15, 0
    %p84 = por %p82, %p83
    %s85 = ssub.s32 %s9, %s16
    %p86 = scmp.eq.s32.totalorder %s85, 0
    %s88 = sadd.s32 %s87, 1
    %s89 = scalar_select %p86, %s87, %s88
    %p92 = pneg %p86
    %p93 = scmp.eq.s32.totalorder %s9, 1
    %p94 = por %p92, %p93
    %p95 = scmp.ne.s32.totalorder %s87, %s90
    %p96 = scmp.eq.s32.totalorder %s9, 0
    %p97 = por %p95, %p96
    %p98 = scmp.ne.s32.totalorder %s87, %s90
    %p99 = scmp.eq.s32.totalorder %s14, 1
    %p100 = por %p98, %p99
    %p101 = scmp.ne.s32.totalorder %s90, %s91
    %p102 = scmp.eq.s32.totalorder %s14, 0
    %p103 = por %p101, %p102
    %p104 = scmp.ne.s32.totalorder %s90, %s91
    %p105 = scmp.eq.s32.totalorder %s15, 1
    %p106 = por %p104, %p105
    %p108 = scmp.ne.s32.totalorder %s91, %s107
    %p109 = scmp.eq.s32.totalorder %s15, 0
    %p110 = por %p108, %p109
    %p111 = scmp.le.s32.totalorder 1, %s9
    %p112 = scmp.lt.s32.totalorder %s9, 3
    %p113 = pnand %p111, %p112
    %p114 = pneg %p113
    // Predicated region
    $region9: #{vgg_feature_extractor.7} parent=5 // pred_check
      _
    $region10: #{vgg_feature_extractor.7} parent=5 // pred_check_branch
      %116 = sbr.rel (%p113) target = $region12
    $region11: #{vgg_feature_extractor.7} parent=5 // pred_region
      %s117 = ssub.s32 %s9, 1
      // Predicated region
      $region13: #{vgg_feature_extractor.7} parent=11 // pred_check
        %p118 = pneg %p56
      $region14: #{vgg_feature_extractor.7} parent=11 // pred_check_branch
        %120 = sbr.rel (%p118) target = $region16
      $region15: #{vgg_feature_extractor.7} parent=11 // pred_region
        _
      $region16: #{vgg_feature_extractor.7} parent=11 // pred_fallthru
        _
      // Predicated region
      $region17: #{vgg_feature_extractor.7} parent=11 // pred_check
        %p121 = pneg %p77
      $region18: #{vgg_feature_extractor.7} parent=11 // pred_check_branch
        %123 = sbr.rel (%p121) target = $region20
      $region19: #{vgg_feature_extractor.7} parent=11 // pred_region
        _
      $region20: #{vgg_feature_extractor.7} parent=11 // pred_fallthru
        _
    $region12: #{vgg_feature_extractor.7} parent=5 // pred_fallthru
      _
    %p124 = scmp.lt.s32.totalorder %s9, 2
    // Predicated region
    $region21: #{vgg_feature_extractor.7} parent=5 // pred_check
      %p125 = pneg %p124
    $region22: #{vgg_feature_extractor.7} parent=5 // pred_check_branch
      %127 = sbr.rel (%p125) target = $region24
    $region23: #{vgg_feature_extractor.7} parent=5 // pred_region
      // Predicated region
      $region25: #{vgg_feature_extractor.7} parent=23 // pred_check
        %p128 = pneg %p29
      $region26: #{vgg_feature_extractor.7} parent=23 // pred_check_branch
        %130 = sbr.rel (%p128) target = $region28
      $region27: #{vgg_feature_extractor.7} parent=23 // pred_region
        %p131 = scmp.lt.s32.totalorder %s9, 1
        %s132 = scalar_select %p131, %s9, 1
        %s133 = smul.addr %s132, 64
        %s134 = smul.addr %s133, 4
        %s135 = scalar_lea.vmem %s0, %s134
      $region28: #{vgg_feature_extractor.7} parent=23 // pred_fallthru
        _
    $region24: #{vgg_feature_extractor.7} parent=5 // pred_fallthru
      _
    %p136 = scmp.le.s32.totalorder 1, %s9
    %p137 = scmp.lt.s32.totalorder %s9, 3
    %p138 = pnand %p136, %p137
    %p139 = pneg %p138
    // Predicated region
    $region29: #{vgg_feature_extractor.7} parent=5 // pred_check
      _
    $region30: #{vgg_feature_extractor.7} parent=5 // pred_check_branch
      %141 = sbr.rel (%p138) target = $region32
    $region31: #{vgg_feature_extractor.7} parent=5 // pred_region
      %s142 = ssub.s32 %s9, 1
      %p143 = scmp.lt.s32.totalorder %s14, 1
      %s144 = scalar_select %p143, %s14, 1
      %s145 = smul.addr %s144, 64
      %s146 = smul.addr %s145, 4
      %s147 = scalar_lea.vmem %s0, %s146
      %p148 = pneg %p35
      %p149 = pneg %p32
      %p150 = pneg %p56
      %p151 = pneg %p53
      %p152 = pneg %p77
      %p153 = pneg %p74
      %p154 = pneg %p103
      %p155 = pneg %p100
      %p156 = scmp.lt.s32.totalorder %s14, 1
      %s157 = scalar_select %p156, %s14, 1
      %s158 = smul.addr %s157, 16
      %s159 = smul.addr %s158, 4
      %s160 = scalar_lea.vmem %s3, %s159
      %p161 = scmp.lt.s32.totalorder %s14, 1
      %s162 = scalar_select %p161, %s14, 1
      %s163 = smul.addr %s162, 64
      %s164 = smul.addr %s163, 4
      %s165 = scalar_lea.vmem %s0, %s164
      %p166 = scmp.lt.s32.totalorder %s14, 1
      %s167 = scalar_select %p166, %s14, 1
      %s168 = smul.addr %s167, 16
      %s169 = smul.addr %s168, 4
      %s170 = scalar_lea.vmem %s3, %s169
      %vm172 = vcmask 31744
      %173 = vst.msk [vmem:[#allocation2] sm:$0xff] %vm172, 0.0
      %174 = vst.msk [vmem:[#allocation2 + $0x8] sm:$0xff] %vm172, 0.0
      %vm175 = vcmask 25600
      %176 = vst.msk [vmem:[#allocation2 + $0x10] sm:$0x3] %vm175, 0.0
      %177 = vst.msk [vmem:[#allocation2 + $0x18] sm:$0xff] %vm172, 0.0
      %178 = vst.msk [vmem:[#allocation2 + $0x20] sm:$0xff] %vm172, 0.0
      %179 = vst.msk [vmem:[#allocation2 + $0x28] sm:$0x3] %vm175, 0.0
      %180 = vst.msk [vmem:[#allocation2 + $0x30] sm:$0xff] %vm172, 0.0
      %181 = vst.msk [vmem:[#allocation2 + $0x38] sm:$0xff] %vm172, 0.0
      %182 = vst.msk [vmem:[#allocation2 + $0x40] sm:$0x3] %vm175, 0.0
      %183 = vst.msk [vmem:[#allocation2 + $0x48] sm:$0xff] %vm172, 0.0
      %184 = vst.msk [vmem:[#allocation2 + $0x50] sm:$0xff] %vm172, 0.0
      %185 = vst.msk [vmem:[#allocation2 + $0x58] sm:$0x3] %vm175, 0.0
      %186 = vst.msk [vmem:[#allocation2 + $0x60] sm:$0xff] %vm172, 0.0
      %187 = vst.msk [vmem:[#allocation2 + $0x68] sm:$0xff] %vm172, 0.0
      %188 = vst.msk [vmem:[#allocation2 + $0x70] sm:$0x3] %vm175, 0.0
      %189 = vst.msk [vmem:[#allocation2 + $0x78] sm:$0xff] %vm172, 0.0
      %190 = vst.msk [vmem:[#allocation2 + $0x80] sm:$0xff] %vm172, 0.0
      %191 = vst.msk [vmem:[#allocation2 + $0x88] sm:$0x3] %vm175, 0.0
      %192 = vst.msk [vmem:[#allocation2 + $0x90] sm:$0xff] %vm172, 0.0
      %193 = vst.msk [vmem:[#allocation2 + $0x98] sm:$0xff] %vm172, 0.0
      %194 = vst.msk [vmem:[#allocation2 + $0xa0] sm:$0x3] %vm175, 0.0
      %195 = vst.msk [vmem:[#allocation2 + $0xa8] sm:$0xff] %vm172, 0.0
      %196 = vst.msk [vmem:[#allocation2 + $0xb0] sm:$0xff] %vm172, 0.0
      %197 = vst.msk [vmem:[#allocation2 + $0xb8] sm:$0x3] %vm175, 0.0
      %198 = vst.msk [vmem:[#allocation2 + $0xc0] sm:$0xff] %vm172, 0.0
      %199 = vst.msk [vmem:[#allocation2 + $0xc8] sm:$0xff] %vm172, 0.0
      %200 = vst.msk [vmem:[#allocation2 + $0xd0] sm:$0x3] %vm175, 0.0
      %201 = vst.msk [vmem:[#allocation2 + $0xd8] sm:$0xff] %vm172, 0.0
      %202 = vst.msk [vmem:[#allocation2 + $0xe0] sm:$0xff] %vm172, 0.0
      %203 = vst.msk [vmem:[#allocation2 + $0xe8] sm:$0x3] %vm175, 0.0
      %204 = vst.msk [vmem:[#allocation2 + $0xf0] sm:$0xff] %vm172, 0.0
      %205 = vst.msk [vmem:[#allocation2 + $0xf8] sm:$0xff] %vm172, 0.0
      %206 = vst.msk [vmem:[#allocation2 + $0x100] sm:$0x3] %vm175, 0.0
      %207 = vst.msk [vmem:[#allocation2 + $0x108] sm:$0xff] %vm172, 0.0
      %208 = vst.msk [vmem:[#allocation2 + $0x110] sm:$0xff] %vm172, 0.0
      %209 = vst.msk [vmem:[#allocation2 + $0x118] sm:$0x3] %vm175, 0.0
      %210 = vst.msk [vmem:[#allocation2 + $0x120] sm:$0xff] %vm172, 0.0
      %211 = vst.msk [vmem:[#allocation2 + $0x128] sm:$0xff] %vm172, 0.0
      %212 = vst.msk [vmem:[#allocation2 + $0x130] sm:$0x3] %vm175, 0.0
      %213 = vst.msk [vmem:[#allocation2 + $0x138] sm:$0xff] %vm172, 0.0
      %214 = vst.msk [vmem:[#allocation2 + $0x140] sm:$0xff] %vm172, 0.0
      %215 = vst.msk [vmem:[#allocation2 + $0x148] sm:$0x3] %vm175, 0.0
      %216 = vst.msk [vmem:[#allocation2 + $0x150] sm:$0xff] %vm172, 0.0
      %217 = vst.msk [vmem:[#allocation2 + $0x158] sm:$0xff] %vm172, 0.0
      %218 = vst.msk [vmem:[#allocation2 + $0x160] sm:$0x3] %vm175, 0.0
      %219 = vst.msk [vmem:[#allocation2 + $0x168] sm:$0xff] %vm172, 0.0
      %220 = vst.msk [vmem:[#allocation2 + $0x170] sm:$0xff] %vm172, 0.0
      %221 = vst.msk [vmem:[#allocation2 + $0x178] sm:$0x3] %vm175, 0.0
      %222 = vst.msk [vmem:[#allocation2 + $0x180] sm:$0xff] %vm172, 0.0
      %223 = vst.msk [vmem:[#allocation2 + $0x188] sm:$0xff] %vm172, 0.0
      %224 = vst.msk [vmem:[#allocation2 + $0x190] sm:$0x3] %vm175, 0.0
      %225 = vst.msk [vmem:[#allocation2 + $0x198] sm:$0xff] %vm172, 0.0
      %226 = vst.msk [vmem:[#allocation2 + $0x1a0] sm:$0xff] %vm172, 0.0
      %227 = vst.msk [vmem:[#allocation2 + $0x1a8] sm:$0x3] %vm175, 0.0
      %228 = vst.msk [vmem:[#allocation2 + $0x1b0] sm:$0xff] %vm172, 0.0
      %229 = vst.msk [vmem:[#allocation2 + $0x1b8] sm:$0xff] %vm172, 0.0
      %230 = vst.msk [vmem:[#allocation2 + $0x1c0] sm:$0x3] %vm175, 0.0
      %231 = vst.msk [vmem:[#allocation2 + $0x1c8] sm:$0xff] %vm172, 0.0
      %232 = vst.msk [vmem:[#allocation2 + $0x1d0] sm:$0xff] %vm172, 0.0
      %233 = vst.msk [vmem:[#allocation2 + $0x1d8] sm:$0x3] %vm175, 0.0
      %234 = vst.msk [vmem:[#allocation2 + $0x1e0] sm:$0xff] %vm172, 0.0
      %235 = vst.msk [vmem:[#allocation2 + $0x1e8] sm:$0xff] %vm172, 0.0
      %236 = vst.msk [vmem:[#allocation2 + $0x1f0] sm:$0x3] %vm175, 0.0
      %237 = vst.msk [vmem:[#allocation2 + $0x1f8] sm:$0xff] %vm172, 0.0
      %238 = vst.msk [vmem:[#allocation2 + $0x200] sm:$0xff] %vm172, 0.0
      %239 = vst.msk [vmem:[#allocation2 + $0x208] sm:$0x3] %vm175, 0.0
      %240 = vst.msk [vmem:[#allocation2 + $0x210] sm:$0xff] %vm172, 0.0
      %241 = vst.msk [vmem:[#allocation2 + $0x218] sm:$0xff] %vm172, 0.0
      %242 = vst.msk [vmem:[#allocation2 + $0x220] sm:$0x3] %vm175, 0.0
      %243 = vst.msk [vmem:[#allocation2 + $0x228] sm:$0xff] %vm172, 0.0
      %244 = vst.msk [vmem:[#allocation2 + $0x230] sm:$0xff] %vm172, 0.0
      %245 = vst.msk [vmem:[#allocation2 + $0x238] sm:$0x3] %vm175, 0.0
      %246 = vst.msk [vmem:[#allocation2 + $0x240] sm:$0xff] %vm172, 0.0
      %247 = vst.msk [vmem:[#allocation2 + $0x248] sm:$0xff] %vm172, 0.0
      %248 = vst.msk [vmem:[#allocation2 + $0x250] sm:$0x3] %vm175, 0.0
      %249 = vst.msk [vmem:[#allocation2 + $0x258] sm:$0xff] %vm172, 0.0
      %250 = vst.msk [vmem:[#allocation2 + $0x260] sm:$0xff] %vm172, 0.0
      %251 = vst.msk [vmem:[#allocation2 + $0x268] sm:$0x3] %vm175, 0.0
      %252 = vst.msk [vmem:[#allocation2 + $0x270] sm:$0xff] %vm172, 0.0
      %253 = vst.msk [vmem:[#allocation2 + $0x278] sm:$0xff] %vm172, 0.0
      %254 = vst.msk [vmem:[#allocation2 + $0x280] sm:$0x3] %vm175, 0.0
      %255 = vst.msk [vmem:[#allocation2 + $0x288] sm:$0xff] %vm172, 0.0
      %256 = vst.msk [vmem:[#allocation2 + $0x290] sm:$0xff] %vm172, 0.0
      %257 = vst.msk [vmem:[#allocation2 + $0x298] sm:$0x3] %vm175, 0.0
      %258 = vst.msk [vmem:[#allocation2 + $0x2a0] sm:$0xff] %vm172, 0.0
      %259 = vst.msk [vmem:[#allocation2 + $0x2a8] sm:$0xff] %vm172, 0.0
      %260 = vst.msk [vmem:[#allocation2 + $0x2b0] sm:$0x3] %vm175, 0.0
      %261 = vst.msk [vmem:[#allocation2 + $0x2b8] sm:$0xff] %vm172, 0.0
      %262 = vst.msk [vmem:[#allocation2 + $0x2c0] sm:$0xff] %vm172, 0.0
      %263 = vst.msk [vmem:[#allocation2 + $0x2c8] sm:$0x3] %vm175, 0.0
      %264 = vst.msk [vmem:[#allocation2 + $0x2d0] sm:$0xff] %vm172, 0.0
      %265 = vst.msk [vmem:[#allocation2 + $0x2d8] sm:$0xff] %vm172, 0.0
      %266 = vst.msk [vmem:[#allocation2 + $0x2e0] sm:$0x3] %vm175, 0.0
      %267 = vst.msk [vmem:[#allocation2 + $0x2e8] sm:$0xff] %vm172, 0.0
      %268 = vst.msk [vmem:[#allocation2 + $0x2f0] sm:$0xff] %vm172, 0.0
      %269 = vst.msk [vmem:[#allocation2 + $0x2f8] sm:$0x3] %vm175, 0.0
      %270 = vst.msk [vmem:[#allocation2 + $0x300] sm:$0xff] %vm172, 0.0
      %271 = vst.msk [vmem:[#allocation2 + $0x308] sm:$0xff] %vm172, 0.0
      %272 = vst.msk [vmem:[#allocation2 + $0x310] sm:$0x3] %vm175, 0.0
      %273 = vst.msk [vmem:[#allocation2 + $0x318] sm:$0xff] %vm172, 0.0
      %274 = vst.msk [vmem:[#allocation2 + $0x320] sm:$0xff] %vm172, 0.0
      %275 = vst.msk [vmem:[#allocation2 + $0x328] sm:$0x3] %vm175, 0.0
      %v276 = vld [vmem:[%s165] sm:$0xf]
      %v277 = vld [vmem:[%s165 + $0x4] sm:$0xf]
      %v278 = vld [vmem:[%s165 + $0x8] sm:$0xf]
      %v279 = vld [vmem:[%s165 + $0xc] sm:$0xf]
      %v280 = vld [vmem:[%s165 + $0x10] sm:$0xf]
      %v281 = vld [vmem:[%s165 + $0x14] sm:$0xf]
      %v282 = vld [vmem:[%s165 + $0x18] sm:$0xf]
      %v283 = vld [vmem:[%s165 + $0x1c] sm:$0xf]
      %v284 = vld [vmem:[%s165 + $0x20] sm:$0xf]
      %v285 = vld [vmem:[%s165 + $0x24] sm:$0xf]
      %v286 = vld [vmem:[%s165 + $0x28] sm:$0xf]
      %v287 = vld [vmem:[%s165 + $0x2c] sm:$0xf]
      %v288 = vld [vmem:[%s165 + $0x30] sm:$0xf]
      %v289 = vld [vmem:[%s165 + $0x34] sm:$0xf]
      %v290 = vld [vmem:[%s165 + $0x38] sm:$0xf]
      %v291 = vld [vmem:[%s165 + $0x3c] sm:$0xf]
      %v292 = vld [vmem:[%s165 + $0x40] sm:$0xf]
      %v293 = vld [vmem:[%s165 + $0x44] sm:$0xf]
      %v294 = vld [vmem:[%s165 + $0x48] sm:$0xf]
      %v295 = vld [vmem:[%s165 + $0x4c] sm:$0xf]
      %v296 = vld [vmem:[%s165 + $0x50] sm:$0xf]
      %v297 = vld [vmem:[%s165 + $0x54] sm:$0xf]
      %v298 = vld [vmem:[%s165 + $0x58] sm:$0xf]
      %v299 = vld [vmem:[%s165 + $0x5c] sm:$0xf]
      %v300 = vld [vmem:[%s165 + $0x60] sm:$0xf]
      %v301 = vld [vmem:[%s165 + $0x64] sm:$0xf]
      %v302 = vld [vmem:[%s165 + $0x68] sm:$0xf]
      %v303 = vld [vmem:[%s165 + $0x6c] sm:$0xf]
      %v304 = vld [vmem:[%s165 + $0x70] sm:$0xf]
      %v305 = vld [vmem:[%s165 + $0x74] sm:$0xf]
      %v306 = vld [vmem:[%s165 + $0x78] sm:$0xf]
      %v307 = vld [vmem:[%s165 + $0x7c] sm:$0xf]
      %v308 = vld [vmem:[%s165 + $0x80] sm:$0xf]
      %v309 = vld [vmem:[%s165 + $0x84] sm:$0xf]
      %v310 = vld [vmem:[%s165 + $0x88] sm:$0xf]
      %v311 = vld [vmem:[%s165 + $0x8c] sm:$0xf]
      %v312 = vld [vmem:[%s165 + $0x90] sm:$0xf]
      %v313 = vld [vmem:[%s165 + $0x94] sm:$0xf]
      %v314 = vld [vmem:[%s165 + $0x98] sm:$0xf]
      %v315 = vld [vmem:[%s165 + $0x9c] sm:$0xf]
      %v316 = vld [vmem:[%s165 + $0xa0] sm:$0xf]
      %v317 = vld [vmem:[%s165 + $0xa4] sm:$0xf]
      %v318 = vld [vmem:[%s165 + $0xa8] sm:$0xf]
      %v319 = vld [vmem:[%s165 + $0xac] sm:$0xf]
      %v320 = vld [vmem:[%s165 + $0xb0] sm:$0xf]
      %v321 = vld [vmem:[%s165 + $0xb4] sm:$0xf]
      %v322 = vld [vmem:[%s165 + $0xb8] sm:$0xf]
      %v323 = vld [vmem:[%s165 + $0xbc] sm:$0xf]
      %v324 = vld [vmem:[%s165 + $0xc0] sm:$0xf]
      %v325 = vld [vmem:[%s165 + $0xc4] sm:$0xf]
      %v326 = vld [vmem:[%s165 + $0xc8] sm:$0xf]
      %v327 = vld [vmem:[%s165 + $0xcc] sm:$0xf]
      %v328 = vld [vmem:[%s165 + $0xd0] sm:$0xf]
      %v329 = vld [vmem:[%s165 + $0xd4] sm:$0xf]
      %v330 = vld [vmem:[%s165 + $0xd8] sm:$0xf]
      %v331 = vld [vmem:[%s165 + $0xdc] sm:$0xf]
      %v332 = vld [vmem:[%s165 + $0xe0] sm:$0xf]
      %v333 = vld [vmem:[%s165 + $0xe4] sm:$0xf]
      %v334 = vld [vmem:[%s165 + $0xe8] sm:$0xf]
      %v335 = vld [vmem:[%s165 + $0xec] sm:$0xf]
      %v336 = vld [vmem:[%s165 + $0xf0] sm:$0xf]
      %v337 = vld [vmem:[%s165 + $0xf4] sm:$0xf]
      %v338 = vld [vmem:[%s165 + $0xf8] sm:$0xf]
      %v339 = vld [vmem:[%s165 + $0xfc] sm:$0xf]
      %v340 = vunpack.c.l.bf16 %v276
      %v341 = vunpack.c.l.bf16 %v277
      %v342 = vunpack.c.l.bf16 %v278
      %v343 = vunpack.c.l.bf16 %v279
      %v344 = vunpack.c.l.bf16 %v280
      %v345 = vunpack.c.l.bf16 %v281
      %v346 = vunpack.c.l.bf16 %v282
      %v347 = vunpack.c.l.bf16 %v283
      %v348 = vunpack.c.l.bf16 %v284
      %v349 = vunpack.c.l.bf16 %v285
      %v350 = vunpack.c.l.bf16 %v286
      %v351 = vunpack.c.l.bf16 %v287
      %v352 = vunpack.c.l.bf16 %v288
      %v353 = vunpack.c.l.bf16 %v289
      %v354 = vunpack.c.l.bf16 %v290
      %v355 = vunpack.c.l.bf16 %v291
      %v356 = vunpack.c.l.bf16 %v292
      %v357 = vunpack.c.l.bf16 %v293
      %v358 = vunpack.c.l.bf16 %v294
      %v359 = vunpack.c.l.bf16 %v295
      %v360 = vunpack.c.l.bf16 %v296
      %v361 = vunpack.c.l.bf16 %v297
      %v362 = vunpack.c.l.bf16 %v298
      %v363 = vunpack.c.l.bf16 %v299
      %v364 = vunpack.c.l.bf16 %v300
      %v365 = vunpack.c.l.bf16 %v301
      %v366 = vunpack.c.l.bf16 %v302
      %v367 = vunpack.c.l.bf16 %v303
      %v368 = vunpack.c.l.bf16 %v304
      %v369 = vunpack.c.l.bf16 %v305
      %v370 = vunpack.c.l.bf16 %v306
      %v371 = vunpack.c.l.bf16 %v307
      %v372 = vunpack.c.l.bf16 %v308
      %v373 = vunpack.c.l.bf16 %v309
      %v374 = vunpack.c.l.bf16 %v310
      %v375 = vunpack.c.l.bf16 %v311
      %v376 = vunpack.c.l.bf16 %v312
      %v377 = vunpack.c.l.bf16 %v313
      %v378 = vunpack.c.l.bf16 %v314
      %v379 = vunpack.c.l.bf16 %v315
      %v380 = vunpack.c.l.bf16 %v316
      %v381 = vunpack.c.l.bf16 %v317
      %v382 = vunpack.c.l.bf16 %v318
      %v383 = vunpack.c.l.bf16 %v319
      %v384 = vunpack.c.l.bf16 %v320
      %v385 = vunpack.c.l.bf16 %v321
      %v386 = vunpack.c.l.bf16 %v322
      %v387 = vunpack.c.l.bf16 %v323
      %v388 = vunpack.c.l.bf16 %v324
      %v389 = vunpack.c.l.bf16 %v325
      %v390 = vunpack.c.l.bf16 %v326
      %v391 = vunpack.c.l.bf16 %v327
      %v392 = vunpack.c.l.bf16 %v328
      %v393 = vunpack.c.l.bf16 %v329
      %v394 = vunpack.c.l.bf16 %v330
      %v395 = vunpack.c.l.bf16 %v331
      %v396 = vunpack.c.l.bf16 %v332
      %v397 = vunpack.c.l.bf16 %v333
      %v398 = vunpack.c.l.bf16 %v334
      %v399 = vunpack.c.l.bf16 %v335
      %v400 = vunpack.c.l.bf16 %v336
      %v401 = vunpack.c.l.bf16 %v337
      %v402 = vunpack.c.l.bf16 %v338
      %v403 = vunpack.c.l.bf16 %v339
      %s404 = scalar_lea.vmem [#allocation2], 24
      %405 = vst.msk [vmem:[%s404 + $0x1] sm:$0xff] %vm172, %v340
      %406 = vst.msk [vmem:[%s404 + $0x9] sm:$0xff] %vm172, %v341
      %407 = vst.msk [vmem:[%s404 + $0x19] sm:$0xff] %vm172, %v342
      %408 = vst.msk [vmem:[%s404 + $0x21] sm:$0xff] %vm172, %v343
      %409 = vst.msk [vmem:[%s404 + $0x31] sm:$0xff] %vm172, %v344
      %410 = vst.msk [vmem:[%s404 + $0x39] sm:$0xff] %vm172, %v345
      %411 = vst.msk [vmem:[%s404 + $0x49] sm:$0xff] %vm172, %v346
      %412 = vst.msk [vmem:[%s404 + $0x51] sm:$0xff] %vm172, %v347
      %413 = vst.msk [vmem:[%s404 + $0x61] sm:$0xff] %vm172, %v348
      %414 = vst.msk [vmem:[%s404 + $0x69] sm:$0xff] %vm172, %v349
      %415 = vst.msk [vmem:[%s404 + $0x79] sm:$0xff] %vm172, %v350
      %416 = vst.msk [vmem:[%s404 + $0x81] sm:$0xff] %vm172, %v351
      %417 = vst.msk [vmem:[%s404 + $0x91] sm:$0xff] %vm172, %v352
      %418 = vst.msk [vmem:[%s404 + $0x99] sm:$0xff] %vm172, %v353
      %419 = vst.msk [vmem:[%s404 + $0xa9] sm:$0xff] %vm172, %v354
      %420 = vst.msk [vmem:[%s404 + $0xb1] sm:$0xff] %vm172, %v355
      %421 = vst.msk [vmem:[%s404 + $0xc1] sm:$0xff] %vm172, %v356
      %422 = vst.msk [vmem:[%s404 + $0xc9] sm:$0xff] %vm172, %v357
      %423 = vst.msk [vmem:[%s404 + $0xd9] sm:$0xff] %vm172, %v358
      %424 = vst.msk [vmem:[%s404 + $0xe1] sm:$0xff] %vm172, %v359
      %425 = vst.msk [vmem:[%s404 + $0xf1] sm:$0xff] %vm172, %v360
      %426 = vst.msk [vmem:[%s404 + $0xf9] sm:$0xff] %vm172, %v361
      %427 = vst.msk [vmem:[%s404 + $0x109] sm:$0xff] %vm172, %v362
      %428 = vst.msk [vmem:[%s404 + $0x111] sm:$0xff] %vm172, %v363
      %429 = vst.msk [vmem:[%s404 + $0x121] sm:$0xff] %vm172, %v364
      %430 = vst.msk [vmem:[%s404 + $0x129] sm:$0xff] %vm172, %v365
      %431 = vst.msk [vmem:[%s404 + $0x139] sm:$0xff] %vm172, %v366
      %432 = vst.msk [vmem:[%s404 + $0x141] sm:$0xff] %vm172, %v367
      %433 = vst.msk [vmem:[%s404 + $0x151] sm:$0xff] %vm172, %v368
      %434 = vst.msk [vmem:[%s404 + $0x159] sm:$0xff] %vm172, %v369
      %435 = vst.msk [vmem:[%s404 + $0x169] sm:$0xff] %vm172, %v370
      %436 = vst.msk [vmem:[%s404 + $0x171] sm:$0xff] %vm172, %v371
      %437 = vst.msk [vmem:[%s404 + $0x181] sm:$0xff] %vm172, %v372
      %438 = vst.msk [vmem:[%s404 + $0x189] sm:$0xff] %vm172, %v373
      %439 = vst.msk [vmem:[%s404 + $0x199] sm:$0xff] %vm172, %v374
      %440 = vst.msk [vmem:[%s404 + $0x1a1] sm:$0xff] %vm172, %v375
      %441 = vst.msk [vmem:[%s404 + $0x1b1] sm:$0xff] %vm172, %v376
      %442 = vst.msk [vmem:[%s404 + $0x1b9] sm:$0xff] %vm172, %v377
      %443 = vst.msk [vmem:[%s404 + $0x1c9] sm:$0xff] %vm172, %v378
      %444 = vst.msk [vmem:[%s404 + $0x1d1] sm:$0xff] %vm172, %v379
      %445 = vst.msk [vmem:[%s404 + $0x1e1] sm:$0xff] %vm172, %v380
      %446 = vst.msk [vmem:[%s404 + $0x1e9] sm:$0xff] %vm172, %v381
      %447 = vst.msk [vmem:[%s404 + $0x1f9] sm:$0xff] %vm172, %v382
      %448 = vst.msk [vmem:[%s404 + $0x201] sm:$0xff] %vm172, %v383
      %449 = vst.msk [vmem:[%s404 + $0x211] sm:$0xff] %vm172, %v384
      %450 = vst.msk [vmem:[%s404 + $0x219] sm:$0xff] %vm172, %v385
      %451 = vst.msk [vmem:[%s404 + $0x229] sm:$0xff] %vm172, %v386
      %452 = vst.msk [vmem:[%s404 + $0x231] sm:$0xff] %vm172, %v387
      %453 = vst.msk [vmem:[%s404 + $0x241] sm:$0xff] %vm172, %v388
      %454 = vst.msk [vmem:[%s404 + $0x249] sm:$0xff] %vm172, %v389
      %455 = vst.msk [vmem:[%s404 + $0x259] sm:$0xff] %vm172, %v390
      %456 = vst.msk [vmem:[%s404 + $0x261] sm:$0xff] %vm172, %v391
      %457 = vst.msk [vmem:[%s404 + $0x271] sm:$0xff] %vm172, %v392
      %458 = vst.msk [vmem:[%s404 + $0x279] sm:$0xff] %vm172, %v393
      %459 = vst.msk [vmem:[%s404 + $0x289] sm:$0xff] %vm172, %v394
      %460 = vst.msk [vmem:[%s404 + $0x291] sm:$0xff] %vm172, %v395
      %461 = vst.msk [vmem:[%s404 + $0x2a1] sm:$0xff] %vm172, %v396
      %462 = vst.msk [vmem:[%s404 + $0x2a9] sm:$0xff] %vm172, %v397
      %463 = vst.msk [vmem:[%s404 + $0x2b9] sm:$0xff] %vm172, %v398
      %464 = vst.msk [vmem:[%s404 + $0x2c1] sm:$0xff] %vm172, %v399
      %465 = vst.msk [vmem:[%s404 + $0x2d1] sm:$0xff] %vm172, %v400
      %466 = vst.msk [vmem:[%s404 + $0x2d9] sm:$0xff] %vm172, %v401
      %467 = vst.msk [vmem:[%s404 + $0x2e9] sm:$0xff] %vm172, %v402
      %468 = vst.msk [vmem:[%s404 + $0x2f1] sm:$0xff] %vm172, %v403
      %v469 = vld [vmem:[#allocation2] sm:$0xff]
      %v470 = vld [vmem:[#allocation2 + $0x8] sm:$0xff]
      %v471 = vld [vmem:[#allocation2 + $0x18] sm:$0xff]
      %v472 = vld [vmem:[#allocation2 + $0x20] sm:$0xff]
      %v473 = vld [vmem:[#allocation2 + $0x30] sm:$0xff]
      %v474 = vld [vmem:[#allocation2 + $0x38] sm:$0xff]
      %v475 = vld [vmem:[#allocation2 + $0x48] sm:$0xff]
      %v476 = vld [vmem:[#allocation2 + $0x50] sm:$0xff]
      %v477 = vld [vmem:[#allocation2 + $0x60] sm:$0xff]
      %v478 = vld [vmem:[#allocation2 + $0x68] sm:$0xff]
      %v479 = vld [vmem:[#allocation2 + $0x78] sm:$0xff]
      %v480 = vld [vmem:[#allocation2 + $0x80] sm:$0xff]
      %v481 = vld [vmem:[#allocation2 + $0x90] sm:$0xff]
      %v482 = vld [vmem:[#allocation2 + $0x98] sm:$0xff]
      %v483 = vld [vmem:[#allocation2 + $0xa8] sm:$0xff]
      %v484 = vld [vmem:[#allocation2 + $0xb0] sm:$0xff]
      %v485 = vld [vmem:[#allocation2 + $0xc0] sm:$0xff]
      %v486 = vld [vmem:[#allocation2 + $0xc8] sm:$0xff]
      %v487 = vld [vmem:[#allocation2 + $0xd8] sm:$0xff]
      %v488 = vld [vmem:[#allocation2 + $0xe0] sm:$0xff]
      %v489 = vld [vmem:[#allocation2 + $0xf0] sm:$0xff]
      %v490 = vld [vmem:[#allocation2 + $0xf8] sm:$0xff]
      %v491 = vld [vmem:[#allocation2 + $0x108] sm:$0xff]
      %v492 = vld [vmem:[#allocation2 + $0x110] sm:$0xff]
      %v493 = vld [vmem:[#allocation2 + $0x120] sm:$0xff]
      %v494 = vld [vmem:[#allocation2 + $0x128] sm:$0xff]
      %v495 = vld [vmem:[#allocation2 + $0x138] sm:$0xff]
      %v496 = vld [vmem:[#allocation2 + $0x140] sm:$0xff]
      %v497 = vld [vmem:[#allocation2 + $0x150] sm:$0xff]
      %v498 = vld [vmem:[#allocation2 + $0x158] sm:$0xff]
      %v499 = vld [vmem:[#allocation2 + $0x168] sm:$0xff]
      %v500 = vld [vmem:[#allocation2 + $0x170] sm:$0xff]
      %v501 = vld [vmem:[#allocation2 + $0x180] sm:$0xff]
      %v502 = vld [vmem:[#allocation2 + $0x188] sm:$0xff]
      %v503 = vld [vmem:[#allocation2 + $0x198] sm:$0xff]
      %v504 = vld [vmem:[#allocation2 + $0x1a0] sm:$0xff]
      %v505 = vld [vmem:[#allocation2 + $0x1b0] sm:$0xff]
      %v506 = vld [vmem:[#allocation2 + $0x1b8] sm:$0xff]
      %v507 = vld [vmem:[#allocation2 + $0x1c8] sm:$0xff]
      %v508 = vld [vmem:[#allocation2 + $0x1d0] sm:$0xff]
      %v509 = vld [vmem:[#allocation2 + $0x1e0] sm:$0xff]
      %v510 = vld [vmem:[#allocation2 + $0x1e8] sm:$0xff]
      %v511 = vld [vmem:[#allocation2 + $0x1f8] sm:$0xff]
      %v512 = vld [vmem:[#allocation2 + $0x200] sm:$0xff]
      %v513 = vld [vmem:[#allocation2 + $0x210] sm:$0xff]
      %v514 = vld [vmem:[#allocation2 + $0x218] sm:$0xff]
      %v515 = vld [vmem:[#allocation2 + $0x228] sm:$0xff]
      %v516 = vld [vmem:[#allocation2 + $0x230] sm:$0xff]
      %v517 = vld [vmem:[#allocation2 + $0x240] sm:$0xff]
      %v518 = vld [vmem:[#allocation2 + $0x248] sm:$0xff]
      %v519 = vld [vmem:[#allocation2 + $0x258] sm:$0xff]
      %v520 = vld [vmem:[#allocation2 + $0x260] sm:$0xff]
      %v521 = vld [vmem:[#allocation2 + $0x270] sm:$0xff]
      %v522 = vld [vmem:[#allocation2 + $0x278] sm:$0xff]
      %v523 = vld [vmem:[#allocation2 + $0x288] sm:$0xff]
      %v524 = vld [vmem:[#allocation2 + $0x290] sm:$0xff]
      %v525 = vld [vmem:[#allocation2 + $0x2a0] sm:$0xff]
      %v526 = vld [vmem:[#allocation2 + $0x2a8] sm:$0xff]
      %v527 = vld [vmem:[#allocation2 + $0x2b8] sm:$0xff]
      %v528 = vld [vmem:[#allocation2 + $0x2c0] sm:$0xff]
      %v529 = vld [vmem:[#allocation2 + $0x2d0] sm:$0xff]
      %v530 = vld [vmem:[#allocation2 + $0x2d8] sm:$0xff]
      %v531 = vld [vmem:[#allocation2 + $0x2e8] sm:$0xff]
      %v532 = vld [vmem:[#allocation2 + $0x2f0] sm:$0xff]
      %v533 = vpack.c.bf16 %v470, %v469
      %v534 = vpack.c.bf16 %v472, %v471
      %v535 = vpack.c.bf16 %v474, %v473
      %v536 = vpack.c.bf16 %v476, %v475
      %v537 = vpack.c.bf16 %v478, %v477
      %v538 = vpack.c.bf16 %v480, %v479
      %v539 = vpack.c.bf16 %v482, %v481
      %v540 = vpack.c.bf16 %v484, %v483
      %v541 = vpack.c.bf16 %v486, %v485
      %v542 = vpack.c.bf16 %v488, %v487
      %v543 = vpack.c.bf16 %v490, %v489
      %v544 = vpack.c.bf16 %v492, %v491
      %v545 = vpack.c.bf16 %v494, %v493
      %v546 = vpack.c.bf16 %v496, %v495
      %v547 = vpack.c.bf16 %v498, %v497
      %v548 = vpack.c.bf16 %v500, %v499
      %v549 = vpack.c.bf16 %v502, %v501
      %v550 = vpack.c.bf16 %v504, %v503
      %v551 = vpack.c.bf16 %v506, %v505
      %v552 = vpack.c.bf16 %v508, %v507
      %v553 = vpack.c.bf16 %v510, %v509
      %v554 = vpack.c.bf16 %v512, %v511
      %v555 = vpack.c.bf16 %v514, %v513
      %v556 = vpack.c.bf16 %v516, %v515
      %v557 = vpack.c.bf16 %v518, %v517
      %v558 = vpack.c.bf16 %v520, %v519
      %v559 = vpack.c.bf16 %v522, %v521
      %v560 = vpack.c.bf16 %v524, %v523
      %v561 = vpack.c.bf16 %v526, %v525
      %v562 = vpack.c.bf16 %v528, %v527
      %v563 = vpack.c.bf16 %v530, %v529
      %v564 = vpack.c.bf16 %v532, %v531
      %565 = vst.msk [vmem:[#allocation3] sm:$0xff] %vm172, %v533
      %566 = vst.msk [vmem:[#allocation3 + $0x8] sm:$0xff] %vm172, %v534
      %567 = vst.msk [vmem:[#allocation3 + $0x10] sm:$0xff] %vm172, %v535
      %568 = vst.msk [vmem:[#allocation3 + $0x18] sm:$0xff] %vm172, %v536
      %569 = vst.msk [vmem:[#allocation3 + $0x20] sm:$0xff] %vm172, %v537
      %570 = vst.msk [vmem:[#allocation3 + $0x28] sm:$0xff] %vm172, %v538
      %571 = vst.msk [vmem:[#allocation3 + $0x30] sm:$0xff] %vm172, %v539
      %572 = vst.msk [vmem:[#allocation3 + $0x38] sm:$0xff] %vm172, %v540
      %573 = vst.msk [vmem:[#allocation3 + $0x40] sm:$0xff] %vm172, %v541
      %574 = vst.msk [vmem:[#allocation3 + $0x48] sm:$0xff] %vm172, %v542
      %575 = vst.msk [vmem:[#allocation3 + $0x50] sm:$0xff] %vm172, %v543
      %576 = vst.msk [vmem:[#allocation3 + $0x58] sm:$0xff] %vm172, %v544
      %577 = vst.msk [vmem:[#allocation3 + $0x60] sm:$0xff] %vm172, %v545
      %578 = vst.msk [vmem:[#allocation3 + $0x68] sm:$0xff] %vm172, %v546
      %579 = vst.msk [vmem:[#allocation3 + $0x70] sm:$0xff] %vm172, %v547
      %580 = vst.msk [vmem:[#allocation3 + $0x78] sm:$0xff] %vm172, %v548
      %581 = vst.msk [vmem:[#allocation3 + $0x80] sm:$0xff] %vm172, %v549
      %582 = vst.msk [vmem:[#allocation3 + $0x88] sm:$0xff] %vm172, %v550
      %583 = vst.msk [vmem:[#allocation3 + $0x90] sm:$0xff] %vm172, %v551
      %584 = vst.msk [vmem:[#allocation3 + $0x98] sm:$0xff] %vm172, %v552
      %585 = vst.msk [vmem:[#allocation3 + $0xa0] sm:$0xff] %vm172, %v553
      %586 = vst.msk [vmem:[#allocation3 + $0xa8] sm:$0xff] %vm172, %v554
      %587 = vst.msk [vmem:[#allocation3 + $0xb0] sm:$0xff] %vm172, %v555
      %588 = vst.msk [vmem:[#allocation3 + $0xb8] sm:$0xff] %vm172, %v556
      %589 = vst.msk [vmem:[#allocation3 + $0xc0] sm:$0xff] %vm172, %v557
      %590 = vst.msk [vmem:[#allocation3 + $0xc8] sm:$0xff] %vm172, %v558
      %591 = vst.msk [vmem:[#allocation3 + $0xd0] sm:$0xff] %vm172, %v559
      %592 = vst.msk [vmem:[#allocation3 + $0xd8] sm:$0xff] %vm172, %v560
      %593 = vst.msk [vmem:[#allocation3 + $0xe0] sm:$0xff] %vm172, %v561
      %594 = vst.msk [vmem:[#allocation3 + $0xe8] sm:$0xff] %vm172, %v562
      %595 = vst.msk [vmem:[#allocation3 + $0xf0] sm:$0xff] %vm172, %v563
      %596 = vst.msk [vmem:[#allocation3 + $0xf8] sm:$0xff] %vm172, %v564
      %v597 = vld [vmem:[#allocation2 + $0x1] sm:$0xff]
      %v598 = vld [vmem:[#allocation2 + $0x9] sm:$0xff]
      %v599 = vld [vmem:[#allocation2 + $0x19] sm:$0xff]
      %v600 = vld [vmem:[#allocation2 + $0x21] sm:$0xff]
      %v601 = vld [vmem:[#allocation2 + $0x31] sm:$0xff]
      %v602 = vld [vmem:[#allocation2 + $0x39] sm:$0xff]
      %v603 = vld [vmem:[#allocation2 + $0x49] sm:$0xff]
      %v604 = vld [vmem:[#allocation2 + $0x51] sm:$0xff]
      %v605 = vld [vmem:[#allocation2 + $0x61] sm:$0xff]
      %v606 = vld [vmem:[#allocation2 + $0x69] sm:$0xff]
      %v607 = vld [vmem:[#allocation2 + $0x79] sm:$0xff]
      %v608 = vld [vmem:[#allocation2 + $0x81] sm:$0xff]
      %v609 = vld [vmem:[#allocation2 + $0x91] sm:$0xff]
      %v610 = vld [vmem:[#allocation2 + $0x99] sm:$0xff]
      %v611 = vld [vmem:[#allocation2 + $0xa9] sm:$0xff]
      %v612 = vld [vmem:[#allocation2 + $0xb1] sm:$0xff]
      %v613 = vld [vmem:[#allocation2 + $0xc1] sm:$0xff]
      %v614 = vld [vmem:[#allocation2 + $0xc9] sm:$0xff]
      %v615 = vld [vmem:[#allocation2 + $0xd9] sm:$0xff]
      %v616 = vld [vmem:[#allocation2 + $0xe1] sm:$0xff]
      %v617 = vld [vmem:[#allocation2 + $0xf1] sm:$0xff]
      %v618 = vld [vmem:[#allocation2 + $0xf9] sm:$0xff]
      %v619 = vld [vmem:[#allocation2 + $0x109] sm:$0xff]
      %v620 = vld [vmem:[#allocation2 + $0x111] sm:$0xff]
      %v621 = vld [vmem:[#allocation2 + $0x121] sm:$0xff]
      %v622 = vld [vmem:[#allocation2 + $0x129] sm:$0xff]
      %v623 = vld [vmem:[#allocation2 + $0x139] sm:$0xff]
      %v624 = vld [vmem:[#allocation2 + $0x141] sm:$0xff]
      %v625 = vld [vmem:[#allocation2 + $0x151] sm:$0xff]
      %v626 = vld [vmem:[#allocation2 + $0x159] sm:$0xff]
      %v627 = vld [vmem:[#allocation2 + $0x169] sm:$0xff]
      %v628 = vld [vmem:[#allocation2 + $0x171] sm:$0xff]
      %v629 = vld [vmem:[#allocation2 + $0x181] sm:$0xff]
      %v630 = vld [vmem:[#allocation2 + $0x189] sm:$0xff]
      %v631 = vld [vmem:[#allocation2 + $0x199] sm:$0xff]
      %v632 = vld [vmem:[#allocation2 + $0x1a1] sm:$0xff]
      %v633 = vld [vmem:[#allocation2 + $0x1b1] sm:$0xff]
      %v634 = vld [vmem:[#allocation2 + $0x1b9] sm:$0xff]
      %v635 = vld [vmem:[#allocation2 + $0x1c9] sm:$0xff]
      %v636 = vld [vmem:[#allocation2 + $0x1d1] sm:$0xff]
      %v637 = vld [vmem:[#allocation2 + $0x1e1] sm:$0xff]
      %v638 = vld [vmem:[#allocation2 + $0x1e9] sm:$0xff]
      %v639 = vld [vmem:[#allocation2 + $0x1f9] sm:$0xff]
      %v640 = vld [vmem:[#allocation2 + $0x201] sm:$0xff]
      %v641 = vld [vmem:[#allocation2 + $0x211] sm:$0xff]
      %v642 = vld [vmem:[#allocation2 + $0x219] sm:$0xff]
      %v643 = vld [vmem:[#allocation2 + $0x229] sm:$0xff]
      %v644 = vld [vmem:[#allocation2 + $0x231] sm:$0xff]
      %v645 = vld [vmem:[#allocation2 + $0x241] sm:$0xff]
      %v646 = vld [vmem:[#allocation2 + $0x249] sm:$0xff]
      %v647 = vld [vmem:[#allocation2 + $0x259] sm:$0xff]
      %v648 = vld [vmem:[#allocation2 + $0x261] sm:$0xff]
      %v649 = vld [vmem:[#allocation2 + $0x271] sm:$0xff]
      %v650 = vld [vmem:[#allocation2 + $0x279] sm:$0xff]
      %v651 = vld [vmem:[#allocation2 + $0x289] sm:$0xff]
      %v652 = vld [vmem:[#allocation2 + $0x291] sm:$0xff]
      %v653 = vld [vmem:[#allocation2 + $0x2a1] sm:$0xff]
      %v654 = vld [vmem:[#allocation2 + $0x2a9] sm:$0xff]
      %v655 = vld [vmem:[#allocation2 + $0x2b9] sm:$0xff]
      %v656 = vld [vmem:[#allocation2 + $0x2c1] sm:$0xff]
      %v657 = vld [vmem:[#allocation2 + $0x2d1] sm:$0xff]
      %v658 = vld [vmem:[#allocation2 + $0x2d9] sm:$0xff]
      %v659 = vld [vmem:[#allocation2 + $0x2e9] sm:$0xff]
      %v660 = vld [vmem:[#allocation2 + $0x2f1] sm:$0xff]
      %v661 = vpack.c.bf16 %v598, %v597
      %v662 = vpack.c.bf16 %v600, %v599
      %v663 = vpack.c.bf16 %v602, %v601
      %v664 = vpack.c.bf16 %v604, %v603
      %v665 = vpack.c.bf16 %v606, %v605
      %v666 = vpack.c.bf16 %v608, %v607
      %v667 = vpack.c.bf16 %v610, %v609
      %v668 = vpack.c.bf16 %v612, %v611
      %v669 = vpack.c.bf16 %v614, %v613
      %v670 = vpack.c.bf16 %v616, %v615
      %v671 = vpack.c.bf16 %v618, %v617
      %v672 = vpack.c.bf16 %v620, %v619
      %v673 = vpack.c.bf16 %v622, %v621
      %v674 = vpack.c.bf16 %v624, %v623
      %v675 = vpack.c.bf16 %v626, %v625
      %v676 = vpack.c.bf16 %v628, %v627
      %v677 = vpack.c.bf16 %v630, %v629
      %v678 = vpack.c.bf16 %v632, %v631
      %v679 = vpack.c.bf16 %v634, %v633
      %v680 = vpack.c.bf16 %v636, %v635
      %v681 = vpack.c.bf16 %v638, %v637
      %v682 = vpack.c.bf16 %v640, %v639
      %v683 = vpack.c.bf16 %v642, %v641
      %v684 = vpack.c.bf16 %v644, %v643
      %v685 = vpack.c.bf16 %v646, %v645
      %v686 = vpack.c.bf16 %v648, %v647
      %v687 = vpack.c.bf16 %v650, %v649
      %v688 = vpack.c.bf16 %v652, %v651
      %v689 = vpack.c.bf16 %v654, %v653
      %v690 = vpack.c.bf16 %v656, %v655
      %v691 = vpack.c.bf16 %v658, %v657
      %v692 = vpack.c.bf16 %v660, %v659
      %725 = vrot.lane.b32.xlu0 %v661, 4
      %v726 = vpop.permute.xlu0 %725
      %727 = vrot.lane.b32.xlu0 %v662, 4
      %v728 = vpop.permute.xlu0 %727
      %729 = vrot.lane.b32.xlu0 %v663, 4
      %v730 = vpop.permute.xlu0 %729
      %731 = vrot.lane.b32.xlu0 %v664, 4
      %v732 = vpop.permute.xlu0 %731
      %733 = vrot.lane.b32.xlu0 %v665, 4
      %v734 = vpop.permute.xlu0 %733
      %735 = vrot.lane.b32.xlu0 %v666, 4
      %v736 = vpop.permute.xlu0 %735
      %737 = vrot.lane.b32.xlu0 %v667, 4
      %v738 = vpop.permute.xlu0 %737
      %739 = vrot.lane.b32.xlu0 %v668, 4
      %v740 = vpop.permute.xlu0 %739
      %741 = vrot.lane.b32.xlu0 %v669, 4
      %v742 = vpop.permute.xlu0 %741
      %743 = vrot.lane.b32.xlu0 %v670, 4
      %v744 = vpop.permute.xlu0 %743
      %745 = vrot.lane.b32.xlu0 %v671, 4
      %v746 = vpop.permute.xlu0 %745
      %747 = vrot.lane.b32.xlu0 %v672, 4
      %v748 = vpop.permute.xlu0 %747
      %749 = vrot.lane.b32.xlu0 %v673, 4
      %v750 = vpop.permute.xlu0 %749
      %751 = vrot.lane.b32.xlu0 %v674, 4
      %v752 = vpop.permute.xlu0 %751
      %753 = vrot.lane.b32.xlu0 %v675, 4
      %v754 = vpop.permute.xlu0 %753
      %755 = vrot.lane.b32.xlu0 %v676, 4
      %v756 = vpop.permute.xlu0 %755
      %757 = vrot.lane.b32.xlu0 %v677, 4
      %v758 = vpop.permute.xlu0 %757
      %759 = vrot.lane.b32.xlu0 %v678, 4
      %v760 = vpop.permute.xlu0 %759
      %761 = vrot.lane.b32.xlu0 %v679, 4
      %v762 = vpop.permute.xlu0 %761
      %763 = vrot.lane.b32.xlu0 %v680, 4
      %v764 = vpop.permute.xlu0 %763
      %765 = vrot.lane.b32.xlu0 %v681, 4
      %v766 = vpop.permute.xlu0 %765
      %767 = vrot.lane.b32.xlu0 %v682, 4
      %v768 = vpop.permute.xlu0 %767
      %769 = vrot.lane.b32.xlu0 %v683, 4
      %v770 = vpop.permute.xlu0 %769
      %771 = vrot.lane.b32.xlu0 %v684, 4
      %v772 = vpop.permute.xlu0 %771
      %773 = vrot.lane.b32.xlu0 %v685, 4
      %v774 = vpop.permute.xlu0 %773
      %775 = vrot.lane.b32.xlu0 %v686, 4
      %v776 = vpop.permute.xlu0 %775
      %777 = vrot.lane.b32.xlu0 %v687, 4
      %v778 = vpop.permute.xlu0 %777
      %779 = vrot.lane.b32.xlu0 %v688, 4
      %v780 = vpop.permute.xlu0 %779
      %781 = vrot.lane.b32.xlu0 %v689, 4
      %v782 = vpop.permute.xlu0 %781
      %783 = vrot.lane.b32.xlu0 %v690, 4
      %v784 = vpop.permute.xlu0 %783
      %785 = vrot.lane.b32.xlu0 %v691, 4
      %v786 = vpop.permute.xlu0 %785
      %787 = vrot.lane.b32.xlu0 %v692, 4
      %v788 = vpop.permute.xlu0 %787
      %vm821 = vcmask 64544
      %822 = vst.msk [vmem:[#allocation3] sm:$0xff] %vm821, %v726
      %823 = vst.msk [vmem:[#allocation3 + $0x8] sm:$0xff] %vm821, %v728
      %824 = vst.msk [vmem:[#allocation3 + $0x10] sm:$0xff] %vm821, %v730
      %825 = vst.msk [vmem:[#allocation3 + $0x18] sm:$0xff] %vm821, %v732
      %826 = vst.msk [vmem:[#allocation3 + $0x20] sm:$0xff] %vm821, %v734
      %827 = vst.msk [vmem:[#allocation3 + $0x28] sm:$0xff] %vm821, %v736
      %828 = vst.msk [vmem:[#allocation3 + $0x30] sm:$0xff] %vm821, %v738
      %829 = vst.msk [vmem:[#allocation3 + $0x38] sm:$0xff] %vm821, %v740
      %830 = vst.msk [vmem:[#allocation3 + $0x40] sm:$0xff] %vm821, %v742
      %831 = vst.msk [vmem:[#allocation3 + $0x48] sm:$0xff] %vm821, %v744
      %832 = vst.msk [vmem:[#allocation3 + $0x50] sm:$0xff] %vm821, %v746
      %833 = vst.msk [vmem:[#allocation3 + $0x58] sm:$0xff] %vm821, %v748
      %834 = vst.msk [vmem:[#allocation3 + $0x60] sm:$0xff] %vm821, %v750
      %835 = vst.msk [vmem:[#allocation3 + $0x68] sm:$0xff] %vm821, %v752
      %836 = vst.msk [vmem:[#allocation3 + $0x70] sm:$0xff] %vm821, %v754
      %837 = vst.msk [vmem:[#allocation3 + $0x78] sm:$0xff] %vm821, %v756
      %838 = vst.msk [vmem:[#allocation3 + $0x80] sm:$0xff] %vm821, %v758
      %839 = vst.msk [vmem:[#allocation3 + $0x88] sm:$0xff] %vm821, %v760
      %840 = vst.msk [vmem:[#allocation3 + $0x90] sm:$0xff] %vm821, %v762
      %841 = vst.msk [vmem:[#allocation3 + $0x98] sm:$0xff] %vm821, %v764
      %842 = vst.msk [vmem:[#allocation3 + $0xa0] sm:$0xff] %vm821, %v766
      %843 = vst.msk [vmem:[#allocation3 + $0xa8] sm:$0xff] %vm821, %v768
      %844 = vst.msk [vmem:[#allocation3 + $0xb0] sm:$0xff] %vm821, %v770
      %845 = vst.msk [vmem:[#allocation3 + $0xb8] sm:$0xff] %vm821, %v772
      %846 = vst.msk [vmem:[#allocation3 + $0xc0] sm:$0xff] %vm821, %v774
      %847 = vst.msk [vmem:[#allocation3 + $0xc8] sm:$0xff] %vm821, %v776
      %848 = vst.msk [vmem:[#allocation3 + $0xd0] sm:$0xff] %vm821, %v778
      %849 = vst.msk [vmem:[#allocation3 + $0xd8] sm:$0xff] %vm821, %v780
      %850 = vst.msk [vmem:[#allocation3 + $0xe0] sm:$0xff] %vm821, %v782
      %851 = vst.msk [vmem:[#allocation3 + $0xe8] sm:$0xff] %vm821, %v784
      %852 = vst.msk [vmem:[#allocation3 + $0xf0] sm:$0xff] %vm821, %v786
      %853 = vst.msk [vmem:[#allocation3 + $0xf8] sm:$0xff] %vm821, %v788
      %v854 = vld [vmem:[#allocation2 + $0x2] sm:$0xff]
      %v855 = vld [vmem:[#allocation2 + $0xa] sm:$0xff]
      %v856 = vld [vmem:[#allocation2 + $0x1a] sm:$0xff]
      %v857 = vld [vmem:[#allocation2 + $0x22] sm:$0xff]
      %v858 = vld [vmem:[#allocation2 + $0x32] sm:$0xff]
      %v859 = vld [vmem:[#allocation2 + $0x3a] sm:$0xff]
      %v860 = vld [vmem:[#allocation2 + $0x4a] sm:$0xff]
      %v861 = vld [vmem:[#allocation2 + $0x52] sm:$0xff]
      %v862 = vld [vmem:[#allocation2 + $0x62] sm:$0xff]
      %v863 = vld [vmem:[#allocation2 + $0x6a] sm:$0xff]
      %v864 = vld [vmem:[#allocation2 + $0x7a] sm:$0xff]
      %v865 = vld [vmem:[#allocation2 + $0x82] sm:$0xff]
      %v866 = vld [vmem:[#allocation2 + $0x92] sm:$0xff]
      %v867 = vld [vmem:[#allocation2 + $0x9a] sm:$0xff]
      %v868 = vld [vmem:[#allocation2 + $0xaa] sm:$0xff]
      %v869 = vld [vmem:[#allocation2 + $0xb2] sm:$0xff]
      %v870 = vld [vmem:[#allocation2 + $0xc2] sm:$0xff]
      %v871 = vld [vmem:[#allocation2 + $0xca] sm:$0xff]
      %v872 = vld [vmem:[#allocation2 + $0xda] sm:$0xff]
      %v873 = vld [vmem:[#allocation2 + $0xe2] sm:$0xff]
      %v874 = vld [vmem:[#allocation2 + $0xf2] sm:$0xff]
      %v875 = vld [vmem:[#allocation2 + $0xfa] sm:$0xff]
      %v876 = vld [vmem:[#allocation2 + $0x10a] sm:$0xff]
      %v877 = vld [vmem:[#allocation2 + $0x112] sm:$0xff]
      %v878 = vld [vmem:[#allocation2 + $0x122] sm:$0xff]
      %v879 = vld [vmem:[#allocation2 + $0x12a] sm:$0xff]
      %v880 = vld [vmem:[#allocation2 + $0x13a] sm:$0xff]
      %v881 = vld [vmem:[#allocation2 + $0x142] sm:$0xff]
      %v882 = vld [vmem:[#allocation2 + $0x152] sm:$0xff]
      %v883 = vld [vmem:[#allocation2 + $0x15a] sm:$0xff]
      %v884 = vld [vmem:[#allocation2 + $0x16a] sm:$0xff]
      %v885 = vld [vmem:[#allocation2 + $0x172] sm:$0xff]
      %v886 = vld [vmem:[#allocation2 + $0x182] sm:$0xff]
      %v887 = vld [vmem:[#allocation2 + $0x18a] sm:$0xff]
      %v888 = vld [vmem:[#allocation2 + $0x19a] sm:$0xff]
      %v889 = vld [vmem:[#allocation2 + $0x1a2] sm:$0xff]
      %v890 = vld [vmem:[#allocation2 + $0x1b2] sm:$0xff]
      %v891 = vld [vmem:[#allocation2 + $0x1ba] sm:$0xff]
      %v892 = vld [vmem:[#allocation2 + $0x1ca] sm:$0xff]
      %v893 = vld [vmem:[#allocation2 + $0x1d2] sm:$0xff]
      %v894 = vld [vmem:[#allocation2 + $0x1e2] sm:$0xff]
      %v895 = vld [vmem:[#allocation2 + $0x1ea] sm:$0xff]
      %v896 = vld [vmem:[#allocation2 + $0x1fa] sm:$0xff]
      %v897 = vld [vmem:[#allocation2 + $0x202] sm:$0xff]
      %v898 = vld [vmem:[#allocation2 + $0x212] sm:$0xff]
      %v899 = vld [vmem:[#allocation2 + $0x21a] sm:$0xff]
      %v900 = vld [vmem:[#allocation2 + $0x22a] sm:$0xff]
      %v901 = vld [vmem:[#allocation2 + $0x232] sm:$0xff]
      %v902 = vld [vmem:[#allocation2 + $0x242] sm:$0xff]
      %v903 = vld [vmem:[#allocation2 + $0x24a] sm:$0xff]
      %v904 = vld [vmem:[#allocation2 + $0x25a] sm:$0xff]
      %v905 = vld [vmem:[#allocation2 + $0x262] sm:$0xff]
      %v906 = vld [vmem:[#allocation2 + $0x272] sm:$0xff]
      %v907 = vld [vmem:[#allocation2 + $0x27a] sm:$0xff]
      %v908 = vld [vmem:[#allocation2 + $0x28a] sm:$0xff]
      %v909 = vld [vmem:[#allocation2 + $0x292] sm:$0xff]
      %v910 = vld [vmem:[#allocation2 + $0x2a2] sm:$0xff]
      %v911 = vld [vmem:[#allocation2 + $0x2aa] sm:$0xff]
      %v912 = vld [vmem:[#allocation2 + $0x2ba] sm:$0xff]
      %v913 = vld [vmem:[#allocation2 + $0x2c2] sm:$0xff]
      %v914 = vld [vmem:[#allocation2 + $0x2d2] sm:$0xff]
      %v915 = vld [vmem:[#allocation2 + $0x2da] sm:$0xff]
      %v916 = vld [vmem:[#allocation2 + $0x2ea] sm:$0xff]
      %v917 = vld [vmem:[#allocation2 + $0x2f2] sm:$0xff]
      %v918 = vpack.c.bf16 %v855, %v854
      %v919 = vpack.c.bf16 %v857, %v856
      %v920 = vpack.c.bf16 %v859, %v858
      %v921 = vpack.c.bf16 %v861, %v860
      %v922 = vpack.c.bf16 %v863, %v862
      %v923 = vpack.c.bf16 %v865, %v864
      %v924 = vpack.c.bf16 %v867, %v866
      %v925 = vpack.c.bf16 %v869, %v868
      %v926 = vpack.c.bf16 %v871, %v870
      %v927 = vpack.c.bf16 %v873, %v872
      %v928 = vpack.c.bf16 %v875, %v874
      %v929 = vpack.c.bf16 %v877, %v876
      %v930 = vpack.c.bf16 %v879, %v878
      %v931 = vpack.c.bf16 %v881, %v880
      %v932 = vpack.c.bf16 %v883, %v882
      %v933 = vpack.c.bf16 %v885, %v884
      %v934 = vpack.c.bf16 %v887, %v886
      %v935 = vpack.c.bf16 %v889, %v888
      %v936 = vpack.c.bf16 %v891, %v890
      %v937 = vpack.c.bf16 %v893, %v892
      %v938 = vpack.c.bf16 %v895, %v894
      %v939 = vpack.c.bf16 %v897, %v896
      %v940 = vpack.c.bf16 %v899, %v898
      %v941 = vpack.c.bf16 %v901, %v900
      %v942 = vpack.c.bf16 %v903, %v902
      %v943 = vpack.c.bf16 %v905, %v904
      %v944 = vpack.c.bf16 %v907, %v906
      %v945 = vpack.c.bf16 %v909, %v908
      %v946 = vpack.c.bf16 %v911, %v910
      %v947 = vpack.c.bf16 %v913, %v912
      %v948 = vpack.c.bf16 %v915, %v914
      %v949 = vpack.c.bf16 %v917, %v916
      %982 = vrot.lane.b32.xlu0 %v918, 8
      %v983 = vpop.permute.xlu0 %982
      %984 = vrot.lane.b32.xlu0 %v919, 8
      %v985 = vpop.permute.xlu0 %984
      %986 = vrot.lane.b32.xlu0 %v920, 8
      %v987 = vpop.permute.xlu0 %986
      %988 = vrot.lane.b32.xlu0 %v921, 8
      %v989 = vpop.permute.xlu0 %988
      %990 = vrot.lane.b32.xlu0 %v922, 8
      %v991 = vpop.permute.xlu0 %990
      %992 = vrot.lane.b32.xlu0 %v923, 8
      %v993 = vpop.permute.xlu0 %992
      %994 = vrot.lane.b32.xlu0 %v924, 8
      %v995 = vpop.permute.xlu0 %994
      %996 = vrot.lane.b32.xlu0 %v925, 8
      %v997 = vpop.permute.xlu0 %996
      %998 = vrot.lane.b32.xlu0 %v926, 8
      %v999 = vpop.permute.xlu0 %998
      %1000 = vrot.lane.b32.xlu0 %v927, 8
      %v1001 = vpop.permute.xlu0 %1000
      %1002 = vrot.lane.b32.xlu0 %v928, 8
      %v1003 = vpop.permute.xlu0 %1002
      %1004 = vrot.lane.b32.xlu0 %v929, 8
      %v1005 = vpop.permute.xlu0 %1004
      %1006 = vrot.lane.b32.xlu0 %v930, 8
      %v1007 = vpop.permute.xlu0 %1006
      %1008 = vrot.lane.b32.xlu0 %v931, 8
      %v1009 = vpop.permute.xlu0 %1008
      %1010 = vrot.lane.b32.xlu0 %v932, 8
      %v1011 = vpop.permute.xlu0 %1010
      %1012 = vrot.lane.b32.xlu0 %v933, 8
      %v1013 = vpop.permute.xlu0 %1012
      %1014 = vrot.lane.b32.xlu0 %v934, 8
      %v1015 = vpop.permute.xlu0 %1014
      %1016 = vrot.lane.b32.xlu0 %v935, 8
      %v1017 = vpop.permute.xlu0 %1016
      %1018 = vrot.lane.b32.xlu0 %v936, 8
      %v1019 = vpop.permute.xlu0 %1018
      %1020 = vrot.lane.b32.xlu0 %v937, 8
      %v1021 = vpop.permute.xlu0 %1020
      %1022 = vrot.lane.b32.xlu0 %v938, 8
      %v1023 = vpop.permute.xlu0 %1022
      %1024 = vrot.lane.b32.xlu0 %v939, 8
      %v1025 = vpop.permute.xlu0 %1024
      %1026 = vrot.lane.b32.xlu0 %v940, 8
      %v1027 = vpop.permute.xlu0 %1026
      %1028 = vrot.lane.b32.xlu0 %v941, 8
      %v1029 = vpop.permute.xlu0 %1028
      %1030 = vrot.lane.b32.xlu0 %v942, 8
      %v1031 = vpop.permute.xlu0 %1030
      %1032 = vrot.lane.b32.xlu0 %v943, 8
      %v1033 = vpop.permute.xlu0 %1032
      %1034 = vrot.lane.b32.xlu0 %v944, 8
      %v1035 = vpop.permute.xlu0 %1034
      %1036 = vrot.lane.b32.xlu0 %v945, 8
      %v1037 = vpop.permute.xlu0 %1036
      %1038 = vrot.lane.b32.xlu0 %v946, 8
      %v1039 = vpop.permute.xlu0 %1038
      %1040 = vrot.lane.b32.xlu0 %v947, 8
      %v1041 = vpop.permute.xlu0 %1040
      %1042 = vrot.lane.b32.xlu0 %v948, 8
      %v1043 = vpop.permute.xlu0 %1042
      %1044 = vrot.lane.b32.xlu0 %v949, 8
      %v1045 = vpop.permute.xlu0 %1044
      %vm1078 = vcmask 97344
      %1079 = vst.msk [vmem:[#allocation3] sm:$0xff] %vm1078, %v983
      %1080 = vst.msk [vmem:[#allocation3 + $0x8] sm:$0xff] %vm1078, %v985
      %1081 = vst.msk [vmem:[#allocation3 + $0x10] sm:$0xff] %vm1078, %v987
      %1082 = vst.msk [vmem:[#allocation3 + $0x18] sm:$0xff] %vm1078, %v989
      %1083 = vst.msk [vmem:[#allocation3 + $0x20] sm:$0xff] %vm1078, %v991
      %1084 = vst.msk [vmem:[#allocation3 + $0x28] sm:$0xff] %vm1078, %v993
      %1085 = vst.msk [vmem:[#allocation3 + $0x30] sm:$0xff] %vm1078, %v995
      %1086 = vst.msk [vmem:[#allocation3 + $0x38] sm:$0xff] %vm1078, %v997
      %1087 = vst.msk [vmem:[#allocation3 + $0x40] sm:$0xff] %vm1078, %v999
      %1088 = vst.msk [vmem:[#allocation3 + $0x48] sm:$0xff] %vm1078, %v1001
      %1089 = vst.msk [vmem:[#allocation3 + $0x50] sm:$0xff] %vm1078, %v1003
      %1090 = vst.msk [vmem:[#allocation3 + $0x58] sm:$0xff] %vm1078, %v1005
      %1091 = vst.msk [vmem:[#allocation3 + $0x60] sm:$0xff] %vm1078, %v1007
      %1092 = vst.msk [vmem:[#allocation3 + $0x68] sm:$0xff] %vm1078, %v1009
      %1093 = vst.msk [vmem:[#allocation3 + $0x70] sm:$0xff] %vm1078, %v1011
      %1094 = vst.msk [vmem:[#allocation3 + $0x78] sm:$0xff] %vm1078, %v1013
      %1095 = vst.msk [vmem:[#allocation3 + $0x80] sm:$0xff] %vm1078, %v1015
      %1096 = vst.msk [vmem:[#allocation3 + $0x88] sm:$0xff] %vm1078, %v1017
      %1097 = vst.msk [vmem:[#allocation3 + $0x90] sm:$0xff] %vm1078, %v1019
      %1098 = vst.msk [vmem:[#allocation3 + $0x98] sm:$0xff] %vm1078, %v1021
      %1099 = vst.msk [vmem:[#allocation3 + $0xa0] sm:$0xff] %vm1078, %v1023
      %1100 = vst.msk [vmem:[#allocation3 + $0xa8] sm:$0xff] %vm1078, %v1025
      %1101 = vst.msk [vmem:[#allocation3 + $0xb0] sm:$0xff] %vm1078, %v1027
      %1102 = vst.msk [vmem:[#allocation3 + $0xb8] sm:$0xff] %vm1078, %v1029
      %1103 = vst.msk [vmem:[#allocation3 + $0xc0] sm:$0xff] %vm1078, %v1031
      %1104 = vst.msk [vmem:[#allocation3 + $0xc8] sm:$0xff] %vm1078, %v1033
      %1105 = vst.msk [vmem:[#allocation3 + $0xd0] sm:$0xff] %vm1078, %v1035
      %1106 = vst.msk [vmem:[#allocation3 + $0xd8] sm:$0xff] %vm1078, %v1037
      %1107 = vst.msk [vmem:[#allocation3 + $0xe0] sm:$0xff] %vm1078, %v1039
      %1108 = vst.msk [vmem:[#allocation3 + $0xe8] sm:$0xff] %vm1078, %v1041
      %1109 = vst.msk [vmem:[#allocation3 + $0xf0] sm:$0xff] %vm1078, %v1043
      %1110 = vst.msk [vmem:[#allocation3 + $0xf8] sm:$0xff] %vm1078, %v1045
      %v1111 = vld [vmem:[%s404] sm:$0xff]
      %v1112 = vld [vmem:[%s404 + $0x8] sm:$0xff]
      %v1113 = vld [vmem:[%s404 + $0x18] sm:$0xff]
      %v1114 = vld [vmem:[%s404 + $0x20] sm:$0xff]
      %v1115 = vld [vmem:[%s404 + $0x30] sm:$0xff]
      %v1116 = vld [vmem:[%s404 + $0x38] sm:$0xff]
      %v1117 = vld [vmem:[%s404 + $0x48] sm:$0xff]
      %v1118 = vld [vmem:[%s404 + $0x50] sm:$0xff]
      %v1119 = vld [vmem:[%s404 + $0x60] sm:$0xff]
      %v1120 = vld [vmem:[%s404 + $0x68] sm:$0xff]
      %v1121 = vld [vmem:[%s404 + $0x78] sm:$0xff]
      %v1122 = vld [vmem:[%s404 + $0x80] sm:$0xff]
      %v1123 = vld [vmem:[%s404 + $0x90] sm:$0xff]
      %v1124 = vld [vmem:[%s404 + $0x98] sm:$0xff]
      %v1125 = vld [vmem:[%s404 + $0xa8] sm:$0xff]
      %v1126 = vld [vmem:[%s404 + $0xb0] sm:$0xff]
      %v1127 = vld [vmem:[%s404 + $0xc0] sm:$0xff]
      %v1128 = vld [vmem:[%s404 + $0xc8] sm:$0xff]
      %v1129 = vld [vmem:[%s404 + $0xd8] sm:$0xff]
      %v1130 = vld [vmem:[%s404 + $0xe0] sm:$0xff]
      %v1131 = vld [vmem:[%s404 + $0xf0] sm:$0xff]
      %v1132 = vld [vmem:[%s404 + $0xf8] sm:$0xff]
      %v1133 = vld [vmem:[%s404 + $0x108] sm:$0xff]
      %v1134 = vld [vmem:[%s404 + $0x110] sm:$0xff]
      %v1135 = vld [vmem:[%s404 + $0x120] sm:$0xff]
      %v1136 = vld [vmem:[%s404 + $0x128] sm:$0xff]
      %v1137 = vld [vmem:[%s404 + $0x138] sm:$0xff]
      %v1138 = vld [vmem:[%s404 + $0x140] sm:$0xff]
      %v1139 = vld [vmem:[%s404 + $0x150] sm:$0xff]
      %v1140 = vld [vmem:[%s404 + $0x158] sm:$0xff]
      %v1141 = vld [vmem:[%s404 + $0x168] sm:$0xff]
      %v1142 = vld [vmem:[%s404 + $0x170] sm:$0xff]
      %v1143 = vld [vmem:[%s404 + $0x180] sm:$0xff]
      %v1144 = vld [vmem:[%s404 + $0x188] sm:$0xff]
      %v1145 = vld [vmem:[%s404 + $0x198] sm:$0xff]
      %v1146 = vld [vmem:[%s404 + $0x1a0] sm:$0xff]
      %v1147 = vld [vmem:[%s404 + $0x1b0] sm:$0xff]
      %v1148 = vld [vmem:[%s404 + $0x1b8] sm:$0xff]
      %v1149 = vld [vmem:[%s404 + $0x1c8] sm:$0xff]
      %v1150 = vld [vmem:[%s404 + $0x1d0] sm:$0xff]
      %v1151 = vld [vmem:[%s404 + $0x1e0] sm:$0xff]
      %v1152 = vld [vmem:[%s404 + $0x1e8] sm:$0xff]
      %v1153 = vld [vmem:[%s404 + $0x1f8] sm:$0xff]
      %v1154 = vld [vmem:[%s404 + $0x200] sm:$0xff]
      %v1155 = vld [vmem:[%s404 + $0x210] sm:$0xff]
      %v1156 = vld [vmem:[%s404 + $0x218] sm:$0xff]
      %v1157 = vld [vmem:[%s404 + $0x228] sm:$0xff]
      %v1158 = vld [vmem:[%s404 + $0x230] sm:$0xff]
      %v1159 = vld [vmem:[%s404 + $0x240] sm:$0xff]
      %v1160 = vld [vmem:[%s404 + $0x248] sm:$0xff]
      %v1161 = vld [vmem:[%s404 + $0x258] sm:$0xff]
      %v1162 = vld [vmem:[%s404 + $0x260] sm:$0xff]
      %v1163 = vld [vmem:[%s404 + $0x270] sm:$0xff]
      %v1164 = vld [vmem:[%s404 + $0x278] sm:$0xff]
      %v1165 = vld [vmem:[%s404 + $0x288] sm:$0xff]
      %v1166 = vld [vmem:[%s404 + $0x290] sm:$0xff]
      %v1167 = vld [vmem:[%s404 + $0x2a0] sm:$0xff]
      %v1168 = vld [vmem:[%s404 + $0x2a8] sm:$0xff]
      %v1169 = vld [vmem:[%s404 + $0x2b8] sm:$0xff]
      %v1170 = vld [vmem:[%s404 + $0x2c0] sm:$0xff]
      %v1171 = vld [vmem:[%s404 + $0x2d0] sm:$0xff]
      %v1172 = vld [vmem:[%s404 + $0x2d8] sm:$0xff]
      %v1173 = vld [vmem:[%s404 + $0x2e8] sm:$0xff]
      %v1174 = vld [vmem:[%s404 + $0x2f0] sm:$0xff]
      %v1175 = vpack.c.bf16 %v1112, %v1111
      %v1176 = vpack.c.bf16 %v1114, %v1113
      %v1177 = vpack.c.bf16 %v1116, %v1115
      %v1178 = vpack.c.bf16 %v1118, %v1117
      %v1179 = vpack.c.bf16 %v1120, %v1119
      %v1180 = vpack.c.bf16 %v1122, %v1121
      %v1181 = vpack.c.bf16 %v1124, %v1123
      %v1182 = vpack.c.bf16 %v1126, %v1125
      %v1183 = vpack.c.bf16 %v1128, %v1127
      %v1184 = vpack.c.bf16 %v1130, %v1129
      %v1185 = vpack.c.bf16 %v1132, %v1131
      %v1186 = vpack.c.bf16 %v1134, %v1133
      %v1187 = vpack.c.bf16 %v1136, %v1135
      %v1188 = vpack.c.bf16 %v1138, %v1137
      %v1189 = vpack.c.bf16 %v1140, %v1139
      %v1190 = vpack.c.bf16 %v1142, %v1141
      %v1191 = vpack.c.bf16 %v1144, %v1143
      %v1192 = vpack.c.bf16 %v1146, %v1145
      %v1193 = vpack.c.bf16 %v1148, %v1147
      %v1194 = vpack.c.bf16 %v1150, %v1149
      %v1195 = vpack.c.bf16 %v1152, %v1151
      %v1196 = vpack.c.bf16 %v1154, %v1153
      %v1197 = vpack.c.bf16 %v1156, %v1155
      %v1198 = vpack.c.bf16 %v1158, %v1157
      %v1199 = vpack.c.bf16 %v1160, %v1159
      %v1200 = vpack.c.bf16 %v1162, %v1161
      %v1201 = vpack.c.bf16 %v1164, %v1163
      %v1202 = vpack.c.bf16 %v1166, %v1165
      %v1203 = vpack.c.bf16 %v1168, %v1167
      %v1204 = vpack.c.bf16 %v1170, %v1169
      %v1205 = vpack.c.bf16 %v1172, %v1171
      %v1206 = vpack.c.bf16 %v1174, %v1173
      %1239 = vrot.lane.b32.xlu0 %v1175, 12
      %v1240 = vpop.permute.xlu0 %1239
      %1241 = vrot.lane.b32.xlu0 %v1176, 12
      %v1242 = vpop.permute.xlu0 %1241
      %1243 = vrot.lane.b32.xlu0 %v1177, 12
      %v1244 = vpop.permute.xlu0 %1243
      %1245 = vrot.lane.b32.xlu0 %v1178, 12
      %v1246 = vpop.permute.xlu0 %1245
      %1247 = vrot.lane.b32.xlu0 %v1179, 12
      %v1248 = vpop.permute.xlu0 %1247
      %1249 = vrot.lane.b32.xlu0 %v1180, 12
      %v1250 = vpop.permute.xlu0 %1249
      %1251 = vrot.lane.b32.xlu0 %v1181, 12
      %v1252 = vpop.permute.xlu0 %1251
      %1253 = vrot.lane.b32.xlu0 %v1182, 12
      %v1254 = vpop.permute.xlu0 %1253
      %1255 = vrot.lane.b32.xlu0 %v1183, 12
      %v1256 = vpop.permute.xlu0 %1255
      %1257 = vrot.lane.b32.xlu0 %v1184, 12
      %v1258 = vpop.permute.xlu0 %1257
      %1259 = vrot.lane.b32.xlu0 %v1185, 12
      %v1260 = vpop.permute.xlu0 %1259
      %1261 = vrot.lane.b32.xlu0 %v1186, 12
      %v1262 = vpop.permute.xlu0 %1261
      %1263 = vrot.lane.b32.xlu0 %v1187, 12
      %v1264 = vpop.permute.xlu0 %1263
      %1265 = vrot.lane.b32.xlu0 %v1188, 12
      %v1266 = vpop.permute.xlu0 %1265
      %1267 = vrot.lane.b32.xlu0 %v1189, 12
      %v1268 = vpop.permute.xlu0 %1267
      %1269 = vrot.lane.b32.xlu0 %v1190, 12
      %v1270 = vpop.permute.xlu0 %1269
      %1271 = vrot.lane.b32.xlu0 %v1191, 12
      %v1272 = vpop.permute.xlu0 %1271
      %1273 = vrot.lane.b32.xlu0 %v1192, 12
      %v1274 = vpop.permute.xlu0 %1273
      %1275 = vrot.lane.b32.xlu0 %v1193, 12
      %v1276 = vpop.permute.xlu0 %1275
      %1277 = vrot.lane.b32.xlu0 %v1194, 12
      %v1278 = vpop.permute.xlu0 %1277
      %1279 = vrot.lane.b32.xlu0 %v1195, 12
      %v1280 = vpop.permute.xlu0 %1279
      %1281 = vrot.lane.b32.xlu0 %v1196, 12
      %v1282 = vpop.permute.xlu0 %1281
      %1283 = vrot.lane.b32.xlu0 %v1197, 12
      %v1284 = vpop.permute.xlu0 %1283
      %1285 = vrot.lane.b32.xlu0 %v1198, 12
      %v1286 = vpop.permute.xlu0 %1285
      %1287 = vrot.lane.b32.xlu0 %v1199, 12
      %v1288 = vpop.permute.xlu0 %1287
      %1289 = vrot.lane.b32.xlu0 %v1200, 12
      %v1290 = vpop.permute.xlu0 %1289
      %1291 = vrot.lane.b32.xlu0 %v1201, 12
      %v1292 = vpop.permute.xlu0 %1291
      %1293 = vrot.lane.b32.xlu0 %v1202, 12
      %v1294 = vpop.permute.xlu0 %1293
      %1295 = vrot.lane.b32.xlu0 %v1203, 12
      %v1296 = vpop.permute.xlu0 %1295
      %1297 = vrot.lane.b32.xlu0 %v1204, 12
      %v1298 = vpop.permute.xlu0 %1297
      %1299 = vrot.lane.b32.xlu0 %v1205, 12
      %v1300 = vpop.permute.xlu0 %1299
      %1301 = vrot.lane.b32.xlu0 %v1206, 12
      %v1302 = vpop.permute.xlu0 %1301
      %vm1335 = vcmask 130144
      %1336 = vst.msk [vmem:[#allocation3] sm:$0xff] %vm1335, %v1240
      %1337 = vst.msk [vmem:[#allocation3 + $0x8] sm:$0xff] %vm1335, %v1242
      %1338 = vst.msk [vmem:[#allocation3 + $0x10] sm:$0xff] %vm1335, %v1244
      %1339 = vst.msk [vmem:[#allocation3 + $0x18] sm:$0xff] %vm1335, %v1246
      %1340 = vst.msk [vmem:[#allocation3 + $0x20] sm:$0xff] %vm1335, %v1248
      %1341 = vst.msk [vmem:[#allocation3 + $0x28] sm:$0xff] %vm1335, %v1250
      %1342 = vst.msk [vmem:[#allocation3 + $0x30] sm:$0xff] %vm1335, %v1252
      %1343 = vst.msk [vmem:[#allocation3 + $0x38] sm:$0xff] %vm1335, %v1254
      %1344 = vst.msk [vmem:[#allocation3 + $0x40] sm:$0xff] %vm1335, %v1256
      %1345 = vst.msk [vmem:[#allocation3 + $0x48] sm:$0xff] %vm1335, %v1258
      %1346 = vst.msk [vmem:[#allocation3 + $0x50] sm:$0xff] %vm1335, %v1260
      %1347 = vst.msk [vmem:[#allocation3 + $0x58] sm:$0xff] %vm1335, %v1262
      %1348 = vst.msk [vmem:[#allocation3 + $0x60] sm:$0xff] %vm1335, %v1264
      %1349 = vst.msk [vmem:[#allocation3 + $0x68] sm:$0xff] %vm1335, %v1266
      %1350 = vst.msk [vmem:[#allocation3 + $0x70] sm:$0xff] %vm1335, %v1268
      %1351 = vst.msk [vmem:[#allocation3 + $0x78] sm:$0xff] %vm1335, %v1270
      %1352 = vst.msk [vmem:[#allocation3 + $0x80] sm:$0xff] %vm1335, %v1272
      %1353 = vst.msk [vmem:[#allocation3 + $0x88] sm:$0xff] %vm1335, %v1274
      %1354 = vst.msk [vmem:[#allocation3 + $0x90] sm:$0xff] %vm1335, %v1276
      %1355 = vst.msk [vmem:[#allocation3 + $0x98] sm:$0xff] %vm1335, %v1278
      %1356 = vst.msk [vmem:[#allocation3 + $0xa0] sm:$0xff] %vm1335, %v1280
      %1357 = vst.msk [vmem:[#allocation3 + $0xa8] sm:$0xff] %vm1335, %v1282
      %1358 = vst.msk [vmem:[#allocation3 + $0xb0] sm:$0xff] %vm1335, %v1284
      %1359 = vst.msk [vmem:[#allocation3 + $0xb8] sm:$0xff] %vm1335, %v1286
      %1360 = vst.msk [vmem:[#allocation3 + $0xc0] sm:$0xff] %vm1335, %v1288
      %1361 = vst.msk [vmem:[#allocation3 + $0xc8] sm:$0xff] %vm1335, %v1290
      %1362 = vst.msk [vmem:[#allocation3 + $0xd0] sm:$0xff] %vm1335, %v1292
      %1363 = vst.msk [vmem:[#allocation3 + $0xd8] sm:$0xff] %vm1335, %v1294
      %1364 = vst.msk [vmem:[#allocation3 + $0xe0] sm:$0xff] %vm1335, %v1296
      %1365 = vst.msk [vmem:[#allocation3 + $0xe8] sm:$0xff] %vm1335, %v1298
      %1366 = vst.msk [vmem:[#allocation3 + $0xf0] sm:$0xff] %vm1335, %v1300
      %1367 = vst.msk [vmem:[#allocation3 + $0xf8] sm:$0xff] %vm1335, %v1302
      %v1368 = vld [vmem:[%s404 + $0x1] sm:$0xff]
      %v1369 = vld [vmem:[%s404 + $0x9] sm:$0xff]
      %v1370 = vld [vmem:[%s404 + $0x19] sm:$0xff]
      %v1371 = vld [vmem:[%s404 + $0x21] sm:$0xff]
      %v1372 = vld [vmem:[%s404 + $0x31] sm:$0xff]
      %v1373 = vld [vmem:[%s404 + $0x39] sm:$0xff]
      %v1374 = vld [vmem:[%s404 + $0x49] sm:$0xff]
      %v1375 = vld [vmem:[%s404 + $0x51] sm:$0xff]
      %v1376 = vld [vmem:[%s404 + $0x61] sm:$0xff]
      %v1377 = vld [vmem:[%s404 + $0x69] sm:$0xff]
      %v1378 = vld [vmem:[%s404 + $0x79] sm:$0xff]
      %v1379 = vld [vmem:[%s404 + $0x81] sm:$0xff]
      %v1380 = vld [vmem:[%s404 + $0x91] sm:$0xff]
      %v1381 = vld [vmem:[%s404 + $0x99] sm:$0xff]
      %v1382 = vld [vmem:[%s404 + $0xa9] sm:$0xff]
      %v1383 = vld [vmem:[%s404 + $0xb1] sm:$0xff]
      %v1384 = vld [vmem:[%s404 + $0xc1] sm:$0xff]
      %v1385 = vld [vmem:[%s404 + $0xc9] sm:$0xff]
      %v1386 = vld [vmem:[%s404 + $0xd9] sm:$0xff]
      %v1387 = vld [vmem:[%s404 + $0xe1] sm:$0xff]
      %v1388 = vld [vmem:[%s404 + $0xf1] sm:$0xff]
      %v1389 = vld [vmem:[%s404 + $0xf9] sm:$0xff]
      %v1390 = vld [vmem:[%s404 + $0x109] sm:$0xff]
      %v1391 = vld [vmem:[%s404 + $0x111] sm:$0xff]
      %v1392 = vld [vmem:[%s404 + $0x121] sm:$0xff]
      %v1393 = vld [vmem:[%s404 + $0x129] sm:$0xff]
      %v1394 = vld [vmem:[%s404 + $0x139] sm:$0xff]
      %v1395 = vld [vmem:[%s404 + $0x141] sm:$0xff]
      %v1396 = vld [vmem:[%s404 + $0x151] sm:$0xff]
      %v1397 = vld [vmem:[%s404 + $0x159] sm:$0xff]
      %v1398 = vld [vmem:[%s404 + $0x169] sm:$0xff]
      %v1399 = vld [vmem:[%s404 + $0x171] sm:$0xff]
      %v1400 = vld [vmem:[%s404 + $0x181] sm:$0xff]
      %v1401 = vld [vmem:[%s404 + $0x189] sm:$0xff]
      %v1402 = vld [vmem:[%s404 + $0x199] sm:$0xff]
      %v1403 = vld [vmem:[%s404 + $0x1a1] sm:$0xff]
      %v1404 = vld [vmem:[%s404 + $0x1b1] sm:$0xff]
      %v1405 = vld [vmem:[%s404 + $0x1b9] sm:$0xff]
      %v1406 = vld [vmem:[%s404 + $0x1c9] sm:$0xff]
      %v1407 = vld [vmem:[%s404 + $0x1d1] sm:$0xff]
      %v1408 = vld [vmem:[%s404 + $0x1e1] sm:$0xff]
      %v1409 = vld [vmem:[%s404 + $0x1e9] sm:$0xff]
      %v1410 = vld [vmem:[%s404 + $0x1f9] sm:$0xff]
      %v1411 = vld [vmem:[%s404 + $0x201] sm:$0xff]
      %v1412 = vld [vmem:[%s404 + $0x211] sm:$0xff]
      %v1413 = vld [vmem:[%s404 + $0x219] sm:$0xff]
      %v1414 = vld [vmem:[%s404 + $0x229] sm:$0xff]
      %v1415 = vld [vmem:[%s404 + $0x231] sm:$0xff]
      %v1416 = vld [vmem:[%s404 + $0x241] sm:$0xff]
      %v1417 = vld [vmem:[%s404 + $0x249] sm:$0xff]
      %v1418 = vld [vmem:[%s404 + $0x259] sm:$0xff]
      %v1419 = vld [vmem:[%s404 + $0x261] sm:$0xff]
      %v1420 = vld [vmem:[%s404 + $0x271] sm:$0xff]
      %v1421 = vld [vmem:[%s404 + $0x279] sm:$0xff]
      %v1422 = vld [vmem:[%s404 + $0x289] sm:$0xff]
      %v1423 = vld [vmem:[%s404 + $0x291] sm:$0xff]
      %v1424 = vld [vmem:[%s404 + $0x2a1] sm:$0xff]
      %v1425 = vld [vmem:[%s404 + $0x2a9] sm:$0xff]
      %v1426 = vld [vmem:[%s404 + $0x2b9] sm:$0xff]
      %v1427 = vld [vmem:[%s404 + $0x2c1] sm:$0xff]
      %v1428 = vld [vmem:[%s404 + $0x2d1] sm:$0xff]
      %v1429 = vld [vmem:[%s404 + $0x2d9] sm:$0xff]
      %v1430 = vld [vmem:[%s404 + $0x2e9] sm:$0xff]
      %v1431 = vld [vmem:[%s404 + $0x2f1] sm:$0xff]
      %v1432 = vpack.c.bf16 %v1369, %v1368
      %v1433 = vpack.c.bf16 %v1371, %v1370
      %v1434 = vpack.c.bf16 %v1373, %v1372
      %v1435 = vpack.c.bf16 %v1375, %v1374
      %v1436 = vpack.c.bf16 %v1377, %v1376
      %v1437 = vpack.c.bf16 %v1379, %v1378
      %v1438 = vpack.c.bf16 %v1381, %v1380
      %v1439 = vpack.c.bf16 %v1383, %v1382
      %v1440 = vpack.c.bf16 %v1385, %v1384
      %v1441 = vpack.c.bf16 %v1387, %v1386
      %v1442 = vpack.c.bf16 %v1389, %v1388
      %v1443 = vpack.c.bf16 %v1391, %v1390
      %v1444 = vpack.c.bf16 %v1393, %v1392
      %v1445 = vpack.c.bf16 %v1395, %v1394
      %v1446 = vpack.c.bf16 %v1397, %v1396
      %v1447 = vpack.c.bf16 %v1399, %v1398
      %v1448 = vpack.c.bf16 %v1401, %v1400
      %v1449 = vpack.c.bf16 %v1403, %v1402
      %v1450 = vpack.c.bf16 %v1405, %v1404
      %v1451 = vpack.c.bf16 %v1407, %v1406
      %v1452 = vpack.c.bf16 %v1409, %v1408
      %v1453 = vpack.c.bf16 %v1411, %v1410
      %v1454 = vpack.c.bf16 %v1413, %v1412
      %v1455 = vpack.c.bf16 %v1415, %v1414
      %v1456 = vpack.c.bf16 %v1417, %v1416
      %v1457 = vpack.c.bf16 %v1419, %v1418
      %v1458 = vpack.c.bf16 %v1421, %v1420
      %v1459 = vpack.c.bf16 %v1423, %v1422
      %v1460 = vpack.c.bf16 %v1425, %v1424
      %v1461 = vpack.c.bf16 %v1427, %v1426
      %v1462 = vpack.c.bf16 %v1429, %v1428
      %v1463 = vpack.c.bf16 %v1431, %v1430
      %1496 = vrot.lane.b32.xlu0 %v1432, 16
      %v1497 = vpop.permute.xlu0 %1496
      %1498 = vrot.lane.b32.xlu0 %v1433, 16
      %v1499 = vpop.permute.xlu0 %1498
      %1500 = vrot.lane.b32.xlu0 %v1434, 16
      %v1501 = vpop.permute.xlu0 %1500
      %1502 = vrot.lane.b32.xlu0 %v1435, 16
      %v1503 = vpop.permute.xlu0 %1502
      %1504 = vrot.lane.b32.xlu0 %v1436, 16
      %v1505 = vpop.permute.xlu0 %1504
      %1506 = vrot.lane.b32.xlu0 %v1437, 16
      %v1507 = vpop.permute.xlu0 %1506
      %1508 = vrot.lane.b32.xlu0 %v1438, 16
      %v1509 = vpop.permute.xlu0 %1508
      %1510 = vrot.lane.b32.xlu0 %v1439, 16
      %v1511 = vpop.permute.xlu0 %1510
      %1512 = vrot.lane.b32.xlu0 %v1440, 16
      %v1513 = vpop.permute.xlu0 %1512
      %1514 = vrot.lane.b32.xlu0 %v1441, 16
      %v1515 = vpop.permute.xlu0 %1514
      %1516 = vrot.lane.b32.xlu0 %v1442, 16
      %v1517 = vpop.permute.xlu0 %1516
      %1518 = vrot.lane.b32.xlu0 %v1443, 16
      %v1519 = vpop.permute.xlu0 %1518
      %1520 = vrot.lane.b32.xlu0 %v1444, 16
      %v1521 = vpop.permute.xlu0 %1520
      %1522 = vrot.lane.b32.xlu0 %v1445, 16
      %v1523 = vpop.permute.xlu0 %1522
      %1524 = vrot.lane.b32.xlu0 %v1446, 16
      %v1525 = vpop.permute.xlu0 %1524
      %1526 = vrot.lane.b32.xlu0 %v1447, 16
      %v1527 = vpop.permute.xlu0 %1526
      %1528 = vrot.lane.b32.xlu0 %v1448, 16
      %v1529 = vpop.permute.xlu0 %1528
      %1530 = vrot.lane.b32.xlu0 %v1449, 16
      %v1531 = vpop.permute.xlu0 %1530
      %1532 = vrot.lane.b32.xlu0 %v1450, 16
      %v1533 = vpop.permute.xlu0 %1532
      %1534 = vrot.lane.b32.xlu0 %v1451, 16
      %v1535 = vpop.permute.xlu0 %1534
      %1536 = vrot.lane.b32.xlu0 %v1452, 16
      %v1537 = vpop.permute.xlu0 %1536
      %1538 = vrot.lane.b32.xlu0 %v1453, 16
      %v1539 = vpop.permute.xlu0 %1538
      %1540 = vrot.lane.b32.xlu0 %v1454, 16
      %v1541 = vpop.permute.xlu0 %1540
      %1542 = vrot.lane.b32.xlu0 %v1455, 16
      %v1543 = vpop.permute.xlu0 %1542
      %1544 = vrot.lane.b32.xlu0 %v1456, 16
      %v1545 = vpop.permute.xlu0 %1544
      %1546 = vrot.lane.b32.xlu0 %v1457, 16
      %v1547 = vpop.permute.xlu0 %1546
      %1548 = vrot.lane.b32.xlu0 %v1458, 16
      %v1549 = vpop.permute.xlu0 %1548
      %1550 = vrot.lane.b32.xlu0 %v1459, 16
      %v1551 = vpop.permute.xlu0 %1550
      %1552 = vrot.lane.b32.xlu0 %v1460, 16
      %v1553 = vpop.permute.xlu0 %1552
      %1554 = vrot.lane.b32.xlu0 %v1461, 16
      %v1555 = vpop.permute.xlu0 %1554
      %1556 = vrot.lane.b32.xlu0 %v1462, 16
      %v1557 = vpop.permute.xlu0 %1556
      %1558 = vrot.lane.b32.xlu0 %v1463, 16
      %v1559 = vpop.permute.xlu0 %1558
      %vm1592 = vcmask 162944
      %1593 = vst.msk [vmem:[#allocation3] sm:$0xff] %vm1592, %v1497
      %1594 = vst.msk [vmem:[#allocation3 + $0x8] sm:$0xff] %vm1592, %v1499
      %1595 = vst.msk [vmem:[#allocation3 + $0x10] sm:$0xff] %vm1592, %v1501
      %1596 = vst.msk [vmem:[#allocation3 + $0x18] sm:$0xff] %vm1592, %v1503
      %1597 = vst.msk [vmem:[#allocation3 + $0x20] sm:$0xff] %vm1592, %v1505
      %1598 = vst.msk [vmem:[#allocation3 + $0x28] sm:$0xff] %vm1592, %v1507
      %1599 = vst.msk [vmem:[#allocation3 + $0x30] sm:$0xff] %vm1592, %v1509
      %1600 = vst.msk [vmem:[#allocation3 + $0x38] sm:$0xff] %vm1592, %v1511
      %1601 = vst.msk [vmem:[#allocation3 + $0x40] sm:$0xff] %vm1592, %v1513
      %1602 = vst.msk [vmem:[#allocation3 + $0x48] sm:$0xff] %vm1592, %v1515
      %1603 = vst.msk [vmem:[#allocation3 + $0x50] sm:$0xff] %vm1592, %v1517
      %1604 = vst.msk [vmem:[#allocation3 + $0x58] sm:$0xff] %vm1592, %v1519
      %1605 = vst.msk [vmem:[#allocation3 + $0x60] sm:$0xff] %vm1592, %v1521
      %1606 = vst.msk [vmem:[#allocation3 + $0x68] sm:$0xff] %vm1592, %v1523
      %1607 = vst.msk [vmem:[#allocation3 + $0x70] sm:$0xff] %vm1592, %v1525
      %1608 = vst.msk [vmem:[#allocation3 + $0x78] sm:$0xff] %vm1592, %v1527
      %1609 = vst.msk [vmem:[#allocation3 + $0x80] sm:$0xff] %vm1592, %v1529
      %1610 = vst.msk [vmem:[#allocation3 + $0x88] sm:$0xff] %vm1592, %v1531
      %1611 = vst.msk [vmem:[#allocation3 + $0x90] sm:$0xff] %vm1592, %v1533
      %1612 = vst.msk [vmem:[#allocation3 + $0x98] sm:$0xff] %vm1592, %v1535
      %1613 = vst.msk [vmem:[#allocation3 + $0xa0] sm:$0xff] %vm1592, %v1537
      %1614 = vst.msk [vmem:[#allocation3 + $0xa8] sm:$0xff] %vm1592, %v1539
      %1615 = vst.msk [vmem:[#allocation3 + $0xb0] sm:$0xff] %vm1592, %v1541
      %1616 = vst.msk [vmem:[#allocation3 + $0xb8] sm:$0xff] %vm1592, %v1543
      %1617 = vst.msk [vmem:[#allocation3 + $0xc0] sm:$0xff] %vm1592, %v1545
      %1618 = vst.msk [vmem:[#allocation3 + $0xc8] sm:$0xff] %vm1592, %v1547
      %1619 = vst.msk [vmem:[#allocation3 + $0xd0] sm:$0xff] %vm1592, %v1549
      %1620 = vst.msk [vmem:[#allocation3 + $0xd8] sm:$0xff] %vm1592, %v1551
      %1621 = vst.msk [vmem:[#allocation3 + $0xe0] sm:$0xff] %vm1592, %v1553
      %1622 = vst.msk [vmem:[#allocation3 + $0xe8] sm:$0xff] %vm1592, %v1555
      %1623 = vst.msk [vmem:[#allocation3 + $0xf0] sm:$0xff] %vm1592, %v1557
      %1624 = vst.msk [vmem:[#allocation3 + $0xf8] sm:$0xff] %vm1592, %v1559
      %v1625 = vld [vmem:[%s404 + $0x2] sm:$0xff]
      %v1626 = vld [vmem:[%s404 + $0xa] sm:$0xff]
      %v1627 = vld [vmem:[%s404 + $0x1a] sm:$0xff]
      %v1628 = vld [vmem:[%s404 + $0x22] sm:$0xff]
      %v1629 = vld [vmem:[%s404 + $0x32] sm:$0xff]
      %v1630 = vld [vmem:[%s404 + $0x3a] sm:$0xff]
      %v1631 = vld [vmem:[%s404 + $0x4a] sm:$0xff]
      %v1632 = vld [vmem:[%s404 + $0x52] sm:$0xff]
      %v1633 = vld [vmem:[%s404 + $0x62] sm:$0xff]
      %v1634 = vld [vmem:[%s404 + $0x6a] sm:$0xff]
      %v1635 = vld [vmem:[%s404 + $0x7a] sm:$0xff]
      %v1636 = vld [vmem:[%s404 + $0x82] sm:$0xff]
      %v1637 = vld [vmem:[%s404 + $0x92] sm:$0xff]
      %v1638 = vld [vmem:[%s404 + $0x9a] sm:$0xff]
      %v1639 = vld [vmem:[%s404 + $0xaa] sm:$0xff]
      %v1640 = vld [vmem:[%s404 + $0xb2] sm:$0xff]
      %v1641 = vld [vmem:[%s404 + $0xc2] sm:$0xff]
      %v1642 = vld [vmem:[%s404 + $0xca] sm:$0xff]
      %v1643 = vld [vmem:[%s404 + $0xda] sm:$0xff]
      %v1644 = vld [vmem:[%s404 + $0xe2] sm:$0xff]
      %v1645 = vld [vmem:[%s404 + $0xf2] sm:$0xff]
      %v1646 = vld [vmem:[%s404 + $0xfa] sm:$0xff]
      %v1647 = vld [vmem:[%s404 + $0x10a] sm:$0xff]
      %v1648 = vld [vmem:[%s404 + $0x112] sm:$0xff]
      %v1649 = vld [vmem:[%s404 + $0x122] sm:$0xff]
      %v1650 = vld [vmem:[%s404 + $0x12a] sm:$0xff]
      %v1651 = vld [vmem:[%s404 + $0x13a] sm:$0xff]
      %v1652 = vld [vmem:[%s404 + $0x142] sm:$0xff]
      %v1653 = vld [vmem:[%s404 + $0x152] sm:$0xff]
      %v1654 = vld [vmem:[%s404 + $0x15a] sm:$0xff]
      %v1655 = vld [vmem:[%s404 + $0x16a] sm:$0xff]
      %v1656 = vld [vmem:[%s404 + $0x172] sm:$0xff]
      %v1657 = vld [vmem:[%s404 + $0x182] sm:$0xff]
      %v1658 = vld [vmem:[%s404 + $0x18a] sm:$0xff]
      %v1659 = vld [vmem:[%s404 + $0x19a] sm:$0xff]
      %v1660 = vld [vmem:[%s404 + $0x1a2] sm:$0xff]
      %v1661 = vld [vmem:[%s404 + $0x1b2] sm:$0xff]
      %v1662 = vld [vmem:[%s404 + $0x1ba] sm:$0xff]
      %v1663 = vld [vmem:[%s404 + $0x1ca] sm:$0xff]
      %v1664 = vld [vmem:[%s404 + $0x1d2] sm:$0xff]
      %v1665 = vld [vmem:[%s404 + $0x1e2] sm:$0xff]
      %v1666 = vld [vmem:[%s404 + $0x1ea] sm:$0xff]
      %v1667 = vld [vmem:[%s404 + $0x1fa] sm:$0xff]
      %v1668 = vld [vmem:[%s404 + $0x202] sm:$0xff]
      %v1669 = vld [vmem:[%s404 + $0x212] sm:$0xff]
      %v1670 = vld [vmem:[%s404 + $0x21a] sm:$0xff]
      %v1671 = vld [vmem:[%s404 + $0x22a] sm:$0xff]
      %v1672 = vld [vmem:[%s404 + $0x232] sm:$0xff]
      %v1673 = vld [vmem:[%s404 + $0x242] sm:$0xff]
      %v1674 = vld [vmem:[%s404 + $0x24a] sm:$0xff]
      %v1675 = vld [vmem:[%s404 + $0x25a] sm:$0xff]
      %v1676 = vld [vmem:[%s404 + $0x262] sm:$0xff]
      %v1677 = vld [vmem:[%s404 + $0x272] sm:$0xff]
      %v1678 = vld [vmem:[%s404 + $0x27a] sm:$0xff]
      %v1679 = vld [vmem:[%s404 + $0x28a] sm:$0xff]
      %v1680 = vld [vmem:[%s404 + $0x292] sm:$0xff]
      %v1681 = vld [vmem:[%s404 + $0x2a2] sm:$0xff]
      %v1682 = vld [vmem:[%s404 + $0x2aa] sm:$0xff]
      %v1683 = vld [vmem:[%s404 + $0x2ba] sm:$0xff]
      %v1684 = vld [vmem:[%s404 + $0x2c2] sm:$0xff]
      %v1685 = vld [vmem:[%s404 + $0x2d2] sm:$0xff]
      %v1686 = vld [vmem:[%s404 + $0x2da] sm:$0xff]
      %v1687 = vld [vmem:[%s404 + $0x2ea] sm:$0xff]
      %v1688 = vld [vmem:[%s404 + $0x2f2] sm:$0xff]
      %v1689 = vpack.c.bf16 %v1626, %v1625
      %v1690 = vpack.c.bf16 %v1628, %v1627
      %v1691 = vpack.c.bf16 %v1630, %v1629
      %v1692 = vpack.c.bf16 %v1632, %v1631
      %v1693 = vpack.c.bf16 %v1634, %v1633
      %v1694 = vpack.c.bf16 %v1636, %v1635
      %v1695 = vpack.c.bf16 %v1638, %v1637
      %v1696 = vpack.c.bf16 %v1640, %v1639
      %v1697 = vpack.c.bf16 %v1642, %v1641
      %v1698 = vpack.c.bf16 %v1644, %v1643
      %v1699 = vpack.c.bf16 %v1646, %v1645
      %v1700 = vpack.c.bf16 %v1648, %v1647
      %v1701 = vpack.c.bf16 %v1650, %v1649
      %v1702 = vpack.c.bf16 %v1652, %v1651
      %v1703 = vpack.c.bf16 %v1654, %v1653
      %v1704 = vpack.c.bf16 %v1656, %v1655
      %v1705 = vpack.c.bf16 %v1658, %v1657
      %v1706 = vpack.c.bf16 %v1660, %v1659
      %v1707 = vpack.c.bf16 %v1662, %v1661
      %v1708 = vpack.c.bf16 %v1664, %v1663
      %v1709 = vpack.c.bf16 %v1666, %v1665
      %v1710 = vpack.c.bf16 %v1668, %v1667
      %v1711 = vpack.c.bf16 %v1670, %v1669
      %v1712 = vpack.c.bf16 %v1672, %v1671
      %v1713 = vpack.c.bf16 %v1674, %v1673
      %v1714 = vpack.c.bf16 %v1676, %v1675
      %v1715 = vpack.c.bf16 %v1678, %v1677
      %v1716 = vpack.c.bf16 %v1680, %v1679
      %v1717 = vpack.c.bf16 %v1682, %v1681
      %v1718 = vpack.c.bf16 %v1684, %v1683
      %v1719 = vpack.c.bf16 %v1686, %v1685
      %v1720 = vpack.c.bf16 %v1688, %v1687
      %1753 = vrot.lane.b32.xlu0 %v1689, 20
      %v1754 = vpop.permute.xlu0 %1753
      %1755 = vrot.lane.b32.xlu0 %v1690, 20
      %v1756 = vpop.permute.xlu0 %1755
      %1757 = vrot.lane.b32.xlu0 %v1691, 20
      %v1758 = vpop.permute.xlu0 %1757
      %1759 = vrot.lane.b32.xlu0 %v1692, 20
      %v1760 = vpop.permute.xlu0 %1759
      %1761 = vrot.lane.b32.xlu0 %v1693, 20
      %v1762 = vpop.permute.xlu0 %1761
      %1763 = vrot.lane.b32.xlu0 %v1694, 20
      %v1764 = vpop.permute.xlu0 %1763
      %1765 = vrot.lane.b32.xlu0 %v1695, 20
      %v1766 = vpop.permute.xlu0 %1765
      %1767 = vrot.lane.b32.xlu0 %v1696, 20
      %v1768 = vpop.permute.xlu0 %1767
      %1769 = vrot.lane.b32.xlu0 %v1697, 20
      %v1770 = vpop.permute.xlu0 %1769
      %1771 = vrot.lane.b32.xlu0 %v1698, 20
      %v1772 = vpop.permute.xlu0 %1771
      %1773 = vrot.lane.b32.xlu0 %v1699, 20
      %v1774 = vpop.permute.xlu0 %1773
      %1775 = vrot.lane.b32.xlu0 %v1700, 20
      %v1776 = vpop.permute.xlu0 %1775
      %1777 = vrot.lane.b32.xlu0 %v1701, 20
      %v1778 = vpop.permute.xlu0 %1777
      %1779 = vrot.lane.b32.xlu0 %v1702, 20
      %v1780 = vpop.permute.xlu0 %1779
      %1781 = vrot.lane.b32.xlu0 %v1703, 20
      %v1782 = vpop.permute.xlu0 %1781
      %1783 = vrot.lane.b32.xlu0 %v1704, 20
      %v1784 = vpop.permute.xlu0 %1783
      %1785 = vrot.lane.b32.xlu0 %v1705, 20
      %v1786 = vpop.permute.xlu0 %1785
      %1787 = vrot.lane.b32.xlu0 %v1706, 20
      %v1788 = vpop.permute.xlu0 %1787
      %1789 = vrot.lane.b32.xlu0 %v1707, 20
      %v1790 = vpop.permute.xlu0 %1789
      %1791 = vrot.lane.b32.xlu0 %v1708, 20
      %v1792 = vpop.permute.xlu0 %1791
      %1793 = vrot.lane.b32.xlu0 %v1709, 20
      %v1794 = vpop.permute.xlu0 %1793
      %1795 = vrot.lane.b32.xlu0 %v1710, 20
      %v1796 = vpop.permute.xlu0 %1795
      %1797 = vrot.lane.b32.xlu0 %v1711, 20
      %v1798 = vpop.permute.xlu0 %1797
      %1799 = vrot.lane.b32.xlu0 %v1712, 20
      %v1800 = vpop.permute.xlu0 %1799
      %1801 = vrot.lane.b32.xlu0 %v1713, 20
      %v1802 = vpop.permute.xlu0 %1801
      %1803 = vrot.lane.b32.xlu0 %v1714, 20
      %v1804 = vpop.permute.xlu0 %1803
      %1805 = vrot.lane.b32.xlu0 %v1715, 20
      %v1806 = vpop.permute.xlu0 %1805
      %1807 = vrot.lane.b32.xlu0 %v1716, 20
      %v1808 = vpop.permute.xlu0 %1807
      %1809 = vrot.lane.b32.xlu0 %v1717, 20
      %v1810 = vpop.permute.xlu0 %1809
      %1811 = vrot.lane.b32.xlu0 %v1718, 20
      %v1812 = vpop.permute.xlu0 %1811
      %1813 = vrot.lane.b32.xlu0 %v1719, 20
      %v1814 = vpop.permute.xlu0 %1813
      %1815 = vrot.lane.b32.xlu0 %v1720, 20
      %v1816 = vpop.permute.xlu0 %1815
      %vm1849 = vcmask 195744
      %1850 = vst.msk [vmem:[#allocation3] sm:$0xff] %vm1849, %v1754
      %1851 = vst.msk [vmem:[#allocation3 + $0x8] sm:$0xff] %vm1849, %v1756
      %1852 = vst.msk [vmem:[#allocation3 + $0x10] sm:$0xff] %vm1849, %v1758
      %1853 = vst.msk [vmem:[#allocation3 + $0x18] sm:$0xff] %vm1849, %v1760
      %1854 = vst.msk [vmem:[#allocation3 + $0x20] sm:$0xff] %vm1849, %v1762
      %1855 = vst.msk [vmem:[#allocation3 + $0x28] sm:$0xff] %vm1849, %v1764
      %1856 = vst.msk [vmem:[#allocation3 + $0x30] sm:$0xff] %vm1849, %v1766
      %1857 = vst.msk [vmem:[#allocation3 + $0x38] sm:$0xff] %vm1849, %v1768
      %1858 = vst.msk [vmem:[#allocation3 + $0x40] sm:$0xff] %vm1849, %v1770
      %1859 = vst.msk [vmem:[#allocation3 + $0x48] sm:$0xff] %vm1849, %v1772
      %1860 = vst.msk [vmem:[#allocation3 + $0x50] sm:$0xff] %vm1849, %v1774
      %1861 = vst.msk [vmem:[#allocation3 + $0x58] sm:$0xff] %vm1849, %v1776
      %1862 = vst.msk [vmem:[#allocation3 + $0x60] sm:$0xff] %vm1849, %v1778
      %1863 = vst.msk [vmem:[#allocation3 + $0x68] sm:$0xff] %vm1849, %v1780
      %1864 = vst.msk [vmem:[#allocation3 + $0x70] sm:$0xff] %vm1849, %v1782
      %1865 = vst.msk [vmem:[#allocation3 + $0x78] sm:$0xff] %vm1849, %v1784
      %1866 = vst.msk [vmem:[#allocation3 + $0x80] sm:$0xff] %vm1849, %v1786
      %1867 = vst.msk [vmem:[#allocation3 + $0x88] sm:$0xff] %vm1849, %v1788
      %1868 = vst.msk [vmem:[#allocation3 + $0x90] sm:$0xff] %vm1849, %v1790
      %1869 = vst.msk [vmem:[#allocation3 + $0x98] sm:$0xff] %vm1849, %v1792
      %1870 = vst.msk [vmem:[#allocation3 + $0xa0] sm:$0xff] %vm1849, %v1794
      %1871 = vst.msk [vmem:[#allocation3 + $0xa8] sm:$0xff] %vm1849, %v1796
      %1872 = vst.msk [vmem:[#allocation3 + $0xb0] sm:$0xff] %vm1849, %v1798
      %1873 = vst.msk [vmem:[#allocation3 + $0xb8] sm:$0xff] %vm1849, %v1800
      %1874 = vst.msk [vmem:[#allocation3 + $0xc0] sm:$0xff] %vm1849, %v1802
      %1875 = vst.msk [vmem:[#allocation3 + $0xc8] sm:$0xff] %vm1849, %v1804
      %1876 = vst.msk [vmem:[#allocation3 + $0xd0] sm:$0xff] %vm1849, %v1806
      %1877 = vst.msk [vmem:[#allocation3 + $0xd8] sm:$0xff] %vm1849, %v1808
      %1878 = vst.msk [vmem:[#allocation3 + $0xe0] sm:$0xff] %vm1849, %v1810
      %1879 = vst.msk [vmem:[#allocation3 + $0xe8] sm:$0xff] %vm1849, %v1812
      %1880 = vst.msk [vmem:[#allocation3 + $0xf0] sm:$0xff] %vm1849, %v1814
      %1881 = vst.msk [vmem:[#allocation3 + $0xf8] sm:$0xff] %vm1849, %v1816
      %s1882 = scalar_lea.vmem [#allocation2], 48
      %v1883 = vld [vmem:[%s1882] sm:$0xff]
      %v1884 = vld [vmem:[%s1882 + $0x8] sm:$0xff]
      %v1885 = vld [vmem:[%s1882 + $0x18] sm:$0xff]
      %v1886 = vld [vmem:[%s1882 + $0x20] sm:$0xff]
      %v1887 = vld [vmem:[%s1882 + $0x30] sm:$0xff]
      %v1888 = vld [vmem:[%s1882 + $0x38] sm:$0xff]
      %v1889 = vld [vmem:[%s1882 + $0x48] sm:$0xff]
      %v1890 = vld [vmem:[%s1882 + $0x50] sm:$0xff]
      %v1891 = vld [vmem:[%s1882 + $0x60] sm:$0xff]
      %v1892 = vld [vmem:[%s1882 + $0x68] sm:$0xff]
      %v1893 = vld [vmem:[%s1882 + $0x78] sm:$0xff]
      %v1894 = vld [vmem:[%s1882 + $0x80] sm:$0xff]
      %v1895 = vld [vmem:[%s1882 + $0x90] sm:$0xff]
      %v1896 = vld [vmem:[%s1882 + $0x98] sm:$0xff]
      %v1897 = vld [vmem:[%s1882 + $0xa8] sm:$0xff]
      %v1898 = vld [vmem:[%s1882 + $0xb0] sm:$0xff]
      %v1899 = vld [vmem:[%s1882 + $0xc0] sm:$0xff]
      %v1900 = vld [vmem:[%s1882 + $0xc8] sm:$0xff]
      %v1901 = vld [vmem:[%s1882 + $0xd8] sm:$0xff]
      %v1902 = vld [vmem:[%s1882 + $0xe0] sm:$0xff]
      %v1903 = vld [vmem:[%s1882 + $0xf0] sm:$0xff]
      %v1904 = vld [vmem:[%s1882 + $0xf8] sm:$0xff]
      %v1905 = vld [vmem:[%s1882 + $0x108] sm:$0xff]
      %v1906 = vld [vmem:[%s1882 + $0x110] sm:$0xff]
      %v1907 = vld [vmem:[%s1882 + $0x120] sm:$0xff]
      %v1908 = vld [vmem:[%s1882 + $0x128] sm:$0xff]
      %v1909 = vld [vmem:[%s1882 + $0x138] sm:$0xff]
      %v1910 = vld [vmem:[%s1882 + $0x140] sm:$0xff]
      %v1911 = vld [vmem:[%s1882 + $0x150] sm:$0xff]
      %v1912 = vld [vmem:[%s1882 + $0x158] sm:$0xff]
      %v1913 = vld [vmem:[%s1882 + $0x168] sm:$0xff]
      %v1914 = vld [vmem:[%s1882 + $0x170] sm:$0xff]
      %v1915 = vld [vmem:[%s1882 + $0x180] sm:$0xff]
      %v1916 = vld [vmem:[%s1882 + $0x188] sm:$0xff]
      %v1917 = vld [vmem:[%s1882 + $0x198] sm:$0xff]
      %v1918 = vld [vmem:[%s1882 + $0x1a0] sm:$0xff]
      %v1919 = vld [vmem:[%s1882 + $0x1b0] sm:$0xff]
      %v1920 = vld [vmem:[%s1882 + $0x1b8] sm:$0xff]
      %v1921 = vld [vmem:[%s1882 + $0x1c8] sm:$0xff]
      %v1922 = vld [vmem:[%s1882 + $0x1d0] sm:$0xff]
      %v1923 = vld [vmem:[%s1882 + $0x1e0] sm:$0xff]
      %v1924 = vld [vmem:[%s1882 + $0x1e8] sm:$0xff]
      %v1925 = vld [vmem:[%s1882 + $0x1f8] sm:$0xff]
      %v1926 = vld [vmem:[%s1882 + $0x200] sm:$0xff]
      %v1927 = vld [vmem:[%s1882 + $0x210] sm:$0xff]
      %v1928 = vld [vmem:[%s1882 + $0x218] sm:$0xff]
      %v1929 = vld [vmem:[%s1882 + $0x228] sm:$0xff]
      %v1930 = vld [vmem:[%s1882 + $0x230] sm:$0xff]
      %v1931 = vld [vmem:[%s1882 + $0x240] sm:$0xff]
      %v1932 = vld [vmem:[%s1882 + $0x248] sm:$0xff]
      %v1933 = vld [vmem:[%s1882 + $0x258] sm:$0xff]
      %v1934 = vld [vmem:[%s1882 + $0x260] sm:$0xff]
      %v1935 = vld [vmem:[%s1882 + $0x270] sm:$0xff]
      %v1936 = vld [vmem:[%s1882 + $0x278] sm:$0xff]
      %v1937 = vld [vmem:[%s1882 + $0x288] sm:$0xff]
      %v1938 = vld [vmem:[%s1882 + $0x290] sm:$0xff]
      %v1939 = vld [vmem:[%s1882 + $0x2a0] sm:$0xff]
      %v1940 = vld [vmem:[%s1882 + $0x2a8] sm:$0xff]
      %v1941 = vld [vmem:[%s1882 + $0x2b8] sm:$0xff]
      %v1942 = vld [vmem:[%s1882 + $0x2c0] sm:$0xff]
      %v1943 = vld [vmem:[%s1882 + $0x2d0] sm:$0xff]
      %v1944 = vld [vmem:[%s1882 + $0x2d8] sm:$0xff]
      %v1945 = vld [vmem:[%s1882 + $0x2e8] sm:$0xff]
      %v1946 = vld [vmem:[%s1882 + $0x2f0] sm:$0xff]
      %v1947 = vpack.c.bf16 %v1884, %v1883
      %v1948 = vpack.c.bf16 %v1886, %v1885
      %v1949 = vpack.c.bf16 %v1888, %v1887
      %v1950 = vpack.c.bf16 %v1890, %v1889
      %v1951 = vpack.c.bf16 %v1892, %v1891
      %v1952 = vpack.c.bf16 %v1894, %v1893
      %v1953 = vpack.c.bf16 %v1896, %v1895
      %v1954 = vpack.c.bf16 %v1898, %v1897
      %v1955 = vpack.c.bf16 %v1900, %v1899
      %v1956 = vpack.c.bf16 %v1902, %v1901
      %v1957 = vpack.c.bf16 %v1904, %v1903
      %v1958 = vpack.c.bf16 %v1906, %v1905
      %v1959 = vpack.c.bf16 %v1908, %v1907
      %v1960 = vpack.c.bf16 %v1910, %v1909
      %v1961 = vpack.c.bf16 %v1912, %v1911
      %v1962 = vpack.c.bf16 %v1914, %v1913
      %v1963 = vpack.c.bf16 %v1916, %v1915
      %v1964 = vpack.c.bf16 %v1918, %v1917
      %v1965 = vpack.c.bf16 %v1920, %v1919
      %v1966 = vpack.c.bf16 %v1922, %v1921
      %v1967 = vpack.c.bf16 %v1924, %v1923
      %v1968 = vpack.c.bf16 %v1926, %v1925
      %v1969 = vpack.c.bf16 %v1928, %v1927
      %v1970 = vpack.c.bf16 %v1930, %v1929
      %v1971 = vpack.c.bf16 %v1932, %v1931
      %v1972 = vpack.c.bf16 %v1934, %v1933
      %v1973 = vpack.c.bf16 %v1936, %v1935
      %v1974 = vpack.c.bf16 %v1938, %v1937
      %v1975 = vpack.c.bf16 %v1940, %v1939
      %v1976 = vpack.c.bf16 %v1942, %v1941
      %v1977 = vpack.c.bf16 %v1944, %v1943
      %v1978 = vpack.c.bf16 %v1946, %v1945
      %2011 = vrot.lane.b32.xlu0 %v1947, 24
      %v2012 = vpop.permute.xlu0 %2011
      %2013 = vrot.lane.b32.xlu0 %v1948, 24
      %v2014 = vpop.permute.xlu0 %2013
      %2015 = vrot.lane.b32.xlu0 %v1949, 24
      %v2016 = vpop.permute.xlu0 %2015
      %2017 = vrot.lane.b32.xlu0 %v1950, 24
      %v2018 = vpop.permute.xlu0 %2017
      %2019 = vrot.lane.b32.xlu0 %v1951, 24
      %v2020 = vpop.permute.xlu0 %2019
      %2021 = vrot.lane.b32.xlu0 %v1952, 24
      %v2022 = vpop.permute.xlu0 %2021
      %2023 = vrot.lane.b32.xlu0 %v1953, 24
      %v2024 = vpop.permute.xlu0 %2023
      %2025 = vrot.lane.b32.xlu0 %v1954, 24
      %v2026 = vpop.permute.xlu0 %2025
      %2027 = vrot.lane.b32.xlu0 %v1955, 24
      %v2028 = vpop.permute.xlu0 %2027
      %2029 = vrot.lane.b32.xlu0 %v1956, 24
      %v2030 = vpop.permute.xlu0 %2029
      %2031 = vrot.lane.b32.xlu0 %v1957, 24
      %v2032 = vpop.permute.xlu0 %2031
      %2033 = vrot.lane.b32.xlu0 %v1958, 24
      %v2034 = vpop.permute.xlu0 %2033
      %2035 = vrot.lane.b32.xlu0 %v1959, 24
      %v2036 = vpop.permute.xlu0 %2035
      %2037 = vrot.lane.b32.xlu0 %v1960, 24
      %v2038 = vpop.permute.xlu0 %2037
      %2039 = vrot.lane.b32.xlu0 %v1961, 24
      %v2040 = vpop.permute.xlu0 %2039
      %2041 = vrot.lane.b32.xlu0 %v1962, 24
      %v2042 = vpop.permute.xlu0 %2041
      %2043 = vrot.lane.b32.xlu0 %v1963, 24
      %v2044 = vpop.permute.xlu0 %2043
      %2045 = vrot.lane.b32.xlu0 %v1964, 24
      %v2046 = vpop.permute.xlu0 %2045
      %2047 = vrot.lane.b32.xlu0 %v1965, 24
      %v2048 = vpop.permute.xlu0 %2047
      %2049 = vrot.lane.b32.xlu0 %v1966, 24
      %v2050 = vpop.permute.xlu0 %2049
      %2051 = vrot.lane.b32.xlu0 %v1967, 24
      %v2052 = vpop.permute.xlu0 %2051
      %2053 = vrot.lane.b32.xlu0 %v1968, 24
      %v2054 = vpop.permute.xlu0 %2053
      %2055 = vrot.lane.b32.xlu0 %v1969, 24
      %v2056 = vpop.permute.xlu0 %2055
      %2057 = vrot.lane.b32.xlu0 %v1970, 24
      %v2058 = vpop.permute.xlu0 %2057
      %2059 = vrot.lane.b32.xlu0 %v1971, 24
      %v2060 = vpop.permute.xlu0 %2059
      %2061 = vrot.lane.b32.xlu0 %v1972, 24
      %v2062 = vpop.permute.xlu0 %2061
      %2063 = vrot.lane.b32.xlu0 %v1973, 24
      %v2064 = vpop.permute.xlu0 %2063
      %2065 = vrot.lane.b32.xlu0 %v1974, 24
      %v2066 = vpop.permute.xlu0 %2065
      %2067 = vrot.lane.b32.xlu0 %v1975, 24
      %v2068 = vpop.permute.xlu0 %2067
      %2069 = vrot.lane.b32.xlu0 %v1976, 24
      %v2070 = vpop.permute.xlu0 %2069
      %2071 = vrot.lane.b32.xlu0 %v1977, 24
      %v2072 = vpop.permute.xlu0 %2071
      %2073 = vrot.lane.b32.xlu0 %v1978, 24
      %v2074 = vpop.permute.xlu0 %2073
      %vm2107 = vcmask 228544
      %2108 = vst.msk [vmem:[#allocation3] sm:$0xff] %vm2107, %v2012
      %2109 = vst.msk [vmem:[#allocation3 + $0x8] sm:$0xff] %vm2107, %v2014
      %2110 = vst.msk [vmem:[#allocation3 + $0x10] sm:$0xff] %vm2107, %v2016
      %2111 = vst.msk [vmem:[#allocation3 + $0x18] sm:$0xff] %vm2107, %v2018
      %2112 = vst.msk [vmem:[#allocation3 + $0x20] sm:$0xff] %vm2107, %v2020
      %2113 = vst.msk [vmem:[#allocation3 + $0x28] sm:$0xff] %vm2107, %v2022
      %2114 = vst.msk [vmem:[#allocation3 + $0x30] sm:$0xff] %vm2107, %v2024
      %2115 = vst.msk [vmem:[#allocation3 + $0x38] sm:$0xff] %vm2107, %v2026
      %2116 = vst.msk [vmem:[#allocation3 + $0x40] sm:$0xff] %vm2107, %v2028
      %2117 = vst.msk [vmem:[#allocation3 + $0x48] sm:$0xff] %vm2107, %v2030
      %2118 = vst.msk [vmem:[#allocation3 + $0x50] sm:$0xff] %vm2107, %v2032
      %2119 = vst.msk [vmem:[#allocation3 + $0x58] sm:$0xff] %vm2107, %v2034
      %2120 = vst.msk [vmem:[#allocation3 + $0x60] sm:$0xff] %vm2107, %v2036
      %2121 = vst.msk [vmem:[#allocation3 + $0x68] sm:$0xff] %vm2107, %v2038
      %2122 = vst.msk [vmem:[#allocation3 + $0x70] sm:$0xff] %vm2107, %v2040
      %2123 = vst.msk [vmem:[#allocation3 + $0x78] sm:$0xff] %vm2107, %v2042
      %2124 = vst.msk [vmem:[#allocation3 + $0x80] sm:$0xff] %vm2107, %v2044
      %2125 = vst.msk [vmem:[#allocation3 + $0x88] sm:$0xff] %vm2107, %v2046
      %2126 = vst.msk [vmem:[#allocation3 + $0x90] sm:$0xff] %vm2107, %v2048
      %2127 = vst.msk [vmem:[#allocation3 + $0x98] sm:$0xff] %vm2107, %v2050
      %2128 = vst.msk [vmem:[#allocation3 + $0xa0] sm:$0xff] %vm2107, %v2052
      %2129 = vst.msk [vmem:[#allocation3 + $0xa8] sm:$0xff] %vm2107, %v2054
      %2130 = vst.msk [vmem:[#allocation3 + $0xb0] sm:$0xff] %vm2107, %v2056
      %2131 = vst.msk [vmem:[#allocation3 + $0xb8] sm:$0xff] %vm2107, %v2058
      %2132 = vst.msk [vmem:[#allocation3 + $0xc0] sm:$0xff] %vm2107, %v2060
      %2133 = vst.msk [vmem:[#allocation3 + $0xc8] sm:$0xff] %vm2107, %v2062
      %2134 = vst.msk [vmem:[#allocation3 + $0xd0] sm:$0xff] %vm2107, %v2064
      %2135 = vst.msk [vmem:[#allocation3 + $0xd8] sm:$0xff] %vm2107, %v2066
      %2136 = vst.msk [vmem:[#allocation3 + $0xe0] sm:$0xff] %vm2107, %v2068
      %2137 = vst.msk [vmem:[#allocation3 + $0xe8] sm:$0xff] %vm2107, %v2070
      %2138 = vst.msk [vmem:[#allocation3 + $0xf0] sm:$0xff] %vm2107, %v2072
      %2139 = vst.msk [vmem:[#allocation3 + $0xf8] sm:$0xff] %vm2107, %v2074
      %v2140 = vld [vmem:[%s1882 + $0x1] sm:$0xff]
      %v2141 = vld [vmem:[%s1882 + $0x9] sm:$0xff]
      %v2142 = vld [vmem:[%s1882 + $0x19] sm:$0xff]
      %v2143 = vld [vmem:[%s1882 + $0x21] sm:$0xff]
      %v2144 = vld [vmem:[%s1882 + $0x31] sm:$0xff]
      %v2145 = vld [vmem:[%s1882 + $0x39] sm:$0xff]
      %v2146 = vld [vmem:[%s1882 + $0x49] sm:$0xff]
      %v2147 = vld [vmem:[%s1882 + $0x51] sm:$0xff]
      %v2148 = vld [vmem:[%s1882 + $0x61] sm:$0xff]
      %v2149 = vld [vmem:[%s1882 + $0x69] sm:$0xff]
      %v2150 = vld [vmem:[%s1882 + $0x79] sm:$0xff]
      %v2151 = vld [vmem:[%s1882 + $0x81] sm:$0xff]
      %v2152 = vld [vmem:[%s1882 + $0x91] sm:$0xff]
      %v2153 = vld [vmem:[%s1882 + $0x99] sm:$0xff]
      %v2154 = vld [vmem:[%s1882 + $0xa9] sm:$0xff]
      %v2155 = vld [vmem:[%s1882 + $0xb1] sm:$0xff]
      %v2156 = vld [vmem:[%s1882 + $0xc1] sm:$0xff]
      %v2157 = vld [vmem:[%s1882 + $0xc9] sm:$0xff]
      %v2158 = vld [vmem:[%s1882 + $0xd9] sm:$0xff]
      %v2159 = vld [vmem:[%s1882 + $0xe1] sm:$0xff]
      %v2160 = vld [vmem:[%s1882 + $0xf1] sm:$0xff]
      %v2161 = vld [vmem:[%s1882 + $0xf9] sm:$0xff]
      %v2162 = vld [vmem:[%s1882 + $0x109] sm:$0xff]
      %v2163 = vld [vmem:[%s1882 + $0x111] sm:$0xff]
      %v2164 = vld [vmem:[%s1882 + $0x121] sm:$0xff]
      %v2165 = vld [vmem:[%s1882 + $0x129] sm:$0xff]
      %v2166 = vld [vmem:[%s1882 + $0x139] sm:$0xff]
      %v2167 = vld [vmem:[%s1882 + $0x141] sm:$0xff]
      %v2168 = vld [vmem:[%s1882 + $0x151] sm:$0xff]
      %v2169 = vld [vmem:[%s1882 + $0x159] sm:$0xff]
      %v2170 = vld [vmem:[%s1882 + $0x169] sm:$0xff]
      %v2171 = vld [vmem:[%s1882 + $0x171] sm:$0xff]
      %v2172 = vld [vmem:[%s1882 + $0x181] sm:$0xff]
      %v2173 = vld [vmem:[%s1882 + $0x189] sm:$0xff]
      %v2174 = vld [vmem:[%s1882 + $0x199] sm:$0xff]
      %v2175 = vld [vmem:[%s1882 + $0x1a1] sm:$0xff]
      %v2176 = vld [vmem:[%s1882 + $0x1b1] sm:$0xff]
      %v2177 = vld [vmem:[%s1882 + $0x1b9] sm:$0xff]
      %v2178 = vld [vmem:[%s1882 + $0x1c9] sm:$0xff]
      %v2179 = vld [vmem:[%s1882 + $0x1d1] sm:$0xff]
      %v2180 = vld [vmem:[%s1882 + $0x1e1] sm:$0xff]
      %v2181 = vld [vmem:[%s1882 + $0x1e9] sm:$0xff]
      %v2182 = vld [vmem:[%s1882 + $0x1f9] sm:$0xff]
      %v2183 = vld [vmem:[%s1882 + $0x201] sm:$0xff]
      %v2184 = vld [vmem:[%s1882 + $0x211] sm:$0xff]
      %v2185 = vld [vmem:[%s1882 + $0x219] sm:$0xff]
      %v2186 = vld [vmem:[%s1882 + $0x229] sm:$0xff]
      %v2187 = vld [vmem:[%s1882 + $0x231] sm:$0xff]
      %v2188 = vld [vmem:[%s1882 + $0x241] sm:$0xff]
      %v2189 = vld [vmem:[%s1882 + $0x249] sm:$0xff]
      %v2190 = vld [vmem:[%s1882 + $0x259] sm:$0xff]
      %v2191 = vld [vmem:[%s1882 + $0x261] sm:$0xff]
      %v2192 = vld [vmem:[%s1882 + $0x271] sm:$0xff]
      %v2193 = vld [vmem:[%s1882 + $0x279] sm:$0xff]
      %v2194 = vld [vmem:[%s1882 + $0x289] sm:$0xff]
      %v2195 = vld [vmem:[%s1882 + $0x291] sm:$0xff]
      %v2196 = vld [vmem:[%s1882 + $0x2a1] sm:$0xff]
      %v2197 = vld [vmem:[%s1882 + $0x2a9] sm:$0xff]
      %v2198 = vld [vmem:[%s1882 + $0x2b9] sm:$0xff]
      %v2199 = vld [vmem:[%s1882 + $0x2c1] sm:$0xff]
      %v2200 = vld [vmem:[%s1882 + $0x2d1] sm:$0xff]
      %v2201 = vld [vmem:[%s1882 + $0x2d9] sm:$0xff]
      %v2202 = vld [vmem:[%s1882 + $0x2e9] sm:$0xff]
      %v2203 = vld [vmem:[%s1882 + $0x2f1] sm:$0xff]
      %v2204 = vpack.c.bf16 %v2141, %v2140
      %v2205 = vpack.c.bf16 %v2143, %v2142
      %v2206 = vpack.c.bf16 %v2145, %v2144
      %v2207 = vpack.c.bf16 %v2147, %v2146
      %v2208 = vpack.c.bf16 %v2149, %v2148
      %v2209 = vpack.c.bf16 %v2151, %v2150
      %v2210 = vpack.c.bf16 %v2153, %v2152
      %v2211 = vpack.c.bf16 %v2155, %v2154
      %v2212 = vpack.c.bf16 %v2157, %v2156
      %v2213 = vpack.c.bf16 %v2159, %v2158
      %v2214 = vpack.c.bf16 %v2161, %v2160
      %v2215 = vpack.c.bf16 %v2163, %v2162
      %v2216 = vpack.c.bf16 %v2165, %v2164
      %v2217 = vpack.c.bf16 %v2167, %v2166
      %v2218 = vpack.c.bf16 %v2169, %v2168
      %v2219 = vpack.c.bf16 %v2171, %v2170
      %v2220 = vpack.c.bf16 %v2173, %v2172
      %v2221 = vpack.c.bf16 %v2175, %v2174
      %v2222 = vpack.c.bf16 %v2177, %v2176
      %v2223 = vpack.c.bf16 %v2179, %v2178
      %v2224 = vpack.c.bf16 %v2181, %v2180
      %v2225 = vpack.c.bf16 %v2183, %v2182
      %v2226 = vpack.c.bf16 %v2185, %v2184
      %v2227 = vpack.c.bf16 %v2187, %v2186
      %v2228 = vpack.c.bf16 %v2189, %v2188
      %v2229 = vpack.c.bf16 %v2191, %v2190
      %v2230 = vpack.c.bf16 %v2193, %v2192
      %v2231 = vpack.c.bf16 %v2195, %v2194
      %v2232 = vpack.c.bf16 %v2197, %v2196
      %v2233 = vpack.c.bf16 %v2199, %v2198
      %v2234 = vpack.c.bf16 %v2201, %v2200
      %v2235 = vpack.c.bf16 %v2203, %v2202
      %2268 = vrot.lane.b32.xlu0 %v2204, 28
      %v2269 = vpop.permute.xlu0 %2268
      %2270 = vrot.lane.b32.xlu0 %v2205, 28
      %v2271 = vpop.permute.xlu0 %2270
      %2272 = vrot.lane.b32.xlu0 %v2206, 28
      %v2273 = vpop.permute.xlu0 %2272
      %2274 = vrot.lane.b32.xlu0 %v2207, 28
      %v2275 = vpop.permute.xlu0 %2274
      %2276 = vrot.lane.b32.xlu0 %v2208, 28
      %v2277 = vpop.permute.xlu0 %2276
      %2278 = vrot.lane.b32.xlu0 %v2209, 28
      %v2279 = vpop.permute.xlu0 %2278
      %2280 = vrot.lane.b32.xlu0 %v2210, 28
      %v2281 = vpop.permute.xlu0 %2280
      %2282 = vrot.lane.b32.xlu0 %v2211, 28
      %v2283 = vpop.permute.xlu0 %2282
      %2284 = vrot.lane.b32.xlu0 %v2212, 28
      %v2285 = vpop.permute.xlu0 %2284
      %2286 = vrot.lane.b32.xlu0 %v2213, 28
      %v2287 = vpop.permute.xlu0 %2286
      %2288 = vrot.lane.b32.xlu0 %v2214, 28
      %v2289 = vpop.permute.xlu0 %2288
      %2290 = vrot.lane.b32.xlu0 %v2215, 28
      %v2291 = vpop.permute.xlu0 %2290
      %2292 = vrot.lane.b32.xlu0 %v2216, 28
      %v2293 = vpop.permute.xlu0 %2292
      %2294 = vrot.lane.b32.xlu0 %v2217, 28
      %v2295 = vpop.permute.xlu0 %2294
      %2296 = vrot.lane.b32.xlu0 %v2218, 28
      %v2297 = vpop.permute.xlu0 %2296
      %2298 = vrot.lane.b32.xlu0 %v2219, 28
      %v2299 = vpop.permute.xlu0 %2298
      %2300 = vrot.lane.b32.xlu0 %v2220, 28
      %v2301 = vpop.permute.xlu0 %2300
      %2302 = vrot.lane.b32.xlu0 %v2221, 28
      %v2303 = vpop.permute.xlu0 %2302
      %2304 = vrot.lane.b32.xlu0 %v2222, 28
      %v2305 = vpop.permute.xlu0 %2304
      %2306 = vrot.lane.b32.xlu0 %v2223, 28
      %v2307 = vpop.permute.xlu0 %2306
      %2308 = vrot.lane.b32.xlu0 %v2224, 28
      %v2309 = vpop.permute.xlu0 %2308
      %2310 = vrot.lane.b32.xlu0 %v2225, 28
      %v2311 = vpop.permute.xlu0 %2310
      %2312 = vrot.lane.b32.xlu0 %v2226, 28
      %v2313 = vpop.permute.xlu0 %2312
      %2314 = vrot.lane.b32.xlu0 %v2227, 28
      %v2315 = vpop.permute.xlu0 %2314
      %2316 = vrot.lane.b32.xlu0 %v2228, 28
      %v2317 = vpop.permute.xlu0 %2316
      %2318 = vrot.lane.b32.xlu0 %v2229, 28
      %v2319 = vpop.permute.xlu0 %2318
      %2320 = vrot.lane.b32.xlu0 %v2230, 28
      %v2321 = vpop.permute.xlu0 %2320
      %2322 = vrot.lane.b32.xlu0 %v2231, 28
      %v2323 = vpop.permute.xlu0 %2322
      %2324 = vrot.lane.b32.xlu0 %v2232, 28
      %v2325 = vpop.permute.xlu0 %2324
      %2326 = vrot.lane.b32.xlu0 %v2233, 28
      %v2327 = vpop.permute.xlu0 %2326
      %2328 = vrot.lane.b32.xlu0 %v2234, 28
      %v2329 = vpop.permute.xlu0 %2328
      %2330 = vrot.lane.b32.xlu0 %v2235, 28
      %v2331 = vpop.permute.xlu0 %2330
      %vm2364 = vcmask 261344
      %2365 = vst.msk [vmem:[#allocation3] sm:$0xff] %vm2364, %v2269
      %2366 = vst.msk [vmem:[#allocation3 + $0x8] sm:$0xff] %vm2364, %v2271
      %2367 = vst.msk [vmem:[#allocation3 + $0x10] sm:$0xff] %vm2364, %v2273
      %2368 = vst.msk [vmem:[#allocation3 + $0x18] sm:$0xff] %vm2364, %v2275
      %2369 = vst.msk [vmem:[#allocation3 + $0x20] sm:$0xff] %vm2364, %v2277
      %2370 = vst.msk [vmem:[#allocation3 + $0x28] sm:$0xff] %vm2364, %v2279
      %2371 = vst.msk [vmem:[#allocation3 + $0x30] sm:$0xff] %vm2364, %v2281
      %2372 = vst.msk [vmem:[#allocation3 + $0x38] sm:$0xff] %vm2364, %v2283
      %2373 = vst.msk [vmem:[#allocation3 + $0x40] sm:$0xff] %vm2364, %v2285
      %2374 = vst.msk [vmem:[#allocation3 + $0x48] sm:$0xff] %vm2364, %v2287
      %2375 = vst.msk [vmem:[#allocation3 + $0x50] sm:$0xff] %vm2364, %v2289
      %2376 = vst.msk [vmem:[#allocation3 + $0x58] sm:$0xff] %vm2364, %v2291
      %2377 = vst.msk [vmem:[#allocation3 + $0x60] sm:$0xff] %vm2364, %v2293
      %2378 = vst.msk [vmem:[#allocation3 + $0x68] sm:$0xff] %vm2364, %v2295
      %2379 = vst.msk [vmem:[#allocation3 + $0x70] sm:$0xff] %vm2364, %v2297
      %2380 = vst.msk [vmem:[#allocation3 + $0x78] sm:$0xff] %vm2364, %v2299
      %2381 = vst.msk [vmem:[#allocation3 + $0x80] sm:$0xff] %vm2364, %v2301
      %2382 = vst.msk [vmem:[#allocation3 + $0x88] sm:$0xff] %vm2364, %v2303
      %2383 = vst.msk [vmem:[#allocation3 + $0x90] sm:$0xff] %vm2364, %v2305
      %2384 = vst.msk [vmem:[#allocation3 + $0x98] sm:$0xff] %vm2364, %v2307
      %2385 = vst.msk [vmem:[#allocation3 + $0xa0] sm:$0xff] %vm2364, %v2309
      %2386 = vst.msk [vmem:[#allocation3 + $0xa8] sm:$0xff] %vm2364, %v2311
      %2387 = vst.msk [vmem:[#allocation3 + $0xb0] sm:$0xff] %vm2364, %v2313
      %2388 = vst.msk [vmem:[#allocation3 + $0xb8] sm:$0xff] %vm2364, %v2315
      %2389 = vst.msk [vmem:[#allocation3 + $0xc0] sm:$0xff] %vm2364, %v2317
      %2390 = vst.msk [vmem:[#allocation3 + $0xc8] sm:$0xff] %vm2364, %v2319
      %2391 = vst.msk [vmem:[#allocation3 + $0xd0] sm:$0xff] %vm2364, %v2321
      %2392 = vst.msk [vmem:[#allocation3 + $0xd8] sm:$0xff] %vm2364, %v2323
      %2393 = vst.msk [vmem:[#allocation3 + $0xe0] sm:$0xff] %vm2364, %v2325
      %2394 = vst.msk [vmem:[#allocation3 + $0xe8] sm:$0xff] %vm2364, %v2327
      %2395 = vst.msk [vmem:[#allocation3 + $0xf0] sm:$0xff] %vm2364, %v2329
      %2396 = vst.msk [vmem:[#allocation3 + $0xf8] sm:$0xff] %vm2364, %v2331
      %v2397 = vld [vmem:[%s1882 + $0x2] sm:$0xff]
      %v2398 = vld [vmem:[%s1882 + $0xa] sm:$0xff]
      %v2399 = vld [vmem:[%s1882 + $0x1a] sm:$0xff]
      %v2400 = vld [vmem:[%s1882 + $0x22] sm:$0xff]
      %v2401 = vld [vmem:[%s1882 + $0x32] sm:$0xff]
      %v2402 = vld [vmem:[%s1882 + $0x3a] sm:$0xff]
      %v2403 = vld [vmem:[%s1882 + $0x4a] sm:$0xff]
      %v2404 = vld [vmem:[%s1882 + $0x52] sm:$0xff]
      %v2405 = vld [vmem:[%s1882 + $0x62] sm:$0xff]
      %v2406 = vld [vmem:[%s1882 + $0x6a] sm:$0xff]
      %v2407 = vld [vmem:[%s1882 + $0x7a] sm:$0xff]
      %v2408 = vld [vmem:[%s1882 + $0x82] sm:$0xff]
      %v2409 = vld [vmem:[%s1882 + $0x92] sm:$0xff]
      %v2410 = vld [vmem:[%s1882 + $0x9a] sm:$0xff]
      %v2411 = vld [vmem:[%s1882 + $0xaa] sm:$0xff]
      %v2412 = vld [vmem:[%s1882 + $0xb2] sm:$0xff]
      %v2413 = vld [vmem:[%s1882 + $0xc2] sm:$0xff]
      %v2414 = vld [vmem:[%s1882 + $0xca] sm:$0xff]
      %v2415 = vld [vmem:[%s1882 + $0xda] sm:$0xff]
      %v2416 = vld [vmem:[%s1882 + $0xe2] sm:$0xff]
      %v2417 = vld [vmem:[%s1882 + $0xf2] sm:$0xff]
      %v2418 = vld [vmem:[%s1882 + $0xfa] sm:$0xff]
      %v2419 = vld [vmem:[%s1882 + $0x10a] sm:$0xff]
      %v2420 = vld [vmem:[%s1882 + $0x112] sm:$0xff]
      %v2421 = vld [vmem:[%s1882 + $0x122] sm:$0xff]
      %v2422 = vld [vmem:[%s1882 + $0x12a] sm:$0xff]
      %v2423 = vld [vmem:[%s1882 + $0x13a] sm:$0xff]
      %v2424 = vld [vmem:[%s1882 + $0x142] sm:$0xff]
      %v2425 = vld [vmem:[%s1882 + $0x152] sm:$0xff]
      %v2426 = vld [vmem:[%s1882 + $0x15a] sm:$0xff]
      %v2427 = vld [vmem:[%s1882 + $0x16a] sm:$0xff]
      %v2428 = vld [vmem:[%s1882 + $0x172] sm:$0xff]
      %v2429 = vld [vmem:[%s1882 + $0x182] sm:$0xff]
      %v2430 = vld [vmem:[%s1882 + $0x18a] sm:$0xff]
      %v2431 = vld [vmem:[%s1882 + $0x19a] sm:$0xff]
      %v2432 = vld [vmem:[%s1882 + $0x1a2] sm:$0xff]
      %v2433 = vld [vmem:[%s1882 + $0x1b2] sm:$0xff]
      %v2434 = vld [vmem:[%s1882 + $0x1ba] sm:$0xff]
      %v2435 = vld [vmem:[%s1882 + $0x1ca] sm:$0xff]
      %v2436 = vld [vmem:[%s1882 + $0x1d2] sm:$0xff]
      %v2437 = vld [vmem:[%s1882 + $0x1e2] sm:$0xff]
      %v2438 = vld [vmem:[%s1882 + $0x1ea] sm:$0xff]
      %v2439 = vld [vmem:[%s1882 + $0x1fa] sm:$0xff]
      %v2440 = vld [vmem:[%s1882 + $0x202] sm:$0xff]
      %v2441 = vld [vmem:[%s1882 + $0x212] sm:$0xff]
      %v2442 = vld [vmem:[%s1882 + $0x21a] sm:$0xff]
      %v2443 = vld [vmem:[%s1882 + $0x22a] sm:$0xff]
      %v2444 = vld [vmem:[%s1882 + $0x232] sm:$0xff]
      %v2445 = vld [vmem:[%s1882 + $0x242] sm:$0xff]
      %v2446 = vld [vmem:[%s1882 + $0x24a] sm:$0xff]
      %v2447 = vld [vmem:[%s1882 + $0x25a] sm:$0xff]
      %v2448 = vld [vmem:[%s1882 + $0x262] sm:$0xff]
      %v2449 = vld [vmem:[%s1882 + $0x272] sm:$0xff]
      %v2450 = vld [vmem:[%s1882 + $0x27a] sm:$0xff]
      %v2451 = vld [vmem:[%s1882 + $0x28a] sm:$0xff]
      %v2452 = vld [vmem:[%s1882 + $0x292] sm:$0xff]
      %v2453 = vld [vmem:[%s1882 + $0x2a2] sm:$0xff]
      %v2454 = vld [vmem:[%s1882 + $0x2aa] sm:$0xff]
      %v2455 = vld [vmem:[%s1882 + $0x2ba] sm:$0xff]
      %v2456 = vld [vmem:[%s1882 + $0x2c2] sm:$0xff]
      %v2457 = vld [vmem:[%s1882 + $0x2d2] sm:$0xff]
      %v2458 = vld [vmem:[%s1882 + $0x2da] sm:$0xff]
      %v2459 = vld [vmem:[%s1882 + $0x2ea] sm:$0xff]
      %v2460 = vld [vmem:[%s1882 + $0x2f2] sm:$0xff]
      %v2461 = vpack.c.bf16 %v2398, %v2397
      %v2462 = vpack.c.bf16 %v2400, %v2399
      %v2463 = vpack.c.bf16 %v2402, %v2401
      %v2464 = vpack.c.bf16 %v2404, %v2403
      %v2465 = vpack.c.bf16 %v2406, %v2405
      %v2466 = vpack.c.bf16 %v2408, %v2407
      %v2467 = vpack.c.bf16 %v2410, %v2409
      %v2468 = vpack.c.bf16 %v2412, %v2411
      %v2469 = vpack.c.bf16 %v2414, %v2413
      %v2470 = vpack.c.bf16 %v2416, %v2415
      %v2471 = vpack.c.bf16 %v2418, %v2417
      %v2472 = vpack.c.bf16 %v2420, %v2419
      %v2473 = vpack.c.bf16 %v2422, %v2421
      %v2474 = vpack.c.bf16 %v2424, %v2423
      %v2475 = vpack.c.bf16 %v2426, %v2425
      %v2476 = vpack.c.bf16 %v2428, %v2427
      %v2477 = vpack.c.bf16 %v2430, %v2429
      %v2478 = vpack.c.bf16 %v2432, %v2431
      %v2479 = vpack.c.bf16 %v2434, %v2433
      %v2480 = vpack.c.bf16 %v2436, %v2435
      %v2481 = vpack.c.bf16 %v2438, %v2437
      %v2482 = vpack.c.bf16 %v2440, %v2439
      %v2483 = vpack.c.bf16 %v2442, %v2441
      %v2484 = vpack.c.bf16 %v2444, %v2443
      %v2485 = vpack.c.bf16 %v2446, %v2445
      %v2486 = vpack.c.bf16 %v2448, %v2447
      %v2487 = vpack.c.bf16 %v2450, %v2449
      %v2488 = vpack.c.bf16 %v2452, %v2451
      %v2489 = vpack.c.bf16 %v2454, %v2453
      %v2490 = vpack.c.bf16 %v2456, %v2455
      %v2491 = vpack.c.bf16 %v2458, %v2457
      %v2492 = vpack.c.bf16 %v2460, %v2459
      %2525 = vrot.lane.b32.xlu0 %v2461, 32
      %v2526 = vpop.permute.xlu0 %2525
      %2527 = vrot.lane.b32.xlu0 %v2462, 32
      %v2528 = vpop.permute.xlu0 %2527
      %2529 = vrot.lane.b32.xlu0 %v2463, 32
      %v2530 = vpop.permute.xlu0 %2529
      %2531 = vrot.lane.b32.xlu0 %v2464, 32
      %v2532 = vpop.permute.xlu0 %2531
      %2533 = vrot.lane.b32.xlu0 %v2465, 32
      %v2534 = vpop.permute.xlu0 %2533
      %2535 = vrot.lane.b32.xlu0 %v2466, 32
      %v2536 = vpop.permute.xlu0 %2535
      %2537 = vrot.lane.b32.xlu0 %v2467, 32
      %v2538 = vpop.permute.xlu0 %2537
      %2539 = vrot.lane.b32.xlu0 %v2468, 32
      %v2540 = vpop.permute.xlu0 %2539
      %2541 = vrot.lane.b32.xlu0 %v2469, 32
      %v2542 = vpop.permute.xlu0 %2541
      %2543 = vrot.lane.b32.xlu0 %v2470, 32
      %v2544 = vpop.permute.xlu0 %2543
      %2545 = vrot.lane.b32.xlu0 %v2471, 32
      %v2546 = vpop.permute.xlu0 %2545
      %2547 = vrot.lane.b32.xlu0 %v2472, 32
      %v2548 = vpop.permute.xlu0 %2547
      %2549 = vrot.lane.b32.xlu0 %v2473, 32
      %v2550 = vpop.permute.xlu0 %2549
      %2551 = vrot.lane.b32.xlu0 %v2474, 32
      %v2552 = vpop.permute.xlu0 %2551
      %2553 = vrot.lane.b32.xlu0 %v2475, 32
      %v2554 = vpop.permute.xlu0 %2553
      %2555 = vrot.lane.b32.xlu0 %v2476, 32
      %v2556 = vpop.permute.xlu0 %2555
      %2557 = vrot.lane.b32.xlu0 %v2477, 32
      %v2558 = vpop.permute.xlu0 %2557
      %2559 = vrot.lane.b32.xlu0 %v2478, 32
      %v2560 = vpop.permute.xlu0 %2559
      %2561 = vrot.lane.b32.xlu0 %v2479, 32
      %v2562 = vpop.permute.xlu0 %2561
      %2563 = vrot.lane.b32.xlu0 %v2480, 32
      %v2564 = vpop.permute.xlu0 %2563
      %2565 = vrot.lane.b32.xlu0 %v2481, 32
      %v2566 = vpop.permute.xlu0 %2565
      %2567 = vrot.lane.b32.xlu0 %v2482, 32
      %v2568 = vpop.permute.xlu0 %2567
      %2569 = vrot.lane.b32.xlu0 %v2483, 32
      %v2570 = vpop.permute.xlu0 %2569
      %2571 = vrot.lane.b32.xlu0 %v2484, 32
      %v2572 = vpop.permute.xlu0 %2571
      %2573 = vrot.lane.b32.xlu0 %v2485, 32
      %v2574 = vpop.permute.xlu0 %2573
      %2575 = vrot.lane.b32.xlu0 %v2486, 32
      %v2576 = vpop.permute.xlu0 %2575
      %2577 = vrot.lane.b32.xlu0 %v2487, 32
      %v2578 = vpop.permute.xlu0 %2577
      %2579 = vrot.lane.b32.xlu0 %v2488, 32
      %v2580 = vpop.permute.xlu0 %2579
      %2581 = vrot.lane.b32.xlu0 %v2489, 32
      %v2582 = vpop.permute.xlu0 %2581
      %2583 = vrot.lane.b32.xlu0 %v2490, 32
      %v2584 = vpop.permute.xlu0 %2583
      %2585 = vrot.lane.b32.xlu0 %v2491, 32
      %v2586 = vpop.permute.xlu0 %2585
      %2587 = vrot.lane.b32.xlu0 %v2492, 32
      %v2588 = vpop.permute.xlu0 %2587
      %vm2621 = vcmask 294144
      %2622 = vst.msk [vmem:[#allocation3] sm:$0xff] %vm2621, %v2526
      %2623 = vst.msk [vmem:[#allocation3 + $0x8] sm:$0xff] %vm2621, %v2528
      %2624 = vst.msk [vmem:[#allocation3 + $0x10] sm:$0xff] %vm2621, %v2530
      %2625 = vst.msk [vmem:[#allocation3 + $0x18] sm:$0xff] %vm2621, %v2532
      %2626 = vst.msk [vmem:[#allocation3 + $0x20] sm:$0xff] %vm2621, %v2534
      %2627 = vst.msk [vmem:[#allocation3 + $0x28] sm:$0xff] %vm2621, %v2536
      %2628 = vst.msk [vmem:[#allocation3 + $0x30] sm:$0xff] %vm2621, %v2538
      %2629 = vst.msk [vmem:[#allocation3 + $0x38] sm:$0xff] %vm2621, %v2540
      %2630 = vst.msk [vmem:[#allocation3 + $0x40] sm:$0xff] %vm2621, %v2542
      %2631 = vst.msk [vmem:[#allocation3 + $0x48] sm:$0xff] %vm2621, %v2544
      %2632 = vst.msk [vmem:[#allocation3 + $0x50] sm:$0xff] %vm2621, %v2546
      %2633 = vst.msk [vmem:[#allocation3 + $0x58] sm:$0xff] %vm2621, %v2548
      %2634 = vst.msk [vmem:[#allocation3 + $0x60] sm:$0xff] %vm2621, %v2550
      %2635 = vst.msk [vmem:[#allocation3 + $0x68] sm:$0xff] %vm2621, %v2552
      %2636 = vst.msk [vmem:[#allocation3 + $0x70] sm:$0xff] %vm2621, %v2554
      %2637 = vst.msk [vmem:[#allocation3 + $0x78] sm:$0xff] %vm2621, %v2556
      %2638 = vst.msk [vmem:[#allocation3 + $0x80] sm:$0xff] %vm2621, %v2558
      %2639 = vst.msk [vmem:[#allocation3 + $0x88] sm:$0xff] %vm2621, %v2560
      %2640 = vst.msk [vmem:[#allocation3 + $0x90] sm:$0xff] %vm2621, %v2562
      %2641 = vst.msk [vmem:[#allocation3 + $0x98] sm:$0xff] %vm2621, %v2564
      %2642 = vst.msk [vmem:[#allocation3 + $0xa0] sm:$0xff] %vm2621, %v2566
      %2643 = vst.msk [vmem:[#allocation3 + $0xa8] sm:$0xff] %vm2621, %v2568
      %2644 = vst.msk [vmem:[#allocation3 + $0xb0] sm:$0xff] %vm2621, %v2570
      %2645 = vst.msk [vmem:[#allocation3 + $0xb8] sm:$0xff] %vm2621, %v2572
      %2646 = vst.msk [vmem:[#allocation3 + $0xc0] sm:$0xff] %vm2621, %v2574
      %2647 = vst.msk [vmem:[#allocation3 + $0xc8] sm:$0xff] %vm2621, %v2576
      %2648 = vst.msk [vmem:[#allocation3 + $0xd0] sm:$0xff] %vm2621, %v2578
      %2649 = vst.msk [vmem:[#allocation3 + $0xd8] sm:$0xff] %vm2621, %v2580
      %2650 = vst.msk [vmem:[#allocation3 + $0xe0] sm:$0xff] %vm2621, %v2582
      %2651 = vst.msk [vmem:[#allocation3 + $0xe8] sm:$0xff] %vm2621, %v2584
      %2652 = vst.msk [vmem:[#allocation3 + $0xf0] sm:$0xff] %vm2621, %v2586
      %2653 = vst.msk [vmem:[#allocation3 + $0xf8] sm:$0xff] %vm2621, %v2588
      %v2654 = vld [vmem:[#allocation3] sm:$0xff]
      %v2655 = vld [vmem:[#allocation3 + $0x8] sm:$0xff]
      %v2656 = vld [vmem:[#allocation3 + $0x10] sm:$0xff]
      %v2657 = vld [vmem:[#allocation3 + $0x18] sm:$0xff]
      %v2658 = vld [vmem:[#allocation3 + $0x20] sm:$0xff]
      %v2659 = vld [vmem:[#allocation3 + $0x28] sm:$0xff]
      %v2660 = vld [vmem:[#allocation3 + $0x30] sm:$0xff]
      %v2661 = vld [vmem:[#allocation3 + $0x38] sm:$0xff]
      %v2662 = vld [vmem:[#allocation3 + $0x40] sm:$0xff]
      %v2663 = vld [vmem:[#allocation3 + $0x48] sm:$0xff]
      %v2664 = vld [vmem:[#allocation3 + $0x50] sm:$0xff]
      %v2665 = vld [vmem:[#allocation3 + $0x58] sm:$0xff]
      %v2666 = vld [vmem:[#allocation3 + $0x60] sm:$0xff]
      %v2667 = vld [vmem:[#allocation3 + $0x68] sm:$0xff]
      %v2668 = vld [vmem:[#allocation3 + $0x70] sm:$0xff]
      %v2669 = vld [vmem:[#allocation3 + $0x78] sm:$0xff]
      %v2670 = vld [vmem:[#allocation3 + $0x80] sm:$0xff]
      %v2671 = vld [vmem:[#allocation3 + $0x88] sm:$0xff]
      %v2672 = vld [vmem:[#allocation3 + $0x90] sm:$0xff]
      %v2673 = vld [vmem:[#allocation3 + $0x98] sm:$0xff]
      %v2674 = vld [vmem:[#allocation3 + $0xa0] sm:$0xff]
      %v2675 = vld [vmem:[#allocation3 + $0xa8] sm:$0xff]
      %v2676 = vld [vmem:[#allocation3 + $0xb0] sm:$0xff]
      %v2677 = vld [vmem:[#allocation3 + $0xb8] sm:$0xff]
      %v2678 = vld [vmem:[#allocation3 + $0xc0] sm:$0xff]
      %v2679 = vld [vmem:[#allocation3 + $0xc8] sm:$0xff]
      %v2680 = vld [vmem:[#allocation3 + $0xd0] sm:$0xff]
      %v2681 = vld [vmem:[#allocation3 + $0xd8] sm:$0xff]
      %v2682 = vld [vmem:[#allocation3 + $0xe0] sm:$0xff]
      %v2683 = vld [vmem:[#allocation3 + $0xe8] sm:$0xff]
      %v2684 = vld [vmem:[#allocation3 + $0xf0] sm:$0xff]
      %v2685 = vld [vmem:[#allocation3 + $0xf8] sm:$0xff]
      %v2686 = vld [vmem:[%s1] sm:$0xf]
      %v2687 = vld [vmem:[%s1 + $0x4] sm:$0xf]
      %v2688 = vld [vmem:[%s1 + $0x8] sm:$0xf]
      %v2689 = vld [vmem:[%s1 + $0xc] sm:$0xf]
      %v2690 = vld [vmem:[%s1 + $0x10] sm:$0x3]
      %v2691 = vld [vmem:[%s2] sm:$0x1]
      %v2693 = vlaneseq
      %v2694 = vshrl.u32 %v2693, 7
      %v2695 = vsub.s32 0, %v2694
      %v2696 = vrot.slane %v2691, %v2695
      %v2703 = vunpack.c.l.b16 %v2686
      %v2704 = vunpack.c.l.b16 %v2687
      %v2705 = vunpack.c.l.b16 %v2688
      %v2706 = vunpack.c.l.b16 %v2689
      %v2707 = vunpack.c.l.b16 %v2690
      %v2708 = vpack.c.b16 %v2704, %v2703
      %v2709 = vpack.c.b16 %v2706, %v2705
      %v2710 = vpack.c.b16 %v2707, %v2707
      %vm2713 = vcmask 293888
      %v2715 = vsel %vm2713, %v2654, 0
      %v2718 = vsel %vm2713, %v2655, 0
      %v2721 = vsel %vm2713, %v2656, 0
      %v2724 = vsel %vm2713, %v2657, 0
      %v2727 = vsel %vm2713, %v2658, 0
      %v2730 = vsel %vm2713, %v2659, 0
      %v2733 = vsel %vm2713, %v2660, 0
      %v2736 = vsel %vm2713, %v2661, 0
      %v2739 = vsel %vm2713, %v2662, 0
      %v2742 = vsel %vm2713, %v2663, 0
      %v2745 = vsel %vm2713, %v2664, 0
      %v2748 = vsel %vm2713, %v2665, 0
      %v2751 = vsel %vm2713, %v2666, 0
      %v2754 = vsel %vm2713, %v2667, 0
      %v2757 = vsel %vm2713, %v2668, 0
      %v2760 = vsel %vm2713, %v2669, 0
      %v2763 = vsel %vm2713, %v2670, 0
      %v2766 = vsel %vm2713, %v2671, 0
      %v2769 = vsel %vm2713, %v2672, 0
      %v2772 = vsel %vm2713, %v2673, 0
      %v2775 = vsel %vm2713, %v2674, 0
      %v2778 = vsel %vm2713, %v2675, 0
      %v2781 = vsel %vm2713, %v2676, 0
      %v2784 = vsel %vm2713, %v2677, 0
      %v2787 = vsel %vm2713, %v2678, 0
      %v2790 = vsel %vm2713, %v2679, 0
      %v2793 = vsel %vm2713, %v2680, 0
      %v2796 = vsel %vm2713, %v2681, 0
      %v2799 = vsel %vm2713, %v2682, 0
      %v2802 = vsel %vm2713, %v2683, 0
      %v2805 = vsel %vm2713, %v2684, 0
      %v2808 = vsel %vm2713, %v2685, 0
      %vm2810 = vcmask 1041408
      %v2812 = vsel %vm2810, %v2710, 0
      %2814 = vmatprep.subr.bf16.mxu0 0
      %2815 = vmatpush1.bf16.msra.mxu0 %v2708
      %2816 = vmatprep.subr.bf16.mxu0 0
      %2817 = vmatpush1.bf16.msra.mxu0 %v2709
      %2818 = vmatprep.subr.bf16.mxu0 0
      %2819 = vmatpush1.bf16.msra.mxu0 %v2812
      %2820 = vmatprep.subr.bf16.mxu0 0
      %2821 = vmatpush1.bf16.msra.mxu0 0
      %2822 = vmatprep.subr.bf16.mxu0 0
      %2823 = vmatpush1.bf16.msra.mxu0 0
      %2824 = vmatprep.subr.bf16.mxu0 0
      %2825 = vmatpush1.bf16.msra.mxu0 0
      %2826 = vmatprep.subr.bf16.mxu0 0
      %2827 = vmatpush1.bf16.msra.mxu0 0
      %2828 = vmatprep.subr.bf16.mxu0 0
      %2829 = vmatpush1.bf16.msra.mxu0 0
      %2830 = vmatprep.subr.bf16.mxu0 0
      %2831 = vmatpush1.bf16.msra.mxu0 0
      %2832 = vmatprep.subr.bf16.mxu0 0
      %2833 = vmatpush1.bf16.msra.mxu0 0
      %2834 = vmatprep.subr.bf16.mxu0 0
      %2835 = vmatpush1.bf16.msra.mxu0 0
      %2836 = vmatprep.subr.bf16.mxu0 0
      %2837 = vmatpush1.bf16.msra.mxu0 0
      %2838 = vmatprep.subr.bf16.mxu0 0
      %2839 = vmatpush1.bf16.msra.mxu0 0
      %2840 = vmatprep.subr.bf16.mxu0 0
      %2841 = vmatpush1.bf16.msra.mxu0 0
      %2842 = vmatprep.subr.bf16.mxu0 0
      %2843 = vmatpush1.bf16.msra.mxu0 0
      %2844 = vmatprep.subr.bf16.mxu0 0
      %2845 = vmatpush1.bf16.msra.mxu0 0
      %2846 = vmatprep.mubr.bf16.mxu0 0
      %2847 = vmatmul.mubr.bf16.gmra.mrb[0].mxu0 %v2715
      %v2848 = vpop.f32.mrb[0].mxu0
      %v2849 = vadd.f32 %v2696, %v2848
      %v2850 = vpop.f32.mrb[0].mxu0
      %v2851 = vpop.f32.mrb[0].mxu0
      %v2852 = vadd.f32 %v2696, %v2851
      %v2853 = vpop.f32.mrb[0].mxu0
      %2854 = vmatprep.mubr.bf16.mxu0 0
      %2855 = vmatmul.mubr.bf16.gmra.mrb[0].mxu0 %v2718
      %v2856 = vpop.f32.mrb[0].mxu0
      %v2857 = vadd.f32 %v2696, %v2856
      %v2858 = vpop.f32.mrb[0].mxu0
      %v2859 = vpop.f32.mrb[0].mxu0
      %v2860 = vadd.f32 %v2696, %v2859
      %v2861 = vpop.f32.mrb[0].mxu0
      %2862 = vmatprep.mubr.bf16.mxu0 0
      %2863 = vmatmul.mubr.bf16.gmra.mrb[0].mxu0 %v2721
      %v2864 = vpop.f32.mrb[0].mxu0
      %v2865 = vadd.f32 %v2696, %v2864
      %v2866 = vpop.f32.mrb[0].mxu0
      %v2867 = vpop.f32.mrb[0].mxu0
      %v2868 = vadd.f32 %v2696, %v2867
      %v2869 = vpop.f32.mrb[0].mxu0
      %2870 = vmatprep.mubr.bf16.mxu0 0
      %2871 = vmatmul.mubr.bf16.gmra.mrb[0].mxu0 %v2724
      %v2872 = vpop.f32.mrb[0].mxu0
      %v2873 = vadd.f32 %v2696, %v2872
      %v2874 = vpop.f32.mrb[0].mxu0
      %v2875 = vpop.f32.mrb[0].mxu0
      %v2876 = vadd.f32 %v2696, %v2875
      %v2877 = vpop.f32.mrb[0].mxu0
      %2878 = vmatprep.mubr.bf16.mxu0 0
      %2879 = vmatmul.mubr.bf16.gmra.mrb[0].mxu0 %v2727
      %v2880 = vpop.f32.mrb[0].mxu0
      %v2881 = vadd.f32 %v2696, %v2880
      %v2882 = vpop.f32.mrb[0].mxu0
      %v2883 = vpop.f32.mrb[0].mxu0
      %v2884 = vadd.f32 %v2696, %v2883
      %v2885 = vpop.f32.mrb[0].mxu0
      %2886 = vmatprep.mubr.bf16.mxu0 0
      %2887 = vmatmul.mubr.bf16.gmra.mrb[0].mxu0 %v2730
      %v2888 = vpop.f32.mrb[0].mxu0
      %v2889 = vadd.f32 %v2696, %v2888
      %v2890 = vpop.f32.mrb[0].mxu0
      %v2891 = vpop.f32.mrb[0].mxu0
      %v2892 = vadd.f32 %v2696, %v2891
      %v2893 = vpop.f32.mrb[0].mxu0
      %2894 = vmatprep.mubr.bf16.mxu0 0
      %2895 = vmatmul.mubr.bf16.gmra.mrb[0].mxu0 %v2733
      %v2896 = vpop.f32.mrb[0].mxu0
      %v2897 = vadd.f32 %v2696, %v2896
      %v2898 = vpop.f32.mrb[0].mxu0
      %v2899 = vpop.f32.mrb[0].mxu0
      %v2900 = vadd.f32 %v2696, %v2899
      %v2901 = vpop.f32.mrb[0].mxu0
      %2902 = vmatprep.mubr.bf16.mxu0 0
      %2903 = vmatmul.mubr.bf16.gmra.mrb[0].mxu0 %v2736
      %v2904 = vpop.f32.mrb[0].mxu0
      %v2905 = vadd.f32 %v2696, %v2904
      %v2906 = vpop.f32.mrb[0].mxu0
      %v2907 = vpop.f32.mrb[0].mxu0
      %v2908 = vadd.f32 %v2696, %v2907
      %v2909 = vpop.f32.mrb[0].mxu0
      %2910 = vmatprep.mubr.bf16.mxu0 0
      %2911 = vmatmul.mubr.bf16.gmra.mrb[0].mxu0 %v2739
      %v2912 = vpop.f32.mrb[0].mxu0
      %v2913 = vadd.f32 %v2696, %v2912
      %v2914 = vpop.f32.mrb[0].mxu0
      %v2915 = vpop.f32.mrb[0].mxu0
      %v2916 = vadd.f32 %v2696, %v2915
      %v2917 = vpop.f32.mrb[0].mxu0
      %2918 = vmatprep.mubr.bf16.mxu0 0
      %2919 = vmatmul.mubr.bf16.gmra.mrb[0].mxu0 %v2742
      %v2920 = vpop.f32.mrb[0].mxu0
      %v2921 = vadd.f32 %v2696, %v2920
      %v2922 = vpop.f32.mrb[0].mxu0
      %v2923 = vpop.f32.mrb[0].mxu0
      %v2924 = vadd.f32 %v2696, %v2923
      %v2925 = vpop.f32.mrb[0].mxu0
      %2926 = vmatprep.mubr.bf16.mxu0 0
      %2927 = vmatmul.mubr.bf16.gmra.mrb[0].mxu0 %v2745
      %v2928 = vpop.f32.mrb[0].mxu0
      %v2929 = vadd.f32 %v2696, %v2928
      %v2930 = vpop.f32.mrb[0].mxu0
      %v2931 = vpop.f32.mrb[0].mxu0
      %v2932 = vadd.f32 %v2696, %v2931
      %v2933 = vpop.f32.mrb[0].mxu0
      %2934 = vmatprep.mubr.bf16.mxu0 0
      %2935 = vmatmul.mubr.bf16.gmra.mrb[0].mxu0 %v2748
      %v2936 = vpop.f32.mrb[0].mxu0
      %v2937 = vadd.f32 %v2696, %v2936
      %v2938 = vpop.f32.mrb[0].mxu0
      %v2939 = vpop.f32.mrb[0].mxu0
      %v2940 = vadd.f32 %v2696, %v2939
      %v2941 = vpop.f32.mrb[0].mxu0
      %2942 = vmatprep.mubr.bf16.mxu0 0
      %2943 = vmatmul.mubr.bf16.gmra.mrb[0].mxu0 %v2751
      %v2944 = vpop.f32.mrb[0].mxu0
      %v2945 = vadd.f32 %v2696, %v2944
      %v2946 = vpop.f32.mrb[0].mxu0
      %v2947 = vpop.f32.mrb[0].mxu0
      %v2948 = vadd.f32 %v2696, %v2947
      %v2949 = vpop.f32.mrb[0].mxu0
      %2950 = vmatprep.mubr.bf16.mxu0 0
      %2951 = vmatmul.mubr.bf16.gmra.mrb[0].mxu0 %v2754
      %v2952 = vpop.f32.mrb[0].mxu0
      %v2953 = vadd.f32 %v2696, %v2952
      %v2954 = vpop.f32.mrb[0].mxu0
      %v2955 = vpop.f32.mrb[0].mxu0
      %v2956 = vadd.f32 %v2696, %v2955
      %v2957 = vpop.f32.mrb[0].mxu0
      %2958 = vmatprep.mubr.bf16.mxu0 0
      %2959 = vmatmul.mubr.bf16.gmra.mrb[0].mxu0 %v2757
      %v2960 = vpop.f32.mrb[0].mxu0
      %v2961 = vadd.f32 %v2696, %v2960
      %v2962 = vpop.f32.mrb[0].mxu0
      %v2963 = vpop.f32.mrb[0].mxu0
      %v2964 = vadd.f32 %v2696, %v2963
      %v2965 = vpop.f32.mrb[0].mxu0
      %2966 = vmatprep.mubr.bf16.mxu0 0
      %2967 = vmatmul.mubr.bf16.gmra.mrb[0].mxu0 %v2760
      %v2968 = vpop.f32.mrb[0].mxu0
      %v2969 = vadd.f32 %v2696, %v2968
      %v2970 = vpop.f32.mrb[0].mxu0
      %v2971 = vpop.f32.mrb[0].mxu0
      %v2972 = vadd.f32 %v2696, %v2971
      %v2973 = vpop.f32.mrb[0].mxu0
      %2974 = vmatprep.mubr.bf16.mxu0 0
      %2975 = vmatmul.mubr.bf16.gmra.mrb[0].mxu0 %v2763
      %v2976 = vpop.f32.mrb[0].mxu0
      %v2977 = vadd.f32 %v2696, %v2976
      %v2978 = vpop.f32.mrb[0].mxu0
      %v2979 = vpop.f32.mrb[0].mxu0
      %v2980 = vadd.f32 %v2696, %v2979
      %v2981 = vpop.f32.mrb[0].mxu0
      %2982 = vmatprep.mubr.bf16.mxu0 0
      %2983 = vmatmul.mubr.bf16.gmra.mrb[0].mxu0 %v2766
      %v2984 = vpop.f32.mrb[0].mxu0
      %v2985 = vadd.f32 %v2696, %v2984
      %v2986 = vpop.f32.mrb[0].mxu0
      %v2987 = vpop.f32.mrb[0].mxu0
      %v2988 = vadd.f32 %v2696, %v2987
      %v2989 = vpop.f32.mrb[0].mxu0
      %2990 = vmatprep.mubr.bf16.mxu0 0
      %2991 = vmatmul.mubr.bf16.gmra.mrb[0].mxu0 %v2769
      %v2992 = vpop.f32.mrb[0].mxu0
      %v2993 = vadd.f32 %v2696, %v2992
      %v2994 = vpop.f32.mrb[0].mxu0
      %v2995 = vpop.f32.mrb[0].mxu0
      %v2996 = vadd.f32 %v2696, %v2995
      %v2997 = vpop.f32.mrb[0].mxu0
      %2998 = vmatprep.mubr.bf16.mxu0 0
      %2999 = vmatmul.mubr.bf16.gmra.mrb[0].mxu0 %v2772
      %v3000 = vpop.f32.mrb[0].mxu0
      %v3001 = vadd.f32 %v2696, %v3000
      %v3002 = vpop.f32.mrb[0].mxu0
      %v3003 = vpop.f32.mrb[0].mxu0
      %v3004 = vadd.f32 %v2696, %v3003
      %v3005 = vpop.f32.mrb[0].mxu0
      %3006 = vmatprep.mubr.bf16.mxu0 0
      %3007 = vmatmul.mubr.bf16.gmra.mrb[0].mxu0 %v2775
      %v3008 = vpop.f32.mrb[0].mxu0
      %v3009 = vadd.f32 %v2696, %v3008
      %v3010 = vpop.f32.mrb[0].mxu0
      %v3011 = vpop.f32.mrb[0].mxu0
      %v3012 = vadd.f32 %v2696, %v3011
      %v3013 = vpop.f32.mrb[0].mxu0
      %3014 = vmatprep.mubr.bf16.mxu0 0
      %3015 = vmatmul.mubr.bf16.gmra.mrb[0].mxu0 %v2778
      %v3016 = vpop.f32.mrb[0].mxu0
      %v3017 = vadd.f32 %v2696, %v3016
      %v3018 = vpop.f32.mrb[0].mxu0
      %v3019 = vpop.f32.mrb[0].mxu0
      %v3020 = vadd.f32 %v2696, %v3019
      %v3021 = vpop.f32.mrb[0].mxu0
      %3022 = vmatprep.mubr.bf16.mxu0 0
      %3023 = vmatmul.mubr.bf16.gmra.mrb[0].mxu0 %v2781
      %v3024 = vpop.f32.mrb[0].mxu0
      %v3025 = vadd.f32 %v2696, %v3024
      %v3026 = vpop.f32.mrb[0].mxu0
      %v3027 = vpop.f32.mrb[0].mxu0
      %v3028 = vadd.f32 %v2696, %v3027
      %v3029 = vpop.f32.mrb[0].mxu0
      %3030 = vmatprep.mubr.bf16.mxu0 0
      %3031 = vmatmul.mubr.bf16.gmra.mrb[0].mxu0 %v2784
      %v3032 = vpop.f32.mrb[0].mxu0
      %v3033 = vadd.f32 %v2696, %v3032
      %v3034 = vpop.f32.mrb[0].mxu0
      %v3035 = vpop.f32.mrb[0].mxu0
      %v3036 = vadd.f32 %v2696, %v3035
      %v3037 = vpop.f32.mrb[0].mxu0
      %3038 = vmatprep.mubr.bf16.mxu0 0
      %3039 = vmatmul.mubr.bf16.gmra.mrb[0].mxu0 %v2787
      %v3040 = vpop.f32.mrb[0].mxu0
      %v3041 = vadd.f32 %v2696, %v3040
      %v3042 = vpop.f32.mrb[0].mxu0
      %v3043 = vpop.f32.mrb[0].mxu0
      %v3044 = vadd.f32 %v2696, %v3043
      %v3045 = vpop.f32.mrb[0].mxu0
      %3046 = vmatprep.mubr.bf16.mxu0 0
      %3047 = vmatmul.mubr.bf16.gmra.mrb[0].mxu0 %v2790
      %v3048 = vpop.f32.mrb[0].mxu0
      %v3049 = vadd.f32 %v2696, %v3048
      %v3050 = vpop.f32.mrb[0].mxu0
      %v3051 = vpop.f32.mrb[0].mxu0
      %v3052 = vadd.f32 %v2696, %v3051
      %v3053 = vpop.f32.mrb[0].mxu0
      %3054 = vmatprep.mubr.bf16.mxu0 0
      %3055 = vmatmul.mubr.bf16.gmra.mrb[0].mxu0 %v2793
      %v3056 = vpop.f32.mrb[0].mxu0
      %v3057 = vadd.f32 %v2696, %v3056
      %v3058 = vpop.f32.mrb[0].mxu0
      %v3059 = vpop.f32.mrb[0].mxu0
      %v3060 = vadd.f32 %v2696, %v3059
      %v3061 = vpop.f32.mrb[0].mxu0
      %3062 = vmatprep.mubr.bf16.mxu0 0
      %3063 = vmatmul.mubr.bf16.gmra.mrb[0].mxu0 %v2796
      %v3064 = vpop.f32.mrb[0].mxu0
      %v3065 = vadd.f32 %v2696, %v3064
      %v3066 = vpop.f32.mrb[0].mxu0
      %v3067 = vpop.f32.mrb[0].mxu0
      %v3068 = vadd.f32 %v2696, %v3067
      %v3069 = vpop.f32.mrb[0].mxu0
      %3070 = vmatprep.mubr.bf16.mxu0 0
      %3071 = vmatmul.mubr.bf16.gmra.mrb[0].mxu0 %v2799
      %v3072 = vpop.f32.mrb[0].mxu0
      %v3073 = vadd.f32 %v2696, %v3072
      %v3074 = vpop.f32.mrb[0].mxu0
      %v3075 = vpop.f32.mrb[0].mxu0
      %v3076 = vadd.f32 %v2696, %v3075
      %v3077 = vpop.f32.mrb[0].mxu0
      %3078 = vmatprep.mubr.bf16.mxu0 0
      %3079 = vmatmul.mubr.bf16.gmra.mrb[0].mxu0 %v2802
      %v3080 = vpop.f32.mrb[0].mxu0
      %v3081 = vadd.f32 %v2696, %v3080
      %v3082 = vpop.f32.mrb[0].mxu0
      %v3083 = vpop.f32.mrb[0].mxu0
      %v3084 = vadd.f32 %v2696, %v3083
      %v3085 = vpop.f32.mrb[0].mxu0
      %3086 = vmatprep.mubr.bf16.mxu0 0
      %3087 = vmatmul.mubr.bf16.gmra.mrb[0].mxu0 %v2805
      %v3088 = vpop.f32.mrb[0].mxu0
      %v3089 = vadd.f32 %v2696, %v3088
      %v3090 = vpop.f32.mrb[0].mxu0
      %v3091 = vpop.f32.mrb[0].mxu0
      %v3092 = vadd.f32 %v2696, %v3091
      %v3093 = vpop.f32.mrb[0].mxu0
      %3094 = vmatprep.mubr.bf16.mxu0 0
      %3095 = vmatmul.mubr.bf16.gmra.mrb[0].mxu0 %v2808
      %v3096 = vpop.f32.mrb[0].mxu0
      %v3097 = vadd.f32 %v2696, %v3096
      %v3098 = vpop.f32.mrb[0].mxu0
      %v3099 = vpop.f32.mrb[0].mxu0
      %v3100 = vadd.f32 %v2696, %v3099
      %v3101 = vpop.f32.mrb[0].mxu0
      %3102 = vdwg.mxu0
      %v3103 = vmax.f32 %v2849, 0.0
      %v3104 = vmax.f32 %v2852, 0.0
      %v3105 = vmax.f32 %v2857, 0.0
      %v3106 = vmax.f32 %v2860, 0.0
      %v3107 = vmax.f32 %v2865, 0.0
      %v3108 = vmax.f32 %v2868, 0.0
      %v3109 = vmax.f32 %v2873, 0.0
      %v3110 = vmax.f32 %v2876, 0.0
      %v3111 = vmax.f32 %v2881, 0.0
      %v3112 = vmax.f32 %v2884, 0.0
      %v3113 = vmax.f32 %v2889, 0.0
      %v3114 = vmax.f32 %v2892, 0.0
      %v3115 = vmax.f32 %v2897, 0.0
      %v3116 = vmax.f32 %v2900, 0.0
      %v3117 = vmax.f32 %v2905, 0.0
      %v3118 = vmax.f32 %v2908, 0.0
      %v3119 = vmax.f32 %v2913, 0.0
      %v3120 = vmax.f32 %v2916, 0.0
      %v3121 = vmax.f32 %v2921, 0.0
      %v3122 = vmax.f32 %v2924, 0.0
      %v3123 = vmax.f32 %v2929, 0.0
      %v3124 = vmax.f32 %v2932, 0.0
      %v3125 = vmax.f32 %v2937, 0.0
      %v3126 = vmax.f32 %v2940, 0.0
      %v3127 = vmax.f32 %v2945, 0.0
      %v3128 = vmax.f32 %v2948, 0.0
      %v3129 = vmax.f32 %v2953, 0.0
      %v3130 = vmax.f32 %v2956, 0.0
      %v3131 = vmax.f32 %v2961, 0.0
      %v3132 = vmax.f32 %v2964, 0.0
      %v3133 = vmax.f32 %v2969, 0.0
      %v3134 = vmax.f32 %v2972, 0.0
      %v3135 = vmax.f32 %v2977, 0.0
      %v3136 = vmax.f32 %v2980, 0.0
      %v3137 = vmax.f32 %v2985, 0.0
      %v3138 = vmax.f32 %v2988, 0.0
      %v3139 = vmax.f32 %v2993, 0.0
      %v3140 = vmax.f32 %v2996, 0.0
      %v3141 = vmax.f32 %v3001, 0.0
      %v3142 = vmax.f32 %v3004, 0.0
      %v3143 = vmax.f32 %v3009, 0.0
      %v3144 = vmax.f32 %v3012, 0.0
      %v3145 = vmax.f32 %v3017, 0.0
      %v3146 = vmax.f32 %v3020, 0.0
      %v3147 = vmax.f32 %v3025, 0.0
      %v3148 = vmax.f32 %v3028, 0.0
      %v3149 = vmax.f32 %v3033, 0.0
      %v3150 = vmax.f32 %v3036, 0.0
      %v3151 = vmax.f32 %v3041, 0.0
      %v3152 = vmax.f32 %v3044, 0.0
      %v3153 = vmax.f32 %v3049, 0.0
      %v3154 = vmax.f32 %v3052, 0.0
      %v3155 = vmax.f32 %v3057, 0.0
      %v3156 = vmax.f32 %v3060, 0.0
      %v3157 = vmax.f32 %v3065, 0.0
      %v3158 = vmax.f32 %v3068, 0.0
      %v3159 = vmax.f32 %v3073, 0.0
      %v3160 = vmax.f32 %v3076, 0.0
      %v3161 = vmax.f32 %v3081, 0.0
      %v3162 = vmax.f32 %v3084, 0.0
      %v3163 = vmax.f32 %v3089, 0.0
      %v3164 = vmax.f32 %v3092, 0.0
      %v3165 = vmax.f32 %v3097, 0.0
      %v3166 = vmax.f32 %v3100, 0.0
      %vm3167 = vcmask 64512
      %3168 = vst.msk [vmem:[#allocation4] sm:$0xff] %vm3167, %v3103
      %3169 = vst.msk [vmem:[#allocation4 + $0x8] sm:$0xff] %vm3167, %v3104
      %3170 = vst.msk [vmem:[#allocation4 + $0x10] sm:$0xff] %vm3167, %v3105
      %3171 = vst.msk [vmem:[#allocation4 + $0x18] sm:$0xff] %vm3167, %v3106
      %3172 = vst.msk [vmem:[#allocation4 + $0x20] sm:$0xff] %vm3167, %v3107
      %3173 = vst.msk [vmem:[#allocation4 + $0x28] sm:$0xff] %vm3167, %v3108
      %3174 = vst.msk [vmem:[#allocation4 + $0x30] sm:$0xff] %vm3167, %v3109
      %3175 = vst.msk [vmem:[#allocation4 + $0x38] sm:$0xff] %vm3167, %v3110
      %3176 = vst.msk [vmem:[#allocation4 + $0x40] sm:$0xff] %vm3167, %v3111
      %3177 = vst.msk [vmem:[#allocation4 + $0x48] sm:$0xff] %vm3167, %v3112
      %3178 = vst.msk [vmem:[#allocation4 + $0x50] sm:$0xff] %vm3167, %v3113
      %3179 = vst.msk [vmem:[#allocation4 + $0x58] sm:$0xff] %vm3167, %v3114
      %3180 = vst.msk [vmem:[#allocation4 + $0x60] sm:$0xff] %vm3167, %v3115
      %3181 = vst.msk [vmem:[#allocation4 + $0x68] sm:$0xff] %vm3167, %v3116
      %3182 = vst.msk [vmem:[#allocation4 + $0x70] sm:$0xff] %vm3167, %v3117
      %3183 = vst.msk [vmem:[#allocation4 + $0x78] sm:$0xff] %vm3167, %v3118
      %3184 = vst.msk [vmem:[#allocation4 + $0x80] sm:$0xff] %vm3167, %v3119
      %3185 = vst.msk [vmem:[#allocation4 + $0x88] sm:$0xff] %vm3167, %v3120
      %3186 = vst.msk [vmem:[#allocation4 + $0x90] sm:$0xff] %vm3167, %v3121
      %3187 = vst.msk [vmem:[#allocation4 + $0x98] sm:$0xff] %vm3167, %v3122
      %3188 = vst.msk [vmem:[#allocation4 + $0xa0] sm:$0xff] %vm3167, %v3123
      %3189 = vst.msk [vmem:[#allocation4 + $0xa8] sm:$0xff] %vm3167, %v3124
      %3190 = vst.msk [vmem:[#allocation4 + $0xb0] sm:$0xff] %vm3167, %v3125
      %3191 = vst.msk [vmem:[#allocation4 + $0xb8] sm:$0xff] %vm3167, %v3126
      %3192 = vst.msk [vmem:[#allocation4 + $0xc0] sm:$0xff] %vm3167, %v3127
      %3193 = vst.msk [vmem:[#allocation4 + $0xc8] sm:$0xff] %vm3167, %v3128
      %3194 = vst.msk [vmem:[#allocation4 + $0xd0] sm:$0xff] %vm3167, %v3129
      %3195 = vst.msk [vmem:[#allocation4 + $0xd8] sm:$0xff] %vm3167, %v3130
      %3196 = vst.msk [vmem:[#allocation4 + $0xe0] sm:$0xff] %vm3167, %v3131
      %3197 = vst.msk [vmem:[#allocation4 + $0xe8] sm:$0xff] %vm3167, %v3132
      %3198 = vst.msk [vmem:[#allocation4 + $0xf0] sm:$0xff] %vm3167, %v3133
      %3199 = vst.msk [vmem:[#allocation4 + $0xf8] sm:$0xff] %vm3167, %v3134
      %3200 = vst.msk [vmem:[#allocation4 + $0x100] sm:$0xff] %vm3167, %v3135
      %3201 = vst.msk [vmem:[#allocation4 + $0x108] sm:$0xff] %vm3167, %v3136
      %3202 = vst.msk [vmem:[#allocation4 + $0x110] sm:$0xff] %vm3167, %v3137
      %3203 = vst.msk [vmem:[#allocation4 + $0x118] sm:$0xff] %vm3167, %v3138
      %3204 = vst.msk [vmem:[#allocation4 + $0x120] sm:$0xff] %vm3167, %v3139
      %3205 = vst.msk [vmem:[#allocation4 + $0x128] sm:$0xff] %vm3167, %v3140
      %3206 = vst.msk [vmem:[#allocation4 + $0x130] sm:$0xff] %vm3167, %v3141
      %3207 = vst.msk [vmem:[#allocation4 + $0x138] sm:$0xff] %vm3167, %v3142
      %3208 = vst.msk [vmem:[#allocation4 + $0x140] sm:$0xff] %vm3167, %v3143
      %3209 = vst.msk [vmem:[#allocation4 + $0x148] sm:$0xff] %vm3167, %v3144
      %3210 = vst.msk [vmem:[#allocation4 + $0x150] sm:$0xff] %vm3167, %v3145
      %3211 = vst.msk [vmem:[#allocation4 + $0x158] sm:$0xff] %vm3167, %v3146
      %3212 = vst.msk [vmem:[#allocation4 + $0x160] sm:$0xff] %vm3167, %v3147
      %3213 = vst.msk [vmem:[#allocation4 + $0x168] sm:$0xff] %vm3167, %v3148
      %3214 = vst.msk [vmem:[#allocation4 + $0x170] sm:$0xff] %vm3167, %v3149
      %3215 = vst.msk [vmem:[#allocation4 + $0x178] sm:$0xff] %vm3167, %v3150
      %3216 = vst.msk [vmem:[#allocation4 + $0x180] sm:$0xff] %vm3167, %v3151
      %3217 = vst.msk [vmem:[#allocation4 + $0x188] sm:$0xff] %vm3167, %v3152
      %3218 = vst.msk [vmem:[#allocation4 + $0x190] sm:$0xff] %vm3167, %v3153
      %3219 = vst.msk [vmem:[#allocation4 + $0x198] sm:$0xff] %vm3167, %v3154
      %3220 = vst.msk [vmem:[#allocation4 + $0x1a0] sm:$0xff] %vm3167, %v3155
      %3221 = vst.msk [vmem:[#allocation4 + $0x1a8] sm:$0xff] %vm3167, %v3156
      %3222 = vst.msk [vmem:[#allocation4 + $0x1b0] sm:$0xff] %vm3167, %v3157
      %3223 = vst.msk [vmem:[#allocation4 + $0x1b8] sm:$0xff] %vm3167, %v3158
      %3224 = vst.msk [vmem:[#allocation4 + $0x1c0] sm:$0xff] %vm3167, %v3159
      %3225 = vst.msk [vmem:[#allocation4 + $0x1c8] sm:$0xff] %vm3167, %v3160
      %3226 = vst.msk [vmem:[#allocation4 + $0x1d0] sm:$0xff] %vm3167, %v3161
      %3227 = vst.msk [vmem:[#allocation4 + $0x1d8] sm:$0xff] %vm3167, %v3162
      %3228 = vst.msk [vmem:[#allocation4 + $0x1e0] sm:$0xff] %vm3167, %v3163
      %3229 = vst.msk [vmem:[#allocation4 + $0x1e8] sm:$0xff] %vm3167, %v3164
      %3230 = vst.msk [vmem:[#allocation4 + $0x1f0] sm:$0xff] %vm3167, %v3165
      %3231 = vst.msk [vmem:[#allocation4 + $0x1f8] sm:$0xff] %vm3167, %v3166
      %v3232 = vld [vmem:[#allocation4] sm:$0xff]
      %v3233 = vld [vmem:[#allocation4 + $0x8] sm:$0xff]
      %v3234 = vld [vmem:[#allocation4 + $0x20] sm:$0xff]
      %v3235 = vld [vmem:[#allocation4 + $0x28] sm:$0xff]
      %v3236 = vld [vmem:[#allocation4 + $0x40] sm:$0xff]
      %v3237 = vld [vmem:[#allocation4 + $0x48] sm:$0xff]
      %v3238 = vld [vmem:[#allocation4 + $0x60] sm:$0xff]
      %v3239 = vld [vmem:[#allocation4 + $0x68] sm:$0xff]
      %v3240 = vld [vmem:[#allocation4 + $0x80] sm:$0xff]
      %v3241 = vld [vmem:[#allocation4 + $0x88] sm:$0xff]
      %v3242 = vld [vmem:[#allocation4 + $0xa0] sm:$0xff]
      %v3243 = vld [vmem:[#allocation4 + $0xa8] sm:$0xff]
      %v3244 = vld [vmem:[#allocation4 + $0xc0] sm:$0xff]
      %v3245 = vld [vmem:[#allocation4 + $0xc8] sm:$0xff]
      %v3246 = vld [vmem:[#allocation4 + $0xe0] sm:$0xff]
      %v3247 = vld [vmem:[#allocation4 + $0xe8] sm:$0xff]
      %v3248 = vld [vmem:[#allocation4 + $0x100] sm:$0xff]
      %v3249 = vld [vmem:[#allocation4 + $0x108] sm:$0xff]
      %v3250 = vld [vmem:[#allocation4 + $0x120] sm:$0xff]
      %v3251 = vld [vmem:[#allocation4 + $0x128] sm:$0xff]
      %v3252 = vld [vmem:[#allocation4 + $0x140] sm:$0xff]
      %v3253 = vld [vmem:[#allocation4 + $0x148] sm:$0xff]
      %v3254 = vld [vmem:[#allocation4 + $0x160] sm:$0xff]
      %v3255 = vld [vmem:[#allocation4 + $0x168] sm:$0xff]
      %v3256 = vld [vmem:[#allocation4 + $0x180] sm:$0xff]
      %v3257 = vld [vmem:[#allocation4 + $0x188] sm:$0xff]
      %v3258 = vld [vmem:[#allocation4 + $0x1a0] sm:$0xff]
      %v3259 = vld [vmem:[#allocation4 + $0x1a8] sm:$0xff]
      %v3260 = vld [vmem:[#allocation4 + $0x1c0] sm:$0xff]
      %v3261 = vld [vmem:[#allocation4 + $0x1c8] sm:$0xff]
      %v3262 = vld [vmem:[#allocation4 + $0x1e0] sm:$0xff]
      %v3263 = vld [vmem:[#allocation4 + $0x1e8] sm:$0xff]
      %s3264 = scalar_lea.vmem [#allocation4], 16
      %v3265 = vld [vmem:[%s3264] sm:$0xff]
      %v3266 = vld [vmem:[%s3264 + $0x8] sm:$0xff]
      %v3267 = vld [vmem:[%s3264 + $0x20] sm:$0xff]
      %v3268 = vld [vmem:[%s3264 + $0x28] sm:$0xff]
      %v3269 = vld [vmem:[%s3264 + $0x40] sm:$0xff]
      %v3270 = vld [vmem:[%s3264 + $0x48] sm:$0xff]
      %v3271 = vld [vmem:[%s3264 + $0x60] sm:$0xff]
      %v3272 = vld [vmem:[%s3264 + $0x68] sm:$0xff]
      %v3273 = vld [vmem:[%s3264 + $0x80] sm:$0xff]
      %v3274 = vld [vmem:[%s3264 + $0x88] sm:$0xff]
      %v3275 = vld [vmem:[%s3264 + $0xa0] sm:$0xff]
      %v3276 = vld [vmem:[%s3264 + $0xa8] sm:$0xff]
      %v3277 = vld [vmem:[%s3264 + $0xc0] sm:$0xff]
      %v3278 = vld [vmem:[%s3264 + $0xc8] sm:$0xff]
      %v3279 = vld [vmem:[%s3264 + $0xe0] sm:$0xff]
      %v3280 = vld [vmem:[%s3264 + $0xe8] sm:$0xff]
      %v3281 = vld [vmem:[%s3264 + $0x100] sm:$0xff]
      %v3282 = vld [vmem:[%s3264 + $0x108] sm:$0xff]
      %v3283 = vld [vmem:[%s3264 + $0x120] sm:$0xff]
      %v3284 = vld [vmem:[%s3264 + $0x128] sm:$0xff]
      %v3285 = vld [vmem:[%s3264 + $0x140] sm:$0xff]
      %v3286 = vld [vmem:[%s3264 + $0x148] sm:$0xff]
      %v3287 = vld [vmem:[%s3264 + $0x160] sm:$0xff]
      %v3288 = vld [vmem:[%s3264 + $0x168] sm:$0xff]
      %v3289 = vld [vmem:[%s3264 + $0x180] sm:$0xff]
      %v3290 = vld [vmem:[%s3264 + $0x188] sm:$0xff]
      %v3291 = vld [vmem:[%s3264 + $0x1a0] sm:$0xff]
      %v3292 = vld [vmem:[%s3264 + $0x1a8] sm:$0xff]
      %v3293 = vld [vmem:[%s3264 + $0x1c0] sm:$0xff]
      %v3294 = vld [vmem:[%s3264 + $0x1c8] sm:$0xff]
      %v3295 = vld [vmem:[%s3264 + $0x1e0] sm:$0xff]
      %v3296 = vld [vmem:[%s3264 + $0x1e8] sm:$0xff]
      %v3297 = vmax.f32 %v3232, %v3265
      %v3298 = vmax.f32 %v3233, %v3266
      %v3299 = vmax.f32 %v3234, %v3267
      %v3300 = vmax.f32 %v3235, %v3268
      %v3301 = vmax.f32 %v3236, %v3269
      %v3302 = vmax.f32 %v3237, %v3270
      %v3303 = vmax.f32 %v3238, %v3271
      %v3304 = vmax.f32 %v3239, %v3272
      %v3305 = vmax.f32 %v3240, %v3273
      %v3306 = vmax.f32 %v3241, %v3274
      %v3307 = vmax.f32 %v3242, %v3275
      %v3308 = vmax.f32 %v3243, %v3276
      %v3309 = vmax.f32 %v3244, %v3277
      %v3310 = vmax.f32 %v3245, %v3278
      %v3311 = vmax.f32 %v3246, %v3279
      %v3312 = vmax.f32 %v3247, %v3280
      %v3313 = vmax.f32 %v3248, %v3281
      %v3314 = vmax.f32 %v3249, %v3282
      %v3315 = vmax.f32 %v3250, %v3283
      %v3316 = vmax.f32 %v3251, %v3284
      %v3317 = vmax.f32 %v3252, %v3285
      %v3318 = vmax.f32 %v3253, %v3286
      %v3319 = vmax.f32 %v3254, %v3287
      %v3320 = vmax.f32 %v3255, %v3288
      %v3321 = vmax.f32 %v3256, %v3289
      %v3322 = vmax.f32 %v3257, %v3290
      %v3323 = vmax.f32 %v3258, %v3291
      %v3324 = vmax.f32 %v3259, %v3292
      %v3325 = vmax.f32 %v3260, %v3293
      %v3326 = vmax.f32 %v3261, %v3294
      %v3327 = vmax.f32 %v3262, %v3295
      %v3328 = vmax.f32 %v3263, %v3296
      %3329 = vst.msk [vmem:[#allocation4] sm:$0xff] %vm3167, %v3297
      %3330 = vst.msk [vmem:[#allocation4 + $0x8] sm:$0xff] %vm3167, %v3298
      %3331 = vst.msk [vmem:[#allocation4 + $0x10] sm:$0xff] %vm3167, %v3299
      %3332 = vst.msk [vmem:[#allocation4 + $0x18] sm:$0xff] %vm3167, %v3300
      %3333 = vst.msk [vmem:[#allocation4 + $0x20] sm:$0xff] %vm3167, %v3301
      %3334 = vst.msk [vmem:[#allocation4 + $0x28] sm:$0xff] %vm3167, %v3302
      %3335 = vst.msk [vmem:[#allocation4 + $0x30] sm:$0xff] %vm3167, %v3303
      %3336 = vst.msk [vmem:[#allocation4 + $0x38] sm:$0xff] %vm3167, %v3304
      %3337 = vst.msk [vmem:[#allocation4 + $0x40] sm:$0xff] %vm3167, %v3305
      %3338 = vst.msk [vmem:[#allocation4 + $0x48] sm:$0xff] %vm3167, %v3306
      %3339 = vst.msk [vmem:[#allocation4 + $0x50] sm:$0xff] %vm3167, %v3307
      %3340 = vst.msk [vmem:[#allocation4 + $0x58] sm:$0xff] %vm3167, %v3308
      %3341 = vst.msk [vmem:[#allocation4 + $0x60] sm:$0xff] %vm3167, %v3309
      %3342 = vst.msk [vmem:[#allocation4 + $0x68] sm:$0xff] %vm3167, %v3310
      %3343 = vst.msk [vmem:[#allocation4 + $0x70] sm:$0xff] %vm3167, %v3311
      %3344 = vst.msk [vmem:[#allocation4 + $0x78] sm:$0xff] %vm3167, %v3312
      %3345 = vst.msk [vmem:[#allocation4 + $0x80] sm:$0xff] %vm3167, %v3313
      %3346 = vst.msk [vmem:[#allocation4 + $0x88] sm:$0xff] %vm3167, %v3314
      %3347 = vst.msk [vmem:[#allocation4 + $0x90] sm:$0xff] %vm3167, %v3315
      %3348 = vst.msk [vmem:[#allocation4 + $0x98] sm:$0xff] %vm3167, %v3316
      %3349 = vst.msk [vmem:[#allocation4 + $0xa0] sm:$0xff] %vm3167, %v3317
      %3350 = vst.msk [vmem:[#allocation4 + $0xa8] sm:$0xff] %vm3167, %v3318
      %3351 = vst.msk [vmem:[#allocation4 + $0xb0] sm:$0xff] %vm3167, %v3319
      %3352 = vst.msk [vmem:[#allocation4 + $0xb8] sm:$0xff] %vm3167, %v3320
      %3353 = vst.msk [vmem:[#allocation4 + $0xc0] sm:$0xff] %vm3167, %v3321
      %3354 = vst.msk [vmem:[#allocation4 + $0xc8] sm:$0xff] %vm3167, %v3322
      %3355 = vst.msk [vmem:[#allocation4 + $0xd0] sm:$0xff] %vm3167, %v3323
      %3356 = vst.msk [vmem:[#allocation4 + $0xd8] sm:$0xff] %vm3167, %v3324
      %3357 = vst.msk [vmem:[#allocation4 + $0xe0] sm:$0xff] %vm3167, %v3325
      %3358 = vst.msk [vmem:[#allocation4 + $0xe8] sm:$0xff] %vm3167, %v3326
      %3359 = vst.msk [vmem:[#allocation4 + $0xf0] sm:$0xff] %vm3167, %v3327
      %3360 = vst.msk [vmem:[#allocation4 + $0xf8] sm:$0xff] %vm3167, %v3328
      %v3361 = vld [vmem:[#allocation4] ss:$2 sm:$0xff]
      %s3362 = scalar_lea.vmem [#allocation4], 16
      %v3363 = vld [vmem:[%s3362] ss:$2 sm:$0xff]
      %s3364 = scalar_lea.vmem [#allocation4], 32
      %v3365 = vld [vmem:[%s3364] ss:$2 sm:$0xff]
      %s3366 = scalar_lea.vmem [#allocation4], 48
      %v3367 = vld [vmem:[%s3366] ss:$2 sm:$0xff]
      %s3368 = scalar_lea.vmem [#allocation4], 64
      %v3369 = vld [vmem:[%s3368] ss:$2 sm:$0xff]
      %s3370 = scalar_lea.vmem [#allocation4], 80
      %v3371 = vld [vmem:[%s3370] ss:$2 sm:$0xff]
      %s3372 = scalar_lea.vmem [#allocation4], 96
      %v3373 = vld [vmem:[%s3372] ss:$2 sm:$0xff]
      %s3374 = scalar_lea.vmem [#allocation4], 112
      %v3375 = vld [vmem:[%s3374] ss:$2 sm:$0xff]
      %s3376 = scalar_lea.vmem [#allocation4], 128
      %v3377 = vld [vmem:[%s3376] ss:$2 sm:$0xff]
      %s3378 = scalar_lea.vmem [#allocation4], 144
      %v3379 = vld [vmem:[%s3378] ss:$2 sm:$0xff]
      %s3380 = scalar_lea.vmem [#allocation4], 160
      %v3381 = vld [vmem:[%s3380] ss:$2 sm:$0xff]
      %s3382 = scalar_lea.vmem [#allocation4], 176
      %v3383 = vld [vmem:[%s3382] ss:$2 sm:$0xff]
      %s3384 = scalar_lea.vmem [#allocation4], 192
      %v3385 = vld [vmem:[%s3384] ss:$2 sm:$0xff]
      %s3386 = scalar_lea.vmem [#allocation4], 208
      %v3387 = vld [vmem:[%s3386] ss:$2 sm:$0xff]
      %s3388 = scalar_lea.vmem [#allocation4], 224
      %v3389 = vld [vmem:[%s3388] ss:$2 sm:$0xff]
      %s3390 = scalar_lea.vmem [#allocation4], 240
      %v3391 = vld [vmem:[%s3390] ss:$2 sm:$0xff]
      %s3392 = scalar_lea.vmem [#allocation4], 1
      %v3393 = vld [vmem:[%s3392] ss:$2 sm:$0xff]
      %s3394 = scalar_lea.vmem [#allocation4], 17
      %v3395 = vld [vmem:[%s3394] ss:$2 sm:$0xff]
      %s3396 = scalar_lea.vmem [#allocation4], 33
      %v3397 = vld [vmem:[%s3396] ss:$2 sm:$0xff]
      %s3398 = scalar_lea.vmem [#allocation4], 49
      %v3399 = vld [vmem:[%s3398] ss:$2 sm:$0xff]
      %s3400 = scalar_lea.vmem [#allocation4], 65
      %v3401 = vld [vmem:[%s3400] ss:$2 sm:$0xff]
      %s3402 = scalar_lea.vmem [#allocation4], 81
      %v3403 = vld [vmem:[%s3402] ss:$2 sm:$0xff]
      %s3404 = scalar_lea.vmem [#allocation4], 97
      %v3405 = vld [vmem:[%s3404] ss:$2 sm:$0xff]
      %s3406 = scalar_lea.vmem [#allocation4], 113
      %v3407 = vld [vmem:[%s3406] ss:$2 sm:$0xff]
      %s3408 = scalar_lea.vmem [#allocation4], 129
      %v3409 = vld [vmem:[%s3408] ss:$2 sm:$0xff]
      %s3410 = scalar_lea.vmem [#allocation4], 145
      %v3411 = vld [vmem:[%s3410] ss:$2 sm:$0xff]
      %s3412 = scalar_lea.vmem [#allocation4], 161
      %v3413 = vld [vmem:[%s3412] ss:$2 sm:$0xff]
      %s3414 = scalar_lea.vmem [#allocation4], 177
      %v3415 = vld [vmem:[%s3414] ss:$2 sm:$0xff]
      %s3416 = scalar_lea.vmem [#allocation4], 193
      %v3417 = vld [vmem:[%s3416] ss:$2 sm:$0xff]
      %s3418 = scalar_lea.vmem [#allocation4], 209
      %v3419 = vld [vmem:[%s3418] ss:$2 sm:$0xff]
      %s3420 = scalar_lea.vmem [#allocation4], 225
      %v3421 = vld [vmem:[%s3420] ss:$2 sm:$0xff]
      %s3422 = scalar_lea.vmem [#allocation4], 241
      %v3423 = vld [vmem:[%s3422] ss:$2 sm:$0xff]
      %v3424 = vmax.f32 %v3361, %v3393
      %v3425 = vmax.f32 %v3363, %v3395
      %v3426 = vmax.f32 %v3365, %v3397
      %v3427 = vmax.f32 %v3367, %v3399
      %v3428 = vmax.f32 %v3369, %v3401
      %v3429 = vmax.f32 %v3371, %v3403
      %v3430 = vmax.f32 %v3373, %v3405
      %v3431 = vmax.f32 %v3375, %v3407
      %v3432 = vmax.f32 %v3377, %v3409
      %v3433 = vmax.f32 %v3379, %v3411
      %v3434 = vmax.f32 %v3381, %v3413
      %v3435 = vmax.f32 %v3383, %v3415
      %v3436 = vmax.f32 %v3385, %v3417
      %v3437 = vmax.f32 %v3387, %v3419
      %v3438 = vmax.f32 %v3389, %v3421
      %v3439 = vmax.f32 %v3391, %v3423
      %v3440 = vpack.c.bf16 %v3424, %v3424
      %v3441 = vpack.c.bf16 %v3425, %v3425
      %v3442 = vpack.c.bf16 %v3426, %v3426
      %v3443 = vpack.c.bf16 %v3427, %v3427
      %v3444 = vpack.c.bf16 %v3428, %v3428
      %v3445 = vpack.c.bf16 %v3429, %v3429
      %v3446 = vpack.c.bf16 %v3430, %v3430
      %v3447 = vpack.c.bf16 %v3431, %v3431
      %v3448 = vpack.c.bf16 %v3432, %v3432
      %v3449 = vpack.c.bf16 %v3433, %v3433
      %v3450 = vpack.c.bf16 %v3434, %v3434
      %v3451 = vpack.c.bf16 %v3435, %v3435
      %v3452 = vpack.c.bf16 %v3436, %v3436
      %v3453 = vpack.c.bf16 %v3437, %v3437
      %v3454 = vpack.c.bf16 %v3438, %v3438
      %v3455 = vpack.c.bf16 %v3439, %v3439
      %vm3456 = vcmask 60416
      %3457 = vst.msk [vmem:[%s170] sm:$0xf] %vm3456, %v3440
      %3458 = vst.msk [vmem:[%s170 + $0x4] sm:$0xf] %vm3456, %v3441
      %3459 = vst.msk [vmem:[%s170 + $0x8] sm:$0xf] %vm3456, %v3442
      %3460 = vst.msk [vmem:[%s170 + $0xc] sm:$0xf] %vm3456, %v3443
      %3461 = vst.msk [vmem:[%s170 + $0x10] sm:$0xf] %vm3456, %v3444
      %3462 = vst.msk [vmem:[%s170 + $0x14] sm:$0xf] %vm3456, %v3445
      %3463 = vst.msk [vmem:[%s170 + $0x18] sm:$0xf] %vm3456, %v3446
      %3464 = vst.msk [vmem:[%s170 + $0x1c] sm:$0xf] %vm3456, %v3447
      %3465 = vst.msk [vmem:[%s170 + $0x20] sm:$0xf] %vm3456, %v3448
      %3466 = vst.msk [vmem:[%s170 + $0x24] sm:$0xf] %vm3456, %v3449
      %3467 = vst.msk [vmem:[%s170 + $0x28] sm:$0xf] %vm3456, %v3450
      %3468 = vst.msk [vmem:[%s170 + $0x2c] sm:$0xf] %vm3456, %v3451
      %3469 = vst.msk [vmem:[%s170 + $0x30] sm:$0xf] %vm3456, %v3452
      %3470 = vst.msk [vmem:[%s170 + $0x34] sm:$0xf] %vm3456, %v3453
      %3471 = vst.msk [vmem:[%s170 + $0x38] sm:$0xf] %vm3456, %v3454
      %3472 = vst.msk [vmem:[%s170 + $0x3c] sm:$0xf] %vm3456, %v3455
      %p3473 = scmp.lt.s32.totalorder %s14, 1
      %s3474 = scalar_select %p3473, %s14, 1
      %s3475 = smul.addr %s3474, 16
      %s3476 = smul.addr %s3475, 4
      %s3477 = scalar_lea.vmem %s3, %s3476
      // Predicated region
      $region33: #{vgg_feature_extractor.7} parent=31 // pred_check
        %p3478 = pneg %p100
      $region34: #{vgg_feature_extractor.7} parent=31 // pred_check_branch
        %3480 = sbr.rel (%p3478) target = $region36
      $region35: #{vgg_feature_extractor.7} parent=31 // pred_region
        _
      $region36: #{vgg_feature_extractor.7} parent=31 // pred_fallthru
        _
    $region32: #{vgg_feature_extractor.7} parent=5 // pred_fallthru
      _
    %p3481 = scmp.le.s32.totalorder 2, %s9
    // Predicated region
    $region37: #{vgg_feature_extractor.7} parent=5 // pred_check
      %p3482 = pneg %p3481
    $region38: #{vgg_feature_extractor.7} parent=5 // pred_check_branch
      %3484 = sbr.rel (%p3482) target = $region40
    $region39: #{vgg_feature_extractor.7} parent=5 // pred_region
      %s3485 = ssub.s32 %s9, 2
      // Predicated region
      $region41: #{vgg_feature_extractor.7} parent=39 // pred_check
        %p3486 = pneg %p106
      $region42: #{vgg_feature_extractor.7} parent=39 // pred_check_branch
        %3488 = sbr.rel (%p3486) target = $region44
      $region43: #{vgg_feature_extractor.7} parent=39 // pred_region
        %p3489 = scmp.lt.s32.totalorder %s15, 1
        %s3490 = scalar_select %p3489, %s15, 1
        %s3491 = smul.addr %s3490, 16
        %s3492 = smul.addr %s3491, 4
        %s3493 = scalar_lea.vmem %s3, %s3492
      $region44: #{vgg_feature_extractor.7} parent=39 // pred_fallthru
        _
    $region40: #{vgg_feature_extractor.7} parent=5 // pred_fallthru
      _
  $region6: #{vgg_feature_extractor.7} parent=0 // loop_footer
    %s13 = sadd.s32 1, %s9
  $region7: #{vgg_feature_extractor.7} parent=0 // loop_footer_branch
    %8 = sbr.rel target = $region3
  $region8: #{vgg_feature_extractor.7} parent=0 // loop_exit
    _

</llo_original>
